<compile_context>
chip_gen: v6e
topology: v6e:2x2x1
jax: 0.10.0
libtpu: 0.0.40
codegen_flags: <defaults>
</compile_context>

<pallas_src>
import functools
import math

import jax
import jax.numpy as jnp
import numpy as np
from jax.experimental import pallas as pl
from jax.experimental.pallas import tpu as pltpu

# ----------------------- problem configuration (small) -----------------------
B = 2                        # batch
C_IN = 32                    # in_features (= out_features)
C_HID = 128                  # hidden_features (mlp_ratio = 4) -> lane-dense
C_OUT = C_IN
H_IMG = W_IMG = 16           # spatial grid, so seq_len N = 256
N = H_IMG * W_IMG
PADL = 24                    # per-image halo rows (>= W+1, multiple of 8)
NPAD = PADL + N + PADL       # padded flattened length of one image segment
INV_SQRT2 = float(1.0 / math.sqrt(2.0))


def _erf(z):
    """erf via Abramowitz & Stegun 7.1.26 (max abs err 1.5e-7); exp/mul/add/div only."""
    a1, a2, a3, a4, a5 = 0.254829592, -0.284496736, 1.421413741, -1.453152027, 1.061405429
    p = 0.3275911
    az = jnp.abs(z)
    t = 1.0 / (1.0 + p * az)
    poly = ((((a5 * t + a4) * t + a3) * t + a2) * t + a1) * t
    e = 1.0 - poly * jnp.exp(-az * az)
    return jnp.where(z >= 0.0, e, -e)


# --------------------------------- kernel ------------------------------------
def mixffn_kernel(hid_ref, w1_ref, b1_ref, wdw_ref, bdw_ref, w2_ref, b2_ref,
                  out_ref, pad_ref, *, ips):
    """One grid step processes `ips` images stacked along the row dimension."""
    hp = jax.lax.Precision.HIGHEST

    # dense1: single MXU matmul over all images in this step:
    # (ips*N, C_IN) @ (C_IN, C_HID) + b1 -> lane-dense (ips*N, 128).
    x1 = jnp.dot(hid_ref[...], w1_ref[...],
                 preferred_element_type=jnp.float32, precision=hp) + b1_ref[...]

    # Establish the per-image zero halos and copy the activations into the
    # padded scratch.  Done once per grid step (and hence once per core on the
    # v7x "parallel" split); top/bottom image borders come from the zero halos.
    zero_halo = jnp.zeros((PADL, C_HID), jnp.float32)
    for i in range(ips):
        base = i * NPAD
        pad_ref[base:base + PADL, :] = zero_halo
        pad_ref[base + PADL + N:base + NPAD, :] = zero_halo
        pad_ref[base + PADL:base + PADL + N, :] = x1[i * N:(i + 1) * N, :]

    # Read small parameters once.
    w = wdw_ref[...]            # (9, C_HID): taps laid out as [ky*3 + kx, channel]
    bdw = bdw_ref[...]          # (1, C_HID)
    w2 = w2_ref[...]            # (C_HID, C_OUT)
    b2 = b2_ref[...]            # (1, C_OUT)

    # Column masks kill the row-major wrap-around at the left/right image
    # borders.  Hoisted & broadcast once; reused by every image in the step.
    col = jax.lax.broadcasted_iota(jnp.int32, (N, 1), 0) % W_IMG
    mask_l = jnp.broadcast_to((col >= 1).astype(jnp.float32), (N, C_HID))
    mask_r = jnp.broadcast_to((col <= W_IMG - 2).astype(jnp.float32), (N, C_HID))

    for i in range(ips):
        base = i * NPAD

        def tap(dy, dx):
            t = (dy + 1) * 3 + (dx + 1)
            off = base + PADL + dy * W_IMG + dx
            return pad_ref[off:off + N, :] * w[t:t + 1, :]     # static slices only

        # Group the 9 taps by dx; only the dx = +-1 groups need a wrap mask,
        # and the accumulator is initialized from the unmasked center tap.
        acc = tap(0, 0) + tap(-1, 0) + tap(1, 0)
        acc_l = tap(-1, -1) + tap(0, -1) + tap(1, -1)
        acc_r = tap(-1, 1) + tap(0, 1) + tap(1, 1)
        # dwconv bias folded straight into the GELU input expression.
        y = acc + mask_l * acc_l + mask_r * acc_r + bdw

        # Exact GELU: 0.5 * y * (1 + erf(y / sqrt(2)))   (PyTorch ACT2FN["gelu"])
        act = 0.5 * y * (1.0 + _erf(y * INV_SQRT2))

        # dense2 for this image + static-slice store (keeps live vregs minimal).
        out = jnp.dot(act, w2, preferred_element_type=jnp.float32, precision=hp) + b2
        out_ref[i * N:(i + 1) * N, :] = out


# ------------------------------- wrapper --------------------------------------
def _images_per_step(batch):
    """Whole batch in one grid step on single-TC chips (v5e/v6e); on v7x keep
    two 'parallel' grid steps so both TensorCores get work."""
    try:
        kind = jax.devices()[0].device_kind.lower()
    except Exception:  # pragma: no cover - defensive
        kind = ""
    if ("v7" in kind or "7x" in kind) and batch % 2 == 0:
        return batch // 2
    return batch


def segformer_mix_ffn(hidden, params, images_per_step=None):
    """hidden: [B, N, C_IN] float32 -> [B, N, C_OUT] float32 (eval-mode forward)."""
    Bq, Nq, Ci = hidden.shape
    assert (Nq, Ci) == (N, C_IN)
    ips = images_per_step if images_per_step is not None else _images_per_step(Bq)
    assert Bq % ips == 0
    steps = Bq // ips

    hid2d = hidden.reshape(Bq * N, C_IN)      # free contiguous view in HBM

    full = lambda shape: pl.BlockSpec(shape, lambda b: (0,) * len(shape))

    out2d = pl.pallas_call(
        functools.partial(mixffn_kernel, ips=ips),
        out_shape=jax.ShapeDtypeStruct((Bq * N, C_OUT), jnp.float32),
        grid_spec=pltpu.PrefetchScalarGridSpec(
            num_scalar_prefetch=0,
            grid=(steps,),
            in_specs=[
                pl.BlockSpec((ips * N, C_IN), lambda b: (b, 0)),  # hidden_states
                full((C_IN, C_HID)),    # w1
                full((1, C_HID)),       # b1
                full((9, C_HID)),       # dwconv taps: [ky*3 + kx, channel]
                full((1, C_HID)),       # dwconv bias
                full((C_HID, C_OUT)),   # w2
                full((1, C_OUT)),       # b2
            ],
            out_specs=pl.BlockSpec((ips * N, C_OUT), lambda b: (b, 0)),
            scratch_shapes=[pltpu.VMEM((ips * NPAD, C_HID), jnp.float32)],
        ),
        compiler_params=pltpu.CompilerParams(dimension_semantics=("parallel",)),
    )(hid2d, params["w1"], params["b1"], params["wdw_taps"], params["b_dw"],
      params["w2"], params["b2"])

    return out2d.reshape(Bq, N, C_OUT)


# ------------------------------ pure-JAX reference -----------------------------
def reference(hidden, params):
    hp = jax.lax.Precision.HIGHEST
    Bq = hidden.shape[0]
    x = jnp.matmul(hidden, params["w1"], precision=hp) + params["b1"]          # (B, N, C_HID)
    img = jnp.transpose(x, (0, 2, 1)).reshape(Bq, C_HID, H_IMG, W_IMG)         # NCHW
    y = jax.lax.conv_general_dilated(
        img, params["w_dw4"], window_strides=(1, 1), padding=((1, 1), (1, 1)),
        dimension_numbers=("NCHW", "OIHW", "NCHW"),
        feature_group_count=C_HID, precision=hp)
    y = y + params["b_dw"].reshape(1, C_HID, 1, 1)
    y = jnp.transpose(y.reshape(Bq, C_HID, N), (0, 2, 1))                      # (B, N, C_HID)
    y = 0.5 * y * (1.0 + jax.lax.erf(y * INV_SQRT2))                           # exact GELU
    return jnp.matmul(y, params["w2"], precision=hp) + params["b2"]


# ---------------------------------- main ---------------------------------------
if __name__ == "__main__":
    key = jax.random.PRNGKey(0)
    ks = jax.random.split(key, 7)

    # Deterministic synthetic parameters. Linear weights stored as (in, out); y = x @ W + b.
    w1 = jax.random.normal(ks[0], (C_IN, C_HID), jnp.float32) * 0.05
    b1 = jax.random.normal(ks[1], (1, C_HID), jnp.float32) * 0.01
    # Depthwise conv weight in PyTorch layout (C_HID, 1, 3, 3) and bias.
    w_dw4 = jax.random.normal(ks[2], (C_HID, 1, 3, 3), jnp.float32) * 0.1
    b_dw = jax.random.normal(ks[3], (1, C_HID), jnp.float32) * 0.01
    w2 = jax.random.normal(ks[4], (C_HID, C_OUT), jnp.float32) * 0.05
    b2 = jax.random.normal(ks[5], (1, C_OUT), jnp.float32) * 0.01
    # Flatten taps for the kernel: wdw_taps[ky*3 + kx, c] = w_dw4[c, 0, ky, kx].
    wdw_taps = jnp.transpose(w_dw4.reshape(C_HID, 9), (1, 0))

    params = dict(w1=w1, b1=b1, w_dw4=w_dw4, wdw_taps=wdw_taps, b_dw=b_dw,
                  w2=w2, b2=b2)

    hidden = jax.random.normal(ks[6], (B, N, C_IN), jnp.float32)

    out = jax.block_until_ready(segformer_mix_ffn(hidden, params))
    ref = jax.block_until_ready(reference(hidden, params))
    np.testing.assert_allclose(np.asarray(out), np.asarray(ref), rtol=1e-4, atol=1e-4)

    print("KERNEL_OK")
</pallas_src>

<mosaic_0001>
module attributes {stable_mosaic.version = 11 : i64} {
  func.func @mixffn_kernel(%arg0: i32, %arg1: memref<512x32xf32, #tpu.memory_space<vmem>>, %arg2: memref<32x128xf32, #tpu.memory_space<vmem>>, %arg3: memref<1x128xf32, #tpu.memory_space<vmem>>, %arg4: memref<9x128xf32, #tpu.memory_space<vmem>>, %arg5: memref<1x128xf32, #tpu.memory_space<vmem>>, %arg6: memref<128x32xf32, #tpu.memory_space<vmem>>, %arg7: memref<1x32xf32, #tpu.memory_space<vmem>>, %arg8: memref<512x32xf32, #tpu.memory_space<vmem>>, %arg9: memref<608x128xf32, #tpu.memory_space<vmem>>) attributes {dimension_semantics = [#tpu.dimension_semantics<parallel>], iteration_bounds = array<i64: 1>, scalar_prefetch = 0 : i64, scratch_operands = 1 : i64, tpu.core_type = #tpu.core_type<tc>, window_params = [{transform_indices = @transform_0, window_bounds = array<i64: 512, 32>}, {pipeline_mode = #tpu.pipeline_mode<synchronous>, transform_indices = @transform_1, window_bounds = array<i64: 32, 128>}, {pipeline_mode = #tpu.pipeline_mode<synchronous>, transform_indices = @transform_2, window_bounds = array<i64: 1, 128>}, {pipeline_mode = #tpu.pipeline_mode<synchronous>, transform_indices = @transform_3, window_bounds = array<i64: 9, 128>}, {pipeline_mode = #tpu.pipeline_mode<synchronous>, transform_indices = @transform_4, window_bounds = array<i64: 1, 128>}, {pipeline_mode = #tpu.pipeline_mode<synchronous>, transform_indices = @transform_5, window_bounds = array<i64: 128, 32>}, {pipeline_mode = #tpu.pipeline_mode<synchronous>, transform_indices = @transform_6, window_bounds = array<i64: 1, 32>}, {transform_indices = @transform_7, window_bounds = array<i64: 512, 32>}]} {
    %c0 = arith.constant 0 : index
    %c0_0 = arith.constant 0 : index
    %0 = vector.load %arg1[%c0, %c0_0] : memref<512x32xf32, #tpu.memory_space<vmem>>, vector<512x32xf32>
    %c0_1 = arith.constant 0 : index
    %c0_2 = arith.constant 0 : index
    %1 = vector.load %arg2[%c0_1, %c0_2] : memref<32x128xf32, #tpu.memory_space<vmem>>, vector<32x128xf32>
    %cst = arith.constant dense<0.000000e+00> : vector<512x128xf32>
    %2 = tpu.matmul %0, %1, %cst {dimension_numbers = #tpu.dot_dimension_numbers<[1], [0], [0], [1], [0, 0, 1, 1], [], []>, precision = #tpu.contract_precision<fp32>} : vector<512x32xf32>, vector<32x128xf32>, vector<512x128xf32> -> vector<512x128xf32>
    %c0_3 = arith.constant 0 : index
    %c0_4 = arith.constant 0 : index
    %3 = vector.load %arg3[%c0_3, %c0_4] : memref<1x128xf32, #tpu.memory_space<vmem>>, vector<1x128xf32>
    %4 = vector.broadcast %3 : vector<1x128xf32> to vector<512x128xf32>
    %5 = arith.addf %2, %4 : vector<512x128xf32>
    %cst_5 = arith.constant 0.000000e+00 : f32
    %6 = vector.broadcast %cst_5 : f32 to vector<24x128xf32>
    %c0_6 = arith.constant 0 : index
    %c0_7 = arith.constant 0 : index
    %7 = vector.load %arg9[%c0_6, %c0_7] : memref<608x128xf32, #tpu.memory_space<vmem>>, vector<24x128xf32>
    tpu.vector_store %arg9[%c0_6, %c0_7], %6 {strides = array<i32>} : memref<608x128xf32, #tpu.memory_space<vmem>>, vector<24x128xf32>,
    %c280 = arith.constant 280 : index
    %c0_8 = arith.constant 0 : index
    %8 = vector.load %arg9[%c280, %c0_8] : memref<608x128xf32, #tpu.memory_space<vmem>>, vector<24x128xf32>
    tpu.vector_store %arg9[%c280, %c0_8], %6 {strides = array<i32>} : memref<608x128xf32, #tpu.memory_space<vmem>>, vector<24x128xf32>,
    %9 = vector.extract_strided_slice %5 {offsets = [0, 0], sizes = [256, 128], strides = [1, 1]} : vector<512x128xf32> to vector<256x128xf32>
    %c24 = arith.constant 24 : index
    %c0_9 = arith.constant 0 : index
    %10 = vector.load %arg9[%c24, %c0_9] : memref<608x128xf32, #tpu.memory_space<vmem>>, vector<256x128xf32>
    tpu.vector_store %arg9[%c24, %c0_9], %9 {strides = array<i32>} : memref<608x128xf32, #tpu.memory_space<vmem>>, vector<256x128xf32>,
    %c304 = arith.constant 304 : index
    %c0_10 = arith.constant 0 : index
    %11 = vector.load %arg9[%c304, %c0_10] : memref<608x128xf32, #tpu.memory_space<vmem>>, vector<24x128xf32>
    tpu.vector_store %arg9[%c304, %c0_10], %6 {strides = array<i32>} : memref<608x128xf32, #tpu.memory_space<vmem>>, vector<24x128xf32>,
    %c584 = arith.constant 584 : index
    %c0_11 = arith.constant 0 : index
    %12 = vector.load %arg9[%c584, %c0_11] : memref<608x128xf32, #tpu.memory_space<vmem>>, vector<24x128xf32>
    tpu.vector_store %arg9[%c584, %c0_11], %6 {strides = array<i32>} : memref<608x128xf32, #tpu.memory_space<vmem>>, vector<24x128xf32>,
    %13 = vector.extract_strided_slice %5 {offsets = [256, 0], sizes = [256, 128], strides = [1, 1]} : vector<512x128xf32> to vector<256x128xf32>
    %c328 = arith.constant 328 : index
    %c0_12 = arith.constant 0 : index
    %14 = vector.load %arg9[%c328, %c0_12] : memref<608x128xf32, #tpu.memory_space<vmem>>, vector<256x128xf32>
    tpu.vector_store %arg9[%c328, %c0_12], %13 {strides = array<i32>} : memref<608x128xf32, #tpu.memory_space<vmem>>, vector<256x128xf32>,
    %c0_13 = arith.constant 0 : index
    %c0_14 = arith.constant 0 : index
    %15 = vector.load %arg4[%c0_13, %c0_14] : memref<9x128xf32, #tpu.memory_space<vmem>>, vector<9x128xf32>
    %c0_15 = arith.constant 0 : index
    %c0_16 = arith.constant 0 : index
    %16 = vector.load %arg5[%c0_15, %c0_16] : memref<1x128xf32, #tpu.memory_space<vmem>>, vector<1x128xf32>
    %c0_17 = arith.constant 0 : index
    %c0_18 = arith.constant 0 : index
    %17 = vector.load %arg6[%c0_17, %c0_18] : memref<128x32xf32, #tpu.memory_space<vmem>>, vector<128x32xf32>
    %c0_19 = arith.constant 0 : index
    %c0_20 = arith.constant 0 : index
    %18 = vector.load %arg7[%c0_19, %c0_20] : memref<1x32xf32, #tpu.memory_space<vmem>>, vector<1x32xf32>
    %19 = tpu.iota {dimensions = array<i32: 0>} : vector<256x1xi32>
    %c16_i32 = arith.constant 16 : i32
    %c0_i32 = arith.constant 0 : i32
    %20 = arith.cmpi eq, %c16_i32, %c0_i32 : i32
    %c1_i32 = arith.constant 1 : i32
    %21 = arith.select %20, %c1_i32, %c16_i32 : i32
    %22 = vector.broadcast %21 : i32 to vector<256x1xi32>
    %23 = arith.remsi %19, %22 : vector<256x1xi32>
    %c0_i32_21 = arith.constant 0 : i32
    %24 = vector.broadcast %c0_i32_21 : i32 to vector<256x1xi32>
    %25 = arith.cmpi ne, %23, %24 : vector<256x1xi32>
    %c0_i32_22 = arith.constant 0 : i32
    %26 = vector.broadcast %c0_i32_22 : i32 to vector<256x1xi32>
    %27 = arith.cmpi slt, %23, %26 : vector<256x1xi32>
    %c0_i32_23 = arith.constant 0 : i32
    %28 = arith.cmpi slt, %21, %c0_i32_23 : i32
    %29 = vector.broadcast %28 : i1 to vector<256x1xi1>
    %30 = vector.broadcast %29 : vector<256x1xi1> to vector<256x1xi1>
    %31 = arith.xori %27, %30 : vector<256x1xi1>
    %32 = arith.andi %31, %25 : vector<256x1xi1>
    %33 = vector.broadcast %21 : i32 to vector<256x1xi32>
    %34 = arith.addi %23, %33 : vector<256x1xi32>
    %35 = arith.select %32, %34, %23 : vector<256x1xi1>, vector<256x1xi32>
    %c1_i32_24 = arith.constant 1 : i32
    %36 = vector.broadcast %c1_i32_24 : i32 to vector<256x1xi32>
    %37 = arith.cmpi sge, %35, %36 : vector<256x1xi32>
    %38 = arith.extui %37 : vector<256x1xi1> to vector<256x1xi32>
    %39 = arith.sitofp %38 : vector<256x1xi32> to vector<256x1xf32>
    %40 = vector.shape_cast %39 : vector<256x1xf32> to vector<256x1xf32>
    %41 = vector.broadcast %40 : vector<256x1xf32> to vector<256x128xf32>
    %c14_i32 = arith.constant 14 : i32
    %42 = vector.broadcast %c14_i32 : i32 to vector<256x1xi32>
    %43 = arith.cmpi sle, %35, %42 : vector<256x1xi32>
    %44 = arith.extui %43 : vector<256x1xi1> to vector<256x1xi32>
    %45 = arith.sitofp %44 : vector<256x1xi32> to vector<256x1xf32>
    %46 = vector.shape_cast %45 : vector<256x1xf32> to vector<256x1xf32>
    %47 = vector.broadcast %46 : vector<256x1xf32> to vector<256x128xf32>
    %c24_25 = arith.constant 24 : index
    %c0_26 = arith.constant 0 : index
    %48 = vector.load %arg9[%c24_25, %c0_26] : memref<608x128xf32, #tpu.memory_space<vmem>>, vector<256x128xf32>
    %49 = vector.extract_strided_slice %15 {offsets = [4, 0], sizes = [1, 128], strides = [1, 1]} : vector<9x128xf32> to vector<1x128xf32>
    %50 = vector.broadcast %49 : vector<1x128xf32> to vector<256x128xf32>
    %51 = arith.mulf %48, %50 : vector<256x128xf32>
    %c8 = arith.constant 8 : index
    %c0_27 = arith.constant 0 : index
    %52 = vector.load %arg9[%c8, %c0_27] : memref<608x128xf32, #tpu.memory_space<vmem>>, vector<256x128xf32>
    %53 = vector.extract_strided_slice %15 {offsets = [1, 0], sizes = [1, 128], strides = [1, 1]} : vector<9x128xf32> to vector<1x128xf32>
    %54 = vector.broadcast %53 : vector<1x128xf32> to vector<256x128xf32>
    %55 = arith.mulf %52, %54 : vector<256x128xf32>
    %56 = arith.addf %51, %55 : vector<256x128xf32>
    %c40 = arith.constant 40 : index
    %c0_28 = arith.constant 0 : index
    %57 = vector.load %arg9[%c40, %c0_28] : memref<608x128xf32, #tpu.memory_space<vmem>>, vector<256x128xf32>
    %58 = vector.extract_strided_slice %15 {offsets = [7, 0], sizes = [1, 128], strides = [1, 1]} : vector<9x128xf32> to vector<1x128xf32>
    %59 = vector.broadcast %58 : vector<1x128xf32> to vector<256x128xf32>
    %60 = arith.mulf %57, %59 : vector<256x128xf32>
    %61 = arith.addf %56, %60 : vector<256x128xf32>
    %c7 = arith.constant 7 : index
    %c0_29 = arith.constant 0 : index
    %62 = vector.load %arg9[%c7, %c0_29] : memref<608x128xf32, #tpu.memory_space<vmem>>, vector<256x128xf32>
    %63 = vector.extract_strided_slice %15 {offsets = [0, 0], sizes = [1, 128], strides = [1, 1]} : vector<9x128xf32> to vector<1x128xf32>
    %64 = vector.broadcast %63 : vector<1x128xf32> to vector<256x128xf32>
    %65 = arith.mulf %62, %64 : vector<256x128xf32>
    %c23 = arith.constant 23 : index
    %c0_30 = arith.constant 0 : index
    %66 = vector.load %arg9[%c23, %c0_30] : memref<608x128xf32, #tpu.memory_space<vmem>>, vector<256x128xf32>
    %67 = vector.extract_strided_slice %15 {offsets = [3, 0], sizes = [1, 128], strides = [1, 1]} : vector<9x128xf32> to vector<1x128xf32>
    %68 = vector.broadcast %67 : vector<1x128xf32> to vector<256x128xf32>
    %69 = arith.mulf %66, %68 : vector<256x128xf32>
    %70 = arith.addf %65, %69 : vector<256x128xf32>
    %c39 = arith.constant 39 : index
    %c0_31 = arith.constant 0 : index
    %71 = vector.load %arg9[%c39, %c0_31] : memref<608x128xf32, #tpu.memory_space<vmem>>, vector<256x128xf32>
    %72 = vector.extract_strided_slice %15 {offsets = [6, 0], sizes = [1, 128], strides = [1, 1]} : vector<9x128xf32> to vector<1x128xf32>
    %73 = vector.broadcast %72 : vector<1x128xf32> to vector<256x128xf32>
    %74 = arith.mulf %71, %73 : vector<256x128xf32>
    %75 = arith.addf %70, %74 : vector<256x128xf32>
    %c9 = arith.constant 9 : index
    %c0_32 = arith.constant 0 : index
    %76 = vector.load %arg9[%c9, %c0_32] : memref<608x128xf32, #tpu.memory_space<vmem>>, vector<256x128xf32>
    %77 = vector.extract_strided_slice %15 {offsets = [2, 0], sizes = [1, 128], strides = [1, 1]} : vector<9x128xf32> to vector<1x128xf32>
    %78 = vector.broadcast %77 : vector<1x128xf32> to vector<256x128xf32>
    %79 = arith.mulf %76, %78 : vector<256x128xf32>
    %c25 = arith.constant 25 : index
    %c0_33 = arith.constant 0 : index
    %80 = vector.load %arg9[%c25, %c0_33] : memref<608x128xf32, #tpu.memory_space<vmem>>, vector<256x128xf32>
    %81 = vector.extract_strided_slice %15 {offsets = [5, 0], sizes = [1, 128], strides = [1, 1]} : vector<9x128xf32> to vector<1x128xf32>
    %82 = vector.broadcast %81 : vector<1x128xf32> to vector<256x128xf32>
    %83 = arith.mulf %80, %82 : vector<256x128xf32>
    %84 = arith.addf %79, %83 : vector<256x128xf32>
    %c41 = arith.constant 41 : index
    %c0_34 = arith.constant 0 : index
    %85 = vector.load %arg9[%c41, %c0_34] : memref<608x128xf32, #tpu.memory_space<vmem>>, vector<256x128xf32>
    %86 = vector.extract_strided_slice %15 {offsets = [8, 0], sizes = [1, 128], strides = [1, 1]} : vector<9x128xf32> to vector<1x128xf32>
    %87 = vector.broadcast %86 : vector<1x128xf32> to vector<256x128xf32>
    %88 = arith.mulf %85, %87 : vector<256x128xf32>
    %89 = arith.addf %84, %88 : vector<256x128xf32>
    %90 = arith.mulf %41, %75 : vector<256x128xf32>
    %91 = arith.addf %61, %90 : vector<256x128xf32>
    %92 = arith.mulf %47, %89 : vector<256x128xf32>
    %93 = arith.addf %91, %92 : vector<256x128xf32>
    %94 = vector.broadcast %16 : vector<1x128xf32> to vector<256x128xf32>
    %95 = arith.addf %93, %94 : vector<256x128xf32>
    %cst_35 = arith.constant 5.000000e-01 : f32
    %96 = vector.broadcast %cst_35 : f32 to vector<256x128xf32>
    %97 = arith.mulf %96, %95 : vector<256x128xf32>
    %cst_36 = arith.constant 0.707106769 : f32
    %98 = vector.broadcast %cst_36 : f32 to vector<256x128xf32>
    %99 = arith.mulf %95, %98 : vector<256x128xf32>
    %100 = math.absf %99 : vector<256x128xf32>
    %cst_37 = arith.constant 0.327591091 : f32
    %101 = vector.broadcast %cst_37 : f32 to vector<256x128xf32>
    %102 = arith.mulf %101, %100 : vector<256x128xf32>
    %cst_38 = arith.constant 1.000000e+00 : f32
    %103 = vector.broadcast %cst_38 : f32 to vector<256x128xf32>
    %104 = arith.addf %103, %102 : vector<256x128xf32>
    %cst_39 = arith.constant 1.000000e+00 : f32
    %105 = vector.broadcast %cst_39 : f32 to vector<256x128xf32>
    %106 = arith.divf %105, %104 : vector<256x128xf32>
    %cst_40 = arith.constant 1.06140542 : f32
    %107 = vector.broadcast %cst_40 : f32 to vector<256x128xf32>
    %108 = arith.mulf %107, %106 : vector<256x128xf32>
    %cst_41 = arith.constant -1.45315206 : f32
    %109 = vector.broadcast %cst_41 : f32 to vector<256x128xf32>
    %110 = arith.addf %108, %109 : vector<256x128xf32>
    %111 = arith.mulf %110, %106 : vector<256x128xf32>
    %cst_42 = arith.constant 1.42141378 : f32
    %112 = vector.broadcast %cst_42 : f32 to vector<256x128xf32>
    %113 = arith.addf %111, %112 : vector<256x128xf32>
    %114 = arith.mulf %113, %106 : vector<256x128xf32>
    %cst_43 = arith.constant -0.284496725 : f32
    %115 = vector.broadcast %cst_43 : f32 to vector<256x128xf32>
    %116 = arith.addf %114, %115 : vector<256x128xf32>
    %117 = arith.mulf %116, %106 : vector<256x128xf32>
    %cst_44 = arith.constant 0.254829586 : f32
    %118 = vector.broadcast %cst_44 : f32 to vector<256x128xf32>
    %119 = arith.addf %117, %118 : vector<256x128xf32>
    %120 = arith.mulf %119, %106 : vector<256x128xf32>
    %cst_45 = arith.constant 0.000000e+00 : f32
    %121 = vector.broadcast %cst_45 : f32 to vector<256x128xf32>
    %122 = arith.subf %121, %100 : vector<256x128xf32>
    %123 = arith.mulf %122, %100 : vector<256x128xf32>
    %124 = math.exp %123 : vector<256x128xf32>
    %125 = arith.mulf %120, %124 : vector<256x128xf32>
    %cst_46 = arith.constant 1.000000e+00 : f32
    %126 = vector.broadcast %cst_46 : f32 to vector<256x128xf32>
    %127 = arith.subf %126, %125 : vector<256x128xf32>
    %cst_47 = arith.constant 0.000000e+00 : f32
    %128 = vector.broadcast %cst_47 : f32 to vector<256x128xf32>
    %129 = arith.cmpf oge, %99, %128 : vector<256x128xf32>
    %cst_48 = arith.constant 0.000000e+00 : f32
    %130 = vector.broadcast %cst_48 : f32 to vector<256x128xf32>
    %131 = arith.subf %130, %127 : vector<256x128xf32>
    %132 = arith.select %129, %127, %131 : vector<256x128xi1>, vector<256x128xf32>
    %cst_49 = arith.constant 1.000000e+00 : f32
    %133 = vector.broadcast %cst_49 : f32 to vector<256x128xf32>
    %134 = arith.addf %133, %132 : vector<256x128xf32>
    %135 = arith.mulf %97, %134 : vector<256x128xf32>
    %cst_50 = arith.constant dense<0.000000e+00> : vector<256x32xf32>
    %136 = tpu.matmul %135, %17, %cst_50 {dimension_numbers = #tpu.dot_dimension_numbers<[1], [0], [0], [1], [0, 0, 1, 1], [], []>, precision = #tpu.contract_precision<fp32>} : vector<256x128xf32>, vector<128x32xf32>, vector<256x32xf32> -> vector<256x32xf32>
    %137 = vector.broadcast %18 : vector<1x32xf32> to vector<256x32xf32>
    %138 = arith.addf %136, %137 : vector<256x32xf32>
    %c0_51 = arith.constant 0 : index
    %c0_52 = arith.constant 0 : index
    %139 = vector.load %arg8[%c0_51, %c0_52] : memref<512x32xf32, #tpu.memory_space<vmem>>, vector<256x32xf32>
    tpu.vector_store %arg8[%c0_51, %c0_52], %138 {strides = array<i32>} : memref<512x32xf32, #tpu.memory_space<vmem>>, vector<256x32xf32>,
    %c328_53 = arith.constant 328 : index
    %c0_54 = arith.constant 0 : index
    %140 = vector.load %arg9[%c328_53, %c0_54] : memref<608x128xf32, #tpu.memory_space<vmem>>, vector<256x128xf32>
    %141 = vector.extract_strided_slice %15 {offsets = [4, 0], sizes = [1, 128], strides = [1, 1]} : vector<9x128xf32> to vector<1x128xf32>
    %142 = vector.broadcast %141 : vector<1x128xf32> to vector<256x128xf32>
    %143 = arith.mulf %140, %142 : vector<256x128xf32>
    %c312 = arith.constant 312 : index
    %c0_55 = arith.constant 0 : index
    %144 = vector.load %arg9[%c312, %c0_55] : memref<608x128xf32, #tpu.memory_space<vmem>>, vector<256x128xf32>
    %145 = vector.extract_strided_slice %15 {offsets = [1, 0], sizes = [1, 128], strides = [1, 1]} : vector<9x128xf32> to vector<1x128xf32>
    %146 = vector.broadcast %145 : vector<1x128xf32> to vector<256x128xf32>
    %147 = arith.mulf %144, %146 : vector<256x128xf32>
    %148 = arith.addf %143, %147 : vector<256x128xf32>
    %c344 = arith.constant 344 : index
    %c0_56 = arith.constant 0 : index
    %149 = vector.load %arg9[%c344, %c0_56] : memref<608x128xf32, #tpu.memory_space<vmem>>, vector<256x128xf32>
    %150 = vector.extract_strided_slice %15 {offsets = [7, 0], sizes = [1, 128], strides = [1, 1]} : vector<9x128xf32> to vector<1x128xf32>
    %151 = vector.broadcast %150 : vector<1x128xf32> to vector<256x128xf32>
    %152 = arith.mulf %149, %151 : vector<256x128xf32>
    %153 = arith.addf %148, %152 : vector<256x128xf32>
    %c311 = arith.constant 311 : index
    %c0_57 = arith.constant 0 : index
    %154 = vector.load %arg9[%c311, %c0_57] : memref<608x128xf32, #tpu.memory_space<vmem>>, vector<256x128xf32>
    %155 = vector.extract_strided_slice %15 {offsets = [0, 0], sizes = [1, 128], strides = [1, 1]} : vector<9x128xf32> to vector<1x128xf32>
    %156 = vector.broadcast %155 : vector<1x128xf32> to vector<256x128xf32>
    %157 = arith.mulf %154, %156 : vector<256x128xf32>
    %c327 = arith.constant 327 : index
    %c0_58 = arith.constant 0 : index
    %158 = vector.load %arg9[%c327, %c0_58] : memref<608x128xf32, #tpu.memory_space<vmem>>, vector<256x128xf32>
    %159 = vector.extract_strided_slice %15 {offsets = [3, 0], sizes = [1, 128], strides = [1, 1]} : vector<9x128xf32> to vector<1x128xf32>
    %160 = vector.broadcast %159 : vector<1x128xf32> to vector<256x128xf32>
    %161 = arith.mulf %158, %160 : vector<256x128xf32>
    %162 = arith.addf %157, %161 : vector<256x128xf32>
    %c343 = arith.constant 343 : index
    %c0_59 = arith.constant 0 : index
    %163 = vector.load %arg9[%c343, %c0_59] : memref<608x128xf32, #tpu.memory_space<vmem>>, vector<256x128xf32>
    %164 = vector.extract_strided_slice %15 {offsets = [6, 0], sizes = [1, 128], strides = [1, 1]} : vector<9x128xf32> to vector<1x128xf32>
    %165 = vector.broadcast %164 : vector<1x128xf32> to vector<256x128xf32>
    %166 = arith.mulf %163, %165 : vector<256x128xf32>
    %167 = arith.addf %162, %166 : vector<256x128xf32>
    %c313 = arith.constant 313 : index
    %c0_60 = arith.constant 0 : index
    %168 = vector.load %arg9[%c313, %c0_60] : memref<608x128xf32, #tpu.memory_space<vmem>>, vector<256x128xf32>
    %169 = vector.extract_strided_slice %15 {offsets = [2, 0], sizes = [1, 128], strides = [1, 1]} : vector<9x128xf32> to vector<1x128xf32>
    %170 = vector.broadcast %169 : vector<1x128xf32> to vector<256x128xf32>
    %171 = arith.mulf %168, %170 : vector<256x128xf32>
    %c329 = arith.constant 329 : index
    %c0_61 = arith.constant 0 : index
    %172 = vector.load %arg9[%c329, %c0_61] : memref<608x128xf32, #tpu.memory_space<vmem>>, vector<256x128xf32>
    %173 = vector.extract_strided_slice %15 {offsets = [5, 0], sizes = [1, 128], strides = [1, 1]} : vector<9x128xf32> to vector<1x128xf32>
    %174 = vector.broadcast %173 : vector<1x128xf32> to vector<256x128xf32>
    %175 = arith.mulf %172, %174 : vector<256x128xf32>
    %176 = arith.addf %171, %175 : vector<256x128xf32>
    %c345 = arith.constant 345 : index
    %c0_62 = arith.constant 0 : index
    %177 = vector.load %arg9[%c345, %c0_62] : memref<608x128xf32, #tpu.memory_space<vmem>>, vector<256x128xf32>
    %178 = vector.extract_strided_slice %15 {offsets = [8, 0], sizes = [1, 128], strides = [1, 1]} : vector<9x128xf32> to vector<1x128xf32>
    %179 = vector.broadcast %178 : vector<1x128xf32> to vector<256x128xf32>
    %180 = arith.mulf %177, %179 : vector<256x128xf32>
    %181 = arith.addf %176, %180 : vector<256x128xf32>
    %182 = arith.mulf %41, %167 : vector<256x128xf32>
    %183 = arith.addf %153, %182 : vector<256x128xf32>
    %184 = arith.mulf %47, %181 : vector<256x128xf32>
    %185 = arith.addf %183, %184 : vector<256x128xf32>
    %186 = vector.broadcast %16 : vector<1x128xf32> to vector<256x128xf32>
    %187 = arith.addf %185, %186 : vector<256x128xf32>
    %cst_63 = arith.constant 5.000000e-01 : f32
    %188 = vector.broadcast %cst_63 : f32 to vector<256x128xf32>
    %189 = arith.mulf %188, %187 : vector<256x128xf32>
    %cst_64 = arith.constant 0.707106769 : f32
    %190 = vector.broadcast %cst_64 : f32 to vector<256x128xf32>
    %191 = arith.mulf %187, %190 : vector<256x128xf32>
    %192 = math.absf %191 : vector<256x128xf32>
    %cst_65 = arith.constant 0.327591091 : f32
    %193 = vector.broadcast %cst_65 : f32 to vector<256x128xf32>
    %194 = arith.mulf %193, %192 : vector<256x128xf32>
    %cst_66 = arith.constant 1.000000e+00 : f32
    %195 = vector.broadcast %cst_66 : f32 to vector<256x128xf32>
    %196 = arith.addf %195, %194 : vector<256x128xf32>
    %cst_67 = arith.constant 1.000000e+00 : f32
    %197 = vector.broadcast %cst_67 : f32 to vector<256x128xf32>
    %198 = arith.divf %197, %196 : vector<256x128xf32>
    %cst_68 = arith.constant 1.06140542 : f32
    %199 = vector.broadcast %cst_68 : f32 to vector<256x128xf32>
    %200 = arith.mulf %199, %198 : vector<256x128xf32>
    %cst_69 = arith.constant -1.45315206 : f32
    %201 = vector.broadcast %cst_69 : f32 to vector<256x128xf32>
    %202 = arith.addf %200, %201 : vector<256x128xf32>
    %203 = arith.mulf %202, %198 : vector<256x128xf32>
    %cst_70 = arith.constant 1.42141378 : f32
    %204 = vector.broadcast %cst_70 : f32 to vector<256x128xf32>
    %205 = arith.addf %203, %204 : vector<256x128xf32>
    %206 = arith.mulf %205, %198 : vector<256x128xf32>
    %cst_71 = arith.constant -0.284496725 : f32
    %207 = vector.broadcast %cst_71 : f32 to vector<256x128xf32>
    %208 = arith.addf %206, %207 : vector<256x128xf32>
    %209 = arith.mulf %208, %198 : vector<256x128xf32>
    %cst_72 = arith.constant 0.254829586 : f32
    %210 = vector.broadcast %cst_72 : f32 to vector<256x128xf32>
    %211 = arith.addf %209, %210 : vector<256x128xf32>
    %212 = arith.mulf %211, %198 : vector<256x128xf32>
    %cst_73 = arith.constant 0.000000e+00 : f32
    %213 = vector.broadcast %cst_73 : f32 to vector<256x128xf32>
    %214 = arith.subf %213, %192 : vector<256x128xf32>
    %215 = arith.mulf %214, %192 : vector<256x128xf32>
    %216 = math.exp %215 : vector<256x128xf32>
    %217 = arith.mulf %212, %216 : vector<256x128xf32>
    %cst_74 = arith.constant 1.000000e+00 : f32
    %218 = vector.broadcast %cst_74 : f32 to vector<256x128xf32>
    %219 = arith.subf %218, %217 : vector<256x128xf32>
    %cst_75 = arith.constant 0.000000e+00 : f32
    %220 = vector.broadcast %cst_75 : f32 to vector<256x128xf32>
    %221 = arith.cmpf oge, %191, %220 : vector<256x128xf32>
    %cst_76 = arith.constant 0.000000e+00 : f32
    %222 = vector.broadcast %cst_76 : f32 to vector<256x128xf32>
    %223 = arith.subf %222, %219 : vector<256x128xf32>
    %224 = arith.select %221, %219, %223 : vector<256x128xi1>, vector<256x128xf32>
    %cst_77 = arith.constant 1.000000e+00 : f32
    %225 = vector.broadcast %cst_77 : f32 to vector<256x128xf32>
    %226 = arith.addf %225, %224 : vector<256x128xf32>
    %227 = arith.mulf %189, %226 : vector<256x128xf32>
    %cst_78 = arith.constant dense<0.000000e+00> : vector<256x32xf32>
    %228 = tpu.matmul %227, %17, %cst_78 {dimension_numbers = #tpu.dot_dimension_numbers<[1], [0], [0], [1], [0, 0, 1, 1], [], []>, precision = #tpu.contract_precision<fp32>} : vector<256x128xf32>, vector<128x32xf32>, vector<256x32xf32> -> vector<256x32xf32>
    %229 = vector.broadcast %18 : vector<1x32xf32> to vector<256x32xf32>
    %230 = arith.addf %228, %229 : vector<256x32xf32>
    %c256 = arith.constant 256 : index
    %c0_79 = arith.constant 0 : index
    %231 = vector.load %arg8[%c256, %c0_79] : memref<512x32xf32, #tpu.memory_space<vmem>>, vector<256x32xf32>
    tpu.vector_store %arg8[%c256, %c0_79], %230 {strides = array<i32>} : memref<512x32xf32, #tpu.memory_space<vmem>>, vector<256x32xf32>,
    return
  }
  func.func @transform_0(%arg0: i32) -> (i32, i32) {
    %c0_i32 = arith.constant 0 : i32
    %c0_i32_0 = arith.constant 0 : i32
    return %arg0, %c0_i32 : i32, i32
  }
  func.func @transform_1(%arg0: i32) -> (i32, i32) {
    %c0_i32 = arith.constant 0 : i32
    %c0_i32_0 = arith.constant 0 : i32
    %c0_i32_1 = arith.constant 0 : i32
    return %c0_i32, %c0_i32_0 : i32, i32
  }
  func.func @transform_2(%arg0: i32) -> (i32, i32) {
    %c0_i32 = arith.constant 0 : i32
    %c0_i32_0 = arith.constant 0 : i32
    %c0_i32_1 = arith.constant 0 : i32
    return %c0_i32, %c0_i32_0 : i32, i32
  }
  func.func @transform_3(%arg0: i32) -> (i32, i32) {
    %c0_i32 = arith.constant 0 : i32
    %c0_i32_0 = arith.constant 0 : i32
    %c0_i32_1 = arith.constant 0 : i32
    return %c0_i32, %c0_i32_0 : i32, i32
  }
  func.func @transform_4(%arg0: i32) -> (i32, i32) {
    %c0_i32 = arith.constant 0 : i32
    %c0_i32_0 = arith.constant 0 : i32
    %c0_i32_1 = arith.constant 0 : i32
    return %c0_i32, %c0_i32_0 : i32, i32
  }
  func.func @transform_5(%arg0: i32) -> (i32, i32) {
    %c0_i32 = arith.constant 0 : i32
    %c0_i32_0 = arith.constant 0 : i32
    %c0_i32_1 = arith.constant 0 : i32
    return %c0_i32, %c0_i32_0 : i32, i32
  }
  func.func @transform_6(%arg0: i32) -> (i32, i32) {
    %c0_i32 = arith.constant 0 : i32
    %c0_i32_0 = arith.constant 0 : i32
    %c0_i32_1 = arith.constant 0 : i32
    return %c0_i32, %c0_i32_0 : i32, i32
  }
  func.func @transform_7(%arg0: i32) -> (i32, i32) {
    %c0_i32 = arith.constant 0 : i32
    %c0_i32_0 = arith.constant 0 : i32
    return %arg0, %c0_i32 : i32, i32
  }
}

</mosaic_0001>

<llo_original>
// kernel: tpu_custom_call.1
$region0: #{tpu_custom_call.1}
  #allocation0 [shape = 'u32[]', space=smem, size = 0x4, offset = 0x4, fixed_abs, tag = 'smem constant byte address 0x4 - core index']
  #allocation1 [shape = 'u32[144,128]{1,0:T(1,128)}', space=vmem, size = 0x12000, scoped, tag = 'internal scratch']
  #allocation2 [shape = 'f32[608,128]{1,0:T(8,128)}', space=vmem, size = 0x4c000, scoped, tag = 'scratch operand']
  %s0 = inlined_call_operand.vmem [shape: f32[512,32], index: 0, kind: input, shape index: {}]
  %s1 = inlined_call_operand.vmem [shape: f32[32,128], index: 1, kind: input, shape index: {}]
  %s2 = inlined_call_operand.vmem [shape: f32[1,128], index: 2, kind: input, shape index: {}]
  %s3 = inlined_call_operand.vmem [shape: f32[9,128], index: 3, kind: input, shape index: {}]
  %s4 = inlined_call_operand.vmem [shape: f32[1,128], index: 4, kind: input, shape index: {}]
  %s5 = inlined_call_operand.vmem [shape: f32[128,32], index: 5, kind: input, shape index: {}]
  %s6 = inlined_call_operand.vmem [shape: f32[1,32], index: 6, kind: input, shape index: {}]
  %s7 = inlined_call_operand.vmem [shape: f32[512,32], index: 7, kind: output, shape index: {}]
  %s8 = sld [smem:[#allocation0]]
  $region38: #{tpu_custom_call.1} parent=0
    _
  %s10 = ssub.s32 1, %s8
  %s11 = scalar_select 0, %s10, %s8
  // Predicated region
  $region2: #{tpu_custom_call.1} parent=0 // pred_check
    _
  $region3: #{tpu_custom_call.1} parent=0 // pred_check_branch
    %13 = sbr.rel (0) target = $region5
  $region4: #{tpu_custom_call.1} parent=0 // pred_region
    _
  $region5: #{tpu_custom_call.1} parent=0 // pred_fallthru
    _
  // Predicated region
  $region6: #{tpu_custom_call.1} parent=0 // pred_check
    _
  $region7: #{tpu_custom_call.1} parent=0 // pred_check_branch
    %15 = sbr.rel (0) target = $region9
  $region8: #{tpu_custom_call.1} parent=0 // pred_region
    _
  $region9: #{tpu_custom_call.1} parent=0 // pred_fallthru
    _
  // Predicated region
  $region10: #{tpu_custom_call.1} parent=0 // pred_check
    _
  $region11: #{tpu_custom_call.1} parent=0 // pred_check_branch
    %17 = sbr.rel (0) target = $region13
  $region12: #{tpu_custom_call.1} parent=0 // pred_region
    _
  $region13: #{tpu_custom_call.1} parent=0 // pred_fallthru
    _
  // Predicated region
  $region14: #{tpu_custom_call.1} parent=0 // pred_check
    _
  $region15: #{tpu_custom_call.1} parent=0 // pred_check_branch
    %19 = sbr.rel (0) target = $region17
  $region16: #{tpu_custom_call.1} parent=0 // pred_region
    _
  $region17: #{tpu_custom_call.1} parent=0 // pred_fallthru
    _
  // Predicated region
  $region18: #{tpu_custom_call.1} parent=0 // pred_check
    _
  $region19: #{tpu_custom_call.1} parent=0 // pred_check_branch
    %21 = sbr.rel (0) target = $region21
  $region20: #{tpu_custom_call.1} parent=0 // pred_region
    _
  $region21: #{tpu_custom_call.1} parent=0 // pred_fallthru
    _
  // Predicated region
  $region22: #{tpu_custom_call.1} parent=0 // pred_check
    _
  $region23: #{tpu_custom_call.1} parent=0 // pred_check_branch
    %23 = sbr.rel (0) target = $region25
  $region24: #{tpu_custom_call.1} parent=0 // pred_region
    _
  $region25: #{tpu_custom_call.1} parent=0 // pred_fallthru
    _
  // Predicated region
  $region26: #{tpu_custom_call.1} parent=0 // pred_check
    _
  $region27: #{tpu_custom_call.1} parent=0 // pred_check_branch
    %25 = sbr.rel (0) target = $region29
  $region28: #{tpu_custom_call.1} parent=0 // pred_region
    _
  $region29: #{tpu_custom_call.1} parent=0 // pred_fallthru
    _
  %v26 = vld [vmem:[%s0] sm:$0xff]
  %v27 = vld [vmem:[%s0 + $0x8] sm:$0xff]
  %v28 = vld [vmem:[%s0 + $0x10] sm:$0xff]
  %v29 = vld [vmem:[%s0 + $0x18] sm:$0xff]
  %v30 = vld [vmem:[%s0 + $0x20] sm:$0xff]
  %v31 = vld [vmem:[%s0 + $0x28] sm:$0xff]
  %v32 = vld [vmem:[%s0 + $0x30] sm:$0xff]
  %v33 = vld [vmem:[%s0 + $0x38] sm:$0xff]
  %v34 = vld [vmem:[%s0 + $0x40] sm:$0xff]
  %v35 = vld [vmem:[%s0 + $0x48] sm:$0xff]
  %v36 = vld [vmem:[%s0 + $0x50] sm:$0xff]
  %v37 = vld [vmem:[%s0 + $0x58] sm:$0xff]
  %v38 = vld [vmem:[%s0 + $0x60] sm:$0xff]
  %v39 = vld [vmem:[%s0 + $0x68] sm:$0xff]
  %v40 = vld [vmem:[%s0 + $0x70] sm:$0xff]
  %v41 = vld [vmem:[%s0 + $0x78] sm:$0xff]
  %v42 = vld [vmem:[%s0 + $0x80] sm:$0xff]
  %v43 = vld [vmem:[%s0 + $0x88] sm:$0xff]
  %v44 = vld [vmem:[%s0 + $0x90] sm:$0xff]
  %v45 = vld [vmem:[%s0 + $0x98] sm:$0xff]
  %v46 = vld [vmem:[%s0 + $0xa0] sm:$0xff]
  %v47 = vld [vmem:[%s0 + $0xa8] sm:$0xff]
  %v48 = vld [vmem:[%s0 + $0xb0] sm:$0xff]
  %v49 = vld [vmem:[%s0 + $0xb8] sm:$0xff]
  %v50 = vld [vmem:[%s0 + $0xc0] sm:$0xff]
  %v51 = vld [vmem:[%s0 + $0xc8] sm:$0xff]
  %v52 = vld [vmem:[%s0 + $0xd0] sm:$0xff]
  %v53 = vld [vmem:[%s0 + $0xd8] sm:$0xff]
  %v54 = vld [vmem:[%s0 + $0xe0] sm:$0xff]
  %v55 = vld [vmem:[%s0 + $0xe8] sm:$0xff]
  %v56 = vld [vmem:[%s0 + $0xf0] sm:$0xff]
  %v57 = vld [vmem:[%s0 + $0xf8] sm:$0xff]
  %v58 = vld [vmem:[%s0 + $0x100] sm:$0xff]
  %v59 = vld [vmem:[%s0 + $0x108] sm:$0xff]
  %v60 = vld [vmem:[%s0 + $0x110] sm:$0xff]
  %v61 = vld [vmem:[%s0 + $0x118] sm:$0xff]
  %v62 = vld [vmem:[%s0 + $0x120] sm:$0xff]
  %v63 = vld [vmem:[%s0 + $0x128] sm:$0xff]
  %v64 = vld [vmem:[%s0 + $0x130] sm:$0xff]
  %v65 = vld [vmem:[%s0 + $0x138] sm:$0xff]
  %v66 = vld [vmem:[%s0 + $0x140] sm:$0xff]
  %v67 = vld [vmem:[%s0 + $0x148] sm:$0xff]
  %v68 = vld [vmem:[%s0 + $0x150] sm:$0xff]
  %v69 = vld [vmem:[%s0 + $0x158] sm:$0xff]
  %v70 = vld [vmem:[%s0 + $0x160] sm:$0xff]
  %v71 = vld [vmem:[%s0 + $0x168] sm:$0xff]
  %v72 = vld [vmem:[%s0 + $0x170] sm:$0xff]
  %v73 = vld [vmem:[%s0 + $0x178] sm:$0xff]
  %v74 = vld [vmem:[%s0 + $0x180] sm:$0xff]
  %v75 = vld [vmem:[%s0 + $0x188] sm:$0xff]
  %v76 = vld [vmem:[%s0 + $0x190] sm:$0xff]
  %v77 = vld [vmem:[%s0 + $0x198] sm:$0xff]
  %v78 = vld [vmem:[%s0 + $0x1a0] sm:$0xff]
  %v79 = vld [vmem:[%s0 + $0x1a8] sm:$0xff]
  %v80 = vld [vmem:[%s0 + $0x1b0] sm:$0xff]
  %v81 = vld [vmem:[%s0 + $0x1b8] sm:$0xff]
  %v82 = vld [vmem:[%s0 + $0x1c0] sm:$0xff]
  %v83 = vld [vmem:[%s0 + $0x1c8] sm:$0xff]
  %v84 = vld [vmem:[%s0 + $0x1d0] sm:$0xff]
  %v85 = vld [vmem:[%s0 + $0x1d8] sm:$0xff]
  %v86 = vld [vmem:[%s0 + $0x1e0] sm:$0xff]
  %v87 = vld [vmem:[%s0 + $0x1e8] sm:$0xff]
  %v88 = vld [vmem:[%s0 + $0x1f0] sm:$0xff]
  %v89 = vld [vmem:[%s0 + $0x1f8] sm:$0xff]
  %v90 = vld [vmem:[%s1] sm:$0xff]
  %v91 = vld [vmem:[%s1 + $0x8] sm:$0xff]
  %v92 = vld [vmem:[%s1 + $0x10] sm:$0xff]
  %v93 = vld [vmem:[%s1 + $0x18] sm:$0xff]
  %v94 = vld [vmem:[%s2] sm:$0x1]
  %v96 = vlaneseq
  %v97 = vshrl.u32 %v96, 7
  %v98 = vsub.s32 0, %v97
  %v99 = vrot.slane %v94, %v98
  %vm101 = vcmask 261120
  %v103 = vsel %vm101, %v26, 0
  %v106 = vsel %vm101, %v27, 0
  %v109 = vsel %vm101, %v28, 0
  %v112 = vsel %vm101, %v29, 0
  %v115 = vsel %vm101, %v30, 0
  %v118 = vsel %vm101, %v31, 0
  %v121 = vsel %vm101, %v32, 0
  %v124 = vsel %vm101, %v33, 0
  %v127 = vsel %vm101, %v34, 0
  %v130 = vsel %vm101, %v35, 0
  %v133 = vsel %vm101, %v36, 0
  %v136 = vsel %vm101, %v37, 0
  %v139 = vsel %vm101, %v38, 0
  %v142 = vsel %vm101, %v39, 0
  %v145 = vsel %vm101, %v40, 0
  %v148 = vsel %vm101, %v41, 0
  %v151 = vsel %vm101, %v42, 0
  %v154 = vsel %vm101, %v43, 0
  %v157 = vsel %vm101, %v44, 0
  %v160 = vsel %vm101, %v45, 0
  %v163 = vsel %vm101, %v46, 0
  %v166 = vsel %vm101, %v47, 0
  %v169 = vsel %vm101, %v48, 0
  %v172 = vsel %vm101, %v49, 0
  %v175 = vsel %vm101, %v50, 0
  %v178 = vsel %vm101, %v51, 0
  %v181 = vsel %vm101, %v52, 0
  %v184 = vsel %vm101, %v53, 0
  %v187 = vsel %vm101, %v54, 0
  %v190 = vsel %vm101, %v55, 0
  %v193 = vsel %vm101, %v56, 0
  %v196 = vsel %vm101, %v57, 0
  %v199 = vsel %vm101, %v58, 0
  %v202 = vsel %vm101, %v59, 0
  %v205 = vsel %vm101, %v60, 0
  %v208 = vsel %vm101, %v61, 0
  %v211 = vsel %vm101, %v62, 0
  %v214 = vsel %vm101, %v63, 0
  %v217 = vsel %vm101, %v64, 0
  %v220 = vsel %vm101, %v65, 0
  %v223 = vsel %vm101, %v66, 0
  %v226 = vsel %vm101, %v67, 0
  %v229 = vsel %vm101, %v68, 0
  %v232 = vsel %vm101, %v69, 0
  %v235 = vsel %vm101, %v70, 0
  %v238 = vsel %vm101, %v71, 0
  %v241 = vsel %vm101, %v72, 0
  %v244 = vsel %vm101, %v73, 0
  %v247 = vsel %vm101, %v74, 0
  %v250 = vsel %vm101, %v75, 0
  %v253 = vsel %vm101, %v76, 0
  %v256 = vsel %vm101, %v77, 0
  %v259 = vsel %vm101, %v78, 0
  %v262 = vsel %vm101, %v79, 0
  %v265 = vsel %vm101, %v80, 0
  %v268 = vsel %vm101, %v81, 0
  %v271 = vsel %vm101, %v82, 0
  %v274 = vsel %vm101, %v83, 0
  %v277 = vsel %vm101, %v84, 0
  %v280 = vsel %vm101, %v85, 0
  %v283 = vsel %vm101, %v86, 0
  %v286 = vsel %vm101, %v87, 0
  %v289 = vsel %vm101, %v88, 0
  %v292 = vsel %vm101, %v89, 0
  %294 = vmatprep.subr.mxu0 0.0
  %295 = vmatpush1.msra.mxu0 0.0
  %296 = vmatprep.subr.mxu0 0.0
  %297 = vmatpush1.msra.mxu0 0.0
  %298 = vmatprep.subr.mxu0 0.0
  %299 = vmatpush1.msra.mxu0 0.0
  %300 = vmatprep.subr.mxu0 0.0
  %301 = vmatpush1.msra.mxu0 0.0
  %302 = vmatprep.subr.mxu0 0.0
  %303 = vmatpush1.msra.mxu0 0.0
  %304 = vmatprep.subr.mxu0 0.0
  %305 = vmatpush1.msra.mxu0 0.0
  %306 = vmatprep.subr.mxu0 0.0
  %307 = vmatpush1.msra.mxu0 0.0
  %308 = vmatprep.subr.mxu0 0.0
  %309 = vmatpush1.msra.mxu0 0.0
  %310 = vmatprep.subr.mxu0 0.0
  %311 = vmatpush1.msra.mxu0 0.0
  %312 = vmatprep.subr.mxu0 0.0
  %313 = vmatpush1.msra.mxu0 0.0
  %314 = vmatprep.subr.mxu0 0.0
  %315 = vmatpush1.msra.mxu0 0.0
  %316 = vmatprep.subr.mxu0 0.0
  %317 = vmatpush1.msra.mxu0 0.0
  %318 = vmatprep.subr.mxu0 0.0
  %v319 = vand.u32 %v93, 4294901760
  %320 = vmatpush1.msra.mxu0 %v319
  %321 = vmatprep.subr.mxu0 0.0
  %v322 = vand.u32 %v92, 4294901760
  %323 = vmatpush1.msra.mxu0 %v322
  %324 = vmatprep.subr.mxu0 0.0
  %v325 = vand.u32 %v91, 4294901760
  %326 = vmatpush1.msra.mxu0 %v325
  %327 = vmatprep.subr.mxu0 0.0
  %v328 = vand.u32 %v90, 4294901760
  %329 = vmatpush1.msra.mxu0 %v328
  %330 = vmatprep.subr.mxu0 0.0
  %331 = vmatpush2.msra.mxu0 0.0
  %332 = vmatprep.subr.mxu0 0.0
  %333 = vmatpush2.msra.mxu0 0.0
  %334 = vmatprep.subr.mxu0 0.0
  %335 = vmatpush2.msra.mxu0 0.0
  %336 = vmatprep.subr.mxu0 0.0
  %337 = vmatpush2.msra.mxu0 0.0
  %338 = vmatprep.subr.mxu0 0.0
  %339 = vmatpush2.msra.mxu0 0.0
  %340 = vmatprep.subr.mxu0 0.0
  %341 = vmatpush2.msra.mxu0 0.0
  %342 = vmatprep.subr.mxu0 0.0
  %343 = vmatpush2.msra.mxu0 0.0
  %344 = vmatprep.subr.mxu0 0.0
  %345 = vmatpush2.msra.mxu0 0.0
  %346 = vmatprep.subr.mxu0 0.0
  %347 = vmatpush2.msra.mxu0 0.0
  %348 = vmatprep.subr.mxu0 0.0
  %349 = vmatpush2.msra.mxu0 0.0
  %350 = vmatprep.subr.mxu0 0.0
  %351 = vmatpush2.msra.mxu0 0.0
  %352 = vmatprep.subr.mxu0 0.0
  %353 = vmatpush2.msra.mxu0 0.0
  %354 = vmatprep.subr.mxu0 0.0
  %355 = vmatpush2.msra.mxu0 0.0
  %356 = vmatprep.subr.mxu0 0.0
  %357 = vmatpush2.msra.mxu0 0.0
  %358 = vmatprep.subr.mxu0 0.0
  %359 = vmatpush2.msra.mxu0 0.0
  %360 = vmatprep.subr.mxu0 0.0
  %361 = vmatpush2.msra.mxu0 0.0
  %362 = vmatprep.mubr.f32.mxu0 0.0
  %v363 = vand.u32 %v103, 4294901760
  %v364 = vsub.f32 %v103, %v363
  %v365 = vand.u32 %v364, 4294901760
  %v366 = vsub.f32 %v364, %v365
  %v367 = vand.u32 %v366, 4294901760
  %368 = vmatmul.mubr.f32.gmra.mxu0 %v367
  %v369 = vpop.f32.mrf.mxu0
  %v370 = vadd.f32 %v99, %v369
  %v371 = vpop.f32.mrf.mxu0
  %372 = vmatprep.mubr.f32.mxu0 0.0
  %v373 = vand.u32 %v106, 4294901760
  %v374 = vsub.f32 %v106, %v373
  %v375 = vand.u32 %v374, 4294901760
  %v376 = vsub.f32 %v374, %v375
  %v377 = vand.u32 %v376, 4294901760
  %378 = vmatmul.mubr.f32.gmra.mxu0 %v377
  %v379 = vpop.f32.mrf.mxu0
  %v380 = vadd.f32 %v99, %v379
  %v381 = vpop.f32.mrf.mxu0
  %382 = vmatprep.mubr.f32.mxu0 0.0
  %v383 = vand.u32 %v109, 4294901760
  %v384 = vsub.f32 %v109, %v383
  %v385 = vand.u32 %v384, 4294901760
  %v386 = vsub.f32 %v384, %v385
  %v387 = vand.u32 %v386, 4294901760
  %388 = vmatmul.mubr.f32.gmra.mxu0 %v387
  %v389 = vpop.f32.mrf.mxu0
  %v390 = vadd.f32 %v99, %v389
  %v391 = vpop.f32.mrf.mxu0
  %392 = vmatprep.mubr.f32.mxu0 0.0
  %v393 = vand.u32 %v112, 4294901760
  %v394 = vsub.f32 %v112, %v393
  %v395 = vand.u32 %v394, 4294901760
  %v396 = vsub.f32 %v394, %v395
  %v397 = vand.u32 %v396, 4294901760
  %398 = vmatmul.mubr.f32.gmra.mxu0 %v397
  %v399 = vpop.f32.mrf.mxu0
  %v400 = vadd.f32 %v99, %v399
  %v401 = vpop.f32.mrf.mxu0
  %402 = vmatprep.mubr.f32.mxu0 0.0
  %v403 = vand.u32 %v115, 4294901760
  %v404 = vsub.f32 %v115, %v403
  %v405 = vand.u32 %v404, 4294901760
  %v406 = vsub.f32 %v404, %v405
  %v407 = vand.u32 %v406, 4294901760
  %408 = vmatmul.mubr.f32.gmra.mxu0 %v407
  %v409 = vpop.f32.mrf.mxu0
  %v410 = vadd.f32 %v99, %v409
  %v411 = vpop.f32.mrf.mxu0
  %412 = vmatprep.mubr.f32.mxu0 0.0
  %v413 = vand.u32 %v118, 4294901760
  %v414 = vsub.f32 %v118, %v413
  %v415 = vand.u32 %v414, 4294901760
  %v416 = vsub.f32 %v414, %v415
  %v417 = vand.u32 %v416, 4294901760
  %418 = vmatmul.mubr.f32.gmra.mxu0 %v417
  %v419 = vpop.f32.mrf.mxu0
  %v420 = vadd.f32 %v99, %v419
  %v421 = vpop.f32.mrf.mxu0
  %422 = vmatprep.mubr.f32.mxu0 0.0
  %v423 = vand.u32 %v121, 4294901760
  %v424 = vsub.f32 %v121, %v423
  %v425 = vand.u32 %v424, 4294901760
  %v426 = vsub.f32 %v424, %v425
  %v427 = vand.u32 %v426, 4294901760
  %428 = vmatmul.mubr.f32.gmra.mxu0 %v427
  %v429 = vpop.f32.mrf.mxu0
  %v430 = vadd.f32 %v99, %v429
  %v431 = vpop.f32.mrf.mxu0
  %432 = vmatprep.mubr.f32.mxu0 0.0
  %v433 = vand.u32 %v124, 4294901760
  %v434 = vsub.f32 %v124, %v433
  %v435 = vand.u32 %v434, 4294901760
  %v436 = vsub.f32 %v434, %v435
  %v437 = vand.u32 %v436, 4294901760
  %438 = vmatmul.mubr.f32.gmra.mxu0 %v437
  %v439 = vpop.f32.mrf.mxu0
  %v440 = vadd.f32 %v99, %v439
  %v441 = vpop.f32.mrf.mxu0
  %442 = vmatprep.mubr.f32.mxu0 0.0
  %v443 = vand.u32 %v127, 4294901760
  %v444 = vsub.f32 %v127, %v443
  %v445 = vand.u32 %v444, 4294901760
  %v446 = vsub.f32 %v444, %v445
  %v447 = vand.u32 %v446, 4294901760
  %448 = vmatmul.mubr.f32.gmra.mxu0 %v447
  %v449 = vpop.f32.mrf.mxu0
  %v450 = vadd.f32 %v99, %v449
  %v451 = vpop.f32.mrf.mxu0
  %452 = vmatprep.mubr.f32.mxu0 0.0
  %v453 = vand.u32 %v130, 4294901760
  %v454 = vsub.f32 %v130, %v453
  %v455 = vand.u32 %v454, 4294901760
  %v456 = vsub.f32 %v454, %v455
  %v457 = vand.u32 %v456, 4294901760
  %458 = vmatmul.mubr.f32.gmra.mxu0 %v457
  %v459 = vpop.f32.mrf.mxu0
  %v460 = vadd.f32 %v99, %v459
  %v461 = vpop.f32.mrf.mxu0
  %462 = vmatprep.mubr.f32.mxu0 0.0
  %v463 = vand.u32 %v133, 4294901760
  %v464 = vsub.f32 %v133, %v463
  %v465 = vand.u32 %v464, 4294901760
  %v466 = vsub.f32 %v464, %v465
  %v467 = vand.u32 %v466, 4294901760
  %468 = vmatmul.mubr.f32.gmra.mxu0 %v467
  %v469 = vpop.f32.mrf.mxu0
  %v470 = vadd.f32 %v99, %v469
  %v471 = vpop.f32.mrf.mxu0
  %472 = vmatprep.mubr.f32.mxu0 0.0
  %v473 = vand.u32 %v136, 4294901760
  %v474 = vsub.f32 %v136, %v473
  %v475 = vand.u32 %v474, 4294901760
  %v476 = vsub.f32 %v474, %v475
  %v477 = vand.u32 %v476, 4294901760
  %478 = vmatmul.mubr.f32.gmra.mxu0 %v477
  %v479 = vpop.f32.mrf.mxu0
  %v480 = vadd.f32 %v99, %v479
  %v481 = vpop.f32.mrf.mxu0
  %482 = vmatprep.mubr.f32.mxu0 0.0
  %v483 = vand.u32 %v139, 4294901760
  %v484 = vsub.f32 %v139, %v483
  %v485 = vand.u32 %v484, 4294901760
  %v486 = vsub.f32 %v484, %v485
  %v487 = vand.u32 %v486, 4294901760
  %488 = vmatmul.mubr.f32.gmra.mxu0 %v487
  %v489 = vpop.f32.mrf.mxu0
  %v490 = vadd.f32 %v99, %v489
  %v491 = vpop.f32.mrf.mxu0
  %492 = vmatprep.mubr.f32.mxu0 0.0
  %v493 = vand.u32 %v142, 4294901760
  %v494 = vsub.f32 %v142, %v493
  %v495 = vand.u32 %v494, 4294901760
  %v496 = vsub.f32 %v494, %v495
  %v497 = vand.u32 %v496, 4294901760
  %498 = vmatmul.mubr.f32.gmra.mxu0 %v497
  %v499 = vpop.f32.mrf.mxu0
  %v500 = vadd.f32 %v99, %v499
  %v501 = vpop.f32.mrf.mxu0
  %502 = vmatprep.mubr.f32.mxu0 0.0
  %v503 = vand.u32 %v145, 4294901760
  %v504 = vsub.f32 %v145, %v503
  %v505 = vand.u32 %v504, 4294901760
  %v506 = vsub.f32 %v504, %v505
  %v507 = vand.u32 %v506, 4294901760
  %508 = vmatmul.mubr.f32.gmra.mxu0 %v507
  %v509 = vpop.f32.mrf.mxu0
  %v510 = vadd.f32 %v99, %v509
  %v511 = vpop.f32.mrf.mxu0
  %512 = vmatprep.mubr.f32.mxu0 0.0
  %v513 = vand.u32 %v148, 4294901760
  %v514 = vsub.f32 %v148, %v513
  %v515 = vand.u32 %v514, 4294901760
  %v516 = vsub.f32 %v514, %v515
  %v517 = vand.u32 %v516, 4294901760
  %518 = vmatmul.mubr.f32.gmra.mxu0 %v517
  %v519 = vpop.f32.mrf.mxu0
  %v520 = vadd.f32 %v99, %v519
  %v521 = vpop.f32.mrf.mxu0
  %522 = vmatprep.mubr.f32.mxu0 0.0
  %v523 = vand.u32 %v151, 4294901760
  %v524 = vsub.f32 %v151, %v523
  %v525 = vand.u32 %v524, 4294901760
  %v526 = vsub.f32 %v524, %v525
  %v527 = vand.u32 %v526, 4294901760
  %528 = vmatmul.mubr.f32.gmra.mxu0 %v527
  %v529 = vpop.f32.mrf.mxu0
  %v530 = vadd.f32 %v99, %v529
  %v531 = vpop.f32.mrf.mxu0
  %532 = vmatprep.mubr.f32.mxu0 0.0
  %v533 = vand.u32 %v154, 4294901760
  %v534 = vsub.f32 %v154, %v533
  %v535 = vand.u32 %v534, 4294901760
  %v536 = vsub.f32 %v534, %v535
  %v537 = vand.u32 %v536, 4294901760
  %538 = vmatmul.mubr.f32.gmra.mxu0 %v537
  %v539 = vpop.f32.mrf.mxu0
  %v540 = vadd.f32 %v99, %v539
  %v541 = vpop.f32.mrf.mxu0
  %542 = vmatprep.mubr.f32.mxu0 0.0
  %v543 = vand.u32 %v157, 4294901760
  %v544 = vsub.f32 %v157, %v543
  %v545 = vand.u32 %v544, 4294901760
  %v546 = vsub.f32 %v544, %v545
  %v547 = vand.u32 %v546, 4294901760
  %548 = vmatmul.mubr.f32.gmra.mxu0 %v547
  %v549 = vpop.f32.mrf.mxu0
  %v550 = vadd.f32 %v99, %v549
  %v551 = vpop.f32.mrf.mxu0
  %552 = vmatprep.mubr.f32.mxu0 0.0
  %v553 = vand.u32 %v160, 4294901760
  %v554 = vsub.f32 %v160, %v553
  %v555 = vand.u32 %v554, 4294901760
  %v556 = vsub.f32 %v554, %v555
  %v557 = vand.u32 %v556, 4294901760
  %558 = vmatmul.mubr.f32.gmra.mxu0 %v557
  %v559 = vpop.f32.mrf.mxu0
  %v560 = vadd.f32 %v99, %v559
  %v561 = vpop.f32.mrf.mxu0
  %562 = vmatprep.mubr.f32.mxu0 0.0
  %v563 = vand.u32 %v163, 4294901760
  %v564 = vsub.f32 %v163, %v563
  %v565 = vand.u32 %v564, 4294901760
  %v566 = vsub.f32 %v564, %v565
  %v567 = vand.u32 %v566, 4294901760
  %568 = vmatmul.mubr.f32.gmra.mxu0 %v567
  %v569 = vpop.f32.mrf.mxu0
  %v570 = vadd.f32 %v99, %v569
  %v571 = vpop.f32.mrf.mxu0
  %572 = vmatprep.mubr.f32.mxu0 0.0
  %v573 = vand.u32 %v166, 4294901760
  %v574 = vsub.f32 %v166, %v573
  %v575 = vand.u32 %v574, 4294901760
  %v576 = vsub.f32 %v574, %v575
  %v577 = vand.u32 %v576, 4294901760
  %578 = vmatmul.mubr.f32.gmra.mxu0 %v577
  %v579 = vpop.f32.mrf.mxu0
  %v580 = vadd.f32 %v99, %v579
  %v581 = vpop.f32.mrf.mxu0
  %582 = vmatprep.mubr.f32.mxu0 0.0
  %v583 = vand.u32 %v169, 4294901760
  %v584 = vsub.f32 %v169, %v583
  %v585 = vand.u32 %v584, 4294901760
  %v586 = vsub.f32 %v584, %v585
  %v587 = vand.u32 %v586, 4294901760
  %588 = vmatmul.mubr.f32.gmra.mxu0 %v587
  %v589 = vpop.f32.mrf.mxu0
  %v590 = vadd.f32 %v99, %v589
  %v591 = vpop.f32.mrf.mxu0
  %592 = vmatprep.mubr.f32.mxu0 0.0
  %v593 = vand.u32 %v172, 4294901760
  %v594 = vsub.f32 %v172, %v593
  %v595 = vand.u32 %v594, 4294901760
  %v596 = vsub.f32 %v594, %v595
  %v597 = vand.u32 %v596, 4294901760
  %598 = vmatmul.mubr.f32.gmra.mxu0 %v597
  %v599 = vpop.f32.mrf.mxu0
  %v600 = vadd.f32 %v99, %v599
  %v601 = vpop.f32.mrf.mxu0
  %602 = vmatprep.mubr.f32.mxu0 0.0
  %v603 = vand.u32 %v175, 4294901760
  %v604 = vsub.f32 %v175, %v603
  %v605 = vand.u32 %v604, 4294901760
  %v606 = vsub.f32 %v604, %v605
  %v607 = vand.u32 %v606, 4294901760
  %608 = vmatmul.mubr.f32.gmra.mxu0 %v607
  %v609 = vpop.f32.mrf.mxu0
  %v610 = vadd.f32 %v99, %v609
  %v611 = vpop.f32.mrf.mxu0
  %612 = vmatprep.mubr.f32.mxu0 0.0
  %v613 = vand.u32 %v178, 4294901760
  %v614 = vsub.f32 %v178, %v613
  %v615 = vand.u32 %v614, 4294901760
  %v616 = vsub.f32 %v614, %v615
  %v617 = vand.u32 %v616, 4294901760
  %618 = vmatmul.mubr.f32.gmra.mxu0 %v617
  %v619 = vpop.f32.mrf.mxu0
  %v620 = vadd.f32 %v99, %v619
  %v621 = vpop.f32.mrf.mxu0
  %622 = vmatprep.mubr.f32.mxu0 0.0
  %v623 = vand.u32 %v181, 4294901760
  %v624 = vsub.f32 %v181, %v623
  %v625 = vand.u32 %v624, 4294901760
  %v626 = vsub.f32 %v624, %v625
  %v627 = vand.u32 %v626, 4294901760
  %628 = vmatmul.mubr.f32.gmra.mxu0 %v627
  %v629 = vpop.f32.mrf.mxu0
  %v630 = vadd.f32 %v99, %v629
  %v631 = vpop.f32.mrf.mxu0
  %632 = vmatprep.mubr.f32.mxu0 0.0
  %v633 = vand.u32 %v184, 4294901760
  %v634 = vsub.f32 %v184, %v633
  %v635 = vand.u32 %v634, 4294901760
  %v636 = vsub.f32 %v634, %v635
  %v637 = vand.u32 %v636, 4294901760
  %638 = vmatmul.mubr.f32.gmra.mxu0 %v637
  %v639 = vpop.f32.mrf.mxu0
  %v640 = vadd.f32 %v99, %v639
  %v641 = vpop.f32.mrf.mxu0
  %642 = vmatprep.mubr.f32.mxu0 0.0
  %v643 = vand.u32 %v187, 4294901760
  %v644 = vsub.f32 %v187, %v643
  %v645 = vand.u32 %v644, 4294901760
  %v646 = vsub.f32 %v644, %v645
  %v647 = vand.u32 %v646, 4294901760
  %648 = vmatmul.mubr.f32.gmra.mxu0 %v647
  %v649 = vpop.f32.mrf.mxu0
  %v650 = vadd.f32 %v99, %v649
  %v651 = vpop.f32.mrf.mxu0
  %652 = vmatprep.mubr.f32.mxu0 0.0
  %v653 = vand.u32 %v190, 4294901760
  %v654 = vsub.f32 %v190, %v653
  %v655 = vand.u32 %v654, 4294901760
  %v656 = vsub.f32 %v654, %v655
  %v657 = vand.u32 %v656, 4294901760
  %658 = vmatmul.mubr.f32.gmra.mxu0 %v657
  %v659 = vpop.f32.mrf.mxu0
  %v660 = vadd.f32 %v99, %v659
  %v661 = vpop.f32.mrf.mxu0
  %662 = vmatprep.mubr.f32.mxu0 0.0
  %v663 = vand.u32 %v193, 4294901760
  %v664 = vsub.f32 %v193, %v663
  %v665 = vand.u32 %v664, 4294901760
  %v666 = vsub.f32 %v664, %v665
  %v667 = vand.u32 %v666, 4294901760
  %668 = vmatmul.mubr.f32.gmra.mxu0 %v667
  %v669 = vpop.f32.mrf.mxu0
  %v670 = vadd.f32 %v99, %v669
  %v671 = vpop.f32.mrf.mxu0
  %672 = vmatprep.mubr.f32.mxu0 0.0
  %v673 = vand.u32 %v196, 4294901760
  %v674 = vsub.f32 %v196, %v673
  %v675 = vand.u32 %v674, 4294901760
  %v676 = vsub.f32 %v674, %v675
  %v677 = vand.u32 %v676, 4294901760
  %678 = vmatmul.mubr.f32.gmra.mxu0 %v677
  %v679 = vpop.f32.mrf.mxu0
  %v680 = vadd.f32 %v99, %v679
  %v681 = vpop.f32.mrf.mxu0
  %682 = vmatprep.mubr.f32.mxu0 0.0
  %v683 = vand.u32 %v199, 4294901760
  %v684 = vsub.f32 %v199, %v683
  %v685 = vand.u32 %v684, 4294901760
  %v686 = vsub.f32 %v684, %v685
  %v687 = vand.u32 %v686, 4294901760
  %688 = vmatmul.mubr.f32.gmra.mxu0 %v687
  %v689 = vpop.f32.mrf.mxu0
  %v690 = vadd.f32 %v99, %v689
  %v691 = vpop.f32.mrf.mxu0
  %692 = vmatprep.mubr.f32.mxu0 0.0
  %v693 = vand.u32 %v202, 4294901760
  %v694 = vsub.f32 %v202, %v693
  %v695 = vand.u32 %v694, 4294901760
  %v696 = vsub.f32 %v694, %v695
  %v697 = vand.u32 %v696, 4294901760
  %698 = vmatmul.mubr.f32.gmra.mxu0 %v697
  %v699 = vpop.f32.mrf.mxu0
  %v700 = vadd.f32 %v99, %v699
  %v701 = vpop.f32.mrf.mxu0
  %702 = vmatprep.mubr.f32.mxu0 0.0
  %v703 = vand.u32 %v205, 4294901760
  %v704 = vsub.f32 %v205, %v703
  %v705 = vand.u32 %v704, 4294901760
  %v706 = vsub.f32 %v704, %v705
  %v707 = vand.u32 %v706, 4294901760
  %708 = vmatmul.mubr.f32.gmra.mxu0 %v707
  %v709 = vpop.f32.mrf.mxu0
  %v710 = vadd.f32 %v99, %v709
  %v711 = vpop.f32.mrf.mxu0
  %712 = vmatprep.mubr.f32.mxu0 0.0
  %v713 = vand.u32 %v208, 4294901760
  %v714 = vsub.f32 %v208, %v713
  %v715 = vand.u32 %v714, 4294901760
  %v716 = vsub.f32 %v714, %v715
  %v717 = vand.u32 %v716, 4294901760
  %718 = vmatmul.mubr.f32.gmra.mxu0 %v717
  %v719 = vpop.f32.mrf.mxu0
  %v720 = vadd.f32 %v99, %v719
  %v721 = vpop.f32.mrf.mxu0
  %722 = vmatprep.mubr.f32.mxu0 0.0
  %v723 = vand.u32 %v211, 4294901760
  %v724 = vsub.f32 %v211, %v723
  %v725 = vand.u32 %v724, 4294901760
  %v726 = vsub.f32 %v724, %v725
  %v727 = vand.u32 %v726, 4294901760
  %728 = vmatmul.mubr.f32.gmra.mxu0 %v727
  %v729 = vpop.f32.mrf.mxu0
  %v730 = vadd.f32 %v99, %v729
  %v731 = vpop.f32.mrf.mxu0
  %732 = vmatprep.mubr.f32.mxu0 0.0
  %v733 = vand.u32 %v214, 4294901760
  %v734 = vsub.f32 %v214, %v733
  %v735 = vand.u32 %v734, 4294901760
  %v736 = vsub.f32 %v734, %v735
  %v737 = vand.u32 %v736, 4294901760
  %738 = vmatmul.mubr.f32.gmra.mxu0 %v737
  %v739 = vpop.f32.mrf.mxu0
  %v740 = vadd.f32 %v99, %v739
  %v741 = vpop.f32.mrf.mxu0
  %742 = vmatprep.mubr.f32.mxu0 0.0
  %v743 = vand.u32 %v217, 4294901760
  %v744 = vsub.f32 %v217, %v743
  %v745 = vand.u32 %v744, 4294901760
  %v746 = vsub.f32 %v744, %v745
  %v747 = vand.u32 %v746, 4294901760
  %748 = vmatmul.mubr.f32.gmra.mxu0 %v747
  %v749 = vpop.f32.mrf.mxu0
  %v750 = vadd.f32 %v99, %v749
  %v751 = vpop.f32.mrf.mxu0
  %752 = vmatprep.mubr.f32.mxu0 0.0
  %v753 = vand.u32 %v220, 4294901760
  %v754 = vsub.f32 %v220, %v753
  %v755 = vand.u32 %v754, 4294901760
  %v756 = vsub.f32 %v754, %v755
  %v757 = vand.u32 %v756, 4294901760
  %758 = vmatmul.mubr.f32.gmra.mxu0 %v757
  %v759 = vpop.f32.mrf.mxu0
  %v760 = vadd.f32 %v99, %v759
  %v761 = vpop.f32.mrf.mxu0
  %762 = vmatprep.mubr.f32.mxu0 0.0
  %v763 = vand.u32 %v223, 4294901760
  %v764 = vsub.f32 %v223, %v763
  %v765 = vand.u32 %v764, 4294901760
  %v766 = vsub.f32 %v764, %v765
  %v767 = vand.u32 %v766, 4294901760
  %768 = vmatmul.mubr.f32.gmra.mxu0 %v767
  %v769 = vpop.f32.mrf.mxu0
  %v770 = vadd.f32 %v99, %v769
  %v771 = vpop.f32.mrf.mxu0
  %772 = vmatprep.mubr.f32.mxu0 0.0
  %v773 = vand.u32 %v226, 4294901760
  %v774 = vsub.f32 %v226, %v773
  %v775 = vand.u32 %v774, 4294901760
  %v776 = vsub.f32 %v774, %v775
  %v777 = vand.u32 %v776, 4294901760
  %778 = vmatmul.mubr.f32.gmra.mxu0 %v777
  %v779 = vpop.f32.mrf.mxu0
  %v780 = vadd.f32 %v99, %v779
  %v781 = vpop.f32.mrf.mxu0
  %782 = vmatprep.mubr.f32.mxu0 0.0
  %v783 = vand.u32 %v229, 4294901760
  %v784 = vsub.f32 %v229, %v783
  %v785 = vand.u32 %v784, 4294901760
  %v786 = vsub.f32 %v784, %v785
  %v787 = vand.u32 %v786, 4294901760
  %788 = vmatmul.mubr.f32.gmra.mxu0 %v787
  %v789 = vpop.f32.mrf.mxu0
  %v790 = vadd.f32 %v99, %v789
  %v791 = vpop.f32.mrf.mxu0
  %792 = vmatprep.mubr.f32.mxu0 0.0
  %v793 = vand.u32 %v232, 4294901760
  %v794 = vsub.f32 %v232, %v793
  %v795 = vand.u32 %v794, 4294901760
  %v796 = vsub.f32 %v794, %v795
  %v797 = vand.u32 %v796, 4294901760
  %798 = vmatmul.mubr.f32.gmra.mxu0 %v797
  %v799 = vpop.f32.mrf.mxu0
  %v800 = vadd.f32 %v99, %v799
  %v801 = vpop.f32.mrf.mxu0
  %802 = vmatprep.mubr.f32.mxu0 0.0
  %v803 = vand.u32 %v235, 4294901760
  %v804 = vsub.f32 %v235, %v803
  %v805 = vand.u32 %v804, 4294901760
  %v806 = vsub.f32 %v804, %v805
  %v807 = vand.u32 %v806, 4294901760
  %808 = vmatmul.mubr.f32.gmra.mxu0 %v807
  %v809 = vpop.f32.mrf.mxu0
  %v810 = vadd.f32 %v99, %v809
  %v811 = vpop.f32.mrf.mxu0
  %812 = vmatprep.mubr.f32.mxu0 0.0
  %v813 = vand.u32 %v238, 4294901760
  %v814 = vsub.f32 %v238, %v813
  %v815 = vand.u32 %v814, 4294901760
  %v816 = vsub.f32 %v814, %v815
  %v817 = vand.u32 %v816, 4294901760
  %818 = vmatmul.mubr.f32.gmra.mxu0 %v817
  %v819 = vpop.f32.mrf.mxu0
  %v820 = vadd.f32 %v99, %v819
  %v821 = vpop.f32.mrf.mxu0
  %822 = vmatprep.mubr.f32.mxu0 0.0
  %v823 = vand.u32 %v241, 4294901760
  %v824 = vsub.f32 %v241, %v823
  %v825 = vand.u32 %v824, 4294901760
  %v826 = vsub.f32 %v824, %v825
  %v827 = vand.u32 %v826, 4294901760
  %828 = vmatmul.mubr.f32.gmra.mxu0 %v827
  %v829 = vpop.f32.mrf.mxu0
  %v830 = vadd.f32 %v99, %v829
  %v831 = vpop.f32.mrf.mxu0
  %832 = vmatprep.mubr.f32.mxu0 0.0
  %v833 = vand.u32 %v244, 4294901760
  %v834 = vsub.f32 %v244, %v833
  %v835 = vand.u32 %v834, 4294901760
  %v836 = vsub.f32 %v834, %v835
  %v837 = vand.u32 %v836, 4294901760
  %838 = vmatmul.mubr.f32.gmra.mxu0 %v837
  %v839 = vpop.f32.mrf.mxu0
  %v840 = vadd.f32 %v99, %v839
  %v841 = vpop.f32.mrf.mxu0
  %842 = vmatprep.mubr.f32.mxu0 0.0
  %v843 = vand.u32 %v247, 4294901760
  %v844 = vsub.f32 %v247, %v843
  %v845 = vand.u32 %v844, 4294901760
  %v846 = vsub.f32 %v844, %v845
  %v847 = vand.u32 %v846, 4294901760
  %848 = vmatmul.mubr.f32.gmra.mxu0 %v847
  %v849 = vpop.f32.mrf.mxu0
  %v850 = vadd.f32 %v99, %v849
  %v851 = vpop.f32.mrf.mxu0
  %852 = vmatprep.mubr.f32.mxu0 0.0
  %v853 = vand.u32 %v250, 4294901760
  %v854 = vsub.f32 %v250, %v853
  %v855 = vand.u32 %v854, 4294901760
  %v856 = vsub.f32 %v854, %v855
  %v857 = vand.u32 %v856, 4294901760
  %858 = vmatmul.mubr.f32.gmra.mxu0 %v857
  %v859 = vpop.f32.mrf.mxu0
  %v860 = vadd.f32 %v99, %v859
  %v861 = vpop.f32.mrf.mxu0
  %862 = vmatprep.mubr.f32.mxu0 0.0
  %v863 = vand.u32 %v253, 4294901760
  %v864 = vsub.f32 %v253, %v863
  %v865 = vand.u32 %v864, 4294901760
  %v866 = vsub.f32 %v864, %v865
  %v867 = vand.u32 %v866, 4294901760
  %868 = vmatmul.mubr.f32.gmra.mxu0 %v867
  %v869 = vpop.f32.mrf.mxu0
  %v870 = vadd.f32 %v99, %v869
  %v871 = vpop.f32.mrf.mxu0
  %872 = vmatprep.mubr.f32.mxu0 0.0
  %v873 = vand.u32 %v256, 4294901760
  %v874 = vsub.f32 %v256, %v873
  %v875 = vand.u32 %v874, 4294901760
  %v876 = vsub.f32 %v874, %v875
  %v877 = vand.u32 %v876, 4294901760
  %878 = vmatmul.mubr.f32.gmra.mxu0 %v877
  %v879 = vpop.f32.mrf.mxu0
  %v880 = vadd.f32 %v99, %v879
  %v881 = vpop.f32.mrf.mxu0
  %882 = vmatprep.mubr.f32.mxu0 0.0
  %v883 = vand.u32 %v259, 4294901760
  %v884 = vsub.f32 %v259, %v883
  %v885 = vand.u32 %v884, 4294901760
  %v886 = vsub.f32 %v884, %v885
  %v887 = vand.u32 %v886, 4294901760
  %888 = vmatmul.mubr.f32.gmra.mxu0 %v887
  %v889 = vpop.f32.mrf.mxu0
  %v890 = vadd.f32 %v99, %v889
  %v891 = vpop.f32.mrf.mxu0
  %892 = vmatprep.mubr.f32.mxu0 0.0
  %v893 = vand.u32 %v262, 4294901760
  %v894 = vsub.f32 %v262, %v893
  %v895 = vand.u32 %v894, 4294901760
  %v896 = vsub.f32 %v894, %v895
  %v897 = vand.u32 %v896, 4294901760
  %898 = vmatmul.mubr.f32.gmra.mxu0 %v897
  %v899 = vpop.f32.mrf.mxu0
  %v900 = vadd.f32 %v99, %v899
  %v901 = vpop.f32.mrf.mxu0
  %902 = vmatprep.mubr.f32.mxu0 0.0
  %v903 = vand.u32 %v265, 4294901760
  %v904 = vsub.f32 %v265, %v903
  %v905 = vand.u32 %v904, 4294901760
  %v906 = vsub.f32 %v904, %v905
  %v907 = vand.u32 %v906, 4294901760
  %908 = vmatmul.mubr.f32.gmra.mxu0 %v907
  %v909 = vpop.f32.mrf.mxu0
  %v910 = vadd.f32 %v99, %v909
  %v911 = vpop.f32.mrf.mxu0
  %912 = vmatprep.mubr.f32.mxu0 0.0
  %v913 = vand.u32 %v268, 4294901760
  %v914 = vsub.f32 %v268, %v913
  %v915 = vand.u32 %v914, 4294901760
  %v916 = vsub.f32 %v914, %v915
  %v917 = vand.u32 %v916, 4294901760
  %918 = vmatmul.mubr.f32.gmra.mxu0 %v917
  %v919 = vpop.f32.mrf.mxu0
  %v920 = vadd.f32 %v99, %v919
  %v921 = vpop.f32.mrf.mxu0
  %922 = vmatprep.mubr.f32.mxu0 0.0
  %v923 = vand.u32 %v271, 4294901760
  %v924 = vsub.f32 %v271, %v923
  %v925 = vand.u32 %v924, 4294901760
  %v926 = vsub.f32 %v924, %v925
  %v927 = vand.u32 %v926, 4294901760
  %928 = vmatmul.mubr.f32.gmra.mxu0 %v927
  %v929 = vpop.f32.mrf.mxu0
  %v930 = vadd.f32 %v99, %v929
  %v931 = vpop.f32.mrf.mxu0
  %932 = vmatprep.mubr.f32.mxu0 0.0
  %v933 = vand.u32 %v274, 4294901760
  %v934 = vsub.f32 %v274, %v933
  %v935 = vand.u32 %v934, 4294901760
  %v936 = vsub.f32 %v934, %v935
  %v937 = vand.u32 %v936, 4294901760
  %938 = vmatmul.mubr.f32.gmra.mxu0 %v937
  %v939 = vpop.f32.mrf.mxu0
  %v940 = vadd.f32 %v99, %v939
  %v941 = vpop.f32.mrf.mxu0
  %942 = vmatprep.mubr.f32.mxu0 0.0
  %v943 = vand.u32 %v277, 4294901760
  %v944 = vsub.f32 %v277, %v943
  %v945 = vand.u32 %v944, 4294901760
  %v946 = vsub.f32 %v944, %v945
  %v947 = vand.u32 %v946, 4294901760
  %948 = vmatmul.mubr.f32.gmra.mxu0 %v947
  %v949 = vpop.f32.mrf.mxu0
  %v950 = vadd.f32 %v99, %v949
  %v951 = vpop.f32.mrf.mxu0
  %952 = vmatprep.mubr.f32.mxu0 0.0
  %v953 = vand.u32 %v280, 4294901760
  %v954 = vsub.f32 %v280, %v953
  %v955 = vand.u32 %v954, 4294901760
  %v956 = vsub.f32 %v954, %v955
  %v957 = vand.u32 %v956, 4294901760
  %958 = vmatmul.mubr.f32.gmra.mxu0 %v957
  %v959 = vpop.f32.mrf.mxu0
  %v960 = vadd.f32 %v99, %v959
  %v961 = vpop.f32.mrf.mxu0
  %962 = vmatprep.mubr.f32.mxu0 0.0
  %v963 = vand.u32 %v283, 4294901760
  %v964 = vsub.f32 %v283, %v963
  %v965 = vand.u32 %v964, 4294901760
  %v966 = vsub.f32 %v964, %v965
  %v967 = vand.u32 %v966, 4294901760
  %968 = vmatmul.mubr.f32.gmra.mxu0 %v967
  %v969 = vpop.f32.mrf.mxu0
  %v970 = vadd.f32 %v99, %v969
  %v971 = vpop.f32.mrf.mxu0
  %972 = vmatprep.mubr.f32.mxu0 0.0
  %v973 = vand.u32 %v286, 4294901760
  %v974 = vsub.f32 %v286, %v973
  %v975 = vand.u32 %v974, 4294901760
  %v976 = vsub.f32 %v974, %v975
  %v977 = vand.u32 %v976, 4294901760
  %978 = vmatmul.mubr.f32.gmra.mxu0 %v977
  %v979 = vpop.f32.mrf.mxu0
  %v980 = vadd.f32 %v99, %v979
  %v981 = vpop.f32.mrf.mxu0
  %982 = vmatprep.mubr.f32.mxu0 0.0
  %v983 = vand.u32 %v289, 4294901760
  %v984 = vsub.f32 %v289, %v983
  %v985 = vand.u32 %v984, 4294901760
  %v986 = vsub.f32 %v984, %v985
  %v987 = vand.u32 %v986, 4294901760
  %988 = vmatmul.mubr.f32.gmra.mxu0 %v987
  %v989 = vpop.f32.mrf.mxu0
  %v990 = vadd.f32 %v99, %v989
  %v991 = vpop.f32.mrf.mxu0
  %992 = vmatprep.mubr.f32.mxu0 0.0
  %v993 = vand.u32 %v292, 4294901760
  %v994 = vsub.f32 %v292, %v993
  %v995 = vand.u32 %v994, 4294901760
  %v996 = vsub.f32 %v994, %v995
  %v997 = vand.u32 %v996, 4294901760
  %998 = vmatmul.mubr.f32.gmra.mxu0 %v997
  %v999 = vpop.f32.mrf.mxu0
  %v1000 = vadd.f32 %v99, %v999
  %v1001 = vpop.f32.mrf.mxu0
  %1002 = vdwg.mxu0
  %1003 = vmatprep.subr.mxu0 0.0
  %1004 = vmatpush1.msra.mxu0 0.0
  %1005 = vmatprep.subr.mxu0 0.0
  %1006 = vmatpush1.msra.mxu0 0.0
  %1007 = vmatprep.subr.mxu0 0.0
  %1008 = vmatpush1.msra.mxu0 0.0
  %1009 = vmatprep.subr.mxu0 0.0
  %1010 = vmatpush1.msra.mxu0 0.0
  %1011 = vmatprep.subr.mxu0 0.0
  %1012 = vmatpush1.msra.mxu0 0.0
  %1013 = vmatprep.subr.mxu0 0.0
  %1014 = vmatpush1.msra.mxu0 0.0
  %1015 = vmatprep.subr.mxu0 0.0
  %1016 = vmatpush1.msra.mxu0 0.0
  %1017 = vmatprep.subr.mxu0 0.0
  %1018 = vmatpush1.msra.mxu0 0.0
  %1019 = vmatprep.subr.mxu0 0.0
  %1020 = vmatpush1.msra.mxu0 0.0
  %1021 = vmatprep.subr.mxu0 0.0
  %1022 = vmatpush1.msra.mxu0 0.0
  %1023 = vmatprep.subr.mxu0 0.0
  %1024 = vmatpush1.msra.mxu0 0.0
  %1025 = vmatprep.subr.mxu0 0.0
  %1026 = vmatpush1.msra.mxu0 0.0
  %1027 = vmatprep.subr.mxu0 0.0
  %v1028 = vand.u32 %v93, 4294901760
  %v1029 = vsub.f32 %v93, %v1028
  %v1030 = vand.u32 %v1029, 4294901760
  %v1031 = vsub.f32 %v1029, %v1030
  %v1032 = vand.u32 %v1031, 4294901760
  %1033 = vmatpush1.msra.mxu0 %v1032
  %1034 = vmatprep.subr.mxu0 0.0
  %v1035 = vand.u32 %v92, 4294901760
  %v1036 = vsub.f32 %v92, %v1035
  %v1037 = vand.u32 %v1036, 4294901760
  %v1038 = vsub.f32 %v1036, %v1037
  %v1039 = vand.u32 %v1038, 4294901760
  %1040 = vmatpush1.msra.mxu0 %v1039
  %1041 = vmatprep.subr.mxu0 0.0
  %v1042 = vand.u32 %v91, 4294901760
  %v1043 = vsub.f32 %v91, %v1042
  %v1044 = vand.u32 %v1043, 4294901760
  %v1045 = vsub.f32 %v1043, %v1044
  %v1046 = vand.u32 %v1045, 4294901760
  %1047 = vmatpush1.msra.mxu0 %v1046
  %1048 = vmatprep.subr.mxu0 0.0
  %v1049 = vand.u32 %v90, 4294901760
  %v1050 = vsub.f32 %v90, %v1049
  %v1051 = vand.u32 %v1050, 4294901760
  %v1052 = vsub.f32 %v1050, %v1051
  %v1053 = vand.u32 %v1052, 4294901760
  %1054 = vmatpush1.msra.mxu0 %v1053
  %1055 = vmatprep.subr.mxu0 0.0
  %1056 = vmatpush2.msra.mxu0 0.0
  %1057 = vmatprep.subr.mxu0 0.0
  %1058 = vmatpush2.msra.mxu0 0.0
  %1059 = vmatprep.subr.mxu0 0.0
  %1060 = vmatpush2.msra.mxu0 0.0
  %1061 = vmatprep.subr.mxu0 0.0
  %1062 = vmatpush2.msra.mxu0 0.0
  %1063 = vmatprep.subr.mxu0 0.0
  %1064 = vmatpush2.msra.mxu0 0.0
  %1065 = vmatprep.subr.mxu0 0.0
  %1066 = vmatpush2.msra.mxu0 0.0
  %1067 = vmatprep.subr.mxu0 0.0
  %1068 = vmatpush2.msra.mxu0 0.0
  %1069 = vmatprep.subr.mxu0 0.0
  %1070 = vmatpush2.msra.mxu0 0.0
  %1071 = vmatprep.subr.mxu0 0.0
  %1072 = vmatpush2.msra.mxu0 0.0
  %1073 = vmatprep.subr.mxu0 0.0
  %1074 = vmatpush2.msra.mxu0 0.0
  %1075 = vmatprep.subr.mxu0 0.0
  %1076 = vmatpush2.msra.mxu0 0.0
  %1077 = vmatprep.subr.mxu0 0.0
  %1078 = vmatpush2.msra.mxu0 0.0
  %1079 = vmatprep.subr.mxu0 0.0
  %1080 = vmatpush2.msra.mxu0 0.0
  %1081 = vmatprep.subr.mxu0 0.0
  %1082 = vmatpush2.msra.mxu0 0.0
  %1083 = vmatprep.subr.mxu0 0.0
  %1084 = vmatpush2.msra.mxu0 0.0
  %1085 = vmatprep.subr.mxu0 0.0
  %1086 = vmatpush2.msra.mxu0 0.0
  %1087 = vmatprep.mubr.f32.mxu0 0.0
  %v1088 = vand.u32 %v103, 4294901760
  %1089 = vmatmul.mubr.f32.gmra.mxu0 %v1088
  %v1090 = vpop.f32.mrf.mxu0
  %v1091 = vadd.f32 %v370, %v1090
  %v1092 = vpop.f32.mrf.mxu0
  %1093 = vmatprep.mubr.f32.mxu0 0.0
  %v1094 = vand.u32 %v106, 4294901760
  %1095 = vmatmul.mubr.f32.gmra.mxu0 %v1094
  %v1096 = vpop.f32.mrf.mxu0
  %v1097 = vadd.f32 %v380, %v1096
  %v1098 = vpop.f32.mrf.mxu0
  %1099 = vmatprep.mubr.f32.mxu0 0.0
  %v1100 = vand.u32 %v109, 4294901760
  %1101 = vmatmul.mubr.f32.gmra.mxu0 %v1100
  %v1102 = vpop.f32.mrf.mxu0
  %v1103 = vadd.f32 %v390, %v1102
  %v1104 = vpop.f32.mrf.mxu0
  %1105 = vmatprep.mubr.f32.mxu0 0.0
  %v1106 = vand.u32 %v112, 4294901760
  %1107 = vmatmul.mubr.f32.gmra.mxu0 %v1106
  %v1108 = vpop.f32.mrf.mxu0
  %v1109 = vadd.f32 %v400, %v1108
  %v1110 = vpop.f32.mrf.mxu0
  %1111 = vmatprep.mubr.f32.mxu0 0.0
  %v1112 = vand.u32 %v115, 4294901760
  %1113 = vmatmul.mubr.f32.gmra.mxu0 %v1112
  %v1114 = vpop.f32.mrf.mxu0
  %v1115 = vadd.f32 %v410, %v1114
  %v1116 = vpop.f32.mrf.mxu0
  %1117 = vmatprep.mubr.f32.mxu0 0.0
  %v1118 = vand.u32 %v118, 4294901760
  %1119 = vmatmul.mubr.f32.gmra.mxu0 %v1118
  %v1120 = vpop.f32.mrf.mxu0
  %v1121 = vadd.f32 %v420, %v1120
  %v1122 = vpop.f32.mrf.mxu0
  %1123 = vmatprep.mubr.f32.mxu0 0.0
  %v1124 = vand.u32 %v121, 4294901760
  %1125 = vmatmul.mubr.f32.gmra.mxu0 %v1124
  %v1126 = vpop.f32.mrf.mxu0
  %v1127 = vadd.f32 %v430, %v1126
  %v1128 = vpop.f32.mrf.mxu0
  %1129 = vmatprep.mubr.f32.mxu0 0.0
  %v1130 = vand.u32 %v124, 4294901760
  %1131 = vmatmul.mubr.f32.gmra.mxu0 %v1130
  %v1132 = vpop.f32.mrf.mxu0
  %v1133 = vadd.f32 %v440, %v1132
  %v1134 = vpop.f32.mrf.mxu0
  %1135 = vmatprep.mubr.f32.mxu0 0.0
  %v1136 = vand.u32 %v127, 4294901760
  %1137 = vmatmul.mubr.f32.gmra.mxu0 %v1136
  %v1138 = vpop.f32.mrf.mxu0
  %v1139 = vadd.f32 %v450, %v1138
  %v1140 = vpop.f32.mrf.mxu0
  %1141 = vmatprep.mubr.f32.mxu0 0.0
  %v1142 = vand.u32 %v130, 4294901760
  %1143 = vmatmul.mubr.f32.gmra.mxu0 %v1142
  %v1144 = vpop.f32.mrf.mxu0
  %v1145 = vadd.f32 %v460, %v1144
  %v1146 = vpop.f32.mrf.mxu0
  %1147 = vmatprep.mubr.f32.mxu0 0.0
  %v1148 = vand.u32 %v133, 4294901760
  %1149 = vmatmul.mubr.f32.gmra.mxu0 %v1148
  %v1150 = vpop.f32.mrf.mxu0
  %v1151 = vadd.f32 %v470, %v1150
  %v1152 = vpop.f32.mrf.mxu0
  %1153 = vmatprep.mubr.f32.mxu0 0.0
  %v1154 = vand.u32 %v136, 4294901760
  %1155 = vmatmul.mubr.f32.gmra.mxu0 %v1154
  %v1156 = vpop.f32.mrf.mxu0
  %v1157 = vadd.f32 %v480, %v1156
  %v1158 = vpop.f32.mrf.mxu0
  %1159 = vmatprep.mubr.f32.mxu0 0.0
  %v1160 = vand.u32 %v139, 4294901760
  %1161 = vmatmul.mubr.f32.gmra.mxu0 %v1160
  %v1162 = vpop.f32.mrf.mxu0
  %v1163 = vadd.f32 %v490, %v1162
  %v1164 = vpop.f32.mrf.mxu0
  %1165 = vmatprep.mubr.f32.mxu0 0.0
  %v1166 = vand.u32 %v142, 4294901760
  %1167 = vmatmul.mubr.f32.gmra.mxu0 %v1166
  %v1168 = vpop.f32.mrf.mxu0
  %v1169 = vadd.f32 %v500, %v1168
  %v1170 = vpop.f32.mrf.mxu0
  %1171 = vmatprep.mubr.f32.mxu0 0.0
  %v1172 = vand.u32 %v145, 4294901760
  %1173 = vmatmul.mubr.f32.gmra.mxu0 %v1172
  %v1174 = vpop.f32.mrf.mxu0
  %v1175 = vadd.f32 %v510, %v1174
  %v1176 = vpop.f32.mrf.mxu0
  %1177 = vmatprep.mubr.f32.mxu0 0.0
  %v1178 = vand.u32 %v148, 4294901760
  %1179 = vmatmul.mubr.f32.gmra.mxu0 %v1178
  %v1180 = vpop.f32.mrf.mxu0
  %v1181 = vadd.f32 %v520, %v1180
  %v1182 = vpop.f32.mrf.mxu0
  %1183 = vmatprep.mubr.f32.mxu0 0.0
  %v1184 = vand.u32 %v151, 4294901760
  %1185 = vmatmul.mubr.f32.gmra.mxu0 %v1184
  %v1186 = vpop.f32.mrf.mxu0
  %v1187 = vadd.f32 %v530, %v1186
  %v1188 = vpop.f32.mrf.mxu0
  %1189 = vmatprep.mubr.f32.mxu0 0.0
  %v1190 = vand.u32 %v154, 4294901760
  %1191 = vmatmul.mubr.f32.gmra.mxu0 %v1190
  %v1192 = vpop.f32.mrf.mxu0
  %v1193 = vadd.f32 %v540, %v1192
  %v1194 = vpop.f32.mrf.mxu0
  %1195 = vmatprep.mubr.f32.mxu0 0.0
  %v1196 = vand.u32 %v157, 4294901760
  %1197 = vmatmul.mubr.f32.gmra.mxu0 %v1196
  %v1198 = vpop.f32.mrf.mxu0
  %v1199 = vadd.f32 %v550, %v1198
  %v1200 = vpop.f32.mrf.mxu0
  %1201 = vmatprep.mubr.f32.mxu0 0.0
  %v1202 = vand.u32 %v160, 4294901760
  %1203 = vmatmul.mubr.f32.gmra.mxu0 %v1202
  %v1204 = vpop.f32.mrf.mxu0
  %v1205 = vadd.f32 %v560, %v1204
  %v1206 = vpop.f32.mrf.mxu0
  %1207 = vmatprep.mubr.f32.mxu0 0.0
  %v1208 = vand.u32 %v163, 4294901760
  %1209 = vmatmul.mubr.f32.gmra.mxu0 %v1208
  %v1210 = vpop.f32.mrf.mxu0
  %v1211 = vadd.f32 %v570, %v1210
  %v1212 = vpop.f32.mrf.mxu0
  %1213 = vmatprep.mubr.f32.mxu0 0.0
  %v1214 = vand.u32 %v166, 4294901760
  %1215 = vmatmul.mubr.f32.gmra.mxu0 %v1214
  %v1216 = vpop.f32.mrf.mxu0
  %v1217 = vadd.f32 %v580, %v1216
  %v1218 = vpop.f32.mrf.mxu0
  %1219 = vmatprep.mubr.f32.mxu0 0.0
  %v1220 = vand.u32 %v169, 4294901760
  %1221 = vmatmul.mubr.f32.gmra.mxu0 %v1220
  %v1222 = vpop.f32.mrf.mxu0
  %v1223 = vadd.f32 %v590, %v1222
  %v1224 = vpop.f32.mrf.mxu0
  %1225 = vmatprep.mubr.f32.mxu0 0.0
  %v1226 = vand.u32 %v172, 4294901760
  %1227 = vmatmul.mubr.f32.gmra.mxu0 %v1226
  %v1228 = vpop.f32.mrf.mxu0
  %v1229 = vadd.f32 %v600, %v1228
  %v1230 = vpop.f32.mrf.mxu0
  %1231 = vmatprep.mubr.f32.mxu0 0.0
  %v1232 = vand.u32 %v175, 4294901760
  %1233 = vmatmul.mubr.f32.gmra.mxu0 %v1232
  %v1234 = vpop.f32.mrf.mxu0
  %v1235 = vadd.f32 %v610, %v1234
  %v1236 = vpop.f32.mrf.mxu0
  %1237 = vmatprep.mubr.f32.mxu0 0.0
  %v1238 = vand.u32 %v178, 4294901760
  %1239 = vmatmul.mubr.f32.gmra.mxu0 %v1238
  %v1240 = vpop.f32.mrf.mxu0
  %v1241 = vadd.f32 %v620, %v1240
  %v1242 = vpop.f32.mrf.mxu0
  %1243 = vmatprep.mubr.f32.mxu0 0.0
  %v1244 = vand.u32 %v181, 4294901760
  %1245 = vmatmul.mubr.f32.gmra.mxu0 %v1244
  %v1246 = vpop.f32.mrf.mxu0
  %v1247 = vadd.f32 %v630, %v1246
  %v1248 = vpop.f32.mrf.mxu0
  %1249 = vmatprep.mubr.f32.mxu0 0.0
  %v1250 = vand.u32 %v184, 4294901760
  %1251 = vmatmul.mubr.f32.gmra.mxu0 %v1250
  %v1252 = vpop.f32.mrf.mxu0
  %v1253 = vadd.f32 %v640, %v1252
  %v1254 = vpop.f32.mrf.mxu0
  %1255 = vmatprep.mubr.f32.mxu0 0.0
  %v1256 = vand.u32 %v187, 4294901760
  %1257 = vmatmul.mubr.f32.gmra.mxu0 %v1256
  %v1258 = vpop.f32.mrf.mxu0
  %v1259 = vadd.f32 %v650, %v1258
  %v1260 = vpop.f32.mrf.mxu0
  %1261 = vmatprep.mubr.f32.mxu0 0.0
  %v1262 = vand.u32 %v190, 4294901760
  %1263 = vmatmul.mubr.f32.gmra.mxu0 %v1262
  %v1264 = vpop.f32.mrf.mxu0
  %v1265 = vadd.f32 %v660, %v1264
  %v1266 = vpop.f32.mrf.mxu0
  %1267 = vmatprep.mubr.f32.mxu0 0.0
  %v1268 = vand.u32 %v193, 4294901760
  %1269 = vmatmul.mubr.f32.gmra.mxu0 %v1268
  %v1270 = vpop.f32.mrf.mxu0
  %v1271 = vadd.f32 %v670, %v1270
  %v1272 = vpop.f32.mrf.mxu0
  %1273 = vmatprep.mubr.f32.mxu0 0.0
  %v1274 = vand.u32 %v196, 4294901760
  %1275 = vmatmul.mubr.f32.gmra.mxu0 %v1274
  %v1276 = vpop.f32.mrf.mxu0
  %v1277 = vadd.f32 %v680, %v1276
  %v1278 = vpop.f32.mrf.mxu0
  %1279 = vmatprep.mubr.f32.mxu0 0.0
  %v1280 = vand.u32 %v199, 4294901760
  %1281 = vmatmul.mubr.f32.gmra.mxu0 %v1280
  %v1282 = vpop.f32.mrf.mxu0
  %v1283 = vadd.f32 %v690, %v1282
  %v1284 = vpop.f32.mrf.mxu0
  %1285 = vmatprep.mubr.f32.mxu0 0.0
  %v1286 = vand.u32 %v202, 4294901760
  %1287 = vmatmul.mubr.f32.gmra.mxu0 %v1286
  %v1288 = vpop.f32.mrf.mxu0
  %v1289 = vadd.f32 %v700, %v1288
  %v1290 = vpop.f32.mrf.mxu0
  %1291 = vmatprep.mubr.f32.mxu0 0.0
  %v1292 = vand.u32 %v205, 4294901760
  %1293 = vmatmul.mubr.f32.gmra.mxu0 %v1292
  %v1294 = vpop.f32.mrf.mxu0
  %v1295 = vadd.f32 %v710, %v1294
  %v1296 = vpop.f32.mrf.mxu0
  %1297 = vmatprep.mubr.f32.mxu0 0.0
  %v1298 = vand.u32 %v208, 4294901760
  %1299 = vmatmul.mubr.f32.gmra.mxu0 %v1298
  %v1300 = vpop.f32.mrf.mxu0
  %v1301 = vadd.f32 %v720, %v1300
  %v1302 = vpop.f32.mrf.mxu0
  %1303 = vmatprep.mubr.f32.mxu0 0.0
  %v1304 = vand.u32 %v211, 4294901760
  %1305 = vmatmul.mubr.f32.gmra.mxu0 %v1304
  %v1306 = vpop.f32.mrf.mxu0
  %v1307 = vadd.f32 %v730, %v1306
  %v1308 = vpop.f32.mrf.mxu0
  %1309 = vmatprep.mubr.f32.mxu0 0.0
  %v1310 = vand.u32 %v214, 4294901760
  %1311 = vmatmul.mubr.f32.gmra.mxu0 %v1310
  %v1312 = vpop.f32.mrf.mxu0
  %v1313 = vadd.f32 %v740, %v1312
  %v1314 = vpop.f32.mrf.mxu0
  %1315 = vmatprep.mubr.f32.mxu0 0.0
  %v1316 = vand.u32 %v217, 4294901760
  %1317 = vmatmul.mubr.f32.gmra.mxu0 %v1316
  %v1318 = vpop.f32.mrf.mxu0
  %v1319 = vadd.f32 %v750, %v1318
  %v1320 = vpop.f32.mrf.mxu0
  %1321 = vmatprep.mubr.f32.mxu0 0.0
  %v1322 = vand.u32 %v220, 4294901760
  %1323 = vmatmul.mubr.f32.gmra.mxu0 %v1322
  %v1324 = vpop.f32.mrf.mxu0
  %v1325 = vadd.f32 %v760, %v1324
  %v1326 = vpop.f32.mrf.mxu0
  %1327 = vmatprep.mubr.f32.mxu0 0.0
  %v1328 = vand.u32 %v223, 4294901760
  %1329 = vmatmul.mubr.f32.gmra.mxu0 %v1328
  %v1330 = vpop.f32.mrf.mxu0
  %v1331 = vadd.f32 %v770, %v1330
  %v1332 = vpop.f32.mrf.mxu0
  %1333 = vmatprep.mubr.f32.mxu0 0.0
  %v1334 = vand.u32 %v226, 4294901760
  %1335 = vmatmul.mubr.f32.gmra.mxu0 %v1334
  %v1336 = vpop.f32.mrf.mxu0
  %v1337 = vadd.f32 %v780, %v1336
  %v1338 = vpop.f32.mrf.mxu0
  %1339 = vmatprep.mubr.f32.mxu0 0.0
  %v1340 = vand.u32 %v229, 4294901760
  %1341 = vmatmul.mubr.f32.gmra.mxu0 %v1340
  %v1342 = vpop.f32.mrf.mxu0
  %v1343 = vadd.f32 %v790, %v1342
  %v1344 = vpop.f32.mrf.mxu0
  %1345 = vmatprep.mubr.f32.mxu0 0.0
  %v1346 = vand.u32 %v232, 4294901760
  %1347 = vmatmul.mubr.f32.gmra.mxu0 %v1346
  %v1348 = vpop.f32.mrf.mxu0
  %v1349 = vadd.f32 %v800, %v1348
  %v1350 = vpop.f32.mrf.mxu0
  %1351 = vmatprep.mubr.f32.mxu0 0.0
  %v1352 = vand.u32 %v235, 4294901760
  %1353 = vmatmul.mubr.f32.gmra.mxu0 %v1352
  %v1354 = vpop.f32.mrf.mxu0
  %v1355 = vadd.f32 %v810, %v1354
  %v1356 = vpop.f32.mrf.mxu0
  %1357 = vmatprep.mubr.f32.mxu0 0.0
  %v1358 = vand.u32 %v238, 4294901760
  %1359 = vmatmul.mubr.f32.gmra.mxu0 %v1358
  %v1360 = vpop.f32.mrf.mxu0
  %v1361 = vadd.f32 %v820, %v1360
  %v1362 = vpop.f32.mrf.mxu0
  %1363 = vmatprep.mubr.f32.mxu0 0.0
  %v1364 = vand.u32 %v241, 4294901760
  %1365 = vmatmul.mubr.f32.gmra.mxu0 %v1364
  %v1366 = vpop.f32.mrf.mxu0
  %v1367 = vadd.f32 %v830, %v1366
  %v1368 = vpop.f32.mrf.mxu0
  %1369 = vmatprep.mubr.f32.mxu0 0.0
  %v1370 = vand.u32 %v244, 4294901760
  %1371 = vmatmul.mubr.f32.gmra.mxu0 %v1370
  %v1372 = vpop.f32.mrf.mxu0
  %v1373 = vadd.f32 %v840, %v1372
  %v1374 = vpop.f32.mrf.mxu0
  %1375 = vmatprep.mubr.f32.mxu0 0.0
  %v1376 = vand.u32 %v247, 4294901760
  %1377 = vmatmul.mubr.f32.gmra.mxu0 %v1376
  %v1378 = vpop.f32.mrf.mxu0
  %v1379 = vadd.f32 %v850, %v1378
  %v1380 = vpop.f32.mrf.mxu0
  %1381 = vmatprep.mubr.f32.mxu0 0.0
  %v1382 = vand.u32 %v250, 4294901760
  %1383 = vmatmul.mubr.f32.gmra.mxu0 %v1382
  %v1384 = vpop.f32.mrf.mxu0
  %v1385 = vadd.f32 %v860, %v1384
  %v1386 = vpop.f32.mrf.mxu0
  %1387 = vmatprep.mubr.f32.mxu0 0.0
  %v1388 = vand.u32 %v253, 4294901760
  %1389 = vmatmul.mubr.f32.gmra.mxu0 %v1388
  %v1390 = vpop.f32.mrf.mxu0
  %v1391 = vadd.f32 %v870, %v1390
  %v1392 = vpop.f32.mrf.mxu0
  %1393 = vmatprep.mubr.f32.mxu0 0.0
  %v1394 = vand.u32 %v256, 4294901760
  %1395 = vmatmul.mubr.f32.gmra.mxu0 %v1394
  %v1396 = vpop.f32.mrf.mxu0
  %v1397 = vadd.f32 %v880, %v1396
  %v1398 = vpop.f32.mrf.mxu0
  %1399 = vmatprep.mubr.f32.mxu0 0.0
  %v1400 = vand.u32 %v259, 4294901760
  %1401 = vmatmul.mubr.f32.gmra.mxu0 %v1400
  %v1402 = vpop.f32.mrf.mxu0
  %v1403 = vadd.f32 %v890, %v1402
  %v1404 = vpop.f32.mrf.mxu0
  %1405 = vmatprep.mubr.f32.mxu0 0.0
  %v1406 = vand.u32 %v262, 4294901760
  %1407 = vmatmul.mubr.f32.gmra.mxu0 %v1406
  %v1408 = vpop.f32.mrf.mxu0
  %v1409 = vadd.f32 %v900, %v1408
  %v1410 = vpop.f32.mrf.mxu0
  %1411 = vmatprep.mubr.f32.mxu0 0.0
  %v1412 = vand.u32 %v265, 4294901760
  %1413 = vmatmul.mubr.f32.gmra.mxu0 %v1412
  %v1414 = vpop.f32.mrf.mxu0
  %v1415 = vadd.f32 %v910, %v1414
  %v1416 = vpop.f32.mrf.mxu0
  %1417 = vmatprep.mubr.f32.mxu0 0.0
  %v1418 = vand.u32 %v268, 4294901760
  %1419 = vmatmul.mubr.f32.gmra.mxu0 %v1418
  %v1420 = vpop.f32.mrf.mxu0
  %v1421 = vadd.f32 %v920, %v1420
  %v1422 = vpop.f32.mrf.mxu0
  %1423 = vmatprep.mubr.f32.mxu0 0.0
  %v1424 = vand.u32 %v271, 4294901760
  %1425 = vmatmul.mubr.f32.gmra.mxu0 %v1424
  %v1426 = vpop.f32.mrf.mxu0
  %v1427 = vadd.f32 %v930, %v1426
  %v1428 = vpop.f32.mrf.mxu0
  %1429 = vmatprep.mubr.f32.mxu0 0.0
  %v1430 = vand.u32 %v274, 4294901760
  %1431 = vmatmul.mubr.f32.gmra.mxu0 %v1430
  %v1432 = vpop.f32.mrf.mxu0
  %v1433 = vadd.f32 %v940, %v1432
  %v1434 = vpop.f32.mrf.mxu0
  %1435 = vmatprep.mubr.f32.mxu0 0.0
  %v1436 = vand.u32 %v277, 4294901760
  %1437 = vmatmul.mubr.f32.gmra.mxu0 %v1436
  %v1438 = vpop.f32.mrf.mxu0
  %v1439 = vadd.f32 %v950, %v1438
  %v1440 = vpop.f32.mrf.mxu0
  %1441 = vmatprep.mubr.f32.mxu0 0.0
  %v1442 = vand.u32 %v280, 4294901760
  %1443 = vmatmul.mubr.f32.gmra.mxu0 %v1442
  %v1444 = vpop.f32.mrf.mxu0
  %v1445 = vadd.f32 %v960, %v1444
  %v1446 = vpop.f32.mrf.mxu0
  %1447 = vmatprep.mubr.f32.mxu0 0.0
  %v1448 = vand.u32 %v283, 4294901760
  %1449 = vmatmul.mubr.f32.gmra.mxu0 %v1448
  %v1450 = vpop.f32.mrf.mxu0
  %v1451 = vadd.f32 %v970, %v1450
  %v1452 = vpop.f32.mrf.mxu0
  %1453 = vmatprep.mubr.f32.mxu0 0.0
  %v1454 = vand.u32 %v286, 4294901760
  %1455 = vmatmul.mubr.f32.gmra.mxu0 %v1454
  %v1456 = vpop.f32.mrf.mxu0
  %v1457 = vadd.f32 %v980, %v1456
  %v1458 = vpop.f32.mrf.mxu0
  %1459 = vmatprep.mubr.f32.mxu0 0.0
  %v1460 = vand.u32 %v289, 4294901760
  %1461 = vmatmul.mubr.f32.gmra.mxu0 %v1460
  %v1462 = vpop.f32.mrf.mxu0
  %v1463 = vadd.f32 %v990, %v1462
  %v1464 = vpop.f32.mrf.mxu0
  %1465 = vmatprep.mubr.f32.mxu0 0.0
  %v1466 = vand.u32 %v292, 4294901760
  %1467 = vmatmul.mubr.f32.gmra.mxu0 %v1466
  %v1468 = vpop.f32.mrf.mxu0
  %v1469 = vadd.f32 %v1000, %v1468
  %v1470 = vpop.f32.mrf.mxu0
  %1471 = vdwg.mxu0
  %1472 = vmatprep.subr.mxu0 0.0
  %1473 = vmatpush1.msra.mxu0 0.0
  %1474 = vmatprep.subr.mxu0 0.0
  %1475 = vmatpush1.msra.mxu0 0.0
  %1476 = vmatprep.subr.mxu0 0.0
  %1477 = vmatpush1.msra.mxu0 0.0
  %1478 = vmatprep.subr.mxu0 0.0
  %1479 = vmatpush1.msra.mxu0 0.0
  %1480 = vmatprep.subr.mxu0 0.0
  %1481 = vmatpush1.msra.mxu0 0.0
  %1482 = vmatprep.subr.mxu0 0.0
  %1483 = vmatpush1.msra.mxu0 0.0
  %1484 = vmatprep.subr.mxu0 0.0
  %1485 = vmatpush1.msra.mxu0 0.0
  %1486 = vmatprep.subr.mxu0 0.0
  %1487 = vmatpush1.msra.mxu0 0.0
  %1488 = vmatprep.subr.mxu0 0.0
  %1489 = vmatpush1.msra.mxu0 0.0
  %1490 = vmatprep.subr.mxu0 0.0
  %1491 = vmatpush1.msra.mxu0 0.0
  %1492 = vmatprep.subr.mxu0 0.0
  %1493 = vmatpush1.msra.mxu0 0.0
  %1494 = vmatprep.subr.mxu0 0.0
  %1495 = vmatpush1.msra.mxu0 0.0
  %1496 = vmatprep.subr.mxu0 0.0
  %v1497 = vand.u32 %v93, 4294901760
  %v1498 = vsub.f32 %v93, %v1497
  %1499 = vmatpush1.msra.mxu0 %v1498
  %1500 = vmatprep.subr.mxu0 0.0
  %v1501 = vand.u32 %v92, 4294901760
  %v1502 = vsub.f32 %v92, %v1501
  %1503 = vmatpush1.msra.mxu0 %v1502
  %1504 = vmatprep.subr.mxu0 0.0
  %v1505 = vand.u32 %v91, 4294901760
  %v1506 = vsub.f32 %v91, %v1505
  %1507 = vmatpush1.msra.mxu0 %v1506
  %1508 = vmatprep.subr.mxu0 0.0
  %v1509 = vand.u32 %v90, 4294901760
  %v1510 = vsub.f32 %v90, %v1509
  %1511 = vmatpush1.msra.mxu0 %v1510
  %1512 = vmatprep.subr.mxu0 0.0
  %1513 = vmatpush2.msra.mxu0 0.0
  %1514 = vmatprep.subr.mxu0 0.0
  %1515 = vmatpush2.msra.mxu0 0.0
  %1516 = vmatprep.subr.mxu0 0.0
  %1517 = vmatpush2.msra.mxu0 0.0
  %1518 = vmatprep.subr.mxu0 0.0
  %1519 = vmatpush2.msra.mxu0 0.0
  %1520 = vmatprep.subr.mxu0 0.0
  %1521 = vmatpush2.msra.mxu0 0.0
  %1522 = vmatprep.subr.mxu0 0.0
  %1523 = vmatpush2.msra.mxu0 0.0
  %1524 = vmatprep.subr.mxu0 0.0
  %1525 = vmatpush2.msra.mxu0 0.0
  %1526 = vmatprep.subr.mxu0 0.0
  %1527 = vmatpush2.msra.mxu0 0.0
  %1528 = vmatprep.subr.mxu0 0.0
  %1529 = vmatpush2.msra.mxu0 0.0
  %1530 = vmatprep.subr.mxu0 0.0
  %1531 = vmatpush2.msra.mxu0 0.0
  %1532 = vmatprep.subr.mxu0 0.0
  %1533 = vmatpush2.msra.mxu0 0.0
  %1534 = vmatprep.subr.mxu0 0.0
  %1535 = vmatpush2.msra.mxu0 0.0
  %1536 = vmatprep.subr.mxu0 0.0
  %1537 = vmatpush2.msra.mxu0 0.0
  %1538 = vmatprep.subr.mxu0 0.0
  %1539 = vmatpush2.msra.mxu0 0.0
  %1540 = vmatprep.subr.mxu0 0.0
  %1541 = vmatpush2.msra.mxu0 0.0
  %1542 = vmatprep.subr.mxu0 0.0
  %1543 = vmatpush2.msra.mxu0 0.0
  %1544 = vmatprep.mubr.f32.mxu0 0.0
  %v1545 = vand.u32 %v103, 4294901760
  %v1546 = vsub.f32 %v103, %v1545
  %1547 = vmatmul.mubr.f32.gmra.mxu0 %v1546
  %v1548 = vpop.f32.mrf.mxu0
  %v1549 = vadd.f32 %v1091, %v1548
  %v1550 = vpop.f32.mrf.mxu0
  %1551 = vmatprep.mubr.f32.mxu0 0.0
  %v1552 = vand.u32 %v106, 4294901760
  %v1553 = vsub.f32 %v106, %v1552
  %1554 = vmatmul.mubr.f32.gmra.mxu0 %v1553
  %v1555 = vpop.f32.mrf.mxu0
  %v1556 = vadd.f32 %v1097, %v1555
  %v1557 = vpop.f32.mrf.mxu0
  %1558 = vmatprep.mubr.f32.mxu0 0.0
  %v1559 = vand.u32 %v109, 4294901760
  %v1560 = vsub.f32 %v109, %v1559
  %1561 = vmatmul.mubr.f32.gmra.mxu0 %v1560
  %v1562 = vpop.f32.mrf.mxu0
  %v1563 = vadd.f32 %v1103, %v1562
  %v1564 = vpop.f32.mrf.mxu0
  %1565 = vmatprep.mubr.f32.mxu0 0.0
  %v1566 = vand.u32 %v112, 4294901760
  %v1567 = vsub.f32 %v112, %v1566
  %1568 = vmatmul.mubr.f32.gmra.mxu0 %v1567
  %v1569 = vpop.f32.mrf.mxu0
  %v1570 = vadd.f32 %v1109, %v1569
  %v1571 = vpop.f32.mrf.mxu0
  %1572 = vmatprep.mubr.f32.mxu0 0.0
  %v1573 = vand.u32 %v115, 4294901760
  %v1574 = vsub.f32 %v115, %v1573
  %1575 = vmatmul.mubr.f32.gmra.mxu0 %v1574
  %v1576 = vpop.f32.mrf.mxu0
  %v1577 = vadd.f32 %v1115, %v1576
  %v1578 = vpop.f32.mrf.mxu0
  %1579 = vmatprep.mubr.f32.mxu0 0.0
  %v1580 = vand.u32 %v118, 4294901760
  %v1581 = vsub.f32 %v118, %v1580
  %1582 = vmatmul.mubr.f32.gmra.mxu0 %v1581
  %v1583 = vpop.f32.mrf.mxu0
  %v1584 = vadd.f32 %v1121, %v1583
  %v1585 = vpop.f32.mrf.mxu0
  %1586 = vmatprep.mubr.f32.mxu0 0.0
  %v1587 = vand.u32 %v121, 4294901760
  %v1588 = vsub.f32 %v121, %v1587
  %1589 = vmatmul.mubr.f32.gmra.mxu0 %v1588
  %v1590 = vpop.f32.mrf.mxu0
  %v1591 = vadd.f32 %v1127, %v1590
  %v1592 = vpop.f32.mrf.mxu0
  %1593 = vmatprep.mubr.f32.mxu0 0.0
  %v1594 = vand.u32 %v124, 4294901760
  %v1595 = vsub.f32 %v124, %v1594
  %1596 = vmatmul.mubr.f32.gmra.mxu0 %v1595
  %v1597 = vpop.f32.mrf.mxu0
  %v1598 = vadd.f32 %v1133, %v1597
  %v1599 = vpop.f32.mrf.mxu0
  %1600 = vmatprep.mubr.f32.mxu0 0.0
  %v1601 = vand.u32 %v127, 4294901760
  %v1602 = vsub.f32 %v127, %v1601
  %1603 = vmatmul.mubr.f32.gmra.mxu0 %v1602
  %v1604 = vpop.f32.mrf.mxu0
  %v1605 = vadd.f32 %v1139, %v1604
  %v1606 = vpop.f32.mrf.mxu0
  %1607 = vmatprep.mubr.f32.mxu0 0.0
  %v1608 = vand.u32 %v130, 4294901760
  %v1609 = vsub.f32 %v130, %v1608
  %1610 = vmatmul.mubr.f32.gmra.mxu0 %v1609
  %v1611 = vpop.f32.mrf.mxu0
  %v1612 = vadd.f32 %v1145, %v1611
  %v1613 = vpop.f32.mrf.mxu0
  %1614 = vmatprep.mubr.f32.mxu0 0.0
  %v1615 = vand.u32 %v133, 4294901760
  %v1616 = vsub.f32 %v133, %v1615
  %1617 = vmatmul.mubr.f32.gmra.mxu0 %v1616
  %v1618 = vpop.f32.mrf.mxu0
  %v1619 = vadd.f32 %v1151, %v1618
  %v1620 = vpop.f32.mrf.mxu0
  %1621 = vmatprep.mubr.f32.mxu0 0.0
  %v1622 = vand.u32 %v136, 4294901760
  %v1623 = vsub.f32 %v136, %v1622
  %1624 = vmatmul.mubr.f32.gmra.mxu0 %v1623
  %v1625 = vpop.f32.mrf.mxu0
  %v1626 = vadd.f32 %v1157, %v1625
  %v1627 = vpop.f32.mrf.mxu0
  %1628 = vmatprep.mubr.f32.mxu0 0.0
  %v1629 = vand.u32 %v139, 4294901760
  %v1630 = vsub.f32 %v139, %v1629
  %1631 = vmatmul.mubr.f32.gmra.mxu0 %v1630
  %v1632 = vpop.f32.mrf.mxu0
  %v1633 = vadd.f32 %v1163, %v1632
  %v1634 = vpop.f32.mrf.mxu0
  %1635 = vmatprep.mubr.f32.mxu0 0.0
  %v1636 = vand.u32 %v142, 4294901760
  %v1637 = vsub.f32 %v142, %v1636
  %1638 = vmatmul.mubr.f32.gmra.mxu0 %v1637
  %v1639 = vpop.f32.mrf.mxu0
  %v1640 = vadd.f32 %v1169, %v1639
  %v1641 = vpop.f32.mrf.mxu0
  %1642 = vmatprep.mubr.f32.mxu0 0.0
  %v1643 = vand.u32 %v145, 4294901760
  %v1644 = vsub.f32 %v145, %v1643
  %1645 = vmatmul.mubr.f32.gmra.mxu0 %v1644
  %v1646 = vpop.f32.mrf.mxu0
  %v1647 = vadd.f32 %v1175, %v1646
  %v1648 = vpop.f32.mrf.mxu0
  %1649 = vmatprep.mubr.f32.mxu0 0.0
  %v1650 = vand.u32 %v148, 4294901760
  %v1651 = vsub.f32 %v148, %v1650
  %1652 = vmatmul.mubr.f32.gmra.mxu0 %v1651
  %v1653 = vpop.f32.mrf.mxu0
  %v1654 = vadd.f32 %v1181, %v1653
  %v1655 = vpop.f32.mrf.mxu0
  %1656 = vmatprep.mubr.f32.mxu0 0.0
  %v1657 = vand.u32 %v151, 4294901760
  %v1658 = vsub.f32 %v151, %v1657
  %1659 = vmatmul.mubr.f32.gmra.mxu0 %v1658
  %v1660 = vpop.f32.mrf.mxu0
  %v1661 = vadd.f32 %v1187, %v1660
  %v1662 = vpop.f32.mrf.mxu0
  %1663 = vmatprep.mubr.f32.mxu0 0.0
  %v1664 = vand.u32 %v154, 4294901760
  %v1665 = vsub.f32 %v154, %v1664
  %1666 = vmatmul.mubr.f32.gmra.mxu0 %v1665
  %v1667 = vpop.f32.mrf.mxu0
  %v1668 = vadd.f32 %v1193, %v1667
  %v1669 = vpop.f32.mrf.mxu0
  %1670 = vmatprep.mubr.f32.mxu0 0.0
  %v1671 = vand.u32 %v157, 4294901760
  %v1672 = vsub.f32 %v157, %v1671
  %1673 = vmatmul.mubr.f32.gmra.mxu0 %v1672
  %v1674 = vpop.f32.mrf.mxu0
  %v1675 = vadd.f32 %v1199, %v1674
  %v1676 = vpop.f32.mrf.mxu0
  %1677 = vmatprep.mubr.f32.mxu0 0.0
  %v1678 = vand.u32 %v160, 4294901760
  %v1679 = vsub.f32 %v160, %v1678
  %1680 = vmatmul.mubr.f32.gmra.mxu0 %v1679
  %v1681 = vpop.f32.mrf.mxu0
  %v1682 = vadd.f32 %v1205, %v1681
  %v1683 = vpop.f32.mrf.mxu0
  %1684 = vmatprep.mubr.f32.mxu0 0.0
  %v1685 = vand.u32 %v163, 4294901760
  %v1686 = vsub.f32 %v163, %v1685
  %1687 = vmatmul.mubr.f32.gmra.mxu0 %v1686
  %v1688 = vpop.f32.mrf.mxu0
  %v1689 = vadd.f32 %v1211, %v1688
  %v1690 = vpop.f32.mrf.mxu0
  %1691 = vmatprep.mubr.f32.mxu0 0.0
  %v1692 = vand.u32 %v166, 4294901760
  %v1693 = vsub.f32 %v166, %v1692
  %1694 = vmatmul.mubr.f32.gmra.mxu0 %v1693
  %v1695 = vpop.f32.mrf.mxu0
  %v1696 = vadd.f32 %v1217, %v1695
  %v1697 = vpop.f32.mrf.mxu0
  %1698 = vmatprep.mubr.f32.mxu0 0.0
  %v1699 = vand.u32 %v169, 4294901760
  %v1700 = vsub.f32 %v169, %v1699
  %1701 = vmatmul.mubr.f32.gmra.mxu0 %v1700
  %v1702 = vpop.f32.mrf.mxu0
  %v1703 = vadd.f32 %v1223, %v1702
  %v1704 = vpop.f32.mrf.mxu0
  %1705 = vmatprep.mubr.f32.mxu0 0.0
  %v1706 = vand.u32 %v172, 4294901760
  %v1707 = vsub.f32 %v172, %v1706
  %1708 = vmatmul.mubr.f32.gmra.mxu0 %v1707
  %v1709 = vpop.f32.mrf.mxu0
  %v1710 = vadd.f32 %v1229, %v1709
  %v1711 = vpop.f32.mrf.mxu0
  %1712 = vmatprep.mubr.f32.mxu0 0.0
  %v1713 = vand.u32 %v175, 4294901760
  %v1714 = vsub.f32 %v175, %v1713
  %1715 = vmatmul.mubr.f32.gmra.mxu0 %v1714
  %v1716 = vpop.f32.mrf.mxu0
  %v1717 = vadd.f32 %v1235, %v1716
  %v1718 = vpop.f32.mrf.mxu0
  %1719 = vmatprep.mubr.f32.mxu0 0.0
  %v1720 = vand.u32 %v178, 4294901760
  %v1721 = vsub.f32 %v178, %v1720
  %1722 = vmatmul.mubr.f32.gmra.mxu0 %v1721
  %v1723 = vpop.f32.mrf.mxu0
  %v1724 = vadd.f32 %v1241, %v1723
  %v1725 = vpop.f32.mrf.mxu0
  %1726 = vmatprep.mubr.f32.mxu0 0.0
  %v1727 = vand.u32 %v181, 4294901760
  %v1728 = vsub.f32 %v181, %v1727
  %1729 = vmatmul.mubr.f32.gmra.mxu0 %v1728
  %v1730 = vpop.f32.mrf.mxu0
  %v1731 = vadd.f32 %v1247, %v1730
  %v1732 = vpop.f32.mrf.mxu0
  %1733 = vmatprep.mubr.f32.mxu0 0.0
  %v1734 = vand.u32 %v184, 4294901760
  %v1735 = vsub.f32 %v184, %v1734
  %1736 = vmatmul.mubr.f32.gmra.mxu0 %v1735
  %v1737 = vpop.f32.mrf.mxu0
  %v1738 = vadd.f32 %v1253, %v1737
  %v1739 = vpop.f32.mrf.mxu0
  %1740 = vmatprep.mubr.f32.mxu0 0.0
  %v1741 = vand.u32 %v187, 4294901760
  %v1742 = vsub.f32 %v187, %v1741
  %1743 = vmatmul.mubr.f32.gmra.mxu0 %v1742
  %v1744 = vpop.f32.mrf.mxu0
  %v1745 = vadd.f32 %v1259, %v1744
  %v1746 = vpop.f32.mrf.mxu0
  %1747 = vmatprep.mubr.f32.mxu0 0.0
  %v1748 = vand.u32 %v190, 4294901760
  %v1749 = vsub.f32 %v190, %v1748
  %1750 = vmatmul.mubr.f32.gmra.mxu0 %v1749
  %v1751 = vpop.f32.mrf.mxu0
  %v1752 = vadd.f32 %v1265, %v1751
  %v1753 = vpop.f32.mrf.mxu0
  %1754 = vmatprep.mubr.f32.mxu0 0.0
  %v1755 = vand.u32 %v193, 4294901760
  %v1756 = vsub.f32 %v193, %v1755
  %1757 = vmatmul.mubr.f32.gmra.mxu0 %v1756
  %v1758 = vpop.f32.mrf.mxu0
  %v1759 = vadd.f32 %v1271, %v1758
  %v1760 = vpop.f32.mrf.mxu0
  %1761 = vmatprep.mubr.f32.mxu0 0.0
  %v1762 = vand.u32 %v196, 4294901760
  %v1763 = vsub.f32 %v196, %v1762
  %1764 = vmatmul.mubr.f32.gmra.mxu0 %v1763
  %v1765 = vpop.f32.mrf.mxu0
  %v1766 = vadd.f32 %v1277, %v1765
  %v1767 = vpop.f32.mrf.mxu0
  %1768 = vmatprep.mubr.f32.mxu0 0.0
  %v1769 = vand.u32 %v199, 4294901760
  %v1770 = vsub.f32 %v199, %v1769
  %1771 = vmatmul.mubr.f32.gmra.mxu0 %v1770
  %v1772 = vpop.f32.mrf.mxu0
  %v1773 = vadd.f32 %v1283, %v1772
  %v1774 = vpop.f32.mrf.mxu0
  %1775 = vmatprep.mubr.f32.mxu0 0.0
  %v1776 = vand.u32 %v202, 4294901760
  %v1777 = vsub.f32 %v202, %v1776
  %1778 = vmatmul.mubr.f32.gmra.mxu0 %v1777
  %v1779 = vpop.f32.mrf.mxu0
  %v1780 = vadd.f32 %v1289, %v1779
  %v1781 = vpop.f32.mrf.mxu0
  %1782 = vmatprep.mubr.f32.mxu0 0.0
  %v1783 = vand.u32 %v205, 4294901760
  %v1784 = vsub.f32 %v205, %v1783
  %1785 = vmatmul.mubr.f32.gmra.mxu0 %v1784
  %v1786 = vpop.f32.mrf.mxu0
  %v1787 = vadd.f32 %v1295, %v1786
  %v1788 = vpop.f32.mrf.mxu0
  %1789 = vmatprep.mubr.f32.mxu0 0.0
  %v1790 = vand.u32 %v208, 4294901760
  %v1791 = vsub.f32 %v208, %v1790
  %1792 = vmatmul.mubr.f32.gmra.mxu0 %v1791
  %v1793 = vpop.f32.mrf.mxu0
  %v1794 = vadd.f32 %v1301, %v1793
  %v1795 = vpop.f32.mrf.mxu0
  %1796 = vmatprep.mubr.f32.mxu0 0.0
  %v1797 = vand.u32 %v211, 4294901760
  %v1798 = vsub.f32 %v211, %v1797
  %1799 = vmatmul.mubr.f32.gmra.mxu0 %v1798
  %v1800 = vpop.f32.mrf.mxu0
  %v1801 = vadd.f32 %v1307, %v1800
  %v1802 = vpop.f32.mrf.mxu0
  %1803 = vmatprep.mubr.f32.mxu0 0.0
  %v1804 = vand.u32 %v214, 4294901760
  %v1805 = vsub.f32 %v214, %v1804
  %1806 = vmatmul.mubr.f32.gmra.mxu0 %v1805
  %v1807 = vpop.f32.mrf.mxu0
  %v1808 = vadd.f32 %v1313, %v1807
  %v1809 = vpop.f32.mrf.mxu0
  %1810 = vmatprep.mubr.f32.mxu0 0.0
  %v1811 = vand.u32 %v217, 4294901760
  %v1812 = vsub.f32 %v217, %v1811
  %1813 = vmatmul.mubr.f32.gmra.mxu0 %v1812
  %v1814 = vpop.f32.mrf.mxu0
  %v1815 = vadd.f32 %v1319, %v1814
  %v1816 = vpop.f32.mrf.mxu0
  %1817 = vmatprep.mubr.f32.mxu0 0.0
  %v1818 = vand.u32 %v220, 4294901760
  %v1819 = vsub.f32 %v220, %v1818
  %1820 = vmatmul.mubr.f32.gmra.mxu0 %v1819
  %v1821 = vpop.f32.mrf.mxu0
  %v1822 = vadd.f32 %v1325, %v1821
  %v1823 = vpop.f32.mrf.mxu0
  %1824 = vmatprep.mubr.f32.mxu0 0.0
  %v1825 = vand.u32 %v223, 4294901760
  %v1826 = vsub.f32 %v223, %v1825
  %1827 = vmatmul.mubr.f32.gmra.mxu0 %v1826
  %v1828 = vpop.f32.mrf.mxu0
  %v1829 = vadd.f32 %v1331, %v1828
  %v1830 = vpop.f32.mrf.mxu0
  %1831 = vmatprep.mubr.f32.mxu0 0.0
  %v1832 = vand.u32 %v226, 4294901760
  %v1833 = vsub.f32 %v226, %v1832
  %1834 = vmatmul.mubr.f32.gmra.mxu0 %v1833
  %v1835 = vpop.f32.mrf.mxu0
  %v1836 = vadd.f32 %v1337, %v1835
  %v1837 = vpop.f32.mrf.mxu0
  %1838 = vmatprep.mubr.f32.mxu0 0.0
  %v1839 = vand.u32 %v229, 4294901760
  %v1840 = vsub.f32 %v229, %v1839
  %1841 = vmatmul.mubr.f32.gmra.mxu0 %v1840
  %v1842 = vpop.f32.mrf.mxu0
  %v1843 = vadd.f32 %v1343, %v1842
  %v1844 = vpop.f32.mrf.mxu0
  %1845 = vmatprep.mubr.f32.mxu0 0.0
  %v1846 = vand.u32 %v232, 4294901760
  %v1847 = vsub.f32 %v232, %v1846
  %1848 = vmatmul.mubr.f32.gmra.mxu0 %v1847
  %v1849 = vpop.f32.mrf.mxu0
  %v1850 = vadd.f32 %v1349, %v1849
  %v1851 = vpop.f32.mrf.mxu0
  %1852 = vmatprep.mubr.f32.mxu0 0.0
  %v1853 = vand.u32 %v235, 4294901760
  %v1854 = vsub.f32 %v235, %v1853
  %1855 = vmatmul.mubr.f32.gmra.mxu0 %v1854
  %v1856 = vpop.f32.mrf.mxu0
  %v1857 = vadd.f32 %v1355, %v1856
  %v1858 = vpop.f32.mrf.mxu0
  %1859 = vmatprep.mubr.f32.mxu0 0.0
  %v1860 = vand.u32 %v238, 4294901760
  %v1861 = vsub.f32 %v238, %v1860
  %1862 = vmatmul.mubr.f32.gmra.mxu0 %v1861
  %v1863 = vpop.f32.mrf.mxu0
  %v1864 = vadd.f32 %v1361, %v1863
  %v1865 = vpop.f32.mrf.mxu0
  %1866 = vmatprep.mubr.f32.mxu0 0.0
  %v1867 = vand.u32 %v241, 4294901760
  %v1868 = vsub.f32 %v241, %v1867
  %1869 = vmatmul.mubr.f32.gmra.mxu0 %v1868
  %v1870 = vpop.f32.mrf.mxu0
  %v1871 = vadd.f32 %v1367, %v1870
  %v1872 = vpop.f32.mrf.mxu0
  %1873 = vmatprep.mubr.f32.mxu0 0.0
  %v1874 = vand.u32 %v244, 4294901760
  %v1875 = vsub.f32 %v244, %v1874
  %1876 = vmatmul.mubr.f32.gmra.mxu0 %v1875
  %v1877 = vpop.f32.mrf.mxu0
  %v1878 = vadd.f32 %v1373, %v1877
  %v1879 = vpop.f32.mrf.mxu0
  %1880 = vmatprep.mubr.f32.mxu0 0.0
  %v1881 = vand.u32 %v247, 4294901760
  %v1882 = vsub.f32 %v247, %v1881
  %1883 = vmatmul.mubr.f32.gmra.mxu0 %v1882
  %v1884 = vpop.f32.mrf.mxu0
  %v1885 = vadd.f32 %v1379, %v1884
  %v1886 = vpop.f32.mrf.mxu0
  %1887 = vmatprep.mubr.f32.mxu0 0.0
  %v1888 = vand.u32 %v250, 4294901760
  %v1889 = vsub.f32 %v250, %v1888
  %1890 = vmatmul.mubr.f32.gmra.mxu0 %v1889
  %v1891 = vpop.f32.mrf.mxu0
  %v1892 = vadd.f32 %v1385, %v1891
  %v1893 = vpop.f32.mrf.mxu0
  %1894 = vmatprep.mubr.f32.mxu0 0.0
  %v1895 = vand.u32 %v253, 4294901760
  %v1896 = vsub.f32 %v253, %v1895
  %1897 = vmatmul.mubr.f32.gmra.mxu0 %v1896
  %v1898 = vpop.f32.mrf.mxu0
  %v1899 = vadd.f32 %v1391, %v1898
  %v1900 = vpop.f32.mrf.mxu0
  %1901 = vmatprep.mubr.f32.mxu0 0.0
  %v1902 = vand.u32 %v256, 4294901760
  %v1903 = vsub.f32 %v256, %v1902
  %1904 = vmatmul.mubr.f32.gmra.mxu0 %v1903
  %v1905 = vpop.f32.mrf.mxu0
  %v1906 = vadd.f32 %v1397, %v1905
  %v1907 = vpop.f32.mrf.mxu0
  %1908 = vmatprep.mubr.f32.mxu0 0.0
  %v1909 = vand.u32 %v259, 4294901760
  %v1910 = vsub.f32 %v259, %v1909
  %1911 = vmatmul.mubr.f32.gmra.mxu0 %v1910
  %v1912 = vpop.f32.mrf.mxu0
  %v1913 = vadd.f32 %v1403, %v1912
  %v1914 = vpop.f32.mrf.mxu0
  %1915 = vmatprep.mubr.f32.mxu0 0.0
  %v1916 = vand.u32 %v262, 4294901760
  %v1917 = vsub.f32 %v262, %v1916
  %1918 = vmatmul.mubr.f32.gmra.mxu0 %v1917
  %v1919 = vpop.f32.mrf.mxu0
  %v1920 = vadd.f32 %v1409, %v1919
  %v1921 = vpop.f32.mrf.mxu0
  %1922 = vmatprep.mubr.f32.mxu0 0.0
  %v1923 = vand.u32 %v265, 4294901760
  %v1924 = vsub.f32 %v265, %v1923
  %1925 = vmatmul.mubr.f32.gmra.mxu0 %v1924
  %v1926 = vpop.f32.mrf.mxu0
  %v1927 = vadd.f32 %v1415, %v1926
  %v1928 = vpop.f32.mrf.mxu0
  %1929 = vmatprep.mubr.f32.mxu0 0.0
  %v1930 = vand.u32 %v268, 4294901760
  %v1931 = vsub.f32 %v268, %v1930
  %1932 = vmatmul.mubr.f32.gmra.mxu0 %v1931
  %v1933 = vpop.f32.mrf.mxu0
  %v1934 = vadd.f32 %v1421, %v1933
  %v1935 = vpop.f32.mrf.mxu0
  %1936 = vmatprep.mubr.f32.mxu0 0.0
  %v1937 = vand.u32 %v271, 4294901760
  %v1938 = vsub.f32 %v271, %v1937
  %1939 = vmatmul.mubr.f32.gmra.mxu0 %v1938
  %v1940 = vpop.f32.mrf.mxu0
  %v1941 = vadd.f32 %v1427, %v1940
  %v1942 = vpop.f32.mrf.mxu0
  %1943 = vmatprep.mubr.f32.mxu0 0.0
  %v1944 = vand.u32 %v274, 4294901760
  %v1945 = vsub.f32 %v274, %v1944
  %1946 = vmatmul.mubr.f32.gmra.mxu0 %v1945
  %v1947 = vpop.f32.mrf.mxu0
  %v1948 = vadd.f32 %v1433, %v1947
  %v1949 = vpop.f32.mrf.mxu0
  %1950 = vmatprep.mubr.f32.mxu0 0.0
  %v1951 = vand.u32 %v277, 4294901760
  %v1952 = vsub.f32 %v277, %v1951
  %1953 = vmatmul.mubr.f32.gmra.mxu0 %v1952
  %v1954 = vpop.f32.mrf.mxu0
  %v1955 = vadd.f32 %v1439, %v1954
  %v1956 = vpop.f32.mrf.mxu0
  %1957 = vmatprep.mubr.f32.mxu0 0.0
  %v1958 = vand.u32 %v280, 4294901760
  %v1959 = vsub.f32 %v280, %v1958
  %1960 = vmatmul.mubr.f32.gmra.mxu0 %v1959
  %v1961 = vpop.f32.mrf.mxu0
  %v1962 = vadd.f32 %v1445, %v1961
  %v1963 = vpop.f32.mrf.mxu0
  %1964 = vmatprep.mubr.f32.mxu0 0.0
  %v1965 = vand.u32 %v283, 4294901760
  %v1966 = vsub.f32 %v283, %v1965
  %1967 = vmatmul.mubr.f32.gmra.mxu0 %v1966
  %v1968 = vpop.f32.mrf.mxu0
  %v1969 = vadd.f32 %v1451, %v1968
  %v1970 = vpop.f32.mrf.mxu0
  %1971 = vmatprep.mubr.f32.mxu0 0.0
  %v1972 = vand.u32 %v286, 4294901760
  %v1973 = vsub.f32 %v286, %v1972
  %1974 = vmatmul.mubr.f32.gmra.mxu0 %v1973
  %v1975 = vpop.f32.mrf.mxu0
  %v1976 = vadd.f32 %v1457, %v1975
  %v1977 = vpop.f32.mrf.mxu0
  %1978 = vmatprep.mubr.f32.mxu0 0.0
  %v1979 = vand.u32 %v289, 4294901760
  %v1980 = vsub.f32 %v289, %v1979
  %1981 = vmatmul.mubr.f32.gmra.mxu0 %v1980
  %v1982 = vpop.f32.mrf.mxu0
  %v1983 = vadd.f32 %v1463, %v1982
  %v1984 = vpop.f32.mrf.mxu0
  %1985 = vmatprep.mubr.f32.mxu0 0.0
  %v1986 = vand.u32 %v292, 4294901760
  %v1987 = vsub.f32 %v292, %v1986
  %1988 = vmatmul.mubr.f32.gmra.mxu0 %v1987
  %v1989 = vpop.f32.mrf.mxu0
  %v1990 = vadd.f32 %v1469, %v1989
  %v1991 = vpop.f32.mrf.mxu0
  %1992 = vdwg.mxu0
  %1993 = vmatprep.subr.mxu0 0.0
  %1994 = vmatpush1.msra.mxu0 0.0
  %1995 = vmatprep.subr.mxu0 0.0
  %1996 = vmatpush1.msra.mxu0 0.0
  %1997 = vmatprep.subr.mxu0 0.0
  %1998 = vmatpush1.msra.mxu0 0.0
  %1999 = vmatprep.subr.mxu0 0.0
  %2000 = vmatpush1.msra.mxu0 0.0
  %2001 = vmatprep.subr.mxu0 0.0
  %2002 = vmatpush1.msra.mxu0 0.0
  %2003 = vmatprep.subr.mxu0 0.0
  %2004 = vmatpush1.msra.mxu0 0.0
  %2005 = vmatprep.subr.mxu0 0.0
  %2006 = vmatpush1.msra.mxu0 0.0
  %2007 = vmatprep.subr.mxu0 0.0
  %2008 = vmatpush1.msra.mxu0 0.0
  %2009 = vmatprep.subr.mxu0 0.0
  %2010 = vmatpush1.msra.mxu0 0.0
  %2011 = vmatprep.subr.mxu0 0.0
  %2012 = vmatpush1.msra.mxu0 0.0
  %2013 = vmatprep.subr.mxu0 0.0
  %2014 = vmatpush1.msra.mxu0 0.0
  %2015 = vmatprep.subr.mxu0 0.0
  %2016 = vmatpush1.msra.mxu0 0.0
  %2017 = vmatprep.subr.mxu0 0.0
  %v2018 = vand.u32 %v93, 4294901760
  %2019 = vmatpush1.msra.mxu0 %v2018
  %2020 = vmatprep.subr.mxu0 0.0
  %v2021 = vand.u32 %v92, 4294901760
  %2022 = vmatpush1.msra.mxu0 %v2021
  %2023 = vmatprep.subr.mxu0 0.0
  %v2024 = vand.u32 %v91, 4294901760
  %2025 = vmatpush1.msra.mxu0 %v2024
  %2026 = vmatprep.subr.mxu0 0.0
  %v2027 = vand.u32 %v90, 4294901760
  %2028 = vmatpush1.msra.mxu0 %v2027
  %2029 = vmatprep.subr.mxu0 0.0
  %2030 = vmatpush2.msra.mxu0 0.0
  %2031 = vmatprep.subr.mxu0 0.0
  %2032 = vmatpush2.msra.mxu0 0.0
  %2033 = vmatprep.subr.mxu0 0.0
  %2034 = vmatpush2.msra.mxu0 0.0
  %2035 = vmatprep.subr.mxu0 0.0
  %2036 = vmatpush2.msra.mxu0 0.0
  %2037 = vmatprep.subr.mxu0 0.0
  %2038 = vmatpush2.msra.mxu0 0.0
  %2039 = vmatprep.subr.mxu0 0.0
  %2040 = vmatpush2.msra.mxu0 0.0
  %2041 = vmatprep.subr.mxu0 0.0
  %2042 = vmatpush2.msra.mxu0 0.0
  %2043 = vmatprep.subr.mxu0 0.0
  %2044 = vmatpush2.msra.mxu0 0.0
  %2045 = vmatprep.subr.mxu0 0.0
  %2046 = vmatpush2.msra.mxu0 0.0
  %2047 = vmatprep.subr.mxu0 0.0
  %2048 = vmatpush2.msra.mxu0 0.0
  %2049 = vmatprep.subr.mxu0 0.0
  %2050 = vmatpush2.msra.mxu0 0.0
  %2051 = vmatprep.subr.mxu0 0.0
  %2052 = vmatpush2.msra.mxu0 0.0
  %2053 = vmatprep.subr.mxu0 0.0
  %2054 = vmatpush2.msra.mxu0 0.0
  %2055 = vmatprep.subr.mxu0 0.0
  %2056 = vmatpush2.msra.mxu0 0.0
  %2057 = vmatprep.subr.mxu0 0.0
  %2058 = vmatpush2.msra.mxu0 0.0
  %2059 = vmatprep.subr.mxu0 0.0
  %2060 = vmatpush2.msra.mxu0 0.0
  %2061 = vmatprep.mubr.f32.mxu0 0.0
  %v2062 = vand.u32 %v103, 4294901760
  %v2063 = vsub.f32 %v103, %v2062
  %v2064 = vand.u32 %v2063, 4294901760
  %2065 = vmatmul.mubr.f32.gmra.mxu0 %v2064
  %v2066 = vpop.f32.mrf.mxu0
  %v2067 = vadd.f32 %v1549, %v2066
  %v2068 = vpop.f32.mrf.mxu0
  %2069 = vmatprep.mubr.f32.mxu0 0.0
  %v2070 = vand.u32 %v106, 4294901760
  %v2071 = vsub.f32 %v106, %v2070
  %v2072 = vand.u32 %v2071, 4294901760
  %2073 = vmatmul.mubr.f32.gmra.mxu0 %v2072
  %v2074 = vpop.f32.mrf.mxu0
  %v2075 = vadd.f32 %v1556, %v2074
  %v2076 = vpop.f32.mrf.mxu0
  %2077 = vmatprep.mubr.f32.mxu0 0.0
  %v2078 = vand.u32 %v109, 4294901760
  %v2079 = vsub.f32 %v109, %v2078
  %v2080 = vand.u32 %v2079, 4294901760
  %2081 = vmatmul.mubr.f32.gmra.mxu0 %v2080
  %v2082 = vpop.f32.mrf.mxu0
  %v2083 = vadd.f32 %v1563, %v2082
  %v2084 = vpop.f32.mrf.mxu0
  %2085 = vmatprep.mubr.f32.mxu0 0.0
  %v2086 = vand.u32 %v112, 4294901760
  %v2087 = vsub.f32 %v112, %v2086
  %v2088 = vand.u32 %v2087, 4294901760
  %2089 = vmatmul.mubr.f32.gmra.mxu0 %v2088
  %v2090 = vpop.f32.mrf.mxu0
  %v2091 = vadd.f32 %v1570, %v2090
  %v2092 = vpop.f32.mrf.mxu0
  %2093 = vmatprep.mubr.f32.mxu0 0.0
  %v2094 = vand.u32 %v115, 4294901760
  %v2095 = vsub.f32 %v115, %v2094
  %v2096 = vand.u32 %v2095, 4294901760
  %2097 = vmatmul.mubr.f32.gmra.mxu0 %v2096
  %v2098 = vpop.f32.mrf.mxu0
  %v2099 = vadd.f32 %v1577, %v2098
  %v2100 = vpop.f32.mrf.mxu0
  %2101 = vmatprep.mubr.f32.mxu0 0.0
  %v2102 = vand.u32 %v118, 4294901760
  %v2103 = vsub.f32 %v118, %v2102
  %v2104 = vand.u32 %v2103, 4294901760
  %2105 = vmatmul.mubr.f32.gmra.mxu0 %v2104
  %v2106 = vpop.f32.mrf.mxu0
  %v2107 = vadd.f32 %v1584, %v2106
  %v2108 = vpop.f32.mrf.mxu0
  %2109 = vmatprep.mubr.f32.mxu0 0.0
  %v2110 = vand.u32 %v121, 4294901760
  %v2111 = vsub.f32 %v121, %v2110
  %v2112 = vand.u32 %v2111, 4294901760
  %2113 = vmatmul.mubr.f32.gmra.mxu0 %v2112
  %v2114 = vpop.f32.mrf.mxu0
  %v2115 = vadd.f32 %v1591, %v2114
  %v2116 = vpop.f32.mrf.mxu0
  %2117 = vmatprep.mubr.f32.mxu0 0.0
  %v2118 = vand.u32 %v124, 4294901760
  %v2119 = vsub.f32 %v124, %v2118
  %v2120 = vand.u32 %v2119, 4294901760
  %2121 = vmatmul.mubr.f32.gmra.mxu0 %v2120
  %v2122 = vpop.f32.mrf.mxu0
  %v2123 = vadd.f32 %v1598, %v2122
  %v2124 = vpop.f32.mrf.mxu0
  %2125 = vmatprep.mubr.f32.mxu0 0.0
  %v2126 = vand.u32 %v127, 4294901760
  %v2127 = vsub.f32 %v127, %v2126
  %v2128 = vand.u32 %v2127, 4294901760
  %2129 = vmatmul.mubr.f32.gmra.mxu0 %v2128
  %v2130 = vpop.f32.mrf.mxu0
  %v2131 = vadd.f32 %v1605, %v2130
  %v2132 = vpop.f32.mrf.mxu0
  %2133 = vmatprep.mubr.f32.mxu0 0.0
  %v2134 = vand.u32 %v130, 4294901760
  %v2135 = vsub.f32 %v130, %v2134
  %v2136 = vand.u32 %v2135, 4294901760
  %2137 = vmatmul.mubr.f32.gmra.mxu0 %v2136
  %v2138 = vpop.f32.mrf.mxu0
  %v2139 = vadd.f32 %v1612, %v2138
  %v2140 = vpop.f32.mrf.mxu0
  %2141 = vmatprep.mubr.f32.mxu0 0.0
  %v2142 = vand.u32 %v133, 4294901760
  %v2143 = vsub.f32 %v133, %v2142
  %v2144 = vand.u32 %v2143, 4294901760
  %2145 = vmatmul.mubr.f32.gmra.mxu0 %v2144
  %v2146 = vpop.f32.mrf.mxu0
  %v2147 = vadd.f32 %v1619, %v2146
  %v2148 = vpop.f32.mrf.mxu0
  %2149 = vmatprep.mubr.f32.mxu0 0.0
  %v2150 = vand.u32 %v136, 4294901760
  %v2151 = vsub.f32 %v136, %v2150
  %v2152 = vand.u32 %v2151, 4294901760
  %2153 = vmatmul.mubr.f32.gmra.mxu0 %v2152
  %v2154 = vpop.f32.mrf.mxu0
  %v2155 = vadd.f32 %v1626, %v2154
  %v2156 = vpop.f32.mrf.mxu0
  %2157 = vmatprep.mubr.f32.mxu0 0.0
  %v2158 = vand.u32 %v139, 4294901760
  %v2159 = vsub.f32 %v139, %v2158
  %v2160 = vand.u32 %v2159, 4294901760
  %2161 = vmatmul.mubr.f32.gmra.mxu0 %v2160
  %v2162 = vpop.f32.mrf.mxu0
  %v2163 = vadd.f32 %v1633, %v2162
  %v2164 = vpop.f32.mrf.mxu0
  %2165 = vmatprep.mubr.f32.mxu0 0.0
  %v2166 = vand.u32 %v142, 4294901760
  %v2167 = vsub.f32 %v142, %v2166
  %v2168 = vand.u32 %v2167, 4294901760
  %2169 = vmatmul.mubr.f32.gmra.mxu0 %v2168
  %v2170 = vpop.f32.mrf.mxu0
  %v2171 = vadd.f32 %v1640, %v2170
  %v2172 = vpop.f32.mrf.mxu0
  %2173 = vmatprep.mubr.f32.mxu0 0.0
  %v2174 = vand.u32 %v145, 4294901760
  %v2175 = vsub.f32 %v145, %v2174
  %v2176 = vand.u32 %v2175, 4294901760
  %2177 = vmatmul.mubr.f32.gmra.mxu0 %v2176
  %v2178 = vpop.f32.mrf.mxu0
  %v2179 = vadd.f32 %v1647, %v2178
  %v2180 = vpop.f32.mrf.mxu0
  %2181 = vmatprep.mubr.f32.mxu0 0.0
  %v2182 = vand.u32 %v148, 4294901760
  %v2183 = vsub.f32 %v148, %v2182
  %v2184 = vand.u32 %v2183, 4294901760
  %2185 = vmatmul.mubr.f32.gmra.mxu0 %v2184
  %v2186 = vpop.f32.mrf.mxu0
  %v2187 = vadd.f32 %v1654, %v2186
  %v2188 = vpop.f32.mrf.mxu0
  %2189 = vmatprep.mubr.f32.mxu0 0.0
  %v2190 = vand.u32 %v151, 4294901760
  %v2191 = vsub.f32 %v151, %v2190
  %v2192 = vand.u32 %v2191, 4294901760
  %2193 = vmatmul.mubr.f32.gmra.mxu0 %v2192
  %v2194 = vpop.f32.mrf.mxu0
  %v2195 = vadd.f32 %v1661, %v2194
  %v2196 = vpop.f32.mrf.mxu0
  %2197 = vmatprep.mubr.f32.mxu0 0.0
  %v2198 = vand.u32 %v154, 4294901760
  %v2199 = vsub.f32 %v154, %v2198
  %v2200 = vand.u32 %v2199, 4294901760
  %2201 = vmatmul.mubr.f32.gmra.mxu0 %v2200
  %v2202 = vpop.f32.mrf.mxu0
  %v2203 = vadd.f32 %v1668, %v2202
  %v2204 = vpop.f32.mrf.mxu0
  %2205 = vmatprep.mubr.f32.mxu0 0.0
  %v2206 = vand.u32 %v157, 4294901760
  %v2207 = vsub.f32 %v157, %v2206
  %v2208 = vand.u32 %v2207, 4294901760
  %2209 = vmatmul.mubr.f32.gmra.mxu0 %v2208
  %v2210 = vpop.f32.mrf.mxu0
  %v2211 = vadd.f32 %v1675, %v2210
  %v2212 = vpop.f32.mrf.mxu0
  %2213 = vmatprep.mubr.f32.mxu0 0.0
  %v2214 = vand.u32 %v160, 4294901760
  %v2215 = vsub.f32 %v160, %v2214
  %v2216 = vand.u32 %v2215, 4294901760
  %2217 = vmatmul.mubr.f32.gmra.mxu0 %v2216
  %v2218 = vpop.f32.mrf.mxu0
  %v2219 = vadd.f32 %v1682, %v2218
  %v2220 = vpop.f32.mrf.mxu0
  %2221 = vmatprep.mubr.f32.mxu0 0.0
  %v2222 = vand.u32 %v163, 4294901760
  %v2223 = vsub.f32 %v163, %v2222
  %v2224 = vand.u32 %v2223, 4294901760
  %2225 = vmatmul.mubr.f32.gmra.mxu0 %v2224
  %v2226 = vpop.f32.mrf.mxu0
  %v2227 = vadd.f32 %v1689, %v2226
  %v2228 = vpop.f32.mrf.mxu0
  %2229 = vmatprep.mubr.f32.mxu0 0.0
  %v2230 = vand.u32 %v166, 4294901760
  %v2231 = vsub.f32 %v166, %v2230
  %v2232 = vand.u32 %v2231, 4294901760
  %2233 = vmatmul.mubr.f32.gmra.mxu0 %v2232
  %v2234 = vpop.f32.mrf.mxu0
  %v2235 = vadd.f32 %v1696, %v2234
  %v2236 = vpop.f32.mrf.mxu0
  %2237 = vmatprep.mubr.f32.mxu0 0.0
  %v2238 = vand.u32 %v169, 4294901760
  %v2239 = vsub.f32 %v169, %v2238
  %v2240 = vand.u32 %v2239, 4294901760
  %2241 = vmatmul.mubr.f32.gmra.mxu0 %v2240
  %v2242 = vpop.f32.mrf.mxu0
  %v2243 = vadd.f32 %v1703, %v2242
  %v2244 = vpop.f32.mrf.mxu0
  %2245 = vmatprep.mubr.f32.mxu0 0.0
  %v2246 = vand.u32 %v172, 4294901760
  %v2247 = vsub.f32 %v172, %v2246
  %v2248 = vand.u32 %v2247, 4294901760
  %2249 = vmatmul.mubr.f32.gmra.mxu0 %v2248
  %v2250 = vpop.f32.mrf.mxu0
  %v2251 = vadd.f32 %v1710, %v2250
  %v2252 = vpop.f32.mrf.mxu0
  %2253 = vmatprep.mubr.f32.mxu0 0.0
  %v2254 = vand.u32 %v175, 4294901760
  %v2255 = vsub.f32 %v175, %v2254
  %v2256 = vand.u32 %v2255, 4294901760
  %2257 = vmatmul.mubr.f32.gmra.mxu0 %v2256
  %v2258 = vpop.f32.mrf.mxu0
  %v2259 = vadd.f32 %v1717, %v2258
  %v2260 = vpop.f32.mrf.mxu0
  %2261 = vmatprep.mubr.f32.mxu0 0.0
  %v2262 = vand.u32 %v178, 4294901760
  %v2263 = vsub.f32 %v178, %v2262
  %v2264 = vand.u32 %v2263, 4294901760
  %2265 = vmatmul.mubr.f32.gmra.mxu0 %v2264
  %v2266 = vpop.f32.mrf.mxu0
  %v2267 = vadd.f32 %v1724, %v2266
  %v2268 = vpop.f32.mrf.mxu0
  %2269 = vmatprep.mubr.f32.mxu0 0.0
  %v2270 = vand.u32 %v181, 4294901760
  %v2271 = vsub.f32 %v181, %v2270
  %v2272 = vand.u32 %v2271, 4294901760
  %2273 = vmatmul.mubr.f32.gmra.mxu0 %v2272
  %v2274 = vpop.f32.mrf.mxu0
  %v2275 = vadd.f32 %v1731, %v2274
  %v2276 = vpop.f32.mrf.mxu0
  %2277 = vmatprep.mubr.f32.mxu0 0.0
  %v2278 = vand.u32 %v184, 4294901760
  %v2279 = vsub.f32 %v184, %v2278
  %v2280 = vand.u32 %v2279, 4294901760
  %2281 = vmatmul.mubr.f32.gmra.mxu0 %v2280
  %v2282 = vpop.f32.mrf.mxu0
  %v2283 = vadd.f32 %v1738, %v2282
  %v2284 = vpop.f32.mrf.mxu0
  %2285 = vmatprep.mubr.f32.mxu0 0.0
  %v2286 = vand.u32 %v187, 4294901760
  %v2287 = vsub.f32 %v187, %v2286
  %v2288 = vand.u32 %v2287, 4294901760
  %2289 = vmatmul.mubr.f32.gmra.mxu0 %v2288
  %v2290 = vpop.f32.mrf.mxu0
  %v2291 = vadd.f32 %v1745, %v2290
  %v2292 = vpop.f32.mrf.mxu0
  %2293 = vmatprep.mubr.f32.mxu0 0.0
  %v2294 = vand.u32 %v190, 4294901760
  %v2295 = vsub.f32 %v190, %v2294
  %v2296 = vand.u32 %v2295, 4294901760
  %2297 = vmatmul.mubr.f32.gmra.mxu0 %v2296
  %v2298 = vpop.f32.mrf.mxu0
  %v2299 = vadd.f32 %v1752, %v2298
  %v2300 = vpop.f32.mrf.mxu0
  %2301 = vmatprep.mubr.f32.mxu0 0.0
  %v2302 = vand.u32 %v193, 4294901760
  %v2303 = vsub.f32 %v193, %v2302
  %v2304 = vand.u32 %v2303, 4294901760
  %2305 = vmatmul.mubr.f32.gmra.mxu0 %v2304
  %v2306 = vpop.f32.mrf.mxu0
  %v2307 = vadd.f32 %v1759, %v2306
  %v2308 = vpop.f32.mrf.mxu0
  %2309 = vmatprep.mubr.f32.mxu0 0.0
  %v2310 = vand.u32 %v196, 4294901760
  %v2311 = vsub.f32 %v196, %v2310
  %v2312 = vand.u32 %v2311, 4294901760
  %2313 = vmatmul.mubr.f32.gmra.mxu0 %v2312
  %v2314 = vpop.f32.mrf.mxu0
  %v2315 = vadd.f32 %v1766, %v2314
  %v2316 = vpop.f32.mrf.mxu0
  %2317 = vmatprep.mubr.f32.mxu0 0.0
  %v2318 = vand.u32 %v199, 4294901760
  %v2319 = vsub.f32 %v199, %v2318
  %v2320 = vand.u32 %v2319, 4294901760
  %2321 = vmatmul.mubr.f32.gmra.mxu0 %v2320
  %v2322 = vpop.f32.mrf.mxu0
  %v2323 = vadd.f32 %v1773, %v2322
  %v2324 = vpop.f32.mrf.mxu0
  %2325 = vmatprep.mubr.f32.mxu0 0.0
  %v2326 = vand.u32 %v202, 4294901760
  %v2327 = vsub.f32 %v202, %v2326
  %v2328 = vand.u32 %v2327, 4294901760
  %2329 = vmatmul.mubr.f32.gmra.mxu0 %v2328
  %v2330 = vpop.f32.mrf.mxu0
  %v2331 = vadd.f32 %v1780, %v2330
  %v2332 = vpop.f32.mrf.mxu0
  %2333 = vmatprep.mubr.f32.mxu0 0.0
  %v2334 = vand.u32 %v205, 4294901760
  %v2335 = vsub.f32 %v205, %v2334
  %v2336 = vand.u32 %v2335, 4294901760
  %2337 = vmatmul.mubr.f32.gmra.mxu0 %v2336
  %v2338 = vpop.f32.mrf.mxu0
  %v2339 = vadd.f32 %v1787, %v2338
  %v2340 = vpop.f32.mrf.mxu0
  %2341 = vmatprep.mubr.f32.mxu0 0.0
  %v2342 = vand.u32 %v208, 4294901760
  %v2343 = vsub.f32 %v208, %v2342
  %v2344 = vand.u32 %v2343, 4294901760
  %2345 = vmatmul.mubr.f32.gmra.mxu0 %v2344
  %v2346 = vpop.f32.mrf.mxu0
  %v2347 = vadd.f32 %v1794, %v2346
  %v2348 = vpop.f32.mrf.mxu0
  %2349 = vmatprep.mubr.f32.mxu0 0.0
  %v2350 = vand.u32 %v211, 4294901760
  %v2351 = vsub.f32 %v211, %v2350
  %v2352 = vand.u32 %v2351, 4294901760
  %2353 = vmatmul.mubr.f32.gmra.mxu0 %v2352
  %v2354 = vpop.f32.mrf.mxu0
  %v2355 = vadd.f32 %v1801, %v2354
  %v2356 = vpop.f32.mrf.mxu0
  %2357 = vmatprep.mubr.f32.mxu0 0.0
  %v2358 = vand.u32 %v214, 4294901760
  %v2359 = vsub.f32 %v214, %v2358
  %v2360 = vand.u32 %v2359, 4294901760
  %2361 = vmatmul.mubr.f32.gmra.mxu0 %v2360
  %v2362 = vpop.f32.mrf.mxu0
  %v2363 = vadd.f32 %v1808, %v2362
  %v2364 = vpop.f32.mrf.mxu0
  %2365 = vmatprep.mubr.f32.mxu0 0.0
  %v2366 = vand.u32 %v217, 4294901760
  %v2367 = vsub.f32 %v217, %v2366
  %v2368 = vand.u32 %v2367, 4294901760
  %2369 = vmatmul.mubr.f32.gmra.mxu0 %v2368
  %v2370 = vpop.f32.mrf.mxu0
  %v2371 = vadd.f32 %v1815, %v2370
  %v2372 = vpop.f32.mrf.mxu0
  %2373 = vmatprep.mubr.f32.mxu0 0.0
  %v2374 = vand.u32 %v220, 4294901760
  %v2375 = vsub.f32 %v220, %v2374
  %v2376 = vand.u32 %v2375, 4294901760
  %2377 = vmatmul.mubr.f32.gmra.mxu0 %v2376
  %v2378 = vpop.f32.mrf.mxu0
  %v2379 = vadd.f32 %v1822, %v2378
  %v2380 = vpop.f32.mrf.mxu0
  %2381 = vmatprep.mubr.f32.mxu0 0.0
  %v2382 = vand.u32 %v223, 4294901760
  %v2383 = vsub.f32 %v223, %v2382
  %v2384 = vand.u32 %v2383, 4294901760
  %2385 = vmatmul.mubr.f32.gmra.mxu0 %v2384
  %v2386 = vpop.f32.mrf.mxu0
  %v2387 = vadd.f32 %v1829, %v2386
  %v2388 = vpop.f32.mrf.mxu0
  %2389 = vmatprep.mubr.f32.mxu0 0.0
  %v2390 = vand.u32 %v226, 4294901760
  %v2391 = vsub.f32 %v226, %v2390
  %v2392 = vand.u32 %v2391, 4294901760
  %2393 = vmatmul.mubr.f32.gmra.mxu0 %v2392
  %v2394 = vpop.f32.mrf.mxu0
  %v2395 = vadd.f32 %v1836, %v2394
  %v2396 = vpop.f32.mrf.mxu0
  %2397 = vmatprep.mubr.f32.mxu0 0.0
  %v2398 = vand.u32 %v229, 4294901760
  %v2399 = vsub.f32 %v229, %v2398
  %v2400 = vand.u32 %v2399, 4294901760
  %2401 = vmatmul.mubr.f32.gmra.mxu0 %v2400
  %v2402 = vpop.f32.mrf.mxu0
  %v2403 = vadd.f32 %v1843, %v2402
  %v2404 = vpop.f32.mrf.mxu0
  %2405 = vmatprep.mubr.f32.mxu0 0.0
  %v2406 = vand.u32 %v232, 4294901760
  %v2407 = vsub.f32 %v232, %v2406
  %v2408 = vand.u32 %v2407, 4294901760
  %2409 = vmatmul.mubr.f32.gmra.mxu0 %v2408
  %v2410 = vpop.f32.mrf.mxu0
  %v2411 = vadd.f32 %v1850, %v2410
  %v2412 = vpop.f32.mrf.mxu0
  %2413 = vmatprep.mubr.f32.mxu0 0.0
  %v2414 = vand.u32 %v235, 4294901760
  %v2415 = vsub.f32 %v235, %v2414
  %v2416 = vand.u32 %v2415, 4294901760
  %2417 = vmatmul.mubr.f32.gmra.mxu0 %v2416
  %v2418 = vpop.f32.mrf.mxu0
  %v2419 = vadd.f32 %v1857, %v2418
  %v2420 = vpop.f32.mrf.mxu0
  %2421 = vmatprep.mubr.f32.mxu0 0.0
  %v2422 = vand.u32 %v238, 4294901760
  %v2423 = vsub.f32 %v238, %v2422
  %v2424 = vand.u32 %v2423, 4294901760
  %2425 = vmatmul.mubr.f32.gmra.mxu0 %v2424
  %v2426 = vpop.f32.mrf.mxu0
  %v2427 = vadd.f32 %v1864, %v2426
  %v2428 = vpop.f32.mrf.mxu0
  %2429 = vmatprep.mubr.f32.mxu0 0.0
  %v2430 = vand.u32 %v241, 4294901760
  %v2431 = vsub.f32 %v241, %v2430
  %v2432 = vand.u32 %v2431, 4294901760
  %2433 = vmatmul.mubr.f32.gmra.mxu0 %v2432
  %v2434 = vpop.f32.mrf.mxu0
  %v2435 = vadd.f32 %v1871, %v2434
  %v2436 = vpop.f32.mrf.mxu0
  %2437 = vmatprep.mubr.f32.mxu0 0.0
  %v2438 = vand.u32 %v244, 4294901760
  %v2439 = vsub.f32 %v244, %v2438
  %v2440 = vand.u32 %v2439, 4294901760
  %2441 = vmatmul.mubr.f32.gmra.mxu0 %v2440
  %v2442 = vpop.f32.mrf.mxu0
  %v2443 = vadd.f32 %v1878, %v2442
  %v2444 = vpop.f32.mrf.mxu0
  %2445 = vmatprep.mubr.f32.mxu0 0.0
  %v2446 = vand.u32 %v247, 4294901760
  %v2447 = vsub.f32 %v247, %v2446
  %v2448 = vand.u32 %v2447, 4294901760
  %2449 = vmatmul.mubr.f32.gmra.mxu0 %v2448
  %v2450 = vpop.f32.mrf.mxu0
  %v2451 = vadd.f32 %v1885, %v2450
  %v2452 = vpop.f32.mrf.mxu0
  %2453 = vmatprep.mubr.f32.mxu0 0.0
  %v2454 = vand.u32 %v250, 4294901760
  %v2455 = vsub.f32 %v250, %v2454
  %v2456 = vand.u32 %v2455, 4294901760
  %2457 = vmatmul.mubr.f32.gmra.mxu0 %v2456
  %v2458 = vpop.f32.mrf.mxu0
  %v2459 = vadd.f32 %v1892, %v2458
  %v2460 = vpop.f32.mrf.mxu0
  %2461 = vmatprep.mubr.f32.mxu0 0.0
  %v2462 = vand.u32 %v253, 4294901760
  %v2463 = vsub.f32 %v253, %v2462
  %v2464 = vand.u32 %v2463, 4294901760
  %2465 = vmatmul.mubr.f32.gmra.mxu0 %v2464
  %v2466 = vpop.f32.mrf.mxu0
  %v2467 = vadd.f32 %v1899, %v2466
  %v2468 = vpop.f32.mrf.mxu0
  %2469 = vmatprep.mubr.f32.mxu0 0.0
  %v2470 = vand.u32 %v256, 4294901760
  %v2471 = vsub.f32 %v256, %v2470
  %v2472 = vand.u32 %v2471, 4294901760
  %2473 = vmatmul.mubr.f32.gmra.mxu0 %v2472
  %v2474 = vpop.f32.mrf.mxu0
  %v2475 = vadd.f32 %v1906, %v2474
  %v2476 = vpop.f32.mrf.mxu0
  %2477 = vmatprep.mubr.f32.mxu0 0.0
  %v2478 = vand.u32 %v259, 4294901760
  %v2479 = vsub.f32 %v259, %v2478
  %v2480 = vand.u32 %v2479, 4294901760
  %2481 = vmatmul.mubr.f32.gmra.mxu0 %v2480
  %v2482 = vpop.f32.mrf.mxu0
  %v2483 = vadd.f32 %v1913, %v2482
  %v2484 = vpop.f32.mrf.mxu0
  %2485 = vmatprep.mubr.f32.mxu0 0.0
  %v2486 = vand.u32 %v262, 4294901760
  %v2487 = vsub.f32 %v262, %v2486
  %v2488 = vand.u32 %v2487, 4294901760
  %2489 = vmatmul.mubr.f32.gmra.mxu0 %v2488
  %v2490 = vpop.f32.mrf.mxu0
  %v2491 = vadd.f32 %v1920, %v2490
  %v2492 = vpop.f32.mrf.mxu0
  %2493 = vmatprep.mubr.f32.mxu0 0.0
  %v2494 = vand.u32 %v265, 4294901760
  %v2495 = vsub.f32 %v265, %v2494
  %v2496 = vand.u32 %v2495, 4294901760
  %2497 = vmatmul.mubr.f32.gmra.mxu0 %v2496
  %v2498 = vpop.f32.mrf.mxu0
  %v2499 = vadd.f32 %v1927, %v2498
  %v2500 = vpop.f32.mrf.mxu0
  %2501 = vmatprep.mubr.f32.mxu0 0.0
  %v2502 = vand.u32 %v268, 4294901760
  %v2503 = vsub.f32 %v268, %v2502
  %v2504 = vand.u32 %v2503, 4294901760
  %2505 = vmatmul.mubr.f32.gmra.mxu0 %v2504
  %v2506 = vpop.f32.mrf.mxu0
  %v2507 = vadd.f32 %v1934, %v2506
  %v2508 = vpop.f32.mrf.mxu0
  %2509 = vmatprep.mubr.f32.mxu0 0.0
  %v2510 = vand.u32 %v271, 4294901760
  %v2511 = vsub.f32 %v271, %v2510
  %v2512 = vand.u32 %v2511, 4294901760
  %2513 = vmatmul.mubr.f32.gmra.mxu0 %v2512
  %v2514 = vpop.f32.mrf.mxu0
  %v2515 = vadd.f32 %v1941, %v2514
  %v2516 = vpop.f32.mrf.mxu0
  %2517 = vmatprep.mubr.f32.mxu0 0.0
  %v2518 = vand.u32 %v274, 4294901760
  %v2519 = vsub.f32 %v274, %v2518
  %v2520 = vand.u32 %v2519, 4294901760
  %2521 = vmatmul.mubr.f32.gmra.mxu0 %v2520
  %v2522 = vpop.f32.mrf.mxu0
  %v2523 = vadd.f32 %v1948, %v2522
  %v2524 = vpop.f32.mrf.mxu0
  %2525 = vmatprep.mubr.f32.mxu0 0.0
  %v2526 = vand.u32 %v277, 4294901760
  %v2527 = vsub.f32 %v277, %v2526
  %v2528 = vand.u32 %v2527, 4294901760
  %2529 = vmatmul.mubr.f32.gmra.mxu0 %v2528
  %v2530 = vpop.f32.mrf.mxu0
  %v2531 = vadd.f32 %v1955, %v2530
  %v2532 = vpop.f32.mrf.mxu0
  %2533 = vmatprep.mubr.f32.mxu0 0.0
  %v2534 = vand.u32 %v280, 4294901760
  %v2535 = vsub.f32 %v280, %v2534
  %v2536 = vand.u32 %v2535, 4294901760
  %2537 = vmatmul.mubr.f32.gmra.mxu0 %v2536
  %v2538 = vpop.f32.mrf.mxu0
  %v2539 = vadd.f32 %v1962, %v2538
  %v2540 = vpop.f32.mrf.mxu0
  %2541 = vmatprep.mubr.f32.mxu0 0.0
  %v2542 = vand.u32 %v283, 4294901760
  %v2543 = vsub.f32 %v283, %v2542
  %v2544 = vand.u32 %v2543, 4294901760
  %2545 = vmatmul.mubr.f32.gmra.mxu0 %v2544
  %v2546 = vpop.f32.mrf.mxu0
  %v2547 = vadd.f32 %v1969, %v2546
  %v2548 = vpop.f32.mrf.mxu0
  %2549 = vmatprep.mubr.f32.mxu0 0.0
  %v2550 = vand.u32 %v286, 4294901760
  %v2551 = vsub.f32 %v286, %v2550
  %v2552 = vand.u32 %v2551, 4294901760
  %2553 = vmatmul.mubr.f32.gmra.mxu0 %v2552
  %v2554 = vpop.f32.mrf.mxu0
  %v2555 = vadd.f32 %v1976, %v2554
  %v2556 = vpop.f32.mrf.mxu0
  %2557 = vmatprep.mubr.f32.mxu0 0.0
  %v2558 = vand.u32 %v289, 4294901760
  %v2559 = vsub.f32 %v289, %v2558
  %v2560 = vand.u32 %v2559, 4294901760
  %2561 = vmatmul.mubr.f32.gmra.mxu0 %v2560
  %v2562 = vpop.f32.mrf.mxu0
  %v2563 = vadd.f32 %v1983, %v2562
  %v2564 = vpop.f32.mrf.mxu0
  %2565 = vmatprep.mubr.f32.mxu0 0.0
  %v2566 = vand.u32 %v292, 4294901760
  %v2567 = vsub.f32 %v292, %v2566
  %v2568 = vand.u32 %v2567, 4294901760
  %2569 = vmatmul.mubr.f32.gmra.mxu0 %v2568
  %v2570 = vpop.f32.mrf.mxu0
  %v2571 = vadd.f32 %v1990, %v2570
  %v2572 = vpop.f32.mrf.mxu0
  %2573 = vdwg.mxu0
  %2574 = vmatprep.subr.mxu0 0.0
  %2575 = vmatpush1.msra.mxu0 0.0
  %2576 = vmatprep.subr.mxu0 0.0
  %2577 = vmatpush1.msra.mxu0 0.0
  %2578 = vmatprep.subr.mxu0 0.0
  %2579 = vmatpush1.msra.mxu0 0.0
  %2580 = vmatprep.subr.mxu0 0.0
  %2581 = vmatpush1.msra.mxu0 0.0
  %2582 = vmatprep.subr.mxu0 0.0
  %2583 = vmatpush1.msra.mxu0 0.0
  %2584 = vmatprep.subr.mxu0 0.0
  %2585 = vmatpush1.msra.mxu0 0.0
  %2586 = vmatprep.subr.mxu0 0.0
  %2587 = vmatpush1.msra.mxu0 0.0
  %2588 = vmatprep.subr.mxu0 0.0
  %2589 = vmatpush1.msra.mxu0 0.0
  %2590 = vmatprep.subr.mxu0 0.0
  %2591 = vmatpush1.msra.mxu0 0.0
  %2592 = vmatprep.subr.mxu0 0.0
  %2593 = vmatpush1.msra.mxu0 0.0
  %2594 = vmatprep.subr.mxu0 0.0
  %2595 = vmatpush1.msra.mxu0 0.0
  %2596 = vmatprep.subr.mxu0 0.0
  %2597 = vmatpush1.msra.mxu0 0.0
  %2598 = vmatprep.subr.mxu0 0.0
  %v2599 = vand.u32 %v93, 4294901760
  %v2600 = vsub.f32 %v93, %v2599
  %v2601 = vand.u32 %v2600, 4294901760
  %2602 = vmatpush1.msra.mxu0 %v2601
  %2603 = vmatprep.subr.mxu0 0.0
  %v2604 = vand.u32 %v92, 4294901760
  %v2605 = vsub.f32 %v92, %v2604
  %v2606 = vand.u32 %v2605, 4294901760
  %2607 = vmatpush1.msra.mxu0 %v2606
  %2608 = vmatprep.subr.mxu0 0.0
  %v2609 = vand.u32 %v91, 4294901760
  %v2610 = vsub.f32 %v91, %v2609
  %v2611 = vand.u32 %v2610, 4294901760
  %2612 = vmatpush1.msra.mxu0 %v2611
  %2613 = vmatprep.subr.mxu0 0.0
  %v2614 = vand.u32 %v90, 4294901760
  %v2615 = vsub.f32 %v90, %v2614
  %v2616 = vand.u32 %v2615, 4294901760
  %2617 = vmatpush1.msra.mxu0 %v2616
  %2618 = vmatprep.subr.mxu0 0.0
  %2619 = vmatpush2.msra.mxu0 0.0
  %2620 = vmatprep.subr.mxu0 0.0
  %2621 = vmatpush2.msra.mxu0 0.0
  %2622 = vmatprep.subr.mxu0 0.0
  %2623 = vmatpush2.msra.mxu0 0.0
  %2624 = vmatprep.subr.mxu0 0.0
  %2625 = vmatpush2.msra.mxu0 0.0
  %2626 = vmatprep.subr.mxu0 0.0
  %2627 = vmatpush2.msra.mxu0 0.0
  %2628 = vmatprep.subr.mxu0 0.0
  %2629 = vmatpush2.msra.mxu0 0.0
  %2630 = vmatprep.subr.mxu0 0.0
  %2631 = vmatpush2.msra.mxu0 0.0
  %2632 = vmatprep.subr.mxu0 0.0
  %2633 = vmatpush2.msra.mxu0 0.0
  %2634 = vmatprep.subr.mxu0 0.0
  %2635 = vmatpush2.msra.mxu0 0.0
  %2636 = vmatprep.subr.mxu0 0.0
  %2637 = vmatpush2.msra.mxu0 0.0
  %2638 = vmatprep.subr.mxu0 0.0
  %2639 = vmatpush2.msra.mxu0 0.0
  %2640 = vmatprep.subr.mxu0 0.0
  %2641 = vmatpush2.msra.mxu0 0.0
  %2642 = vmatprep.subr.mxu0 0.0
  %2643 = vmatpush2.msra.mxu0 0.0
  %2644 = vmatprep.subr.mxu0 0.0
  %2645 = vmatpush2.msra.mxu0 0.0
  %2646 = vmatprep.subr.mxu0 0.0
  %2647 = vmatpush2.msra.mxu0 0.0
  %2648 = vmatprep.subr.mxu0 0.0
  %2649 = vmatpush2.msra.mxu0 0.0
  %2650 = vmatprep.mubr.f32.mxu0 0.0
  %v2651 = vand.u32 %v103, 4294901760
  %2652 = vmatmul.mubr.f32.gmra.mxu0 %v2651
  %v2653 = vpop.f32.mrf.mxu0
  %v2654 = vadd.f32 %v2067, %v2653
  %v2655 = vpop.f32.mrf.mxu0
  %2656 = vmatprep.mubr.f32.mxu0 0.0
  %v2657 = vand.u32 %v106, 4294901760
  %2658 = vmatmul.mubr.f32.gmra.mxu0 %v2657
  %v2659 = vpop.f32.mrf.mxu0
  %v2660 = vadd.f32 %v2075, %v2659
  %v2661 = vpop.f32.mrf.mxu0
  %2662 = vmatprep.mubr.f32.mxu0 0.0
  %v2663 = vand.u32 %v109, 4294901760
  %2664 = vmatmul.mubr.f32.gmra.mxu0 %v2663
  %v2665 = vpop.f32.mrf.mxu0
  %v2666 = vadd.f32 %v2083, %v2665
  %v2667 = vpop.f32.mrf.mxu0
  %2668 = vmatprep.mubr.f32.mxu0 0.0
  %v2669 = vand.u32 %v112, 4294901760
  %2670 = vmatmul.mubr.f32.gmra.mxu0 %v2669
  %v2671 = vpop.f32.mrf.mxu0
  %v2672 = vadd.f32 %v2091, %v2671
  %v2673 = vpop.f32.mrf.mxu0
  %2674 = vmatprep.mubr.f32.mxu0 0.0
  %v2675 = vand.u32 %v115, 4294901760
  %2676 = vmatmul.mubr.f32.gmra.mxu0 %v2675
  %v2677 = vpop.f32.mrf.mxu0
  %v2678 = vadd.f32 %v2099, %v2677
  %v2679 = vpop.f32.mrf.mxu0
  %2680 = vmatprep.mubr.f32.mxu0 0.0
  %v2681 = vand.u32 %v118, 4294901760
  %2682 = vmatmul.mubr.f32.gmra.mxu0 %v2681
  %v2683 = vpop.f32.mrf.mxu0
  %v2684 = vadd.f32 %v2107, %v2683
  %v2685 = vpop.f32.mrf.mxu0
  %2686 = vmatprep.mubr.f32.mxu0 0.0
  %v2687 = vand.u32 %v121, 4294901760
  %2688 = vmatmul.mubr.f32.gmra.mxu0 %v2687
  %v2689 = vpop.f32.mrf.mxu0
  %v2690 = vadd.f32 %v2115, %v2689
  %v2691 = vpop.f32.mrf.mxu0
  %2692 = vmatprep.mubr.f32.mxu0 0.0
  %v2693 = vand.u32 %v124, 4294901760
  %2694 = vmatmul.mubr.f32.gmra.mxu0 %v2693
  %v2695 = vpop.f32.mrf.mxu0
  %v2696 = vadd.f32 %v2123, %v2695
  %v2697 = vpop.f32.mrf.mxu0
  %2698 = vmatprep.mubr.f32.mxu0 0.0
  %v2699 = vand.u32 %v127, 4294901760
  %2700 = vmatmul.mubr.f32.gmra.mxu0 %v2699
  %v2701 = vpop.f32.mrf.mxu0
  %v2702 = vadd.f32 %v2131, %v2701
  %v2703 = vpop.f32.mrf.mxu0
  %2704 = vmatprep.mubr.f32.mxu0 0.0
  %v2705 = vand.u32 %v130, 4294901760
  %2706 = vmatmul.mubr.f32.gmra.mxu0 %v2705
  %v2707 = vpop.f32.mrf.mxu0
  %v2708 = vadd.f32 %v2139, %v2707
  %v2709 = vpop.f32.mrf.mxu0
  %2710 = vmatprep.mubr.f32.mxu0 0.0
  %v2711 = vand.u32 %v133, 4294901760
  %2712 = vmatmul.mubr.f32.gmra.mxu0 %v2711
  %v2713 = vpop.f32.mrf.mxu0
  %v2714 = vadd.f32 %v2147, %v2713
  %v2715 = vpop.f32.mrf.mxu0
  %2716 = vmatprep.mubr.f32.mxu0 0.0
  %v2717 = vand.u32 %v136, 4294901760
  %2718 = vmatmul.mubr.f32.gmra.mxu0 %v2717
  %v2719 = vpop.f32.mrf.mxu0
  %v2720 = vadd.f32 %v2155, %v2719
  %v2721 = vpop.f32.mrf.mxu0
  %2722 = vmatprep.mubr.f32.mxu0 0.0
  %v2723 = vand.u32 %v139, 4294901760
  %2724 = vmatmul.mubr.f32.gmra.mxu0 %v2723
  %v2725 = vpop.f32.mrf.mxu0
  %v2726 = vadd.f32 %v2163, %v2725
  %v2727 = vpop.f32.mrf.mxu0
  %2728 = vmatprep.mubr.f32.mxu0 0.0
  %v2729 = vand.u32 %v142, 4294901760
  %2730 = vmatmul.mubr.f32.gmra.mxu0 %v2729
  %v2731 = vpop.f32.mrf.mxu0
  %v2732 = vadd.f32 %v2171, %v2731
  %v2733 = vpop.f32.mrf.mxu0
  %2734 = vmatprep.mubr.f32.mxu0 0.0
  %v2735 = vand.u32 %v145, 4294901760
  %2736 = vmatmul.mubr.f32.gmra.mxu0 %v2735
  %v2737 = vpop.f32.mrf.mxu0
  %v2738 = vadd.f32 %v2179, %v2737
  %v2739 = vpop.f32.mrf.mxu0
  %2740 = vmatprep.mubr.f32.mxu0 0.0
  %v2741 = vand.u32 %v148, 4294901760
  %2742 = vmatmul.mubr.f32.gmra.mxu0 %v2741
  %v2743 = vpop.f32.mrf.mxu0
  %v2744 = vadd.f32 %v2187, %v2743
  %v2745 = vpop.f32.mrf.mxu0
  %2746 = vmatprep.mubr.f32.mxu0 0.0
  %v2747 = vand.u32 %v151, 4294901760
  %2748 = vmatmul.mubr.f32.gmra.mxu0 %v2747
  %v2749 = vpop.f32.mrf.mxu0
  %v2750 = vadd.f32 %v2195, %v2749
  %v2751 = vpop.f32.mrf.mxu0
  %2752 = vmatprep.mubr.f32.mxu0 0.0
  %v2753 = vand.u32 %v154, 4294901760
  %2754 = vmatmul.mubr.f32.gmra.mxu0 %v2753
  %v2755 = vpop.f32.mrf.mxu0
  %v2756 = vadd.f32 %v2203, %v2755
  %v2757 = vpop.f32.mrf.mxu0
  %2758 = vmatprep.mubr.f32.mxu0 0.0
  %v2759 = vand.u32 %v157, 4294901760
  %2760 = vmatmul.mubr.f32.gmra.mxu0 %v2759
  %v2761 = vpop.f32.mrf.mxu0
  %v2762 = vadd.f32 %v2211, %v2761
  %v2763 = vpop.f32.mrf.mxu0
  %2764 = vmatprep.mubr.f32.mxu0 0.0
  %v2765 = vand.u32 %v160, 4294901760
  %2766 = vmatmul.mubr.f32.gmra.mxu0 %v2765
  %v2767 = vpop.f32.mrf.mxu0
  %v2768 = vadd.f32 %v2219, %v2767
  %v2769 = vpop.f32.mrf.mxu0
  %2770 = vmatprep.mubr.f32.mxu0 0.0
  %v2771 = vand.u32 %v163, 4294901760
  %2772 = vmatmul.mubr.f32.gmra.mxu0 %v2771
  %v2773 = vpop.f32.mrf.mxu0
  %v2774 = vadd.f32 %v2227, %v2773
  %v2775 = vpop.f32.mrf.mxu0
  %2776 = vmatprep.mubr.f32.mxu0 0.0
  %v2777 = vand.u32 %v166, 4294901760
  %2778 = vmatmul.mubr.f32.gmra.mxu0 %v2777
  %v2779 = vpop.f32.mrf.mxu0
  %v2780 = vadd.f32 %v2235, %v2779
  %v2781 = vpop.f32.mrf.mxu0
  %2782 = vmatprep.mubr.f32.mxu0 0.0
  %v2783 = vand.u32 %v169, 4294901760
  %2784 = vmatmul.mubr.f32.gmra.mxu0 %v2783
  %v2785 = vpop.f32.mrf.mxu0
  %v2786 = vadd.f32 %v2243, %v2785
  %v2787 = vpop.f32.mrf.mxu0
  %2788 = vmatprep.mubr.f32.mxu0 0.0
  %v2789 = vand.u32 %v172, 4294901760
  %2790 = vmatmul.mubr.f32.gmra.mxu0 %v2789
  %v2791 = vpop.f32.mrf.mxu0
  %v2792 = vadd.f32 %v2251, %v2791
  %v2793 = vpop.f32.mrf.mxu0
  %2794 = vmatprep.mubr.f32.mxu0 0.0
  %v2795 = vand.u32 %v175, 4294901760
  %2796 = vmatmul.mubr.f32.gmra.mxu0 %v2795
  %v2797 = vpop.f32.mrf.mxu0
  %v2798 = vadd.f32 %v2259, %v2797
  %v2799 = vpop.f32.mrf.mxu0
  %2800 = vmatprep.mubr.f32.mxu0 0.0
  %v2801 = vand.u32 %v178, 4294901760
  %2802 = vmatmul.mubr.f32.gmra.mxu0 %v2801
  %v2803 = vpop.f32.mrf.mxu0
  %v2804 = vadd.f32 %v2267, %v2803
  %v2805 = vpop.f32.mrf.mxu0
  %2806 = vmatprep.mubr.f32.mxu0 0.0
  %v2807 = vand.u32 %v181, 4294901760
  %2808 = vmatmul.mubr.f32.gmra.mxu0 %v2807
  %v2809 = vpop.f32.mrf.mxu0
  %v2810 = vadd.f32 %v2275, %v2809
  %v2811 = vpop.f32.mrf.mxu0
  %2812 = vmatprep.mubr.f32.mxu0 0.0
  %v2813 = vand.u32 %v184, 4294901760
  %2814 = vmatmul.mubr.f32.gmra.mxu0 %v2813
  %v2815 = vpop.f32.mrf.mxu0
  %v2816 = vadd.f32 %v2283, %v2815
  %v2817 = vpop.f32.mrf.mxu0
  %2818 = vmatprep.mubr.f32.mxu0 0.0
  %v2819 = vand.u32 %v187, 4294901760
  %2820 = vmatmul.mubr.f32.gmra.mxu0 %v2819
  %v2821 = vpop.f32.mrf.mxu0
  %v2822 = vadd.f32 %v2291, %v2821
  %v2823 = vpop.f32.mrf.mxu0
  %2824 = vmatprep.mubr.f32.mxu0 0.0
  %v2825 = vand.u32 %v190, 4294901760
  %2826 = vmatmul.mubr.f32.gmra.mxu0 %v2825
  %v2827 = vpop.f32.mrf.mxu0
  %v2828 = vadd.f32 %v2299, %v2827
  %v2829 = vpop.f32.mrf.mxu0
  %2830 = vmatprep.mubr.f32.mxu0 0.0
  %v2831 = vand.u32 %v193, 4294901760
  %2832 = vmatmul.mubr.f32.gmra.mxu0 %v2831
  %v2833 = vpop.f32.mrf.mxu0
  %v2834 = vadd.f32 %v2307, %v2833
  %v2835 = vpop.f32.mrf.mxu0
  %2836 = vmatprep.mubr.f32.mxu0 0.0
  %v2837 = vand.u32 %v196, 4294901760
  %2838 = vmatmul.mubr.f32.gmra.mxu0 %v2837
  %v2839 = vpop.f32.mrf.mxu0
  %v2840 = vadd.f32 %v2315, %v2839
  %v2841 = vpop.f32.mrf.mxu0
  %2842 = vmatprep.mubr.f32.mxu0 0.0
  %v2843 = vand.u32 %v199, 4294901760
  %2844 = vmatmul.mubr.f32.gmra.mxu0 %v2843
  %v2845 = vpop.f32.mrf.mxu0
  %v2846 = vadd.f32 %v2323, %v2845
  %v2847 = vpop.f32.mrf.mxu0
  %2848 = vmatprep.mubr.f32.mxu0 0.0
  %v2849 = vand.u32 %v202, 4294901760
  %2850 = vmatmul.mubr.f32.gmra.mxu0 %v2849
  %v2851 = vpop.f32.mrf.mxu0
  %v2852 = vadd.f32 %v2331, %v2851
  %v2853 = vpop.f32.mrf.mxu0
  %2854 = vmatprep.mubr.f32.mxu0 0.0
  %v2855 = vand.u32 %v205, 4294901760
  %2856 = vmatmul.mubr.f32.gmra.mxu0 %v2855
  %v2857 = vpop.f32.mrf.mxu0
  %v2858 = vadd.f32 %v2339, %v2857
  %v2859 = vpop.f32.mrf.mxu0
  %2860 = vmatprep.mubr.f32.mxu0 0.0
  %v2861 = vand.u32 %v208, 4294901760
  %2862 = vmatmul.mubr.f32.gmra.mxu0 %v2861
  %v2863 = vpop.f32.mrf.mxu0
  %v2864 = vadd.f32 %v2347, %v2863
  %v2865 = vpop.f32.mrf.mxu0
  %2866 = vmatprep.mubr.f32.mxu0 0.0
  %v2867 = vand.u32 %v211, 4294901760
  %2868 = vmatmul.mubr.f32.gmra.mxu0 %v2867
  %v2869 = vpop.f32.mrf.mxu0
  %v2870 = vadd.f32 %v2355, %v2869
  %v2871 = vpop.f32.mrf.mxu0
  %2872 = vmatprep.mubr.f32.mxu0 0.0
  %v2873 = vand.u32 %v214, 4294901760
  %2874 = vmatmul.mubr.f32.gmra.mxu0 %v2873
  %v2875 = vpop.f32.mrf.mxu0
  %v2876 = vadd.f32 %v2363, %v2875
  %v2877 = vpop.f32.mrf.mxu0
  %2878 = vmatprep.mubr.f32.mxu0 0.0
  %v2879 = vand.u32 %v217, 4294901760
  %2880 = vmatmul.mubr.f32.gmra.mxu0 %v2879
  %v2881 = vpop.f32.mrf.mxu0
  %v2882 = vadd.f32 %v2371, %v2881
  %v2883 = vpop.f32.mrf.mxu0
  %2884 = vmatprep.mubr.f32.mxu0 0.0
  %v2885 = vand.u32 %v220, 4294901760
  %2886 = vmatmul.mubr.f32.gmra.mxu0 %v2885
  %v2887 = vpop.f32.mrf.mxu0
  %v2888 = vadd.f32 %v2379, %v2887
  %v2889 = vpop.f32.mrf.mxu0
  %2890 = vmatprep.mubr.f32.mxu0 0.0
  %v2891 = vand.u32 %v223, 4294901760
  %2892 = vmatmul.mubr.f32.gmra.mxu0 %v2891
  %v2893 = vpop.f32.mrf.mxu0
  %v2894 = vadd.f32 %v2387, %v2893
  %v2895 = vpop.f32.mrf.mxu0
  %2896 = vmatprep.mubr.f32.mxu0 0.0
  %v2897 = vand.u32 %v226, 4294901760
  %2898 = vmatmul.mubr.f32.gmra.mxu0 %v2897
  %v2899 = vpop.f32.mrf.mxu0
  %v2900 = vadd.f32 %v2395, %v2899
  %v2901 = vpop.f32.mrf.mxu0
  %2902 = vmatprep.mubr.f32.mxu0 0.0
  %v2903 = vand.u32 %v229, 4294901760
  %2904 = vmatmul.mubr.f32.gmra.mxu0 %v2903
  %v2905 = vpop.f32.mrf.mxu0
  %v2906 = vadd.f32 %v2403, %v2905
  %v2907 = vpop.f32.mrf.mxu0
  %2908 = vmatprep.mubr.f32.mxu0 0.0
  %v2909 = vand.u32 %v232, 4294901760
  %2910 = vmatmul.mubr.f32.gmra.mxu0 %v2909
  %v2911 = vpop.f32.mrf.mxu0
  %v2912 = vadd.f32 %v2411, %v2911
  %v2913 = vpop.f32.mrf.mxu0
  %2914 = vmatprep.mubr.f32.mxu0 0.0
  %v2915 = vand.u32 %v235, 4294901760
  %2916 = vmatmul.mubr.f32.gmra.mxu0 %v2915
  %v2917 = vpop.f32.mrf.mxu0
  %v2918 = vadd.f32 %v2419, %v2917
  %v2919 = vpop.f32.mrf.mxu0
  %2920 = vmatprep.mubr.f32.mxu0 0.0
  %v2921 = vand.u32 %v238, 4294901760
  %2922 = vmatmul.mubr.f32.gmra.mxu0 %v2921
  %v2923 = vpop.f32.mrf.mxu0
  %v2924 = vadd.f32 %v2427, %v2923
  %v2925 = vpop.f32.mrf.mxu0
  %2926 = vmatprep.mubr.f32.mxu0 0.0
  %v2927 = vand.u32 %v241, 4294901760
  %2928 = vmatmul.mubr.f32.gmra.mxu0 %v2927
  %v2929 = vpop.f32.mrf.mxu0
  %v2930 = vadd.f32 %v2435, %v2929
  %v2931 = vpop.f32.mrf.mxu0
  %2932 = vmatprep.mubr.f32.mxu0 0.0
  %v2933 = vand.u32 %v244, 4294901760
  %2934 = vmatmul.mubr.f32.gmra.mxu0 %v2933
  %v2935 = vpop.f32.mrf.mxu0
  %v2936 = vadd.f32 %v2443, %v2935
  %v2937 = vpop.f32.mrf.mxu0
  %2938 = vmatprep.mubr.f32.mxu0 0.0
  %v2939 = vand.u32 %v247, 4294901760
  %2940 = vmatmul.mubr.f32.gmra.mxu0 %v2939
  %v2941 = vpop.f32.mrf.mxu0
  %v2942 = vadd.f32 %v2451, %v2941
  %v2943 = vpop.f32.mrf.mxu0
  %2944 = vmatprep.mubr.f32.mxu0 0.0
  %v2945 = vand.u32 %v250, 4294901760
  %2946 = vmatmul.mubr.f32.gmra.mxu0 %v2945
  %v2947 = vpop.f32.mrf.mxu0
  %v2948 = vadd.f32 %v2459, %v2947
  %v2949 = vpop.f32.mrf.mxu0
  %2950 = vmatprep.mubr.f32.mxu0 0.0
  %v2951 = vand.u32 %v253, 4294901760
  %2952 = vmatmul.mubr.f32.gmra.mxu0 %v2951
  %v2953 = vpop.f32.mrf.mxu0
  %v2954 = vadd.f32 %v2467, %v2953
  %v2955 = vpop.f32.mrf.mxu0
  %2956 = vmatprep.mubr.f32.mxu0 0.0
  %v2957 = vand.u32 %v256, 4294901760
  %2958 = vmatmul.mubr.f32.gmra.mxu0 %v2957
  %v2959 = vpop.f32.mrf.mxu0
  %v2960 = vadd.f32 %v2475, %v2959
  %v2961 = vpop.f32.mrf.mxu0
  %2962 = vmatprep.mubr.f32.mxu0 0.0
  %v2963 = vand.u32 %v259, 4294901760
  %2964 = vmatmul.mubr.f32.gmra.mxu0 %v2963
  %v2965 = vpop.f32.mrf.mxu0
  %v2966 = vadd.f32 %v2483, %v2965
  %v2967 = vpop.f32.mrf.mxu0
  %2968 = vmatprep.mubr.f32.mxu0 0.0
  %v2969 = vand.u32 %v262, 4294901760
  %2970 = vmatmul.mubr.f32.gmra.mxu0 %v2969
  %v2971 = vpop.f32.mrf.mxu0
  %v2972 = vadd.f32 %v2491, %v2971
  %v2973 = vpop.f32.mrf.mxu0
  %2974 = vmatprep.mubr.f32.mxu0 0.0
  %v2975 = vand.u32 %v265, 4294901760
  %2976 = vmatmul.mubr.f32.gmra.mxu0 %v2975
  %v2977 = vpop.f32.mrf.mxu0
  %v2978 = vadd.f32 %v2499, %v2977
  %v2979 = vpop.f32.mrf.mxu0
  %2980 = vmatprep.mubr.f32.mxu0 0.0
  %v2981 = vand.u32 %v268, 4294901760
  %2982 = vmatmul.mubr.f32.gmra.mxu0 %v2981
  %v2983 = vpop.f32.mrf.mxu0
  %v2984 = vadd.f32 %v2507, %v2983
  %v2985 = vpop.f32.mrf.mxu0
  %2986 = vmatprep.mubr.f32.mxu0 0.0
  %v2987 = vand.u32 %v271, 4294901760
  %2988 = vmatmul.mubr.f32.gmra.mxu0 %v2987
  %v2989 = vpop.f32.mrf.mxu0
  %v2990 = vadd.f32 %v2515, %v2989
  %v2991 = vpop.f32.mrf.mxu0
  %2992 = vmatprep.mubr.f32.mxu0 0.0
  %v2993 = vand.u32 %v274, 4294901760
  %2994 = vmatmul.mubr.f32.gmra.mxu0 %v2993
  %v2995 = vpop.f32.mrf.mxu0
  %v2996 = vadd.f32 %v2523, %v2995
  %v2997 = vpop.f32.mrf.mxu0
  %2998 = vmatprep.mubr.f32.mxu0 0.0
  %v2999 = vand.u32 %v277, 4294901760
  %3000 = vmatmul.mubr.f32.gmra.mxu0 %v2999
  %v3001 = vpop.f32.mrf.mxu0
  %v3002 = vadd.f32 %v2531, %v3001
  %v3003 = vpop.f32.mrf.mxu0
  %3004 = vmatprep.mubr.f32.mxu0 0.0
  %v3005 = vand.u32 %v280, 4294901760
  %3006 = vmatmul.mubr.f32.gmra.mxu0 %v3005
  %v3007 = vpop.f32.mrf.mxu0
  %v3008 = vadd.f32 %v2539, %v3007
  %v3009 = vpop.f32.mrf.mxu0
  %3010 = vmatprep.mubr.f32.mxu0 0.0
  %v3011 = vand.u32 %v283, 4294901760
  %3012 = vmatmul.mubr.f32.gmra.mxu0 %v3011
  %v3013 = vpop.f32.mrf.mxu0
  %v3014 = vadd.f32 %v2547, %v3013
  %v3015 = vpop.f32.mrf.mxu0
  %3016 = vmatprep.mubr.f32.mxu0 0.0
  %v3017 = vand.u32 %v286, 4294901760
  %3018 = vmatmul.mubr.f32.gmra.mxu0 %v3017
  %v3019 = vpop.f32.mrf.mxu0
  %v3020 = vadd.f32 %v2555, %v3019
  %v3021 = vpop.f32.mrf.mxu0
  %3022 = vmatprep.mubr.f32.mxu0 0.0
  %v3023 = vand.u32 %v289, 4294901760
  %3024 = vmatmul.mubr.f32.gmra.mxu0 %v3023
  %v3025 = vpop.f32.mrf.mxu0
  %v3026 = vadd.f32 %v2563, %v3025
  %v3027 = vpop.f32.mrf.mxu0
  %3028 = vmatprep.mubr.f32.mxu0 0.0
  %v3029 = vand.u32 %v292, 4294901760
  %3030 = vmatmul.mubr.f32.gmra.mxu0 %v3029
  %v3031 = vpop.f32.mrf.mxu0
  %v3032 = vadd.f32 %v2571, %v3031
  %v3033 = vpop.f32.mrf.mxu0
  %3034 = vdwg.mxu0
  %3035 = vmatprep.subr.mxu0 0.0
  %3036 = vmatpush1.msra.mxu0 0.0
  %3037 = vmatprep.subr.mxu0 0.0
  %3038 = vmatpush1.msra.mxu0 0.0
  %3039 = vmatprep.subr.mxu0 0.0
  %3040 = vmatpush1.msra.mxu0 0.0
  %3041 = vmatprep.subr.mxu0 0.0
  %3042 = vmatpush1.msra.mxu0 0.0
  %3043 = vmatprep.subr.mxu0 0.0
  %3044 = vmatpush1.msra.mxu0 0.0
  %3045 = vmatprep.subr.mxu0 0.0
  %3046 = vmatpush1.msra.mxu0 0.0
  %3047 = vmatprep.subr.mxu0 0.0
  %3048 = vmatpush1.msra.mxu0 0.0
  %3049 = vmatprep.subr.mxu0 0.0
  %3050 = vmatpush1.msra.mxu0 0.0
  %3051 = vmatprep.subr.mxu0 0.0
  %3052 = vmatpush1.msra.mxu0 0.0
  %3053 = vmatprep.subr.mxu0 0.0
  %3054 = vmatpush1.msra.mxu0 0.0
  %3055 = vmatprep.subr.mxu0 0.0
  %3056 = vmatpush1.msra.mxu0 0.0
  %3057 = vmatprep.subr.mxu0 0.0
  %3058 = vmatpush1.msra.mxu0 0.0
  %3059 = vmatprep.subr.mxu0 0.0
  %v3060 = vand.u32 %v93, 4294901760
  %3061 = vmatpush1.msra.mxu0 %v3060
  %3062 = vmatprep.subr.mxu0 0.0
  %v3063 = vand.u32 %v92, 4294901760
  %3064 = vmatpush1.msra.mxu0 %v3063
  %3065 = vmatprep.subr.mxu0 0.0
  %v3066 = vand.u32 %v91, 4294901760
  %3067 = vmatpush1.msra.mxu0 %v3066
  %3068 = vmatprep.subr.mxu0 0.0
  %v3069 = vand.u32 %v90, 4294901760
  %3070 = vmatpush1.msra.mxu0 %v3069
  %3071 = vmatprep.subr.mxu0 0.0
  %3072 = vmatpush2.msra.mxu0 0.0
  %3073 = vmatprep.subr.mxu0 0.0
  %3074 = vmatpush2.msra.mxu0 0.0
  %3075 = vmatprep.subr.mxu0 0.0
  %3076 = vmatpush2.msra.mxu0 0.0
  %3077 = vmatprep.subr.mxu0 0.0
  %3078 = vmatpush2.msra.mxu0 0.0
  %3079 = vmatprep.subr.mxu0 0.0
  %3080 = vmatpush2.msra.mxu0 0.0
  %3081 = vmatprep.subr.mxu0 0.0
  %3082 = vmatpush2.msra.mxu0 0.0
  %3083 = vmatprep.subr.mxu0 0.0
  %3084 = vmatpush2.msra.mxu0 0.0
  %3085 = vmatprep.subr.mxu0 0.0
  %3086 = vmatpush2.msra.mxu0 0.0
  %3087 = vmatprep.subr.mxu0 0.0
  %3088 = vmatpush2.msra.mxu0 0.0
  %3089 = vmatprep.subr.mxu0 0.0
  %3090 = vmatpush2.msra.mxu0 0.0
  %3091 = vmatprep.subr.mxu0 0.0
  %3092 = vmatpush2.msra.mxu0 0.0
  %3093 = vmatprep.subr.mxu0 0.0
  %3094 = vmatpush2.msra.mxu0 0.0
  %3095 = vmatprep.subr.mxu0 0.0
  %3096 = vmatpush2.msra.mxu0 0.0
  %3097 = vmatprep.subr.mxu0 0.0
  %3098 = vmatpush2.msra.mxu0 0.0
  %3099 = vmatprep.subr.mxu0 0.0
  %3100 = vmatpush2.msra.mxu0 0.0
  %3101 = vmatprep.subr.mxu0 0.0
  %3102 = vmatpush2.msra.mxu0 0.0
  %3103 = vmatprep.mubr.f32.mxu0 0.0
  %v3104 = vand.u32 %v103, 4294901760
  %3105 = vmatmul.mubr.f32.gmra.mxu0 %v3104
  %v3106 = vpop.f32.mrf.mxu0
  %v3107 = vadd.f32 %v2654, %v3106
  %v3108 = vpop.f32.mrf.mxu0
  %3109 = vmatprep.mubr.f32.mxu0 0.0
  %v3110 = vand.u32 %v106, 4294901760
  %3111 = vmatmul.mubr.f32.gmra.mxu0 %v3110
  %v3112 = vpop.f32.mrf.mxu0
  %v3113 = vadd.f32 %v2660, %v3112
  %v3114 = vpop.f32.mrf.mxu0
  %3115 = vmatprep.mubr.f32.mxu0 0.0
  %v3116 = vand.u32 %v109, 4294901760
  %3117 = vmatmul.mubr.f32.gmra.mxu0 %v3116
  %v3118 = vpop.f32.mrf.mxu0
  %v3119 = vadd.f32 %v2666, %v3118
  %v3120 = vpop.f32.mrf.mxu0
  %3121 = vmatprep.mubr.f32.mxu0 0.0
  %v3122 = vand.u32 %v112, 4294901760
  %3123 = vmatmul.mubr.f32.gmra.mxu0 %v3122
  %v3124 = vpop.f32.mrf.mxu0
  %v3125 = vadd.f32 %v2672, %v3124
  %v3126 = vpop.f32.mrf.mxu0
  %3127 = vmatprep.mubr.f32.mxu0 0.0
  %v3128 = vand.u32 %v115, 4294901760
  %3129 = vmatmul.mubr.f32.gmra.mxu0 %v3128
  %v3130 = vpop.f32.mrf.mxu0
  %v3131 = vadd.f32 %v2678, %v3130
  %v3132 = vpop.f32.mrf.mxu0
  %3133 = vmatprep.mubr.f32.mxu0 0.0
  %v3134 = vand.u32 %v118, 4294901760
  %3135 = vmatmul.mubr.f32.gmra.mxu0 %v3134
  %v3136 = vpop.f32.mrf.mxu0
  %v3137 = vadd.f32 %v2684, %v3136
  %v3138 = vpop.f32.mrf.mxu0
  %3139 = vmatprep.mubr.f32.mxu0 0.0
  %v3140 = vand.u32 %v121, 4294901760
  %3141 = vmatmul.mubr.f32.gmra.mxu0 %v3140
  %v3142 = vpop.f32.mrf.mxu0
  %v3143 = vadd.f32 %v2690, %v3142
  %v3144 = vpop.f32.mrf.mxu0
  %3145 = vmatprep.mubr.f32.mxu0 0.0
  %v3146 = vand.u32 %v124, 4294901760
  %3147 = vmatmul.mubr.f32.gmra.mxu0 %v3146
  %v3148 = vpop.f32.mrf.mxu0
  %v3149 = vadd.f32 %v2696, %v3148
  %v3150 = vpop.f32.mrf.mxu0
  %3151 = vmatprep.mubr.f32.mxu0 0.0
  %v3152 = vand.u32 %v127, 4294901760
  %3153 = vmatmul.mubr.f32.gmra.mxu0 %v3152
  %v3154 = vpop.f32.mrf.mxu0
  %v3155 = vadd.f32 %v2702, %v3154
  %v3156 = vpop.f32.mrf.mxu0
  %3157 = vmatprep.mubr.f32.mxu0 0.0
  %v3158 = vand.u32 %v130, 4294901760
  %3159 = vmatmul.mubr.f32.gmra.mxu0 %v3158
  %v3160 = vpop.f32.mrf.mxu0
  %v3161 = vadd.f32 %v2708, %v3160
  %v3162 = vpop.f32.mrf.mxu0
  %3163 = vmatprep.mubr.f32.mxu0 0.0
  %v3164 = vand.u32 %v133, 4294901760
  %3165 = vmatmul.mubr.f32.gmra.mxu0 %v3164
  %v3166 = vpop.f32.mrf.mxu0
  %v3167 = vadd.f32 %v2714, %v3166
  %v3168 = vpop.f32.mrf.mxu0
  %3169 = vmatprep.mubr.f32.mxu0 0.0
  %v3170 = vand.u32 %v136, 4294901760
  %3171 = vmatmul.mubr.f32.gmra.mxu0 %v3170
  %v3172 = vpop.f32.mrf.mxu0
  %v3173 = vadd.f32 %v2720, %v3172
  %v3174 = vpop.f32.mrf.mxu0
  %3175 = vmatprep.mubr.f32.mxu0 0.0
  %v3176 = vand.u32 %v139, 4294901760
  %3177 = vmatmul.mubr.f32.gmra.mxu0 %v3176
  %v3178 = vpop.f32.mrf.mxu0
  %v3179 = vadd.f32 %v2726, %v3178
  %v3180 = vpop.f32.mrf.mxu0
  %3181 = vmatprep.mubr.f32.mxu0 0.0
  %v3182 = vand.u32 %v142, 4294901760
  %3183 = vmatmul.mubr.f32.gmra.mxu0 %v3182
  %v3184 = vpop.f32.mrf.mxu0
  %v3185 = vadd.f32 %v2732, %v3184
  %v3186 = vpop.f32.mrf.mxu0
  %3187 = vmatprep.mubr.f32.mxu0 0.0
  %v3188 = vand.u32 %v145, 4294901760
  %3189 = vmatmul.mubr.f32.gmra.mxu0 %v3188
  %v3190 = vpop.f32.mrf.mxu0
  %v3191 = vadd.f32 %v2738, %v3190
  %v3192 = vpop.f32.mrf.mxu0
  %3193 = vmatprep.mubr.f32.mxu0 0.0
  %v3194 = vand.u32 %v148, 4294901760
  %3195 = vmatmul.mubr.f32.gmra.mxu0 %v3194
  %v3196 = vpop.f32.mrf.mxu0
  %v3197 = vadd.f32 %v2744, %v3196
  %v3198 = vpop.f32.mrf.mxu0
  %3199 = vmatprep.mubr.f32.mxu0 0.0
  %v3200 = vand.u32 %v151, 4294901760
  %3201 = vmatmul.mubr.f32.gmra.mxu0 %v3200
  %v3202 = vpop.f32.mrf.mxu0
  %v3203 = vadd.f32 %v2750, %v3202
  %v3204 = vpop.f32.mrf.mxu0
  %3205 = vmatprep.mubr.f32.mxu0 0.0
  %v3206 = vand.u32 %v154, 4294901760
  %3207 = vmatmul.mubr.f32.gmra.mxu0 %v3206
  %v3208 = vpop.f32.mrf.mxu0
  %v3209 = vadd.f32 %v2756, %v3208
  %v3210 = vpop.f32.mrf.mxu0
  %3211 = vmatprep.mubr.f32.mxu0 0.0
  %v3212 = vand.u32 %v157, 4294901760
  %3213 = vmatmul.mubr.f32.gmra.mxu0 %v3212
  %v3214 = vpop.f32.mrf.mxu0
  %v3215 = vadd.f32 %v2762, %v3214
  %v3216 = vpop.f32.mrf.mxu0
  %3217 = vmatprep.mubr.f32.mxu0 0.0
  %v3218 = vand.u32 %v160, 4294901760
  %3219 = vmatmul.mubr.f32.gmra.mxu0 %v3218
  %v3220 = vpop.f32.mrf.mxu0
  %v3221 = vadd.f32 %v2768, %v3220
  %v3222 = vpop.f32.mrf.mxu0
  %3223 = vmatprep.mubr.f32.mxu0 0.0
  %v3224 = vand.u32 %v163, 4294901760
  %3225 = vmatmul.mubr.f32.gmra.mxu0 %v3224
  %v3226 = vpop.f32.mrf.mxu0
  %v3227 = vadd.f32 %v2774, %v3226
  %v3228 = vpop.f32.mrf.mxu0
  %3229 = vmatprep.mubr.f32.mxu0 0.0
  %v3230 = vand.u32 %v166, 4294901760
  %3231 = vmatmul.mubr.f32.gmra.mxu0 %v3230
  %v3232 = vpop.f32.mrf.mxu0
  %v3233 = vadd.f32 %v2780, %v3232
  %v3234 = vpop.f32.mrf.mxu0
  %3235 = vmatprep.mubr.f32.mxu0 0.0
  %v3236 = vand.u32 %v169, 4294901760
  %3237 = vmatmul.mubr.f32.gmra.mxu0 %v3236
  %v3238 = vpop.f32.mrf.mxu0
  %v3239 = vadd.f32 %v2786, %v3238
  %v3240 = vpop.f32.mrf.mxu0
  %3241 = vmatprep.mubr.f32.mxu0 0.0
  %v3242 = vand.u32 %v172, 4294901760
  %3243 = vmatmul.mubr.f32.gmra.mxu0 %v3242
  %v3244 = vpop.f32.mrf.mxu0
  %v3245 = vadd.f32 %v2792, %v3244
  %v3246 = vpop.f32.mrf.mxu0
  %3247 = vmatprep.mubr.f32.mxu0 0.0
  %v3248 = vand.u32 %v175, 4294901760
  %3249 = vmatmul.mubr.f32.gmra.mxu0 %v3248
  %v3250 = vpop.f32.mrf.mxu0
  %v3251 = vadd.f32 %v2798, %v3250
  %v3252 = vpop.f32.mrf.mxu0
  %3253 = vmatprep.mubr.f32.mxu0 0.0
  %v3254 = vand.u32 %v178, 4294901760
  %3255 = vmatmul.mubr.f32.gmra.mxu0 %v3254
  %v3256 = vpop.f32.mrf.mxu0
  %v3257 = vadd.f32 %v2804, %v3256
  %v3258 = vpop.f32.mrf.mxu0
  %3259 = vmatprep.mubr.f32.mxu0 0.0
  %v3260 = vand.u32 %v181, 4294901760
  %3261 = vmatmul.mubr.f32.gmra.mxu0 %v3260
  %v3262 = vpop.f32.mrf.mxu0
  %v3263 = vadd.f32 %v2810, %v3262
  %v3264 = vpop.f32.mrf.mxu0
  %3265 = vmatprep.mubr.f32.mxu0 0.0
  %v3266 = vand.u32 %v184, 4294901760
  %3267 = vmatmul.mubr.f32.gmra.mxu0 %v3266
  %v3268 = vpop.f32.mrf.mxu0
  %v3269 = vadd.f32 %v2816, %v3268
  %v3270 = vpop.f32.mrf.mxu0
  %3271 = vmatprep.mubr.f32.mxu0 0.0
  %v3272 = vand.u32 %v187, 4294901760
  %3273 = vmatmul.mubr.f32.gmra.mxu0 %v3272
  %v3274 = vpop.f32.mrf.mxu0
  %v3275 = vadd.f32 %v2822, %v3274
  %v3276 = vpop.f32.mrf.mxu0
  %3277 = vmatprep.mubr.f32.mxu0 0.0
  %v3278 = vand.u32 %v190, 4294901760
  %3279 = vmatmul.mubr.f32.gmra.mxu0 %v3278
  %v3280 = vpop.f32.mrf.mxu0
  %v3281 = vadd.f32 %v2828, %v3280
  %v3282 = vpop.f32.mrf.mxu0
  %3283 = vmatprep.mubr.f32.mxu0 0.0
  %v3284 = vand.u32 %v193, 4294901760
  %3285 = vmatmul.mubr.f32.gmra.mxu0 %v3284
  %v3286 = vpop.f32.mrf.mxu0
  %v3287 = vadd.f32 %v2834, %v3286
  %v3288 = vpop.f32.mrf.mxu0
  %3289 = vmatprep.mubr.f32.mxu0 0.0
  %v3290 = vand.u32 %v196, 4294901760
  %3291 = vmatmul.mubr.f32.gmra.mxu0 %v3290
  %v3292 = vpop.f32.mrf.mxu0
  %v3293 = vadd.f32 %v2840, %v3292
  %v3294 = vpop.f32.mrf.mxu0
  %3295 = vmatprep.mubr.f32.mxu0 0.0
  %v3296 = vand.u32 %v199, 4294901760
  %3297 = vmatmul.mubr.f32.gmra.mxu0 %v3296
  %v3298 = vpop.f32.mrf.mxu0
  %v3299 = vadd.f32 %v2846, %v3298
  %v3300 = vpop.f32.mrf.mxu0
  %3301 = vmatprep.mubr.f32.mxu0 0.0
  %v3302 = vand.u32 %v202, 4294901760
  %3303 = vmatmul.mubr.f32.gmra.mxu0 %v3302
  %v3304 = vpop.f32.mrf.mxu0
  %v3305 = vadd.f32 %v2852, %v3304
  %v3306 = vpop.f32.mrf.mxu0
  %3307 = vmatprep.mubr.f32.mxu0 0.0
  %v3308 = vand.u32 %v205, 4294901760
  %3309 = vmatmul.mubr.f32.gmra.mxu0 %v3308
  %v3310 = vpop.f32.mrf.mxu0
  %v3311 = vadd.f32 %v2858, %v3310
  %v3312 = vpop.f32.mrf.mxu0
  %3313 = vmatprep.mubr.f32.mxu0 0.0
  %v3314 = vand.u32 %v208, 4294901760
  %3315 = vmatmul.mubr.f32.gmra.mxu0 %v3314
  %v3316 = vpop.f32.mrf.mxu0
  %v3317 = vadd.f32 %v2864, %v3316
  %v3318 = vpop.f32.mrf.mxu0
  %3319 = vmatprep.mubr.f32.mxu0 0.0
  %v3320 = vand.u32 %v211, 4294901760
  %3321 = vmatmul.mubr.f32.gmra.mxu0 %v3320
  %v3322 = vpop.f32.mrf.mxu0
  %v3323 = vadd.f32 %v2870, %v3322
  %v3324 = vpop.f32.mrf.mxu0
  %3325 = vmatprep.mubr.f32.mxu0 0.0
  %v3326 = vand.u32 %v214, 4294901760
  %3327 = vmatmul.mubr.f32.gmra.mxu0 %v3326
  %v3328 = vpop.f32.mrf.mxu0
  %v3329 = vadd.f32 %v2876, %v3328
  %v3330 = vpop.f32.mrf.mxu0
  %3331 = vmatprep.mubr.f32.mxu0 0.0
  %v3332 = vand.u32 %v217, 4294901760
  %3333 = vmatmul.mubr.f32.gmra.mxu0 %v3332
  %v3334 = vpop.f32.mrf.mxu0
  %v3335 = vadd.f32 %v2882, %v3334
  %v3336 = vpop.f32.mrf.mxu0
  %3337 = vmatprep.mubr.f32.mxu0 0.0
  %v3338 = vand.u32 %v220, 4294901760
  %3339 = vmatmul.mubr.f32.gmra.mxu0 %v3338
  %v3340 = vpop.f32.mrf.mxu0
  %v3341 = vadd.f32 %v2888, %v3340
  %v3342 = vpop.f32.mrf.mxu0
  %3343 = vmatprep.mubr.f32.mxu0 0.0
  %v3344 = vand.u32 %v223, 4294901760
  %3345 = vmatmul.mubr.f32.gmra.mxu0 %v3344
  %v3346 = vpop.f32.mrf.mxu0
  %v3347 = vadd.f32 %v2894, %v3346
  %v3348 = vpop.f32.mrf.mxu0
  %3349 = vmatprep.mubr.f32.mxu0 0.0
  %v3350 = vand.u32 %v226, 4294901760
  %3351 = vmatmul.mubr.f32.gmra.mxu0 %v3350
  %v3352 = vpop.f32.mrf.mxu0
  %v3353 = vadd.f32 %v2900, %v3352
  %v3354 = vpop.f32.mrf.mxu0
  %3355 = vmatprep.mubr.f32.mxu0 0.0
  %v3356 = vand.u32 %v229, 4294901760
  %3357 = vmatmul.mubr.f32.gmra.mxu0 %v3356
  %v3358 = vpop.f32.mrf.mxu0
  %v3359 = vadd.f32 %v2906, %v3358
  %v3360 = vpop.f32.mrf.mxu0
  %3361 = vmatprep.mubr.f32.mxu0 0.0
  %v3362 = vand.u32 %v232, 4294901760
  %3363 = vmatmul.mubr.f32.gmra.mxu0 %v3362
  %v3364 = vpop.f32.mrf.mxu0
  %v3365 = vadd.f32 %v2912, %v3364
  %v3366 = vpop.f32.mrf.mxu0
  %3367 = vmatprep.mubr.f32.mxu0 0.0
  %v3368 = vand.u32 %v235, 4294901760
  %3369 = vmatmul.mubr.f32.gmra.mxu0 %v3368
  %v3370 = vpop.f32.mrf.mxu0
  %v3371 = vadd.f32 %v2918, %v3370
  %v3372 = vpop.f32.mrf.mxu0
  %3373 = vmatprep.mubr.f32.mxu0 0.0
  %v3374 = vand.u32 %v238, 4294901760
  %3375 = vmatmul.mubr.f32.gmra.mxu0 %v3374
  %v3376 = vpop.f32.mrf.mxu0
  %v3377 = vadd.f32 %v2924, %v3376
  %v3378 = vpop.f32.mrf.mxu0
  %3379 = vmatprep.mubr.f32.mxu0 0.0
  %v3380 = vand.u32 %v241, 4294901760
  %3381 = vmatmul.mubr.f32.gmra.mxu0 %v3380
  %v3382 = vpop.f32.mrf.mxu0
  %v3383 = vadd.f32 %v2930, %v3382
  %v3384 = vpop.f32.mrf.mxu0
  %3385 = vmatprep.mubr.f32.mxu0 0.0
  %v3386 = vand.u32 %v244, 4294901760
  %3387 = vmatmul.mubr.f32.gmra.mxu0 %v3386
  %v3388 = vpop.f32.mrf.mxu0
  %v3389 = vadd.f32 %v2936, %v3388
  %v3390 = vpop.f32.mrf.mxu0
  %3391 = vmatprep.mubr.f32.mxu0 0.0
  %v3392 = vand.u32 %v247, 4294901760
  %3393 = vmatmul.mubr.f32.gmra.mxu0 %v3392
  %v3394 = vpop.f32.mrf.mxu0
  %v3395 = vadd.f32 %v2942, %v3394
  %v3396 = vpop.f32.mrf.mxu0
  %3397 = vmatprep.mubr.f32.mxu0 0.0
  %v3398 = vand.u32 %v250, 4294901760
  %3399 = vmatmul.mubr.f32.gmra.mxu0 %v3398
  %v3400 = vpop.f32.mrf.mxu0
  %v3401 = vadd.f32 %v2948, %v3400
  %v3402 = vpop.f32.mrf.mxu0
  %3403 = vmatprep.mubr.f32.mxu0 0.0
  %v3404 = vand.u32 %v253, 4294901760
  %3405 = vmatmul.mubr.f32.gmra.mxu0 %v3404
  %v3406 = vpop.f32.mrf.mxu0
  %v3407 = vadd.f32 %v2954, %v3406
  %v3408 = vpop.f32.mrf.mxu0
  %3409 = vmatprep.mubr.f32.mxu0 0.0
  %v3410 = vand.u32 %v256, 4294901760
  %3411 = vmatmul.mubr.f32.gmra.mxu0 %v3410
  %v3412 = vpop.f32.mrf.mxu0
  %v3413 = vadd.f32 %v2960, %v3412
  %v3414 = vpop.f32.mrf.mxu0
  %3415 = vmatprep.mubr.f32.mxu0 0.0
  %v3416 = vand.u32 %v259, 4294901760
  %3417 = vmatmul.mubr.f32.gmra.mxu0 %v3416
  %v3418 = vpop.f32.mrf.mxu0
  %v3419 = vadd.f32 %v2966, %v3418
  %v3420 = vpop.f32.mrf.mxu0
  %3421 = vmatprep.mubr.f32.mxu0 0.0
  %v3422 = vand.u32 %v262, 4294901760
  %3423 = vmatmul.mubr.f32.gmra.mxu0 %v3422
  %v3424 = vpop.f32.mrf.mxu0
  %v3425 = vadd.f32 %v2972, %v3424
  %v3426 = vpop.f32.mrf.mxu0
  %3427 = vmatprep.mubr.f32.mxu0 0.0
  %v3428 = vand.u32 %v265, 4294901760
  %3429 = vmatmul.mubr.f32.gmra.mxu0 %v3428
  %v3430 = vpop.f32.mrf.mxu0
  %v3431 = vadd.f32 %v2978, %v3430
  %v3432 = vpop.f32.mrf.mxu0
  %3433 = vmatprep.mubr.f32.mxu0 0.0
  %v3434 = vand.u32 %v268, 4294901760
  %3435 = vmatmul.mubr.f32.gmra.mxu0 %v3434
  %v3436 = vpop.f32.mrf.mxu0
  %v3437 = vadd.f32 %v2984, %v3436
  %v3438 = vpop.f32.mrf.mxu0
  %3439 = vmatprep.mubr.f32.mxu0 0.0
  %v3440 = vand.u32 %v271, 4294901760
  %3441 = vmatmul.mubr.f32.gmra.mxu0 %v3440
  %v3442 = vpop.f32.mrf.mxu0
  %v3443 = vadd.f32 %v2990, %v3442
  %v3444 = vpop.f32.mrf.mxu0
  %3445 = vmatprep.mubr.f32.mxu0 0.0
  %v3446 = vand.u32 %v274, 4294901760
  %3447 = vmatmul.mubr.f32.gmra.mxu0 %v3446
  %v3448 = vpop.f32.mrf.mxu0
  %v3449 = vadd.f32 %v2996, %v3448
  %v3450 = vpop.f32.mrf.mxu0
  %3451 = vmatprep.mubr.f32.mxu0 0.0
  %v3452 = vand.u32 %v277, 4294901760
  %3453 = vmatmul.mubr.f32.gmra.mxu0 %v3452
  %v3454 = vpop.f32.mrf.mxu0
  %v3455 = vadd.f32 %v3002, %v3454
  %v3456 = vpop.f32.mrf.mxu0
  %3457 = vmatprep.mubr.f32.mxu0 0.0
  %v3458 = vand.u32 %v280, 4294901760
  %3459 = vmatmul.mubr.f32.gmra.mxu0 %v3458
  %v3460 = vpop.f32.mrf.mxu0
  %v3461 = vadd.f32 %v3008, %v3460
  %v3462 = vpop.f32.mrf.mxu0
  %3463 = vmatprep.mubr.f32.mxu0 0.0
  %v3464 = vand.u32 %v283, 4294901760
  %3465 = vmatmul.mubr.f32.gmra.mxu0 %v3464
  %v3466 = vpop.f32.mrf.mxu0
  %v3467 = vadd.f32 %v3014, %v3466
  %v3468 = vpop.f32.mrf.mxu0
  %3469 = vmatprep.mubr.f32.mxu0 0.0
  %v3470 = vand.u32 %v286, 4294901760
  %3471 = vmatmul.mubr.f32.gmra.mxu0 %v3470
  %v3472 = vpop.f32.mrf.mxu0
  %v3473 = vadd.f32 %v3020, %v3472
  %v3474 = vpop.f32.mrf.mxu0
  %3475 = vmatprep.mubr.f32.mxu0 0.0
  %v3476 = vand.u32 %v289, 4294901760
  %3477 = vmatmul.mubr.f32.gmra.mxu0 %v3476
  %v3478 = vpop.f32.mrf.mxu0
  %v3479 = vadd.f32 %v3026, %v3478
  %v3480 = vpop.f32.mrf.mxu0
  %3481 = vmatprep.mubr.f32.mxu0 0.0
  %v3482 = vand.u32 %v292, 4294901760
  %3483 = vmatmul.mubr.f32.gmra.mxu0 %v3482
  %v3484 = vpop.f32.mrf.mxu0
  %v3485 = vadd.f32 %v3032, %v3484
  %v3486 = vpop.f32.mrf.mxu0
  %3487 = vdwg.mxu0
  %3488 = vst [vmem:[#allocation2] sm:$0xff] 0.0
  %3489 = vst [vmem:[#allocation2 + $0x8] sm:$0xff] 0.0
  %3490 = vst [vmem:[#allocation2 + $0x10] sm:$0xff] 0.0
  %3491 = vst [vmem:[#allocation2 + $0x118] sm:$0xff] 0.0
  %3492 = vst [vmem:[#allocation2 + $0x120] sm:$0xff] 0.0
  %3493 = vst [vmem:[#allocation2 + $0x128] sm:$0xff] 0.0
  %3494 = vst [vmem:[#allocation2 + $0x18] sm:$0xff] %v3107
  %3495 = vst [vmem:[#allocation2 + $0x20] sm:$0xff] %v3113
  %3496 = vst [vmem:[#allocation2 + $0x28] sm:$0xff] %v3119
  %3497 = vst [vmem:[#allocation2 + $0x30] sm:$0xff] %v3125
  %3498 = vst [vmem:[#allocation2 + $0x38] sm:$0xff] %v3131
  %3499 = vst [vmem:[#allocation2 + $0x40] sm:$0xff] %v3137
  %3500 = vst [vmem:[#allocation2 + $0x48] sm:$0xff] %v3143
  %3501 = vst [vmem:[#allocation2 + $0x50] sm:$0xff] %v3149
  %3502 = vst [vmem:[#allocation2 + $0x58] sm:$0xff] %v3155
  %3503 = vst [vmem:[#allocation2 + $0x60] sm:$0xff] %v3161
  %3504 = vst [vmem:[#allocation2 + $0x68] sm:$0xff] %v3167
  %3505 = vst [vmem:[#allocation2 + $0x70] sm:$0xff] %v3173
  %3506 = vst [vmem:[#allocation2 + $0x78] sm:$0xff] %v3179
  %3507 = vst [vmem:[#allocation2 + $0x80] sm:$0xff] %v3185
  %3508 = vst [vmem:[#allocation2 + $0x88] sm:$0xff] %v3191
  %3509 = vst [vmem:[#allocation2 + $0x90] sm:$0xff] %v3197
  %3510 = vst [vmem:[#allocation2 + $0x98] sm:$0xff] %v3203
  %3511 = vst [vmem:[#allocation2 + $0xa0] sm:$0xff] %v3209
  %3512 = vst [vmem:[#allocation2 + $0xa8] sm:$0xff] %v3215
  %3513 = vst [vmem:[#allocation2 + $0xb0] sm:$0xff] %v3221
  %3514 = vst [vmem:[#allocation2 + $0xb8] sm:$0xff] %v3227
  %3515 = vst [vmem:[#allocation2 + $0xc0] sm:$0xff] %v3233
  %3516 = vst [vmem:[#allocation2 + $0xc8] sm:$0xff] %v3239
  %3517 = vst [vmem:[#allocation2 + $0xd0] sm:$0xff] %v3245
  %3518 = vst [vmem:[#allocation2 + $0xd8] sm:$0xff] %v3251
  %3519 = vst [vmem:[#allocation2 + $0xe0] sm:$0xff] %v3257
  %3520 = vst [vmem:[#allocation2 + $0xe8] sm:$0xff] %v3263
  %3521 = vst [vmem:[#allocation2 + $0xf0] sm:$0xff] %v3269
  %3522 = vst [vmem:[#allocation2 + $0xf8] sm:$0xff] %v3275
  %3523 = vst [vmem:[#allocation2 + $0x100] sm:$0xff] %v3281
  %3524 = vst [vmem:[#allocation2 + $0x108] sm:$0xff] %v3287
  %3525 = vst [vmem:[#allocation2 + $0x110] sm:$0xff] %v3293
  %3526 = vst [vmem:[#allocation2 + $0x130] sm:$0xff] 0.0
  %3527 = vst [vmem:[#allocation2 + $0x138] sm:$0xff] 0.0
  %3528 = vst [vmem:[#allocation2 + $0x140] sm:$0xff] 0.0
  %3529 = vst [vmem:[#allocation2 + $0x248] sm:$0xff] 0.0
  %3530 = vst [vmem:[#allocation2 + $0x250] sm:$0xff] 0.0
  %3531 = vst [vmem:[#allocation2 + $0x258] sm:$0xff] 0.0
  %3532 = vst [vmem:[#allocation2 + $0x148] sm:$0xff] %v3299
  %3533 = vst [vmem:[#allocation2 + $0x150] sm:$0xff] %v3305
  %3534 = vst [vmem:[#allocation2 + $0x158] sm:$0xff] %v3311
  %3535 = vst [vmem:[#allocation2 + $0x160] sm:$0xff] %v3317
  %3536 = vst [vmem:[#allocation2 + $0x168] sm:$0xff] %v3323
  %3537 = vst [vmem:[#allocation2 + $0x170] sm:$0xff] %v3329
  %3538 = vst [vmem:[#allocation2 + $0x178] sm:$0xff] %v3335
  %3539 = vst [vmem:[#allocation2 + $0x180] sm:$0xff] %v3341
  %3540 = vst [vmem:[#allocation2 + $0x188] sm:$0xff] %v3347
  %3541 = vst [vmem:[#allocation2 + $0x190] sm:$0xff] %v3353
  %3542 = vst [vmem:[#allocation2 + $0x198] sm:$0xff] %v3359
  %3543 = vst [vmem:[#allocation2 + $0x1a0] sm:$0xff] %v3365
  %3544 = vst [vmem:[#allocation2 + $0x1a8] sm:$0xff] %v3371
  %3545 = vst [vmem:[#allocation2 + $0x1b0] sm:$0xff] %v3377
  %3546 = vst [vmem:[#allocation2 + $0x1b8] sm:$0xff] %v3383
  %3547 = vst [vmem:[#allocation2 + $0x1c0] sm:$0xff] %v3389
  %3548 = vst [vmem:[#allocation2 + $0x1c8] sm:$0xff] %v3395
  %3549 = vst [vmem:[#allocation2 + $0x1d0] sm:$0xff] %v3401
  %3550 = vst [vmem:[#allocation2 + $0x1d8] sm:$0xff] %v3407
  %3551 = vst [vmem:[#allocation2 + $0x1e0] sm:$0xff] %v3413
  %3552 = vst [vmem:[#allocation2 + $0x1e8] sm:$0xff] %v3419
  %3553 = vst [vmem:[#allocation2 + $0x1f0] sm:$0xff] %v3425
  %3554 = vst [vmem:[#allocation2 + $0x1f8] sm:$0xff] %v3431
  %3555 = vst [vmem:[#allocation2 + $0x200] sm:$0xff] %v3437
  %3556 = vst [vmem:[#allocation2 + $0x208] sm:$0xff] %v3443
  %3557 = vst [vmem:[#allocation2 + $0x210] sm:$0xff] %v3449
  %3558 = vst [vmem:[#allocation2 + $0x218] sm:$0xff] %v3455
  %3559 = vst [vmem:[#allocation2 + $0x220] sm:$0xff] %v3461
  %3560 = vst [vmem:[#allocation2 + $0x228] sm:$0xff] %v3467
  %3561 = vst [vmem:[#allocation2 + $0x230] sm:$0xff] %v3473
  %3562 = vst [vmem:[#allocation2 + $0x238] sm:$0xff] %v3479
  %3563 = vst [vmem:[#allocation2 + $0x240] sm:$0xff] %v3485
  %v3564 = vld [vmem:[%s3] sm:$0xff]
  %v3565 = vld [vmem:[%s3 + $0x8] sm:$0x1]
  %v3566 = vld [vmem:[%s4] sm:$0x1]
  %v3567 = vld [vmem:[%s5] sm:$0xff]
  %v3568 = vld [vmem:[%s5 + $0x8] sm:$0xff]
  %v3569 = vld [vmem:[%s5 + $0x10] sm:$0xff]
  %v3570 = vld [vmem:[%s5 + $0x18] sm:$0xff]
  %v3571 = vld [vmem:[%s5 + $0x20] sm:$0xff]
  %v3572 = vld [vmem:[%s5 + $0x28] sm:$0xff]
  %v3573 = vld [vmem:[%s5 + $0x30] sm:$0xff]
  %v3574 = vld [vmem:[%s5 + $0x38] sm:$0xff]
  %v3575 = vld [vmem:[%s5 + $0x40] sm:$0xff]
  %v3576 = vld [vmem:[%s5 + $0x48] sm:$0xff]
  %v3577 = vld [vmem:[%s5 + $0x50] sm:$0xff]
  %v3578 = vld [vmem:[%s5 + $0x58] sm:$0xff]
  %v3579 = vld [vmem:[%s5 + $0x60] sm:$0xff]
  %v3580 = vld [vmem:[%s5 + $0x68] sm:$0xff]
  %v3581 = vld [vmem:[%s5 + $0x70] sm:$0xff]
  %v3582 = vld [vmem:[%s5 + $0x78] sm:$0xff]
  %v3583 = vld [vmem:[%s6] sm:$0x1]
  %v3584 = vlaneseq
  %v3585 = vshrl.u32 %v3584, 7
  %v3586 = vadd.s32 %v3585, 8
  %v3587 = vadd.s32 %v3585, 16
  %v3588 = vadd.s32 %v3585, 24
  %v3589 = vadd.s32 %v3585, 32
  %v3590 = vadd.s32 %v3585, 40
  %v3591 = vadd.s32 %v3585, 48
  %v3592 = vadd.s32 %v3585, 56
  %v3593 = vadd.s32 %v3585, 64
  %v3594 = vadd.s32 %v3585, 72
  %v3595 = vadd.s32 %v3585, 80
  %v3596 = vadd.s32 %v3585, 88
  %v3597 = vadd.s32 %v3585, 96
  %v3598 = vadd.s32 %v3585, 104
  %v3599 = vadd.s32 %v3585, 112
  %v3600 = vadd.s32 %v3585, 120
  %v3601 = vadd.s32 %v3585, 128
  %v3602 = vadd.s32 %v3585, 136
  %v3603 = vadd.s32 %v3585, 144
  %v3604 = vadd.s32 %v3585, 152
  %v3605 = vadd.s32 %v3585, 160
  %v3606 = vadd.s32 %v3585, 168
  %v3607 = vadd.s32 %v3585, 176
  %v3608 = vadd.s32 %v3585, 184
  %v3609 = vadd.s32 %v3585, 192
  %v3610 = vadd.s32 %v3585, 200
  %v3611 = vadd.s32 %v3585, 208
  %v3612 = vadd.s32 %v3585, 216
  %v3613 = vadd.s32 %v3585, 224
  %v3614 = vadd.s32 %v3585, 232
  %v3615 = vadd.s32 %v3585, 240
  %v3616 = vadd.s32 %v3585, 248
  %vm3617 = vcmp.lt.s32.totalorder %v3585, 0
  %v3618 = vsub.s32 0, %v3585
  %v3619 = vsel %vm3617, %v3618, %v3585
  %v3620 = vshrl.u32 %v3619, 4
  %v3621 = vand.u32 %v3619, 15
  %v3622 = vsub.s32 0, %v3621
  %v3623 = vsel %vm3617, %v3622, %v3621
  %vm3624 = vcmp.lt.s32.totalorder %v3586, 0
  %v3625 = vsub.s32 0, %v3586
  %v3626 = vsel %vm3624, %v3625, %v3586
  %v3627 = vshrl.u32 %v3626, 4
  %v3628 = vand.u32 %v3626, 15
  %v3629 = vsub.s32 0, %v3628
  %v3630 = vsel %vm3624, %v3629, %v3628
  %vm3631 = vcmp.lt.s32.totalorder %v3587, 0
  %v3632 = vsub.s32 0, %v3587
  %v3633 = vsel %vm3631, %v3632, %v3587
  %v3634 = vshrl.u32 %v3633, 4
  %v3635 = vand.u32 %v3633, 15
  %v3636 = vsub.s32 0, %v3635
  %v3637 = vsel %vm3631, %v3636, %v3635
  %vm3638 = vcmp.lt.s32.totalorder %v3588, 0
  %v3639 = vsub.s32 0, %v3588
  %v3640 = vsel %vm3638, %v3639, %v3588
  %v3641 = vshrl.u32 %v3640, 4
  %v3642 = vand.u32 %v3640, 15
  %v3643 = vsub.s32 0, %v3642
  %v3644 = vsel %vm3638, %v3643, %v3642
  %vm3645 = vcmp.lt.s32.totalorder %v3589, 0
  %v3646 = vsub.s32 0, %v3589
  %v3647 = vsel %vm3645, %v3646, %v3589
  %v3648 = vshrl.u32 %v3647, 4
  %v3649 = vand.u32 %v3647, 15
  %v3650 = vsub.s32 0, %v3649
  %v3651 = vsel %vm3645, %v3650, %v3649
  %vm3652 = vcmp.lt.s32.totalorder %v3590, 0
  %v3653 = vsub.s32 0, %v3590
  %v3654 = vsel %vm3652, %v3653, %v3590
  %v3655 = vshrl.u32 %v3654, 4
  %v3656 = vand.u32 %v3654, 15
  %v3657 = vsub.s32 0, %v3656
  %v3658 = vsel %vm3652, %v3657, %v3656
  %vm3659 = vcmp.lt.s32.totalorder %v3591, 0
  %v3660 = vsub.s32 0, %v3591
  %v3661 = vsel %vm3659, %v3660, %v3591
  %v3662 = vshrl.u32 %v3661, 4
  %v3663 = vand.u32 %v3661, 15
  %v3664 = vsub.s32 0, %v3663
  %v3665 = vsel %vm3659, %v3664, %v3663
  %vm3666 = vcmp.lt.s32.totalorder %v3592, 0
  %v3667 = vsub.s32 0, %v3592
  %v3668 = vsel %vm3666, %v3667, %v3592
  %v3669 = vshrl.u32 %v3668, 4
  %v3670 = vand.u32 %v3668, 15
  %v3671 = vsub.s32 0, %v3670
  %v3672 = vsel %vm3666, %v3671, %v3670
  %vm3673 = vcmp.lt.s32.totalorder %v3593, 0
  %v3674 = vsub.s32 0, %v3593
  %v3675 = vsel %vm3673, %v3674, %v3593
  %v3676 = vshrl.u32 %v3675, 4
  %v3677 = vand.u32 %v3675, 15
  %v3678 = vsub.s32 0, %v3677
  %v3679 = vsel %vm3673, %v3678, %v3677
  %vm3680 = vcmp.lt.s32.totalorder %v3594, 0
  %v3681 = vsub.s32 0, %v3594
  %v3682 = vsel %vm3680, %v3681, %v3594
  %v3683 = vshrl.u32 %v3682, 4
  %v3684 = vand.u32 %v3682, 15
  %v3685 = vsub.s32 0, %v3684
  %v3686 = vsel %vm3680, %v3685, %v3684
  %vm3687 = vcmp.lt.s32.totalorder %v3595, 0
  %v3688 = vsub.s32 0, %v3595
  %v3689 = vsel %vm3687, %v3688, %v3595
  %v3690 = vshrl.u32 %v3689, 4
  %v3691 = vand.u32 %v3689, 15
  %v3692 = vsub.s32 0, %v3691
  %v3693 = vsel %vm3687, %v3692, %v3691
  %vm3694 = vcmp.lt.s32.totalorder %v3596, 0
  %v3695 = vsub.s32 0, %v3596
  %v3696 = vsel %vm3694, %v3695, %v3596
  %v3697 = vshrl.u32 %v3696, 4
  %v3698 = vand.u32 %v3696, 15
  %v3699 = vsub.s32 0, %v3698
  %v3700 = vsel %vm3694, %v3699, %v3698
  %vm3701 = vcmp.lt.s32.totalorder %v3597, 0
  %v3702 = vsub.s32 0, %v3597
  %v3703 = vsel %vm3701, %v3702, %v3597
  %v3704 = vshrl.u32 %v3703, 4
  %v3705 = vand.u32 %v3703, 15
  %v3706 = vsub.s32 0, %v3705
  %v3707 = vsel %vm3701, %v3706, %v3705
  %vm3708 = vcmp.lt.s32.totalorder %v3598, 0
  %v3709 = vsub.s32 0, %v3598
  %v3710 = vsel %vm3708, %v3709, %v3598
  %v3711 = vshrl.u32 %v3710, 4
  %v3712 = vand.u32 %v3710, 15
  %v3713 = vsub.s32 0, %v3712
  %v3714 = vsel %vm3708, %v3713, %v3712
  %vm3715 = vcmp.lt.s32.totalorder %v3599, 0
  %v3716 = vsub.s32 0, %v3599
  %v3717 = vsel %vm3715, %v3716, %v3599
  %v3718 = vshrl.u32 %v3717, 4
  %v3719 = vand.u32 %v3717, 15
  %v3720 = vsub.s32 0, %v3719
  %v3721 = vsel %vm3715, %v3720, %v3719
  %vm3722 = vcmp.lt.s32.totalorder %v3600, 0
  %v3723 = vsub.s32 0, %v3600
  %v3724 = vsel %vm3722, %v3723, %v3600
  %v3725 = vshrl.u32 %v3724, 4
  %v3726 = vand.u32 %v3724, 15
  %v3727 = vsub.s32 0, %v3726
  %v3728 = vsel %vm3722, %v3727, %v3726
  %vm3729 = vcmp.lt.s32.totalorder %v3601, 0
  %v3730 = vsub.s32 0, %v3601
  %v3731 = vsel %vm3729, %v3730, %v3601
  %v3732 = vshrl.u32 %v3731, 4
  %v3733 = vand.u32 %v3731, 15
  %v3734 = vsub.s32 0, %v3733
  %v3735 = vsel %vm3729, %v3734, %v3733
  %vm3736 = vcmp.lt.s32.totalorder %v3602, 0
  %v3737 = vsub.s32 0, %v3602
  %v3738 = vsel %vm3736, %v3737, %v3602
  %v3739 = vshrl.u32 %v3738, 4
  %v3740 = vand.u32 %v3738, 15
  %v3741 = vsub.s32 0, %v3740
  %v3742 = vsel %vm3736, %v3741, %v3740
  %vm3743 = vcmp.lt.s32.totalorder %v3603, 0
  %v3744 = vsub.s32 0, %v3603
  %v3745 = vsel %vm3743, %v3744, %v3603
  %v3746 = vshrl.u32 %v3745, 4
  %v3747 = vand.u32 %v3745, 15
  %v3748 = vsub.s32 0, %v3747
  %v3749 = vsel %vm3743, %v3748, %v3747
  %vm3750 = vcmp.lt.s32.totalorder %v3604, 0
  %v3751 = vsub.s32 0, %v3604
  %v3752 = vsel %vm3750, %v3751, %v3604
  %v3753 = vshrl.u32 %v3752, 4
  %v3754 = vand.u32 %v3752, 15
  %v3755 = vsub.s32 0, %v3754
  %v3756 = vsel %vm3750, %v3755, %v3754
  %vm3757 = vcmp.lt.s32.totalorder %v3605, 0
  %v3758 = vsub.s32 0, %v3605
  %v3759 = vsel %vm3757, %v3758, %v3605
  %v3760 = vshrl.u32 %v3759, 4
  %v3761 = vand.u32 %v3759, 15
  %v3762 = vsub.s32 0, %v3761
  %v3763 = vsel %vm3757, %v3762, %v3761
  %vm3764 = vcmp.lt.s32.totalorder %v3606, 0
  %v3765 = vsub.s32 0, %v3606
  %v3766 = vsel %vm3764, %v3765, %v3606
  %v3767 = vshrl.u32 %v3766, 4
  %v3768 = vand.u32 %v3766, 15
  %v3769 = vsub.s32 0, %v3768
  %v3770 = vsel %vm3764, %v3769, %v3768
  %vm3771 = vcmp.lt.s32.totalorder %v3607, 0
  %v3772 = vsub.s32 0, %v3607
  %v3773 = vsel %vm3771, %v3772, %v3607
  %v3774 = vshrl.u32 %v3773, 4
  %v3775 = vand.u32 %v3773, 15
  %v3776 = vsub.s32 0, %v3775
  %v3777 = vsel %vm3771, %v3776, %v3775
  %vm3778 = vcmp.lt.s32.totalorder %v3608, 0
  %v3779 = vsub.s32 0, %v3608
  %v3780 = vsel %vm3778, %v3779, %v3608
  %v3781 = vshrl.u32 %v3780, 4
  %v3782 = vand.u32 %v3780, 15
  %v3783 = vsub.s32 0, %v3782
  %v3784 = vsel %vm3778, %v3783, %v3782
  %vm3785 = vcmp.lt.s32.totalorder %v3609, 0
  %v3786 = vsub.s32 0, %v3609
  %v3787 = vsel %vm3785, %v3786, %v3609
  %v3788 = vshrl.u32 %v3787, 4
  %v3789 = vand.u32 %v3787, 15
  %v3790 = vsub.s32 0, %v3789
  %v3791 = vsel %vm3785, %v3790, %v3789
  %vm3792 = vcmp.lt.s32.totalorder %v3610, 0
  %v3793 = vsub.s32 0, %v3610
  %v3794 = vsel %vm3792, %v3793, %v3610
  %v3795 = vshrl.u32 %v3794, 4
  %v3796 = vand.u32 %v3794, 15
  %v3797 = vsub.s32 0, %v3796
  %v3798 = vsel %vm3792, %v3797, %v3796
  %vm3799 = vcmp.lt.s32.totalorder %v3611, 0
  %v3800 = vsub.s32 0, %v3611
  %v3801 = vsel %vm3799, %v3800, %v3611
  %v3802 = vshrl.u32 %v3801, 4
  %v3803 = vand.u32 %v3801, 15
  %v3804 = vsub.s32 0, %v3803
  %v3805 = vsel %vm3799, %v3804, %v3803
  %vm3806 = vcmp.lt.s32.totalorder %v3612, 0
  %v3807 = vsub.s32 0, %v3612
  %v3808 = vsel %vm3806, %v3807, %v3612
  %v3809 = vshrl.u32 %v3808, 4
  %v3810 = vand.u32 %v3808, 15
  %v3811 = vsub.s32 0, %v3810
  %v3812 = vsel %vm3806, %v3811, %v3810
  %vm3813 = vcmp.lt.s32.totalorder %v3613, 0
  %v3814 = vsub.s32 0, %v3613
  %v3815 = vsel %vm3813, %v3814, %v3613
  %v3816 = vshrl.u32 %v3815, 4
  %v3817 = vand.u32 %v3815, 15
  %v3818 = vsub.s32 0, %v3817
  %v3819 = vsel %vm3813, %v3818, %v3817
  %vm3820 = vcmp.lt.s32.totalorder %v3614, 0
  %v3821 = vsub.s32 0, %v3614
  %v3822 = vsel %vm3820, %v3821, %v3614
  %v3823 = vshrl.u32 %v3822, 4
  %v3824 = vand.u32 %v3822, 15
  %v3825 = vsub.s32 0, %v3824
  %v3826 = vsel %vm3820, %v3825, %v3824
  %vm3827 = vcmp.lt.s32.totalorder %v3615, 0
  %v3828 = vsub.s32 0, %v3615
  %v3829 = vsel %vm3827, %v3828, %v3615
  %v3830 = vshrl.u32 %v3829, 4
  %v3831 = vand.u32 %v3829, 15
  %v3832 = vsub.s32 0, %v3831
  %v3833 = vsel %vm3827, %v3832, %v3831
  %vm3834 = vcmp.lt.s32.totalorder %v3616, 0
  %v3835 = vsub.s32 0, %v3616
  %v3836 = vsel %vm3834, %v3835, %v3616
  %v3837 = vshrl.u32 %v3836, 4
  %v3838 = vand.u32 %v3836, 15
  %v3839 = vsub.s32 0, %v3838
  %v3840 = vsel %vm3834, %v3839, %v3838
  %vm3841 = vcmp.ne.s32.totalorder %v3623, 0
  %vm3842 = vcmp.ne.s32.totalorder %v3630, 0
  %vm3843 = vcmp.ne.s32.totalorder %v3637, 0
  %vm3844 = vcmp.ne.s32.totalorder %v3644, 0
  %vm3845 = vcmp.ne.s32.totalorder %v3651, 0
  %vm3846 = vcmp.ne.s32.totalorder %v3658, 0
  %vm3847 = vcmp.ne.s32.totalorder %v3665, 0
  %vm3848 = vcmp.ne.s32.totalorder %v3672, 0
  %vm3849 = vcmp.ne.s32.totalorder %v3679, 0
  %vm3850 = vcmp.ne.s32.totalorder %v3686, 0
  %vm3851 = vcmp.ne.s32.totalorder %v3693, 0
  %vm3852 = vcmp.ne.s32.totalorder %v3700, 0
  %vm3853 = vcmp.ne.s32.totalorder %v3707, 0
  %vm3854 = vcmp.ne.s32.totalorder %v3714, 0
  %vm3855 = vcmp.ne.s32.totalorder %v3721, 0
  %vm3856 = vcmp.ne.s32.totalorder %v3728, 0
  %vm3857 = vcmp.ne.s32.totalorder %v3735, 0
  %vm3858 = vcmp.ne.s32.totalorder %v3742, 0
  %vm3859 = vcmp.ne.s32.totalorder %v3749, 0
  %vm3860 = vcmp.ne.s32.totalorder %v3756, 0
  %vm3861 = vcmp.ne.s32.totalorder %v3763, 0
  %vm3862 = vcmp.ne.s32.totalorder %v3770, 0
  %vm3863 = vcmp.ne.s32.totalorder %v3777, 0
  %vm3864 = vcmp.ne.s32.totalorder %v3784, 0
  %vm3865 = vcmp.ne.s32.totalorder %v3791, 0
  %vm3866 = vcmp.ne.s32.totalorder %v3798, 0
  %vm3867 = vcmp.ne.s32.totalorder %v3805, 0
  %vm3868 = vcmp.ne.s32.totalorder %v3812, 0
  %vm3869 = vcmp.ne.s32.totalorder %v3819, 0
  %vm3870 = vcmp.ne.s32.totalorder %v3826, 0
  %vm3871 = vcmp.ne.s32.totalorder %v3833, 0
  %vm3872 = vcmp.ne.s32.totalorder %v3840, 0
  %vm3873 = vcmp.lt.s32.totalorder %v3623, 0
  %vm3874 = vcmp.lt.s32.totalorder %v3630, 0
  %vm3875 = vcmp.lt.s32.totalorder %v3637, 0
  %vm3876 = vcmp.lt.s32.totalorder %v3644, 0
  %vm3877 = vcmp.lt.s32.totalorder %v3651, 0
  %vm3878 = vcmp.lt.s32.totalorder %v3658, 0
  %vm3879 = vcmp.lt.s32.totalorder %v3665, 0
  %vm3880 = vcmp.lt.s32.totalorder %v3672, 0
  %vm3881 = vcmp.lt.s32.totalorder %v3679, 0
  %vm3882 = vcmp.lt.s32.totalorder %v3686, 0
  %vm3883 = vcmp.lt.s32.totalorder %v3693, 0
  %vm3884 = vcmp.lt.s32.totalorder %v3700, 0
  %vm3885 = vcmp.lt.s32.totalorder %v3707, 0
  %vm3886 = vcmp.lt.s32.totalorder %v3714, 0
  %vm3887 = vcmp.lt.s32.totalorder %v3721, 0
  %vm3888 = vcmp.lt.s32.totalorder %v3728, 0
  %vm3889 = vcmp.lt.s32.totalorder %v3735, 0
  %vm3890 = vcmp.lt.s32.totalorder %v3742, 0
  %vm3891 = vcmp.lt.s32.totalorder %v3749, 0
  %vm3892 = vcmp.lt.s32.totalorder %v3756, 0
  %vm3893 = vcmp.lt.s32.totalorder %v3763, 0
  %vm3894 = vcmp.lt.s32.totalorder %v3770, 0
  %vm3895 = vcmp.lt.s32.totalorder %v3777, 0
  %vm3896 = vcmp.lt.s32.totalorder %v3784, 0
  %vm3897 = vcmp.lt.s32.totalorder %v3791, 0
  %vm3898 = vcmp.lt.s32.totalorder %v3798, 0
  %vm3899 = vcmp.lt.s32.totalorder %v3805, 0
  %vm3900 = vcmp.lt.s32.totalorder %v3812, 0
  %vm3901 = vcmp.lt.s32.totalorder %v3819, 0
  %vm3902 = vcmp.lt.s32.totalorder %v3826, 0
  %vm3903 = vcmp.lt.s32.totalorder %v3833, 0
  %vm3904 = vcmp.lt.s32.totalorder %v3840, 0
  %vm3905 = vmand %vm3873, %vm3841
  %vm3906 = vmand %vm3874, %vm3842
  %vm3907 = vmand %vm3875, %vm3843
  %vm3908 = vmand %vm3876, %vm3844
  %vm3909 = vmand %vm3877, %vm3845
  %vm3910 = vmand %vm3878, %vm3846
  %vm3911 = vmand %vm3879, %vm3847
  %vm3912 = vmand %vm3880, %vm3848
  %vm3913 = vmand %vm3881, %vm3849
  %vm3914 = vmand %vm3882, %vm3850
  %vm3915 = vmand %vm3883, %vm3851
  %vm3916 = vmand %vm3884, %vm3852
  %vm3917 = vmand %vm3885, %vm3853
  %vm3918 = vmand %vm3886, %vm3854
  %vm3919 = vmand %vm3887, %vm3855
  %vm3920 = vmand %vm3888, %vm3856
  %vm3921 = vmand %vm3889, %vm3857
  %vm3922 = vmand %vm3890, %vm3858
  %vm3923 = vmand %vm3891, %vm3859
  %vm3924 = vmand %vm3892, %vm3860
  %vm3925 = vmand %vm3893, %vm3861
  %vm3926 = vmand %vm3894, %vm3862
  %vm3927 = vmand %vm3895, %vm3863
  %vm3928 = vmand %vm3896, %vm3864
  %vm3929 = vmand %vm3897, %vm3865
  %vm3930 = vmand %vm3898, %vm3866
  %vm3931 = vmand %vm3899, %vm3867
  %vm3932 = vmand %vm3900, %vm3868
  %vm3933 = vmand %vm3901, %vm3869
  %vm3934 = vmand %vm3902, %vm3870
  %vm3935 = vmand %vm3903, %vm3871
  %vm3936 = vmand %vm3904, %vm3872
  %v3937 = vadd.s32 %v3623, 16
  %v3938 = vadd.s32 %v3630, 16
  %v3939 = vadd.s32 %v3637, 16
  %v3940 = vadd.s32 %v3644, 16
  %v3941 = vadd.s32 %v3651, 16
  %v3942 = vadd.s32 %v3658, 16
  %v3943 = vadd.s32 %v3665, 16
  %v3944 = vadd.s32 %v3672, 16
  %v3945 = vadd.s32 %v3679, 16
  %v3946 = vadd.s32 %v3686, 16
  %v3947 = vadd.s32 %v3693, 16
  %v3948 = vadd.s32 %v3700, 16
  %v3949 = vadd.s32 %v3707, 16
  %v3950 = vadd.s32 %v3714, 16
  %v3951 = vadd.s32 %v3721, 16
  %v3952 = vadd.s32 %v3728, 16
  %v3953 = vadd.s32 %v3735, 16
  %v3954 = vadd.s32 %v3742, 16
  %v3955 = vadd.s32 %v3749, 16
  %v3956 = vadd.s32 %v3756, 16
  %v3957 = vadd.s32 %v3763, 16
  %v3958 = vadd.s32 %v3770, 16
  %v3959 = vadd.s32 %v3777, 16
  %v3960 = vadd.s32 %v3784, 16
  %v3961 = vadd.s32 %v3791, 16
  %v3962 = vadd.s32 %v3798, 16
  %v3963 = vadd.s32 %v3805, 16
  %v3964 = vadd.s32 %v3812, 16
  %v3965 = vadd.s32 %v3819, 16
  %v3966 = vadd.s32 %v3826, 16
  %v3967 = vadd.s32 %v3833, 16
  %v3968 = vadd.s32 %v3840, 16
  %v3969 = vsel %vm3905, %v3937, %v3623
  %v3970 = vsel %vm3906, %v3938, %v3630
  %v3971 = vsel %vm3907, %v3939, %v3637
  %v3972 = vsel %vm3908, %v3940, %v3644
  %v3973 = vsel %vm3909, %v3941, %v3651
  %v3974 = vsel %vm3910, %v3942, %v3658
  %v3975 = vsel %vm3911, %v3943, %v3665
  %v3976 = vsel %vm3912, %v3944, %v3672
  %v3977 = vsel %vm3913, %v3945, %v3679
  %v3978 = vsel %vm3914, %v3946, %v3686
  %v3979 = vsel %vm3915, %v3947, %v3693
  %v3980 = vsel %vm3916, %v3948, %v3700
  %v3981 = vsel %vm3917, %v3949, %v3707
  %v3982 = vsel %vm3918, %v3950, %v3714
  %v3983 = vsel %vm3919, %v3951, %v3721
  %v3984 = vsel %vm3920, %v3952, %v3728
  %v3985 = vsel %vm3921, %v3953, %v3735
  %v3986 = vsel %vm3922, %v3954, %v3742
  %v3987 = vsel %vm3923, %v3955, %v3749
  %v3988 = vsel %vm3924, %v3956, %v3756
  %v3989 = vsel %vm3925, %v3957, %v3763
  %v3990 = vsel %vm3926, %v3958, %v3770
  %v3991 = vsel %vm3927, %v3959, %v3777
  %v3992 = vsel %vm3928, %v3960, %v3784
  %v3993 = vsel %vm3929, %v3961, %v3791
  %v3994 = vsel %vm3930, %v3962, %v3798
  %v3995 = vsel %vm3931, %v3963, %v3805
  %v3996 = vsel %vm3932, %v3964, %v3812
  %v3997 = vsel %vm3933, %v3965, %v3819
  %v3998 = vsel %vm3934, %v3966, %v3826
  %v3999 = vsel %vm3935, %v3967, %v3833
  %v4000 = vsel %vm3936, %v3968, %v3840
  %vm4001 = vcmp.ge.s32.totalorder %v3969, 1
  %vm4002 = vcmp.ge.s32.totalorder %v3970, 1
  %vm4003 = vcmp.ge.s32.totalorder %v3971, 1
  %vm4004 = vcmp.ge.s32.totalorder %v3972, 1
  %vm4005 = vcmp.ge.s32.totalorder %v3973, 1
  %vm4006 = vcmp.ge.s32.totalorder %v3974, 1
  %vm4007 = vcmp.ge.s32.totalorder %v3975, 1
  %vm4008 = vcmp.ge.s32.totalorder %v3976, 1
  %vm4009 = vcmp.ge.s32.totalorder %v3977, 1
  %vm4010 = vcmp.ge.s32.totalorder %v3978, 1
  %vm4011 = vcmp.ge.s32.totalorder %v3979, 1
  %vm4012 = vcmp.ge.s32.totalorder %v3980, 1
  %vm4013 = vcmp.ge.s32.totalorder %v3981, 1
  %vm4014 = vcmp.ge.s32.totalorder %v3982, 1
  %vm4015 = vcmp.ge.s32.totalorder %v3983, 1
  %vm4016 = vcmp.ge.s32.totalorder %v3984, 1
  %vm4017 = vcmp.ge.s32.totalorder %v3985, 1
  %vm4018 = vcmp.ge.s32.totalorder %v3986, 1
  %vm4019 = vcmp.ge.s32.totalorder %v3987, 1
  %vm4020 = vcmp.ge.s32.totalorder %v3988, 1
  %vm4021 = vcmp.ge.s32.totalorder %v3989, 1
  %vm4022 = vcmp.ge.s32.totalorder %v3990, 1
  %vm4023 = vcmp.ge.s32.totalorder %v3991, 1
  %vm4024 = vcmp.ge.s32.totalorder %v3992, 1
  %vm4025 = vcmp.ge.s32.totalorder %v3993, 1
  %vm4026 = vcmp.ge.s32.totalorder %v3994, 1
  %vm4027 = vcmp.ge.s32.totalorder %v3995, 1
  %vm4028 = vcmp.ge.s32.totalorder %v3996, 1
  %vm4029 = vcmp.ge.s32.totalorder %v3997, 1
  %vm4030 = vcmp.ge.s32.totalorder %v3998, 1
  %vm4031 = vcmp.ge.s32.totalorder %v3999, 1
  %vm4032 = vcmp.ge.s32.totalorder %v4000, 1
  %v4033 = vsel %vm4001, 1, 0
  %v4034 = vsel %vm4002, 1, 0
  %v4035 = vsel %vm4003, 1, 0
  %v4036 = vsel %vm4004, 1, 0
  %v4037 = vsel %vm4005, 1, 0
  %v4038 = vsel %vm4006, 1, 0
  %v4039 = vsel %vm4007, 1, 0
  %v4040 = vsel %vm4008, 1, 0
  %v4041 = vsel %vm4009, 1, 0
  %v4042 = vsel %vm4010, 1, 0
  %v4043 = vsel %vm4011, 1, 0
  %v4044 = vsel %vm4012, 1, 0
  %v4045 = vsel %vm4013, 1, 0
  %v4046 = vsel %vm4014, 1, 0
  %v4047 = vsel %vm4015, 1, 0
  %v4048 = vsel %vm4016, 1, 0
  %v4049 = vsel %vm4017, 1, 0
  %v4050 = vsel %vm4018, 1, 0
  %v4051 = vsel %vm4019, 1, 0
  %v4052 = vsel %vm4020, 1, 0
  %v4053 = vsel %vm4021, 1, 0
  %v4054 = vsel %vm4022, 1, 0
  %v4055 = vsel %vm4023, 1, 0
  %v4056 = vsel %vm4024, 1, 0
  %v4057 = vsel %vm4025, 1, 0
  %v4058 = vsel %vm4026, 1, 0
  %v4059 = vsel %vm4027, 1, 0
  %v4060 = vsel %vm4028, 1, 0
  %v4061 = vsel %vm4029, 1, 0
  %v4062 = vsel %vm4030, 1, 0
  %v4063 = vsel %vm4031, 1, 0
  %v4064 = vsel %vm4032, 1, 0
  %v4065 = vcvt.s32.f32 %v4033
  %v4066 = vcvt.s32.f32 %v4034
  %v4067 = vcvt.s32.f32 %v4035
  %v4068 = vcvt.s32.f32 %v4036
  %v4069 = vcvt.s32.f32 %v4037
  %v4070 = vcvt.s32.f32 %v4038
  %v4071 = vcvt.s32.f32 %v4039
  %v4072 = vcvt.s32.f32 %v4040
  %v4073 = vcvt.s32.f32 %v4041
  %v4074 = vcvt.s32.f32 %v4042
  %v4075 = vcvt.s32.f32 %v4043
  %v4076 = vcvt.s32.f32 %v4044
  %v4077 = vcvt.s32.f32 %v4045
  %v4078 = vcvt.s32.f32 %v4046
  %v4079 = vcvt.s32.f32 %v4047
  %v4080 = vcvt.s32.f32 %v4048
  %v4081 = vcvt.s32.f32 %v4049
  %v4082 = vcvt.s32.f32 %v4050
  %v4083 = vcvt.s32.f32 %v4051
  %v4084 = vcvt.s32.f32 %v4052
  %v4085 = vcvt.s32.f32 %v4053
  %v4086 = vcvt.s32.f32 %v4054
  %v4087 = vcvt.s32.f32 %v4055
  %v4088 = vcvt.s32.f32 %v4056
  %v4089 = vcvt.s32.f32 %v4057
  %v4090 = vcvt.s32.f32 %v4058
  %v4091 = vcvt.s32.f32 %v4059
  %v4092 = vcvt.s32.f32 %v4060
  %v4093 = vcvt.s32.f32 %v4061
  %v4094 = vcvt.s32.f32 %v4062
  %v4095 = vcvt.s32.f32 %v4063
  %v4096 = vcvt.s32.f32 %v4064
  %vm4097 = vcmp.le.s32.totalorder %v3969, 14
  %vm4098 = vcmp.le.s32.totalorder %v3970, 14
  %vm4099 = vcmp.le.s32.totalorder %v3971, 14
  %vm4100 = vcmp.le.s32.totalorder %v3972, 14
  %vm4101 = vcmp.le.s32.totalorder %v3973, 14
  %vm4102 = vcmp.le.s32.totalorder %v3974, 14
  %vm4103 = vcmp.le.s32.totalorder %v3975, 14
  %vm4104 = vcmp.le.s32.totalorder %v3976, 14
  %vm4105 = vcmp.le.s32.totalorder %v3977, 14
  %vm4106 = vcmp.le.s32.totalorder %v3978, 14
  %vm4107 = vcmp.le.s32.totalorder %v3979, 14
  %vm4108 = vcmp.le.s32.totalorder %v3980, 14
  %vm4109 = vcmp.le.s32.totalorder %v3981, 14
  %vm4110 = vcmp.le.s32.totalorder %v3982, 14
  %vm4111 = vcmp.le.s32.totalorder %v3983, 14
  %vm4112 = vcmp.le.s32.totalorder %v3984, 14
  %vm4113 = vcmp.le.s32.totalorder %v3985, 14
  %vm4114 = vcmp.le.s32.totalorder %v3986, 14
  %vm4115 = vcmp.le.s32.totalorder %v3987, 14
  %vm4116 = vcmp.le.s32.totalorder %v3988, 14
  %vm4117 = vcmp.le.s32.totalorder %v3989, 14
  %vm4118 = vcmp.le.s32.totalorder %v3990, 14
  %vm4119 = vcmp.le.s32.totalorder %v3991, 14
  %vm4120 = vcmp.le.s32.totalorder %v3992, 14
  %vm4121 = vcmp.le.s32.totalorder %v3993, 14
  %vm4122 = vcmp.le.s32.totalorder %v3994, 14
  %vm4123 = vcmp.le.s32.totalorder %v3995, 14
  %vm4124 = vcmp.le.s32.totalorder %v3996, 14
  %vm4125 = vcmp.le.s32.totalorder %v3997, 14
  %vm4126 = vcmp.le.s32.totalorder %v3998, 14
  %vm4127 = vcmp.le.s32.totalorder %v3999, 14
  %vm4128 = vcmp.le.s32.totalorder %v4000, 14
  %v4129 = vsel %vm4097, 1, 0
  %v4130 = vsel %vm4098, 1, 0
  %v4131 = vsel %vm4099, 1, 0
  %v4132 = vsel %vm4100, 1, 0
  %v4133 = vsel %vm4101, 1, 0
  %v4134 = vsel %vm4102, 1, 0
  %v4135 = vsel %vm4103, 1, 0
  %v4136 = vsel %vm4104, 1, 0
  %v4137 = vsel %vm4105, 1, 0
  %v4138 = vsel %vm4106, 1, 0
  %v4139 = vsel %vm4107, 1, 0
  %v4140 = vsel %vm4108, 1, 0
  %v4141 = vsel %vm4109, 1, 0
  %v4142 = vsel %vm4110, 1, 0
  %v4143 = vsel %vm4111, 1, 0
  %v4144 = vsel %vm4112, 1, 0
  %v4145 = vsel %vm4113, 1, 0
  %v4146 = vsel %vm4114, 1, 0
  %v4147 = vsel %vm4115, 1, 0
  %v4148 = vsel %vm4116, 1, 0
  %v4149 = vsel %vm4117, 1, 0
  %v4150 = vsel %vm4118, 1, 0
  %v4151 = vsel %vm4119, 1, 0
  %v4152 = vsel %vm4120, 1, 0
  %v4153 = vsel %vm4121, 1, 0
  %v4154 = vsel %vm4122, 1, 0
  %v4155 = vsel %vm4123, 1, 0
  %v4156 = vsel %vm4124, 1, 0
  %v4157 = vsel %vm4125, 1, 0
  %v4158 = vsel %vm4126, 1, 0
  %v4159 = vsel %vm4127, 1, 0
  %v4160 = vsel %vm4128, 1, 0
  %v4161 = vcvt.s32.f32 %v4129
  %v4162 = vcvt.s32.f32 %v4130
  %v4163 = vcvt.s32.f32 %v4131
  %v4164 = vcvt.s32.f32 %v4132
  %v4165 = vcvt.s32.f32 %v4133
  %v4166 = vcvt.s32.f32 %v4134
  %v4167 = vcvt.s32.f32 %v4135
  %v4168 = vcvt.s32.f32 %v4136
  %v4169 = vcvt.s32.f32 %v4137
  %v4170 = vcvt.s32.f32 %v4138
  %v4171 = vcvt.s32.f32 %v4139
  %v4172 = vcvt.s32.f32 %v4140
  %v4173 = vcvt.s32.f32 %v4141
  %v4174 = vcvt.s32.f32 %v4142
  %v4175 = vcvt.s32.f32 %v4143
  %v4176 = vcvt.s32.f32 %v4144
  %v4177 = vcvt.s32.f32 %v4145
  %v4178 = vcvt.s32.f32 %v4146
  %v4179 = vcvt.s32.f32 %v4147
  %v4180 = vcvt.s32.f32 %v4148
  %v4181 = vcvt.s32.f32 %v4149
  %v4182 = vcvt.s32.f32 %v4150
  %v4183 = vcvt.s32.f32 %v4151
  %v4184 = vcvt.s32.f32 %v4152
  %v4185 = vcvt.s32.f32 %v4153
  %v4186 = vcvt.s32.f32 %v4154
  %v4187 = vcvt.s32.f32 %v4155
  %v4188 = vcvt.s32.f32 %v4156
  %v4189 = vcvt.s32.f32 %v4157
  %v4190 = vcvt.s32.f32 %v4158
  %v4191 = vcvt.s32.f32 %v4159
  %v4192 = vcvt.s32.f32 %v4160
  %v4193 = vld [vmem:[#allocation2 + $0x18] sm:$0xff]
  %v4194 = vld [vmem:[#allocation2 + $0x20] sm:$0xff]
  %v4195 = vld [vmem:[#allocation2 + $0x28] sm:$0xff]
  %v4196 = vld [vmem:[#allocation2 + $0x30] sm:$0xff]
  %v4197 = vld [vmem:[#allocation2 + $0x38] sm:$0xff]
  %v4198 = vld [vmem:[#allocation2 + $0x40] sm:$0xff]
  %v4199 = vld [vmem:[#allocation2 + $0x48] sm:$0xff]
  %v4200 = vld [vmem:[#allocation2 + $0x50] sm:$0xff]
  %v4201 = vld [vmem:[#allocation2 + $0x58] sm:$0xff]
  %v4202 = vld [vmem:[#allocation2 + $0x60] sm:$0xff]
  %v4203 = vld [vmem:[#allocation2 + $0x68] sm:$0xff]
  %v4204 = vld [vmem:[#allocation2 + $0x70] sm:$0xff]
  %v4205 = vld [vmem:[#allocation2 + $0x78] sm:$0xff]
  %v4206 = vld [vmem:[#allocation2 + $0x80] sm:$0xff]
  %v4207 = vld [vmem:[#allocation2 + $0x88] sm:$0xff]
  %v4208 = vld [vmem:[#allocation2 + $0x90] sm:$0xff]
  %v4209 = vld [vmem:[#allocation2 + $0x98] sm:$0xff]
  %v4210 = vld [vmem:[#allocation2 + $0xa0] sm:$0xff]
  %v4211 = vld [vmem:[#allocation2 + $0xa8] sm:$0xff]
  %v4212 = vld [vmem:[#allocation2 + $0xb0] sm:$0xff]
  %v4213 = vld [vmem:[#allocation2 + $0xb8] sm:$0xff]
  %v4214 = vld [vmem:[#allocation2 + $0xc0] sm:$0xff]
  %v4215 = vld [vmem:[#allocation2 + $0xc8] sm:$0xff]
  %v4216 = vld [vmem:[#allocation2 + $0xd0] sm:$0xff]
  %v4217 = vld [vmem:[#allocation2 + $0xd8] sm:$0xff]
  %v4218 = vld [vmem:[#allocation2 + $0xe0] sm:$0xff]
  %v4219 = vld [vmem:[#allocation2 + $0xe8] sm:$0xff]
  %v4220 = vld [vmem:[#allocation2 + $0xf0] sm:$0xff]
  %v4221 = vld [vmem:[#allocation2 + $0xf8] sm:$0xff]
  %v4222 = vld [vmem:[#allocation2 + $0x100] sm:$0xff]
  %v4223 = vld [vmem:[#allocation2 + $0x108] sm:$0xff]
  %v4224 = vld [vmem:[#allocation2 + $0x110] sm:$0xff]
  %v4225 = vlaneseq
  %v4226 = vshrl.u32 %v4225, 7
  %v4227 = vsub.s32 4, %v4226
  %v4228 = vrot.slane %v3564, %v4227
  %v4229 = vmul.f32 %v4193, %v4228
  %v4230 = vmul.f32 %v4194, %v4228
  %v4231 = vmul.f32 %v4195, %v4228
  %v4232 = vmul.f32 %v4196, %v4228
  %v4233 = vmul.f32 %v4197, %v4228
  %v4234 = vmul.f32 %v4198, %v4228
  %v4235 = vmul.f32 %v4199, %v4228
  %v4236 = vmul.f32 %v4200, %v4228
  %v4237 = vmul.f32 %v4201, %v4228
  %v4238 = vmul.f32 %v4202, %v4228
  %v4239 = vmul.f32 %v4203, %v4228
  %v4240 = vmul.f32 %v4204, %v4228
  %v4241 = vmul.f32 %v4205, %v4228
  %v4242 = vmul.f32 %v4206, %v4228
  %v4243 = vmul.f32 %v4207, %v4228
  %v4244 = vmul.f32 %v4208, %v4228
  %v4245 = vmul.f32 %v4209, %v4228
  %v4246 = vmul.f32 %v4210, %v4228
  %v4247 = vmul.f32 %v4211, %v4228
  %v4248 = vmul.f32 %v4212, %v4228
  %v4249 = vmul.f32 %v4213, %v4228
  %v4250 = vmul.f32 %v4214, %v4228
  %v4251 = vmul.f32 %v4215, %v4228
  %v4252 = vmul.f32 %v4216, %v4228
  %v4253 = vmul.f32 %v4217, %v4228
  %v4254 = vmul.f32 %v4218, %v4228
  %v4255 = vmul.f32 %v4219, %v4228
  %v4256 = vmul.f32 %v4220, %v4228
  %v4257 = vmul.f32 %v4221, %v4228
  %v4258 = vmul.f32 %v4222, %v4228
  %v4259 = vmul.f32 %v4223, %v4228
  %v4260 = vmul.f32 %v4224, %v4228
  %v4261 = vld [vmem:[#allocation2 + $0x8] sm:$0xff]
  %v4262 = vld [vmem:[#allocation2 + $0x10] sm:$0xff]
  %v4263 = vlaneseq
  %v4264 = vshrl.u32 %v4263, 7
  %v4265 = vsub.s32 1, %v4264
  %v4266 = vrot.slane %v3564, %v4265
  %v4267 = vmul.f32 %v4261, %v4266
  %v4268 = vmul.f32 %v4262, %v4266
  %v4269 = vmul.f32 %v4193, %v4266
  %v4270 = vmul.f32 %v4194, %v4266
  %v4271 = vmul.f32 %v4195, %v4266
  %v4272 = vmul.f32 %v4196, %v4266
  %v4273 = vmul.f32 %v4197, %v4266
  %v4274 = vmul.f32 %v4198, %v4266
  %v4275 = vmul.f32 %v4199, %v4266
  %v4276 = vmul.f32 %v4200, %v4266
  %v4277 = vmul.f32 %v4201, %v4266
  %v4278 = vmul.f32 %v4202, %v4266
  %v4279 = vmul.f32 %v4203, %v4266
  %v4280 = vmul.f32 %v4204, %v4266
  %v4281 = vmul.f32 %v4205, %v4266
  %v4282 = vmul.f32 %v4206, %v4266
  %v4283 = vmul.f32 %v4207, %v4266
  %v4284 = vmul.f32 %v4208, %v4266
  %v4285 = vmul.f32 %v4209, %v4266
  %v4286 = vmul.f32 %v4210, %v4266
  %v4287 = vmul.f32 %v4211, %v4266
  %v4288 = vmul.f32 %v4212, %v4266
  %v4289 = vmul.f32 %v4213, %v4266
  %v4290 = vmul.f32 %v4214, %v4266
  %v4291 = vmul.f32 %v4215, %v4266
  %v4292 = vmul.f32 %v4216, %v4266
  %v4293 = vmul.f32 %v4217, %v4266
  %v4294 = vmul.f32 %v4218, %v4266
  %v4295 = vmul.f32 %v4219, %v4266
  %v4296 = vmul.f32 %v4220, %v4266
  %v4297 = vmul.f32 %v4221, %v4266
  %v4298 = vmul.f32 %v4222, %v4266
  %v4299 = vadd.f32 %v4229, %v4267
  %v4300 = vadd.f32 %v4230, %v4268
  %v4301 = vadd.f32 %v4231, %v4269
  %v4302 = vadd.f32 %v4232, %v4270
  %v4303 = vadd.f32 %v4233, %v4271
  %v4304 = vadd.f32 %v4234, %v4272
  %v4305 = vadd.f32 %v4235, %v4273
  %v4306 = vadd.f32 %v4236, %v4274
  %v4307 = vadd.f32 %v4237, %v4275
  %v4308 = vadd.f32 %v4238, %v4276
  %v4309 = vadd.f32 %v4239, %v4277
  %v4310 = vadd.f32 %v4240, %v4278
  %v4311 = vadd.f32 %v4241, %v4279
  %v4312 = vadd.f32 %v4242, %v4280
  %v4313 = vadd.f32 %v4243, %v4281
  %v4314 = vadd.f32 %v4244, %v4282
  %v4315 = vadd.f32 %v4245, %v4283
  %v4316 = vadd.f32 %v4246, %v4284
  %v4317 = vadd.f32 %v4247, %v4285
  %v4318 = vadd.f32 %v4248, %v4286
  %v4319 = vadd.f32 %v4249, %v4287
  %v4320 = vadd.f32 %v4250, %v4288
  %v4321 = vadd.f32 %v4251, %v4289
  %v4322 = vadd.f32 %v4252, %v4290
  %v4323 = vadd.f32 %v4253, %v4291
  %v4324 = vadd.f32 %v4254, %v4292
  %v4325 = vadd.f32 %v4255, %v4293
  %v4326 = vadd.f32 %v4256, %v4294
  %v4327 = vadd.f32 %v4257, %v4295
  %v4328 = vadd.f32 %v4258, %v4296
  %v4329 = vadd.f32 %v4259, %v4297
  %v4330 = vadd.f32 %v4260, %v4298
  %v4331 = vld [vmem:[#allocation2 + $0x118] sm:$0xff]
  %v4332 = vld [vmem:[#allocation2 + $0x120] sm:$0xff]
  %v4333 = vlaneseq
  %v4334 = vshrl.u32 %v4333, 7
  %v4335 = vsub.s32 7, %v4334
  %v4336 = vrot.slane %v3564, %v4335
  %v4337 = vmul.f32 %v4195, %v4336
  %v4338 = vmul.f32 %v4196, %v4336
  %v4339 = vmul.f32 %v4197, %v4336
  %v4340 = vmul.f32 %v4198, %v4336
  %v4341 = vmul.f32 %v4199, %v4336
  %v4342 = vmul.f32 %v4200, %v4336
  %v4343 = vmul.f32 %v4201, %v4336
  %v4344 = vmul.f32 %v4202, %v4336
  %v4345 = vmul.f32 %v4203, %v4336
  %v4346 = vmul.f32 %v4204, %v4336
  %v4347 = vmul.f32 %v4205, %v4336
  %v4348 = vmul.f32 %v4206, %v4336
  %v4349 = vmul.f32 %v4207, %v4336
  %v4350 = vmul.f32 %v4208, %v4336
  %v4351 = vmul.f32 %v4209, %v4336
  %v4352 = vmul.f32 %v4210, %v4336
  %v4353 = vmul.f32 %v4211, %v4336
  %v4354 = vmul.f32 %v4212, %v4336
  %v4355 = vmul.f32 %v4213, %v4336
  %v4356 = vmul.f32 %v4214, %v4336
  %v4357 = vmul.f32 %v4215, %v4336
  %v4358 = vmul.f32 %v4216, %v4336
  %v4359 = vmul.f32 %v4217, %v4336
  %v4360 = vmul.f32 %v4218, %v4336
  %v4361 = vmul.f32 %v4219, %v4336
  %v4362 = vmul.f32 %v4220, %v4336
  %v4363 = vmul.f32 %v4221, %v4336
  %v4364 = vmul.f32 %v4222, %v4336
  %v4365 = vmul.f32 %v4223, %v4336
  %v4366 = vmul.f32 %v4224, %v4336
  %v4367 = vmul.f32 %v4331, %v4336
  %v4368 = vmul.f32 %v4332, %v4336
  %v4369 = vadd.f32 %v4299, %v4337
  %v4370 = vadd.f32 %v4300, %v4338
  %v4371 = vadd.f32 %v4301, %v4339
  %v4372 = vadd.f32 %v4302, %v4340
  %v4373 = vadd.f32 %v4303, %v4341
  %v4374 = vadd.f32 %v4304, %v4342
  %v4375 = vadd.f32 %v4305, %v4343
  %v4376 = vadd.f32 %v4306, %v4344
  %v4377 = vadd.f32 %v4307, %v4345
  %v4378 = vadd.f32 %v4308, %v4346
  %v4379 = vadd.f32 %v4309, %v4347
  %v4380 = vadd.f32 %v4310, %v4348
  %v4381 = vadd.f32 %v4311, %v4349
  %v4382 = vadd.f32 %v4312, %v4350
  %v4383 = vadd.f32 %v4313, %v4351
  %v4384 = vadd.f32 %v4314, %v4352
  %v4385 = vadd.f32 %v4315, %v4353
  %v4386 = vadd.f32 %v4316, %v4354
  %v4387 = vadd.f32 %v4317, %v4355
  %v4388 = vadd.f32 %v4318, %v4356
  %v4389 = vadd.f32 %v4319, %v4357
  %v4390 = vadd.f32 %v4320, %v4358
  %v4391 = vadd.f32 %v4321, %v4359
  %v4392 = vadd.f32 %v4322, %v4360
  %v4393 = vadd.f32 %v4323, %v4361
  %v4394 = vadd.f32 %v4324, %v4362
  %v4395 = vadd.f32 %v4325, %v4363
  %v4396 = vadd.f32 %v4326, %v4364
  %v4397 = vadd.f32 %v4327, %v4365
  %v4398 = vadd.f32 %v4328, %v4366
  %v4399 = vadd.f32 %v4329, %v4367
  %v4400 = vadd.f32 %v4330, %v4368
  %v4401 = vld [vmem:[#allocation2 + $0x7] sm:$0xff]
  %v4402 = vld [vmem:[#allocation2 + $0xf] sm:$0xff]
  %v4403 = vld [vmem:[#allocation2 + $0x17] sm:$0xff]
  %v4404 = vld [vmem:[#allocation2 + $0x1f] sm:$0xff]
  %v4405 = vld [vmem:[#allocation2 + $0x27] sm:$0xff]
  %v4406 = vld [vmem:[#allocation2 + $0x2f] sm:$0xff]
  %v4407 = vld [vmem:[#allocation2 + $0x37] sm:$0xff]
  %v4408 = vld [vmem:[#allocation2 + $0x3f] sm:$0xff]
  %v4409 = vld [vmem:[#allocation2 + $0x47] sm:$0xff]
  %v4410 = vld [vmem:[#allocation2 + $0x4f] sm:$0xff]
  %v4411 = vld [vmem:[#allocation2 + $0x57] sm:$0xff]
  %v4412 = vld [vmem:[#allocation2 + $0x5f] sm:$0xff]
  %v4413 = vld [vmem:[#allocation2 + $0x67] sm:$0xff]
  %v4414 = vld [vmem:[#allocation2 + $0x6f] sm:$0xff]
  %v4415 = vld [vmem:[#allocation2 + $0x77] sm:$0xff]
  %v4416 = vld [vmem:[#allocation2 + $0x7f] sm:$0xff]
  %v4417 = vld [vmem:[#allocation2 + $0x87] sm:$0xff]
  %v4418 = vld [vmem:[#allocation2 + $0x8f] sm:$0xff]
  %v4419 = vld [vmem:[#allocation2 + $0x97] sm:$0xff]
  %v4420 = vld [vmem:[#allocation2 + $0x9f] sm:$0xff]
  %v4421 = vld [vmem:[#allocation2 + $0xa7] sm:$0xff]
  %v4422 = vld [vmem:[#allocation2 + $0xaf] sm:$0xff]
  %v4423 = vld [vmem:[#allocation2 + $0xb7] sm:$0xff]
  %v4424 = vld [vmem:[#allocation2 + $0xbf] sm:$0xff]
  %v4425 = vld [vmem:[#allocation2 + $0xc7] sm:$0xff]
  %v4426 = vld [vmem:[#allocation2 + $0xcf] sm:$0xff]
  %v4427 = vld [vmem:[#allocation2 + $0xd7] sm:$0xff]
  %v4428 = vld [vmem:[#allocation2 + $0xdf] sm:$0xff]
  %v4429 = vld [vmem:[#allocation2 + $0xe7] sm:$0xff]
  %v4430 = vld [vmem:[#allocation2 + $0xef] sm:$0xff]
  %v4431 = vld [vmem:[#allocation2 + $0xf7] sm:$0xff]
  %v4432 = vld [vmem:[#allocation2 + $0xff] sm:$0xff]
  %v4433 = vlaneseq
  %v4434 = vshrl.u32 %v4433, 7
  %v4435 = vsub.s32 0, %v4434
  %v4436 = vrot.slane %v3564, %v4435
  %v4437 = vmul.f32 %v4401, %v4436
  %v4438 = vmul.f32 %v4402, %v4436
  %v4439 = vmul.f32 %v4403, %v4436
  %v4440 = vmul.f32 %v4404, %v4436
  %v4441 = vmul.f32 %v4405, %v4436
  %v4442 = vmul.f32 %v4406, %v4436
  %v4443 = vmul.f32 %v4407, %v4436
  %v4444 = vmul.f32 %v4408, %v4436
  %v4445 = vmul.f32 %v4409, %v4436
  %v4446 = vmul.f32 %v4410, %v4436
  %v4447 = vmul.f32 %v4411, %v4436
  %v4448 = vmul.f32 %v4412, %v4436
  %v4449 = vmul.f32 %v4413, %v4436
  %v4450 = vmul.f32 %v4414, %v4436
  %v4451 = vmul.f32 %v4415, %v4436
  %v4452 = vmul.f32 %v4416, %v4436
  %v4453 = vmul.f32 %v4417, %v4436
  %v4454 = vmul.f32 %v4418, %v4436
  %v4455 = vmul.f32 %v4419, %v4436
  %v4456 = vmul.f32 %v4420, %v4436
  %v4457 = vmul.f32 %v4421, %v4436
  %v4458 = vmul.f32 %v4422, %v4436
  %v4459 = vmul.f32 %v4423, %v4436
  %v4460 = vmul.f32 %v4424, %v4436
  %v4461 = vmul.f32 %v4425, %v4436
  %v4462 = vmul.f32 %v4426, %v4436
  %v4463 = vmul.f32 %v4427, %v4436
  %v4464 = vmul.f32 %v4428, %v4436
  %v4465 = vmul.f32 %v4429, %v4436
  %v4466 = vmul.f32 %v4430, %v4436
  %v4467 = vmul.f32 %v4431, %v4436
  %v4468 = vmul.f32 %v4432, %v4436
  %v4469 = vld [vmem:[#allocation2 + $0x107] sm:$0xff]
  %v4470 = vld [vmem:[#allocation2 + $0x10f] sm:$0xff]
  %v4471 = vlaneseq
  %v4472 = vshrl.u32 %v4471, 7
  %v4473 = vsub.s32 3, %v4472
  %v4474 = vrot.slane %v3564, %v4473
  %v4475 = vmul.f32 %v4403, %v4474
  %v4476 = vmul.f32 %v4404, %v4474
  %v4477 = vmul.f32 %v4405, %v4474
  %v4478 = vmul.f32 %v4406, %v4474
  %v4479 = vmul.f32 %v4407, %v4474
  %v4480 = vmul.f32 %v4408, %v4474
  %v4481 = vmul.f32 %v4409, %v4474
  %v4482 = vmul.f32 %v4410, %v4474
  %v4483 = vmul.f32 %v4411, %v4474
  %v4484 = vmul.f32 %v4412, %v4474
  %v4485 = vmul.f32 %v4413, %v4474
  %v4486 = vmul.f32 %v4414, %v4474
  %v4487 = vmul.f32 %v4415, %v4474
  %v4488 = vmul.f32 %v4416, %v4474
  %v4489 = vmul.f32 %v4417, %v4474
  %v4490 = vmul.f32 %v4418, %v4474
  %v4491 = vmul.f32 %v4419, %v4474
  %v4492 = vmul.f32 %v4420, %v4474
  %v4493 = vmul.f32 %v4421, %v4474
  %v4494 = vmul.f32 %v4422, %v4474
  %v4495 = vmul.f32 %v4423, %v4474
  %v4496 = vmul.f32 %v4424, %v4474
  %v4497 = vmul.f32 %v4425, %v4474
  %v4498 = vmul.f32 %v4426, %v4474
  %v4499 = vmul.f32 %v4427, %v4474
  %v4500 = vmul.f32 %v4428, %v4474
  %v4501 = vmul.f32 %v4429, %v4474
  %v4502 = vmul.f32 %v4430, %v4474
  %v4503 = vmul.f32 %v4431, %v4474
  %v4504 = vmul.f32 %v4432, %v4474
  %v4505 = vmul.f32 %v4469, %v4474
  %v4506 = vmul.f32 %v4470, %v4474
  %v4507 = vadd.f32 %v4437, %v4475
  %v4508 = vadd.f32 %v4438, %v4476
  %v4509 = vadd.f32 %v4439, %v4477
  %v4510 = vadd.f32 %v4440, %v4478
  %v4511 = vadd.f32 %v4441, %v4479
  %v4512 = vadd.f32 %v4442, %v4480
  %v4513 = vadd.f32 %v4443, %v4481
  %v4514 = vadd.f32 %v4444, %v4482
  %v4515 = vadd.f32 %v4445, %v4483
  %v4516 = vadd.f32 %v4446, %v4484
  %v4517 = vadd.f32 %v4447, %v4485
  %v4518 = vadd.f32 %v4448, %v4486
  %v4519 = vadd.f32 %v4449, %v4487
  %v4520 = vadd.f32 %v4450, %v4488
  %v4521 = vadd.f32 %v4451, %v4489
  %v4522 = vadd.f32 %v4452, %v4490
  %v4523 = vadd.f32 %v4453, %v4491
  %v4524 = vadd.f32 %v4454, %v4492
  %v4525 = vadd.f32 %v4455, %v4493
  %v4526 = vadd.f32 %v4456, %v4494
  %v4527 = vadd.f32 %v4457, %v4495
  %v4528 = vadd.f32 %v4458, %v4496
  %v4529 = vadd.f32 %v4459, %v4497
  %v4530 = vadd.f32 %v4460, %v4498
  %v4531 = vadd.f32 %v4461, %v4499
  %v4532 = vadd.f32 %v4462, %v4500
  %v4533 = vadd.f32 %v4463, %v4501
  %v4534 = vadd.f32 %v4464, %v4502
  %v4535 = vadd.f32 %v4465, %v4503
  %v4536 = vadd.f32 %v4466, %v4504
  %v4537 = vadd.f32 %v4467, %v4505
  %v4538 = vadd.f32 %v4468, %v4506
  %v4539 = vld [vmem:[#allocation2 + $0x117] sm:$0xff]
  %v4540 = vld [vmem:[#allocation2 + $0x11f] sm:$0xff]
  %v4541 = vlaneseq
  %v4542 = vshrl.u32 %v4541, 7
  %v4543 = vsub.s32 6, %v4542
  %v4544 = vrot.slane %v3564, %v4543
  %v4545 = vmul.f32 %v4405, %v4544
  %v4546 = vmul.f32 %v4406, %v4544
  %v4547 = vmul.f32 %v4407, %v4544
  %v4548 = vmul.f32 %v4408, %v4544
  %v4549 = vmul.f32 %v4409, %v4544
  %v4550 = vmul.f32 %v4410, %v4544
  %v4551 = vmul.f32 %v4411, %v4544
  %v4552 = vmul.f32 %v4412, %v4544
  %v4553 = vmul.f32 %v4413, %v4544
  %v4554 = vmul.f32 %v4414, %v4544
  %v4555 = vmul.f32 %v4415, %v4544
  %v4556 = vmul.f32 %v4416, %v4544
  %v4557 = vmul.f32 %v4417, %v4544
  %v4558 = vmul.f32 %v4418, %v4544
  %v4559 = vmul.f32 %v4419, %v4544
  %v4560 = vmul.f32 %v4420, %v4544
  %v4561 = vmul.f32 %v4421, %v4544
  %v4562 = vmul.f32 %v4422, %v4544
  %v4563 = vmul.f32 %v4423, %v4544
  %v4564 = vmul.f32 %v4424, %v4544
  %v4565 = vmul.f32 %v4425, %v4544
  %v4566 = vmul.f32 %v4426, %v4544
  %v4567 = vmul.f32 %v4427, %v4544
  %v4568 = vmul.f32 %v4428, %v4544
  %v4569 = vmul.f32 %v4429, %v4544
  %v4570 = vmul.f32 %v4430, %v4544
  %v4571 = vmul.f32 %v4431, %v4544
  %v4572 = vmul.f32 %v4432, %v4544
  %v4573 = vmul.f32 %v4469, %v4544
  %v4574 = vmul.f32 %v4470, %v4544
  %v4575 = vmul.f32 %v4539, %v4544
  %v4576 = vmul.f32 %v4540, %v4544
  %v4577 = vadd.f32 %v4507, %v4545
  %v4578 = vadd.f32 %v4508, %v4546
  %v4579 = vadd.f32 %v4509, %v4547
  %v4580 = vadd.f32 %v4510, %v4548
  %v4581 = vadd.f32 %v4511, %v4549
  %v4582 = vadd.f32 %v4512, %v4550
  %v4583 = vadd.f32 %v4513, %v4551
  %v4584 = vadd.f32 %v4514, %v4552
  %v4585 = vadd.f32 %v4515, %v4553
  %v4586 = vadd.f32 %v4516, %v4554
  %v4587 = vadd.f32 %v4517, %v4555
  %v4588 = vadd.f32 %v4518, %v4556
  %v4589 = vadd.f32 %v4519, %v4557
  %v4590 = vadd.f32 %v4520, %v4558
  %v4591 = vadd.f32 %v4521, %v4559
  %v4592 = vadd.f32 %v4522, %v4560
  %v4593 = vadd.f32 %v4523, %v4561
  %v4594 = vadd.f32 %v4524, %v4562
  %v4595 = vadd.f32 %v4525, %v4563
  %v4596 = vadd.f32 %v4526, %v4564
  %v4597 = vadd.f32 %v4527, %v4565
  %v4598 = vadd.f32 %v4528, %v4566
  %v4599 = vadd.f32 %v4529, %v4567
  %v4600 = vadd.f32 %v4530, %v4568
  %v4601 = vadd.f32 %v4531, %v4569
  %v4602 = vadd.f32 %v4532, %v4570
  %v4603 = vadd.f32 %v4533, %v4571
  %v4604 = vadd.f32 %v4534, %v4572
  %v4605 = vadd.f32 %v4535, %v4573
  %v4606 = vadd.f32 %v4536, %v4574
  %v4607 = vadd.f32 %v4537, %v4575
  %v4608 = vadd.f32 %v4538, %v4576
  %v4609 = vld [vmem:[#allocation2 + $0x9] sm:$0xff]
  %v4610 = vld [vmem:[#allocation2 + $0x11] sm:$0xff]
  %v4611 = vld [vmem:[#allocation2 + $0x19] sm:$0xff]
  %v4612 = vld [vmem:[#allocation2 + $0x21] sm:$0xff]
  %v4613 = vld [vmem:[#allocation2 + $0x29] sm:$0xff]
  %v4614 = vld [vmem:[#allocation2 + $0x31] sm:$0xff]
  %v4615 = vld [vmem:[#allocation2 + $0x39] sm:$0xff]
  %v4616 = vld [vmem:[#allocation2 + $0x41] sm:$0xff]
  %v4617 = vld [vmem:[#allocation2 + $0x49] sm:$0xff]
  %v4618 = vld [vmem:[#allocation2 + $0x51] sm:$0xff]
  %v4619 = vld [vmem:[#allocation2 + $0x59] sm:$0xff]
  %v4620 = vld [vmem:[#allocation2 + $0x61] sm:$0xff]
  %v4621 = vld [vmem:[#allocation2 + $0x69] sm:$0xff]
  %v4622 = vld [vmem:[#allocation2 + $0x71] sm:$0xff]
  %v4623 = vld [vmem:[#allocation2 + $0x79] sm:$0xff]
  %v4624 = vld [vmem:[#allocation2 + $0x81] sm:$0xff]
  %v4625 = vld [vmem:[#allocation2 + $0x89] sm:$0xff]
  %v4626 = vld [vmem:[#allocation2 + $0x91] sm:$0xff]
  %v4627 = vld [vmem:[#allocation2 + $0x99] sm:$0xff]
  %v4628 = vld [vmem:[#allocation2 + $0xa1] sm:$0xff]
  %v4629 = vld [vmem:[#allocation2 + $0xa9] sm:$0xff]
  %v4630 = vld [vmem:[#allocation2 + $0xb1] sm:$0xff]
  %v4631 = vld [vmem:[#allocation2 + $0xb9] sm:$0xff]
  %v4632 = vld [vmem:[#allocation2 + $0xc1] sm:$0xff]
  %v4633 = vld [vmem:[#allocation2 + $0xc9] sm:$0xff]
  %v4634 = vld [vmem:[#allocation2 + $0xd1] sm:$0xff]
  %v4635 = vld [vmem:[#allocation2 + $0xd9] sm:$0xff]
  %v4636 = vld [vmem:[#allocation2 + $0xe1] sm:$0xff]
  %v4637 = vld [vmem:[#allocation2 + $0xe9] sm:$0xff]
  %v4638 = vld [vmem:[#allocation2 + $0xf1] sm:$0xff]
  %v4639 = vld [vmem:[#allocation2 + $0xf9] sm:$0xff]
  %v4640 = vld [vmem:[#allocation2 + $0x101] sm:$0xff]
  %v4641 = vlaneseq
  %v4642 = vshrl.u32 %v4641, 7
  %v4643 = vsub.s32 2, %v4642
  %v4644 = vrot.slane %v3564, %v4643
  %v4645 = vmul.f32 %v4609, %v4644
  %v4646 = vmul.f32 %v4610, %v4644
  %v4647 = vmul.f32 %v4611, %v4644
  %v4648 = vmul.f32 %v4612, %v4644
  %v4649 = vmul.f32 %v4613, %v4644
  %v4650 = vmul.f32 %v4614, %v4644
  %v4651 = vmul.f32 %v4615, %v4644
  %v4652 = vmul.f32 %v4616, %v4644
  %v4653 = vmul.f32 %v4617, %v4644
  %v4654 = vmul.f32 %v4618, %v4644
  %v4655 = vmul.f32 %v4619, %v4644
  %v4656 = vmul.f32 %v4620, %v4644
  %v4657 = vmul.f32 %v4621, %v4644
  %v4658 = vmul.f32 %v4622, %v4644
  %v4659 = vmul.f32 %v4623, %v4644
  %v4660 = vmul.f32 %v4624, %v4644
  %v4661 = vmul.f32 %v4625, %v4644
  %v4662 = vmul.f32 %v4626, %v4644
  %v4663 = vmul.f32 %v4627, %v4644
  %v4664 = vmul.f32 %v4628, %v4644
  %v4665 = vmul.f32 %v4629, %v4644
  %v4666 = vmul.f32 %v4630, %v4644
  %v4667 = vmul.f32 %v4631, %v4644
  %v4668 = vmul.f32 %v4632, %v4644
  %v4669 = vmul.f32 %v4633, %v4644
  %v4670 = vmul.f32 %v4634, %v4644
  %v4671 = vmul.f32 %v4635, %v4644
  %v4672 = vmul.f32 %v4636, %v4644
  %v4673 = vmul.f32 %v4637, %v4644
  %v4674 = vmul.f32 %v4638, %v4644
  %v4675 = vmul.f32 %v4639, %v4644
  %v4676 = vmul.f32 %v4640, %v4644
  %v4677 = vld [vmem:[#allocation2 + $0x109] sm:$0xff]
  %v4678 = vld [vmem:[#allocation2 + $0x111] sm:$0xff]
  %v4679 = vlaneseq
  %v4680 = vshrl.u32 %v4679, 7
  %v4681 = vsub.s32 5, %v4680
  %v4682 = vrot.slane %v3564, %v4681
  %v4683 = vmul.f32 %v4611, %v4682
  %v4684 = vmul.f32 %v4612, %v4682
  %v4685 = vmul.f32 %v4613, %v4682
  %v4686 = vmul.f32 %v4614, %v4682
  %v4687 = vmul.f32 %v4615, %v4682
  %v4688 = vmul.f32 %v4616, %v4682
  %v4689 = vmul.f32 %v4617, %v4682
  %v4690 = vmul.f32 %v4618, %v4682
  %v4691 = vmul.f32 %v4619, %v4682
  %v4692 = vmul.f32 %v4620, %v4682
  %v4693 = vmul.f32 %v4621, %v4682
  %v4694 = vmul.f32 %v4622, %v4682
  %v4695 = vmul.f32 %v4623, %v4682
  %v4696 = vmul.f32 %v4624, %v4682
  %v4697 = vmul.f32 %v4625, %v4682
  %v4698 = vmul.f32 %v4626, %v4682
  %v4699 = vmul.f32 %v4627, %v4682
  %v4700 = vmul.f32 %v4628, %v4682
  %v4701 = vmul.f32 %v4629, %v4682
  %v4702 = vmul.f32 %v4630, %v4682
  %v4703 = vmul.f32 %v4631, %v4682
  %v4704 = vmul.f32 %v4632, %v4682
  %v4705 = vmul.f32 %v4633, %v4682
  %v4706 = vmul.f32 %v4634, %v4682
  %v4707 = vmul.f32 %v4635, %v4682
  %v4708 = vmul.f32 %v4636, %v4682
  %v4709 = vmul.f32 %v4637, %v4682
  %v4710 = vmul.f32 %v4638, %v4682
  %v4711 = vmul.f32 %v4639, %v4682
  %v4712 = vmul.f32 %v4640, %v4682
  %v4713 = vmul.f32 %v4677, %v4682
  %v4714 = vmul.f32 %v4678, %v4682
  %v4715 = vadd.f32 %v4645, %v4683
  %v4716 = vadd.f32 %v4646, %v4684
  %v4717 = vadd.f32 %v4647, %v4685
  %v4718 = vadd.f32 %v4648, %v4686
  %v4719 = vadd.f32 %v4649, %v4687
  %v4720 = vadd.f32 %v4650, %v4688
  %v4721 = vadd.f32 %v4651, %v4689
  %v4722 = vadd.f32 %v4652, %v4690
  %v4723 = vadd.f32 %v4653, %v4691
  %v4724 = vadd.f32 %v4654, %v4692
  %v4725 = vadd.f32 %v4655, %v4693
  %v4726 = vadd.f32 %v4656, %v4694
  %v4727 = vadd.f32 %v4657, %v4695
  %v4728 = vadd.f32 %v4658, %v4696
  %v4729 = vadd.f32 %v4659, %v4697
  %v4730 = vadd.f32 %v4660, %v4698
  %v4731 = vadd.f32 %v4661, %v4699
  %v4732 = vadd.f32 %v4662, %v4700
  %v4733 = vadd.f32 %v4663, %v4701
  %v4734 = vadd.f32 %v4664, %v4702
  %v4735 = vadd.f32 %v4665, %v4703
  %v4736 = vadd.f32 %v4666, %v4704
  %v4737 = vadd.f32 %v4667, %v4705
  %v4738 = vadd.f32 %v4668, %v4706
  %v4739 = vadd.f32 %v4669, %v4707
  %v4740 = vadd.f32 %v4670, %v4708
  %v4741 = vadd.f32 %v4671, %v4709
  %v4742 = vadd.f32 %v4672, %v4710
  %v4743 = vadd.f32 %v4673, %v4711
  %v4744 = vadd.f32 %v4674, %v4712
  %v4745 = vadd.f32 %v4675, %v4713
  %v4746 = vadd.f32 %v4676, %v4714
  %v4747 = vld [vmem:[#allocation2 + $0x119] sm:$0xff]
  %v4748 = vld [vmem:[#allocation2 + $0x121] sm:$0xff]
  %v4749 = vlaneseq
  %v4750 = vshrl.u32 %v4749, 7
  %v4751 = vsub.s32 0, %v4750
  %v4752 = vrot.slane %v3565, %v4751
  %v4753 = vmul.f32 %v4613, %v4752
  %v4754 = vmul.f32 %v4614, %v4752
  %v4755 = vmul.f32 %v4615, %v4752
  %v4756 = vmul.f32 %v4616, %v4752
  %v4757 = vmul.f32 %v4617, %v4752
  %v4758 = vmul.f32 %v4618, %v4752
  %v4759 = vmul.f32 %v4619, %v4752
  %v4760 = vmul.f32 %v4620, %v4752
  %v4761 = vmul.f32 %v4621, %v4752
  %v4762 = vmul.f32 %v4622, %v4752
  %v4763 = vmul.f32 %v4623, %v4752
  %v4764 = vmul.f32 %v4624, %v4752
  %v4765 = vmul.f32 %v4625, %v4752
  %v4766 = vmul.f32 %v4626, %v4752
  %v4767 = vmul.f32 %v4627, %v4752
  %v4768 = vmul.f32 %v4628, %v4752
  %v4769 = vmul.f32 %v4629, %v4752
  %v4770 = vmul.f32 %v4630, %v4752
  %v4771 = vmul.f32 %v4631, %v4752
  %v4772 = vmul.f32 %v4632, %v4752
  %v4773 = vmul.f32 %v4633, %v4752
  %v4774 = vmul.f32 %v4634, %v4752
  %v4775 = vmul.f32 %v4635, %v4752
  %v4776 = vmul.f32 %v4636, %v4752
  %v4777 = vmul.f32 %v4637, %v4752
  %v4778 = vmul.f32 %v4638, %v4752
  %v4779 = vmul.f32 %v4639, %v4752
  %v4780 = vmul.f32 %v4640, %v4752
  %v4781 = vmul.f32 %v4677, %v4752
  %v4782 = vmul.f32 %v4678, %v4752
  %v4783 = vmul.f32 %v4747, %v4752
  %v4784 = vmul.f32 %v4748, %v4752
  %v4785 = vadd.f32 %v4715, %v4753
  %v4786 = vadd.f32 %v4716, %v4754
  %v4787 = vadd.f32 %v4717, %v4755
  %v4788 = vadd.f32 %v4718, %v4756
  %v4789 = vadd.f32 %v4719, %v4757
  %v4790 = vadd.f32 %v4720, %v4758
  %v4791 = vadd.f32 %v4721, %v4759
  %v4792 = vadd.f32 %v4722, %v4760
  %v4793 = vadd.f32 %v4723, %v4761
  %v4794 = vadd.f32 %v4724, %v4762
  %v4795 = vadd.f32 %v4725, %v4763
  %v4796 = vadd.f32 %v4726, %v4764
  %v4797 = vadd.f32 %v4727, %v4765
  %v4798 = vadd.f32 %v4728, %v4766
  %v4799 = vadd.f32 %v4729, %v4767
  %v4800 = vadd.f32 %v4730, %v4768
  %v4801 = vadd.f32 %v4731, %v4769
  %v4802 = vadd.f32 %v4732, %v4770
  %v4803 = vadd.f32 %v4733, %v4771
  %v4804 = vadd.f32 %v4734, %v4772
  %v4805 = vadd.f32 %v4735, %v4773
  %v4806 = vadd.f32 %v4736, %v4774
  %v4807 = vadd.f32 %v4737, %v4775
  %v4808 = vadd.f32 %v4738, %v4776
  %v4809 = vadd.f32 %v4739, %v4777
  %v4810 = vadd.f32 %v4740, %v4778
  %v4811 = vadd.f32 %v4741, %v4779
  %v4812 = vadd.f32 %v4742, %v4780
  %v4813 = vadd.f32 %v4743, %v4781
  %v4814 = vadd.f32 %v4744, %v4782
  %v4815 = vadd.f32 %v4745, %v4783
  %v4816 = vadd.f32 %v4746, %v4784
  %v4817 = vmul.f32 %v4065, %v4577
  %v4818 = vmul.f32 %v4066, %v4578
  %v4819 = vmul.f32 %v4067, %v4579
  %v4820 = vmul.f32 %v4068, %v4580
  %v4821 = vmul.f32 %v4069, %v4581
  %v4822 = vmul.f32 %v4070, %v4582
  %v4823 = vmul.f32 %v4071, %v4583
  %v4824 = vmul.f32 %v4072, %v4584
  %v4825 = vmul.f32 %v4073, %v4585
  %v4826 = vmul.f32 %v4074, %v4586
  %v4827 = vmul.f32 %v4075, %v4587
  %v4828 = vmul.f32 %v4076, %v4588
  %v4829 = vmul.f32 %v4077, %v4589
  %v4830 = vmul.f32 %v4078, %v4590
  %v4831 = vmul.f32 %v4079, %v4591
  %v4832 = vmul.f32 %v4080, %v4592
  %v4833 = vmul.f32 %v4081, %v4593
  %v4834 = vmul.f32 %v4082, %v4594
  %v4835 = vmul.f32 %v4083, %v4595
  %v4836 = vmul.f32 %v4084, %v4596
  %v4837 = vmul.f32 %v4085, %v4597
  %v4838 = vmul.f32 %v4086, %v4598
  %v4839 = vmul.f32 %v4087, %v4599
  %v4840 = vmul.f32 %v4088, %v4600
  %v4841 = vmul.f32 %v4089, %v4601
  %v4842 = vmul.f32 %v4090, %v4602
  %v4843 = vmul.f32 %v4091, %v4603
  %v4844 = vmul.f32 %v4092, %v4604
  %v4845 = vmul.f32 %v4093, %v4605
  %v4846 = vmul.f32 %v4094, %v4606
  %v4847 = vmul.f32 %v4095, %v4607
  %v4848 = vmul.f32 %v4096, %v4608
  %v4849 = vadd.f32 %v4369, %v4817
  %v4850 = vadd.f32 %v4370, %v4818
  %v4851 = vadd.f32 %v4371, %v4819
  %v4852 = vadd.f32 %v4372, %v4820
  %v4853 = vadd.f32 %v4373, %v4821
  %v4854 = vadd.f32 %v4374, %v4822
  %v4855 = vadd.f32 %v4375, %v4823
  %v4856 = vadd.f32 %v4376, %v4824
  %v4857 = vadd.f32 %v4377, %v4825
  %v4858 = vadd.f32 %v4378, %v4826
  %v4859 = vadd.f32 %v4379, %v4827
  %v4860 = vadd.f32 %v4380, %v4828
  %v4861 = vadd.f32 %v4381, %v4829
  %v4862 = vadd.f32 %v4382, %v4830
  %v4863 = vadd.f32 %v4383, %v4831
  %v4864 = vadd.f32 %v4384, %v4832
  %v4865 = vadd.f32 %v4385, %v4833
  %v4866 = vadd.f32 %v4386, %v4834
  %v4867 = vadd.f32 %v4387, %v4835
  %v4868 = vadd.f32 %v4388, %v4836
  %v4869 = vadd.f32 %v4389, %v4837
  %v4870 = vadd.f32 %v4390, %v4838
  %v4871 = vadd.f32 %v4391, %v4839
  %v4872 = vadd.f32 %v4392, %v4840
  %v4873 = vadd.f32 %v4393, %v4841
  %v4874 = vadd.f32 %v4394, %v4842
  %v4875 = vadd.f32 %v4395, %v4843
  %v4876 = vadd.f32 %v4396, %v4844
  %v4877 = vadd.f32 %v4397, %v4845
  %v4878 = vadd.f32 %v4398, %v4846
  %v4879 = vadd.f32 %v4399, %v4847
  %v4880 = vadd.f32 %v4400, %v4848
  %v4881 = vmul.f32 %v4161, %v4785
  %v4882 = vmul.f32 %v4162, %v4786
  %v4883 = vmul.f32 %v4163, %v4787
  %v4884 = vmul.f32 %v4164, %v4788
  %v4885 = vmul.f32 %v4165, %v4789
  %v4886 = vmul.f32 %v4166, %v4790
  %v4887 = vmul.f32 %v4167, %v4791
  %v4888 = vmul.f32 %v4168, %v4792
  %v4889 = vmul.f32 %v4169, %v4793
  %v4890 = vmul.f32 %v4170, %v4794
  %v4891 = vmul.f32 %v4171, %v4795
  %v4892 = vmul.f32 %v4172, %v4796
  %v4893 = vmul.f32 %v4173, %v4797
  %v4894 = vmul.f32 %v4174, %v4798
  %v4895 = vmul.f32 %v4175, %v4799
  %v4896 = vmul.f32 %v4176, %v4800
  %v4897 = vmul.f32 %v4177, %v4801
  %v4898 = vmul.f32 %v4178, %v4802
  %v4899 = vmul.f32 %v4179, %v4803
  %v4900 = vmul.f32 %v4180, %v4804
  %v4901 = vmul.f32 %v4181, %v4805
  %v4902 = vmul.f32 %v4182, %v4806
  %v4903 = vmul.f32 %v4183, %v4807
  %v4904 = vmul.f32 %v4184, %v4808
  %v4905 = vmul.f32 %v4185, %v4809
  %v4906 = vmul.f32 %v4186, %v4810
  %v4907 = vmul.f32 %v4187, %v4811
  %v4908 = vmul.f32 %v4188, %v4812
  %v4909 = vmul.f32 %v4189, %v4813
  %v4910 = vmul.f32 %v4190, %v4814
  %v4911 = vmul.f32 %v4191, %v4815
  %v4912 = vmul.f32 %v4192, %v4816
  %v4913 = vadd.f32 %v4849, %v4881
  %v4914 = vadd.f32 %v4850, %v4882
  %v4915 = vadd.f32 %v4851, %v4883
  %v4916 = vadd.f32 %v4852, %v4884
  %v4917 = vadd.f32 %v4853, %v4885
  %v4918 = vadd.f32 %v4854, %v4886
  %v4919 = vadd.f32 %v4855, %v4887
  %v4920 = vadd.f32 %v4856, %v4888
  %v4921 = vadd.f32 %v4857, %v4889
  %v4922 = vadd.f32 %v4858, %v4890
  %v4923 = vadd.f32 %v4859, %v4891
  %v4924 = vadd.f32 %v4860, %v4892
  %v4925 = vadd.f32 %v4861, %v4893
  %v4926 = vadd.f32 %v4862, %v4894
  %v4927 = vadd.f32 %v4863, %v4895
  %v4928 = vadd.f32 %v4864, %v4896
  %v4929 = vadd.f32 %v4865, %v4897
  %v4930 = vadd.f32 %v4866, %v4898
  %v4931 = vadd.f32 %v4867, %v4899
  %v4932 = vadd.f32 %v4868, %v4900
  %v4933 = vadd.f32 %v4869, %v4901
  %v4934 = vadd.f32 %v4870, %v4902
  %v4935 = vadd.f32 %v4871, %v4903
  %v4936 = vadd.f32 %v4872, %v4904
  %v4937 = vadd.f32 %v4873, %v4905
  %v4938 = vadd.f32 %v4874, %v4906
  %v4939 = vadd.f32 %v4875, %v4907
  %v4940 = vadd.f32 %v4876, %v4908
  %v4941 = vadd.f32 %v4877, %v4909
  %v4942 = vadd.f32 %v4878, %v4910
  %v4943 = vadd.f32 %v4879, %v4911
  %v4944 = vadd.f32 %v4880, %v4912
  %v4946 = vlaneseq
  %v4947 = vshrl.u32 %v4946, 7
  %v4948 = vsub.s32 0, %v4947
  %v4949 = vrot.slane %v3566, %v4948
  %v4951 = vadd.f32 %v4913, %v4949
  %v4952 = vadd.f32 %v4914, %v4949
  %v4953 = vadd.f32 %v4915, %v4949
  %v4954 = vadd.f32 %v4916, %v4949
  %v4955 = vadd.f32 %v4917, %v4949
  %v4956 = vadd.f32 %v4918, %v4949
  %v4957 = vadd.f32 %v4919, %v4949
  %v4958 = vadd.f32 %v4920, %v4949
  %v4959 = vadd.f32 %v4921, %v4949
  %v4960 = vadd.f32 %v4922, %v4949
  %v4961 = vadd.f32 %v4923, %v4949
  %v4962 = vadd.f32 %v4924, %v4949
  %v4963 = vadd.f32 %v4925, %v4949
  %v4964 = vadd.f32 %v4926, %v4949
  %v4965 = vadd.f32 %v4927, %v4949
  %v4966 = vadd.f32 %v4928, %v4949
  %v4967 = vadd.f32 %v4929, %v4949
  %v4968 = vadd.f32 %v4930, %v4949
  %v4969 = vadd.f32 %v4931, %v4949
  %v4970 = vadd.f32 %v4932, %v4949
  %v4971 = vadd.f32 %v4933, %v4949
  %v4972 = vadd.f32 %v4934, %v4949
  %v4973 = vadd.f32 %v4935, %v4949
  %v4974 = vadd.f32 %v4936, %v4949
  %v4975 = vadd.f32 %v4937, %v4949
  %v4976 = vadd.f32 %v4938, %v4949
  %v4977 = vadd.f32 %v4939, %v4949
  %v4978 = vadd.f32 %v4940, %v4949
  %v4979 = vadd.f32 %v4941, %v4949
  %v4980 = vadd.f32 %v4942, %v4949
  %v4981 = vadd.f32 %v4943, %v4949
  %v4982 = vadd.f32 %v4944, %v4949
  %v4983 = vmul.f32 %v4951, 0.5
  %v4984 = vmul.f32 %v4952, 0.5
  %v4985 = vmul.f32 %v4953, 0.5
  %v4986 = vmul.f32 %v4954, 0.5
  %v4987 = vmul.f32 %v4955, 0.5
  %v4988 = vmul.f32 %v4956, 0.5
  %v4989 = vmul.f32 %v4957, 0.5
  %v4990 = vmul.f32 %v4958, 0.5
  %v4991 = vmul.f32 %v4959, 0.5
  %v4992 = vmul.f32 %v4960, 0.5
  %v4993 = vmul.f32 %v4961, 0.5
  %v4994 = vmul.f32 %v4962, 0.5
  %v4995 = vmul.f32 %v4963, 0.5
  %v4996 = vmul.f32 %v4964, 0.5
  %v4997 = vmul.f32 %v4965, 0.5
  %v4998 = vmul.f32 %v4966, 0.5
  %v4999 = vmul.f32 %v4967, 0.5
  %v5000 = vmul.f32 %v4968, 0.5
  %v5001 = vmul.f32 %v4969, 0.5
  %v5002 = vmul.f32 %v4970, 0.5
  %v5003 = vmul.f32 %v4971, 0.5
  %v5004 = vmul.f32 %v4972, 0.5
  %v5005 = vmul.f32 %v4973, 0.5
  %v5006 = vmul.f32 %v4974, 0.5
  %v5007 = vmul.f32 %v4975, 0.5
  %v5008 = vmul.f32 %v4976, 0.5
  %v5009 = vmul.f32 %v4977, 0.5
  %v5010 = vmul.f32 %v4978, 0.5
  %v5011 = vmul.f32 %v4979, 0.5
  %v5012 = vmul.f32 %v4980, 0.5
  %v5013 = vmul.f32 %v4981, 0.5
  %v5014 = vmul.f32 %v4982, 0.5
  %v5015 = vmul.f32 %v4951, 0.70710677
  %v5016 = vmul.f32 %v4952, 0.70710677
  %v5017 = vmul.f32 %v4953, 0.70710677
  %v5018 = vmul.f32 %v4954, 0.70710677
  %v5019 = vmul.f32 %v4955, 0.70710677
  %v5020 = vmul.f32 %v4956, 0.70710677
  %v5021 = vmul.f32 %v4957, 0.70710677
  %v5022 = vmul.f32 %v4958, 0.70710677
  %v5023 = vmul.f32 %v4959, 0.70710677
  %v5024 = vmul.f32 %v4960, 0.70710677
  %v5025 = vmul.f32 %v4961, 0.70710677
  %v5026 = vmul.f32 %v4962, 0.70710677
  %v5027 = vmul.f32 %v4963, 0.70710677
  %v5028 = vmul.f32 %v4964, 0.70710677
  %v5029 = vmul.f32 %v4965, 0.70710677
  %v5030 = vmul.f32 %v4966, 0.70710677
  %v5031 = vmul.f32 %v4967, 0.70710677
  %v5032 = vmul.f32 %v4968, 0.70710677
  %v5033 = vmul.f32 %v4969, 0.70710677
  %v5034 = vmul.f32 %v4970, 0.70710677
  %v5035 = vmul.f32 %v4971, 0.70710677
  %v5036 = vmul.f32 %v4972, 0.70710677
  %v5037 = vmul.f32 %v4973, 0.70710677
  %v5038 = vmul.f32 %v4974, 0.70710677
  %v5039 = vmul.f32 %v4975, 0.70710677
  %v5040 = vmul.f32 %v4976, 0.70710677
  %v5041 = vmul.f32 %v4977, 0.70710677
  %v5042 = vmul.f32 %v4978, 0.70710677
  %v5043 = vmul.f32 %v4979, 0.70710677
  %v5044 = vmul.f32 %v4980, 0.70710677
  %v5045 = vmul.f32 %v4981, 0.70710677
  %v5046 = vmul.f32 %v4982, 0.70710677
  %v5047 = vand.u32 2147483647, %v5015
  %v5048 = vand.u32 2147483647, %v5016
  %v5049 = vand.u32 2147483647, %v5017
  %v5050 = vand.u32 2147483647, %v5018
  %v5051 = vand.u32 2147483647, %v5019
  %v5052 = vand.u32 2147483647, %v5020
  %v5053 = vand.u32 2147483647, %v5021
  %v5054 = vand.u32 2147483647, %v5022
  %v5055 = vand.u32 2147483647, %v5023
  %v5056 = vand.u32 2147483647, %v5024
  %v5057 = vand.u32 2147483647, %v5025
  %v5058 = vand.u32 2147483647, %v5026
  %v5059 = vand.u32 2147483647, %v5027
  %v5060 = vand.u32 2147483647, %v5028
  %v5061 = vand.u32 2147483647, %v5029
  %v5062 = vand.u32 2147483647, %v5030
  %v5063 = vand.u32 2147483647, %v5031
  %v5064 = vand.u32 2147483647, %v5032
  %v5065 = vand.u32 2147483647, %v5033
  %v5066 = vand.u32 2147483647, %v5034
  %v5067 = vand.u32 2147483647, %v5035
  %v5068 = vand.u32 2147483647, %v5036
  %v5069 = vand.u32 2147483647, %v5037
  %v5070 = vand.u32 2147483647, %v5038
  %v5071 = vand.u32 2147483647, %v5039
  %v5072 = vand.u32 2147483647, %v5040
  %v5073 = vand.u32 2147483647, %v5041
  %v5074 = vand.u32 2147483647, %v5042
  %v5075 = vand.u32 2147483647, %v5043
  %v5076 = vand.u32 2147483647, %v5044
  %v5077 = vand.u32 2147483647, %v5045
  %v5078 = vand.u32 2147483647, %v5046
  %v5079 = vmul.f32 %v5047, 0.3275911
  %v5080 = vmul.f32 %v5048, 0.3275911
  %v5081 = vmul.f32 %v5049, 0.3275911
  %v5082 = vmul.f32 %v5050, 0.3275911
  %v5083 = vmul.f32 %v5051, 0.3275911
  %v5084 = vmul.f32 %v5052, 0.3275911
  %v5085 = vmul.f32 %v5053, 0.3275911
  %v5086 = vmul.f32 %v5054, 0.3275911
  %v5087 = vmul.f32 %v5055, 0.3275911
  %v5088 = vmul.f32 %v5056, 0.3275911
  %v5089 = vmul.f32 %v5057, 0.3275911
  %v5090 = vmul.f32 %v5058, 0.3275911
  %v5091 = vmul.f32 %v5059, 0.3275911
  %v5092 = vmul.f32 %v5060, 0.3275911
  %v5093 = vmul.f32 %v5061, 0.3275911
  %v5094 = vmul.f32 %v5062, 0.3275911
  %v5095 = vmul.f32 %v5063, 0.3275911
  %v5096 = vmul.f32 %v5064, 0.3275911
  %v5097 = vmul.f32 %v5065, 0.3275911
  %v5098 = vmul.f32 %v5066, 0.3275911
  %v5099 = vmul.f32 %v5067, 0.3275911
  %v5100 = vmul.f32 %v5068, 0.3275911
  %v5101 = vmul.f32 %v5069, 0.3275911
  %v5102 = vmul.f32 %v5070, 0.3275911
  %v5103 = vmul.f32 %v5071, 0.3275911
  %v5104 = vmul.f32 %v5072, 0.3275911
  %v5105 = vmul.f32 %v5073, 0.3275911
  %v5106 = vmul.f32 %v5074, 0.3275911
  %v5107 = vmul.f32 %v5075, 0.3275911
  %v5108 = vmul.f32 %v5076, 0.3275911
  %v5109 = vmul.f32 %v5077, 0.3275911
  %v5110 = vmul.f32 %v5078, 0.3275911
  %v5111 = vadd.f32 %v5079, 1.0
  %v5112 = vadd.f32 %v5080, 1.0
  %v5113 = vadd.f32 %v5081, 1.0
  %v5114 = vadd.f32 %v5082, 1.0
  %v5115 = vadd.f32 %v5083, 1.0
  %v5116 = vadd.f32 %v5084, 1.0
  %v5117 = vadd.f32 %v5085, 1.0
  %v5118 = vadd.f32 %v5086, 1.0
  %v5119 = vadd.f32 %v5087, 1.0
  %v5120 = vadd.f32 %v5088, 1.0
  %v5121 = vadd.f32 %v5089, 1.0
  %v5122 = vadd.f32 %v5090, 1.0
  %v5123 = vadd.f32 %v5091, 1.0
  %v5124 = vadd.f32 %v5092, 1.0
  %v5125 = vadd.f32 %v5093, 1.0
  %v5126 = vadd.f32 %v5094, 1.0
  %v5127 = vadd.f32 %v5095, 1.0
  %v5128 = vadd.f32 %v5096, 1.0
  %v5129 = vadd.f32 %v5097, 1.0
  %v5130 = vadd.f32 %v5098, 1.0
  %v5131 = vadd.f32 %v5099, 1.0
  %v5132 = vadd.f32 %v5100, 1.0
  %v5133 = vadd.f32 %v5101, 1.0
  %v5134 = vadd.f32 %v5102, 1.0
  %v5135 = vadd.f32 %v5103, 1.0
  %v5136 = vadd.f32 %v5104, 1.0
  %v5137 = vadd.f32 %v5105, 1.0
  %v5138 = vadd.f32 %v5106, 1.0
  %v5139 = vadd.f32 %v5107, 1.0
  %v5140 = vadd.f32 %v5108, 1.0
  %v5141 = vadd.f32 %v5109, 1.0
  %v5142 = vadd.f32 %v5110, 1.0
  %v5143 = vrcp.pop %v5111
  %v5144 = vmul.f32 1.0, %v5143
  %v5145 = vrcp.pop %v5112
  %v5146 = vmul.f32 1.0, %v5145
  %v5147 = vrcp.pop %v5113
  %v5148 = vmul.f32 1.0, %v5147
  %v5149 = vrcp.pop %v5114
  %v5150 = vmul.f32 1.0, %v5149
  %v5151 = vrcp.pop %v5115
  %v5152 = vmul.f32 1.0, %v5151
  %v5153 = vrcp.pop %v5116
  %v5154 = vmul.f32 1.0, %v5153
  %v5155 = vrcp.pop %v5117
  %v5156 = vmul.f32 1.0, %v5155
  %v5157 = vrcp.pop %v5118
  %v5158 = vmul.f32 1.0, %v5157
  %v5159 = vrcp.pop %v5119
  %v5160 = vmul.f32 1.0, %v5159
  %v5161 = vrcp.pop %v5120
  %v5162 = vmul.f32 1.0, %v5161
  %v5163 = vrcp.pop %v5121
  %v5164 = vmul.f32 1.0, %v5163
  %v5165 = vrcp.pop %v5122
  %v5166 = vmul.f32 1.0, %v5165
  %v5167 = vrcp.pop %v5123
  %v5168 = vmul.f32 1.0, %v5167
  %v5169 = vrcp.pop %v5124
  %v5170 = vmul.f32 1.0, %v5169
  %v5171 = vrcp.pop %v5125
  %v5172 = vmul.f32 1.0, %v5171
  %v5173 = vrcp.pop %v5126
  %v5174 = vmul.f32 1.0, %v5173
  %v5175 = vrcp.pop %v5127
  %v5176 = vmul.f32 1.0, %v5175
  %v5177 = vrcp.pop %v5128
  %v5178 = vmul.f32 1.0, %v5177
  %v5179 = vrcp.pop %v5129
  %v5180 = vmul.f32 1.0, %v5179
  %v5181 = vrcp.pop %v5130
  %v5182 = vmul.f32 1.0, %v5181
  %v5183 = vrcp.pop %v5131
  %v5184 = vmul.f32 1.0, %v5183
  %v5185 = vrcp.pop %v5132
  %v5186 = vmul.f32 1.0, %v5185
  %v5187 = vrcp.pop %v5133
  %v5188 = vmul.f32 1.0, %v5187
  %v5189 = vrcp.pop %v5134
  %v5190 = vmul.f32 1.0, %v5189
  %v5191 = vrcp.pop %v5135
  %v5192 = vmul.f32 1.0, %v5191
  %v5193 = vrcp.pop %v5136
  %v5194 = vmul.f32 1.0, %v5193
  %v5195 = vrcp.pop %v5137
  %v5196 = vmul.f32 1.0, %v5195
  %v5197 = vrcp.pop %v5138
  %v5198 = vmul.f32 1.0, %v5197
  %v5199 = vrcp.pop %v5139
  %v5200 = vmul.f32 1.0, %v5199
  %v5201 = vrcp.pop %v5140
  %v5202 = vmul.f32 1.0, %v5201
  %v5203 = vrcp.pop %v5141
  %v5204 = vmul.f32 1.0, %v5203
  %v5205 = vrcp.pop %v5142
  %v5206 = vmul.f32 1.0, %v5205
  %v5207 = vmul.f32 %v5144, 1.0614054
  %v5208 = vmul.f32 %v5146, 1.0614054
  %v5209 = vmul.f32 %v5148, 1.0614054
  %v5210 = vmul.f32 %v5150, 1.0614054
  %v5211 = vmul.f32 %v5152, 1.0614054
  %v5212 = vmul.f32 %v5154, 1.0614054
  %v5213 = vmul.f32 %v5156, 1.0614054
  %v5214 = vmul.f32 %v5158, 1.0614054
  %v5215 = vmul.f32 %v5160, 1.0614054
  %v5216 = vmul.f32 %v5162, 1.0614054
  %v5217 = vmul.f32 %v5164, 1.0614054
  %v5218 = vmul.f32 %v5166, 1.0614054
  %v5219 = vmul.f32 %v5168, 1.0614054
  %v5220 = vmul.f32 %v5170, 1.0614054
  %v5221 = vmul.f32 %v5172, 1.0614054
  %v5222 = vmul.f32 %v5174, 1.0614054
  %v5223 = vmul.f32 %v5176, 1.0614054
  %v5224 = vmul.f32 %v5178, 1.0614054
  %v5225 = vmul.f32 %v5180, 1.0614054
  %v5226 = vmul.f32 %v5182, 1.0614054
  %v5227 = vmul.f32 %v5184, 1.0614054
  %v5228 = vmul.f32 %v5186, 1.0614054
  %v5229 = vmul.f32 %v5188, 1.0614054
  %v5230 = vmul.f32 %v5190, 1.0614054
  %v5231 = vmul.f32 %v5192, 1.0614054
  %v5232 = vmul.f32 %v5194, 1.0614054
  %v5233 = vmul.f32 %v5196, 1.0614054
  %v5234 = vmul.f32 %v5198, 1.0614054
  %v5235 = vmul.f32 %v5200, 1.0614054
  %v5236 = vmul.f32 %v5202, 1.0614054
  %v5237 = vmul.f32 %v5204, 1.0614054
  %v5238 = vmul.f32 %v5206, 1.0614054
  %v5239 = vadd.f32 %v5207, -1.4531521
  %v5240 = vadd.f32 %v5208, -1.4531521
  %v5241 = vadd.f32 %v5209, -1.4531521
  %v5242 = vadd.f32 %v5210, -1.4531521
  %v5243 = vadd.f32 %v5211, -1.4531521
  %v5244 = vadd.f32 %v5212, -1.4531521
  %v5245 = vadd.f32 %v5213, -1.4531521
  %v5246 = vadd.f32 %v5214, -1.4531521
  %v5247 = vadd.f32 %v5215, -1.4531521
  %v5248 = vadd.f32 %v5216, -1.4531521
  %v5249 = vadd.f32 %v5217, -1.4531521
  %v5250 = vadd.f32 %v5218, -1.4531521
  %v5251 = vadd.f32 %v5219, -1.4531521
  %v5252 = vadd.f32 %v5220, -1.4531521
  %v5253 = vadd.f32 %v5221, -1.4531521
  %v5254 = vadd.f32 %v5222, -1.4531521
  %v5255 = vadd.f32 %v5223, -1.4531521
  %v5256 = vadd.f32 %v5224, -1.4531521
  %v5257 = vadd.f32 %v5225, -1.4531521
  %v5258 = vadd.f32 %v5226, -1.4531521
  %v5259 = vadd.f32 %v5227, -1.4531521
  %v5260 = vadd.f32 %v5228, -1.4531521
  %v5261 = vadd.f32 %v5229, -1.4531521
  %v5262 = vadd.f32 %v5230, -1.4531521
  %v5263 = vadd.f32 %v5231, -1.4531521
  %v5264 = vadd.f32 %v5232, -1.4531521
  %v5265 = vadd.f32 %v5233, -1.4531521
  %v5266 = vadd.f32 %v5234, -1.4531521
  %v5267 = vadd.f32 %v5235, -1.4531521
  %v5268 = vadd.f32 %v5236, -1.4531521
  %v5269 = vadd.f32 %v5237, -1.4531521
  %v5270 = vadd.f32 %v5238, -1.4531521
  %v5271 = vmul.f32 %v5239, %v5144
  %v5272 = vmul.f32 %v5240, %v5146
  %v5273 = vmul.f32 %v5241, %v5148
  %v5274 = vmul.f32 %v5242, %v5150
  %v5275 = vmul.f32 %v5243, %v5152
  %v5276 = vmul.f32 %v5244, %v5154
  %v5277 = vmul.f32 %v5245, %v5156
  %v5278 = vmul.f32 %v5246, %v5158
  %v5279 = vmul.f32 %v5247, %v5160
  %v5280 = vmul.f32 %v5248, %v5162
  %v5281 = vmul.f32 %v5249, %v5164
  %v5282 = vmul.f32 %v5250, %v5166
  %v5283 = vmul.f32 %v5251, %v5168
  %v5284 = vmul.f32 %v5252, %v5170
  %v5285 = vmul.f32 %v5253, %v5172
  %v5286 = vmul.f32 %v5254, %v5174
  %v5287 = vmul.f32 %v5255, %v5176
  %v5288 = vmul.f32 %v5256, %v5178
  %v5289 = vmul.f32 %v5257, %v5180
  %v5290 = vmul.f32 %v5258, %v5182
  %v5291 = vmul.f32 %v5259, %v5184
  %v5292 = vmul.f32 %v5260, %v5186
  %v5293 = vmul.f32 %v5261, %v5188
  %v5294 = vmul.f32 %v5262, %v5190
  %v5295 = vmul.f32 %v5263, %v5192
  %v5296 = vmul.f32 %v5264, %v5194
  %v5297 = vmul.f32 %v5265, %v5196
  %v5298 = vmul.f32 %v5266, %v5198
  %v5299 = vmul.f32 %v5267, %v5200
  %v5300 = vmul.f32 %v5268, %v5202
  %v5301 = vmul.f32 %v5269, %v5204
  %v5302 = vmul.f32 %v5270, %v5206
  %v5303 = vadd.f32 %v5271, 1.4214138
  %v5304 = vadd.f32 %v5272, 1.4214138
  %v5305 = vadd.f32 %v5273, 1.4214138
  %v5306 = vadd.f32 %v5274, 1.4214138
  %v5307 = vadd.f32 %v5275, 1.4214138
  %v5308 = vadd.f32 %v5276, 1.4214138
  %v5309 = vadd.f32 %v5277, 1.4214138
  %v5310 = vadd.f32 %v5278, 1.4214138
  %v5311 = vadd.f32 %v5279, 1.4214138
  %v5312 = vadd.f32 %v5280, 1.4214138
  %v5313 = vadd.f32 %v5281, 1.4214138
  %v5314 = vadd.f32 %v5282, 1.4214138
  %v5315 = vadd.f32 %v5283, 1.4214138
  %v5316 = vadd.f32 %v5284, 1.4214138
  %v5317 = vadd.f32 %v5285, 1.4214138
  %v5318 = vadd.f32 %v5286, 1.4214138
  %v5319 = vadd.f32 %v5287, 1.4214138
  %v5320 = vadd.f32 %v5288, 1.4214138
  %v5321 = vadd.f32 %v5289, 1.4214138
  %v5322 = vadd.f32 %v5290, 1.4214138
  %v5323 = vadd.f32 %v5291, 1.4214138
  %v5324 = vadd.f32 %v5292, 1.4214138
  %v5325 = vadd.f32 %v5293, 1.4214138
  %v5326 = vadd.f32 %v5294, 1.4214138
  %v5327 = vadd.f32 %v5295, 1.4214138
  %v5328 = vadd.f32 %v5296, 1.4214138
  %v5329 = vadd.f32 %v5297, 1.4214138
  %v5330 = vadd.f32 %v5298, 1.4214138
  %v5331 = vadd.f32 %v5299, 1.4214138
  %v5332 = vadd.f32 %v5300, 1.4214138
  %v5333 = vadd.f32 %v5301, 1.4214138
  %v5334 = vadd.f32 %v5302, 1.4214138
  %v5335 = vmul.f32 %v5303, %v5144
  %v5336 = vmul.f32 %v5304, %v5146
  %v5337 = vmul.f32 %v5305, %v5148
  %v5338 = vmul.f32 %v5306, %v5150
  %v5339 = vmul.f32 %v5307, %v5152
  %v5340 = vmul.f32 %v5308, %v5154
  %v5341 = vmul.f32 %v5309, %v5156
  %v5342 = vmul.f32 %v5310, %v5158
  %v5343 = vmul.f32 %v5311, %v5160
  %v5344 = vmul.f32 %v5312, %v5162
  %v5345 = vmul.f32 %v5313, %v5164
  %v5346 = vmul.f32 %v5314, %v5166
  %v5347 = vmul.f32 %v5315, %v5168
  %v5348 = vmul.f32 %v5316, %v5170
  %v5349 = vmul.f32 %v5317, %v5172
  %v5350 = vmul.f32 %v5318, %v5174
  %v5351 = vmul.f32 %v5319, %v5176
  %v5352 = vmul.f32 %v5320, %v5178
  %v5353 = vmul.f32 %v5321, %v5180
  %v5354 = vmul.f32 %v5322, %v5182
  %v5355 = vmul.f32 %v5323, %v5184
  %v5356 = vmul.f32 %v5324, %v5186
  %v5357 = vmul.f32 %v5325, %v5188
  %v5358 = vmul.f32 %v5326, %v5190
  %v5359 = vmul.f32 %v5327, %v5192
  %v5360 = vmul.f32 %v5328, %v5194
  %v5361 = vmul.f32 %v5329, %v5196
  %v5362 = vmul.f32 %v5330, %v5198
  %v5363 = vmul.f32 %v5331, %v5200
  %v5364 = vmul.f32 %v5332, %v5202
  %v5365 = vmul.f32 %v5333, %v5204
  %v5366 = vmul.f32 %v5334, %v5206
  %v5367 = vadd.f32 %v5335, -0.28449672
  %v5368 = vadd.f32 %v5336, -0.28449672
  %v5369 = vadd.f32 %v5337, -0.28449672
  %v5370 = vadd.f32 %v5338, -0.28449672
  %v5371 = vadd.f32 %v5339, -0.28449672
  %v5372 = vadd.f32 %v5340, -0.28449672
  %v5373 = vadd.f32 %v5341, -0.28449672
  %v5374 = vadd.f32 %v5342, -0.28449672
  %v5375 = vadd.f32 %v5343, -0.28449672
  %v5376 = vadd.f32 %v5344, -0.28449672
  %v5377 = vadd.f32 %v5345, -0.28449672
  %v5378 = vadd.f32 %v5346, -0.28449672
  %v5379 = vadd.f32 %v5347, -0.28449672
  %v5380 = vadd.f32 %v5348, -0.28449672
  %v5381 = vadd.f32 %v5349, -0.28449672
  %v5382 = vadd.f32 %v5350, -0.28449672
  %v5383 = vadd.f32 %v5351, -0.28449672
  %v5384 = vadd.f32 %v5352, -0.28449672
  %v5385 = vadd.f32 %v5353, -0.28449672
  %v5386 = vadd.f32 %v5354, -0.28449672
  %v5387 = vadd.f32 %v5355, -0.28449672
  %v5388 = vadd.f32 %v5356, -0.28449672
  %v5389 = vadd.f32 %v5357, -0.28449672
  %v5390 = vadd.f32 %v5358, -0.28449672
  %v5391 = vadd.f32 %v5359, -0.28449672
  %v5392 = vadd.f32 %v5360, -0.28449672
  %v5393 = vadd.f32 %v5361, -0.28449672
  %v5394 = vadd.f32 %v5362, -0.28449672
  %v5395 = vadd.f32 %v5363, -0.28449672
  %v5396 = vadd.f32 %v5364, -0.28449672
  %v5397 = vadd.f32 %v5365, -0.28449672
  %v5398 = vadd.f32 %v5366, -0.28449672
  %v5399 = vmul.f32 %v5367, %v5144
  %v5400 = vmul.f32 %v5368, %v5146
  %v5401 = vmul.f32 %v5369, %v5148
  %v5402 = vmul.f32 %v5370, %v5150
  %v5403 = vmul.f32 %v5371, %v5152
  %v5404 = vmul.f32 %v5372, %v5154
  %v5405 = vmul.f32 %v5373, %v5156
  %v5406 = vmul.f32 %v5374, %v5158
  %v5407 = vmul.f32 %v5375, %v5160
  %v5408 = vmul.f32 %v5376, %v5162
  %v5409 = vmul.f32 %v5377, %v5164
  %v5410 = vmul.f32 %v5378, %v5166
  %v5411 = vmul.f32 %v5379, %v5168
  %v5412 = vmul.f32 %v5380, %v5170
  %v5413 = vmul.f32 %v5381, %v5172
  %v5414 = vmul.f32 %v5382, %v5174
  %v5415 = vmul.f32 %v5383, %v5176
  %v5416 = vmul.f32 %v5384, %v5178
  %v5417 = vmul.f32 %v5385, %v5180
  %v5418 = vmul.f32 %v5386, %v5182
  %v5419 = vmul.f32 %v5387, %v5184
  %v5420 = vmul.f32 %v5388, %v5186
  %v5421 = vmul.f32 %v5389, %v5188
  %v5422 = vmul.f32 %v5390, %v5190
  %v5423 = vmul.f32 %v5391, %v5192
  %v5424 = vmul.f32 %v5392, %v5194
  %v5425 = vmul.f32 %v5393, %v5196
  %v5426 = vmul.f32 %v5394, %v5198
  %v5427 = vmul.f32 %v5395, %v5200
  %v5428 = vmul.f32 %v5396, %v5202
  %v5429 = vmul.f32 %v5397, %v5204
  %v5430 = vmul.f32 %v5398, %v5206
  %v5431 = vadd.f32 %v5399, 0.2548296
  %v5432 = vadd.f32 %v5400, 0.2548296
  %v5433 = vadd.f32 %v5401, 0.2548296
  %v5434 = vadd.f32 %v5402, 0.2548296
  %v5435 = vadd.f32 %v5403, 0.2548296
  %v5436 = vadd.f32 %v5404, 0.2548296
  %v5437 = vadd.f32 %v5405, 0.2548296
  %v5438 = vadd.f32 %v5406, 0.2548296
  %v5439 = vadd.f32 %v5407, 0.2548296
  %v5440 = vadd.f32 %v5408, 0.2548296
  %v5441 = vadd.f32 %v5409, 0.2548296
  %v5442 = vadd.f32 %v5410, 0.2548296
  %v5443 = vadd.f32 %v5411, 0.2548296
  %v5444 = vadd.f32 %v5412, 0.2548296
  %v5445 = vadd.f32 %v5413, 0.2548296
  %v5446 = vadd.f32 %v5414, 0.2548296
  %v5447 = vadd.f32 %v5415, 0.2548296
  %v5448 = vadd.f32 %v5416, 0.2548296
  %v5449 = vadd.f32 %v5417, 0.2548296
  %v5450 = vadd.f32 %v5418, 0.2548296
  %v5451 = vadd.f32 %v5419, 0.2548296
  %v5452 = vadd.f32 %v5420, 0.2548296
  %v5453 = vadd.f32 %v5421, 0.2548296
  %v5454 = vadd.f32 %v5422, 0.2548296
  %v5455 = vadd.f32 %v5423, 0.2548296
  %v5456 = vadd.f32 %v5424, 0.2548296
  %v5457 = vadd.f32 %v5425, 0.2548296
  %v5458 = vadd.f32 %v5426, 0.2548296
  %v5459 = vadd.f32 %v5427, 0.2548296
  %v5460 = vadd.f32 %v5428, 0.2548296
  %v5461 = vadd.f32 %v5429, 0.2548296
  %v5462 = vadd.f32 %v5430, 0.2548296
  %v5463 = vmul.f32 %v5431, %v5144
  %v5464 = vmul.f32 %v5432, %v5146
  %v5465 = vmul.f32 %v5433, %v5148
  %v5466 = vmul.f32 %v5434, %v5150
  %v5467 = vmul.f32 %v5435, %v5152
  %v5468 = vmul.f32 %v5436, %v5154
  %v5469 = vmul.f32 %v5437, %v5156
  %v5470 = vmul.f32 %v5438, %v5158
  %v5471 = vmul.f32 %v5439, %v5160
  %v5472 = vmul.f32 %v5440, %v5162
  %v5473 = vmul.f32 %v5441, %v5164
  %v5474 = vmul.f32 %v5442, %v5166
  %v5475 = vmul.f32 %v5443, %v5168
  %v5476 = vmul.f32 %v5444, %v5170
  %v5477 = vmul.f32 %v5445, %v5172
  %v5478 = vmul.f32 %v5446, %v5174
  %v5479 = vmul.f32 %v5447, %v5176
  %v5480 = vmul.f32 %v5448, %v5178
  %v5481 = vmul.f32 %v5449, %v5180
  %v5482 = vmul.f32 %v5450, %v5182
  %v5483 = vmul.f32 %v5451, %v5184
  %v5484 = vmul.f32 %v5452, %v5186
  %v5485 = vmul.f32 %v5453, %v5188
  %v5486 = vmul.f32 %v5454, %v5190
  %v5487 = vmul.f32 %v5455, %v5192
  %v5488 = vmul.f32 %v5456, %v5194
  %v5489 = vmul.f32 %v5457, %v5196
  %v5490 = vmul.f32 %v5458, %v5198
  %v5491 = vmul.f32 %v5459, %v5200
  %v5492 = vmul.f32 %v5460, %v5202
  %v5493 = vmul.f32 %v5461, %v5204
  %v5494 = vmul.f32 %v5462, %v5206
  %v5495 = vsub.f32 0.0, %v5047
  %v5496 = vsub.f32 0.0, %v5048
  %v5497 = vsub.f32 0.0, %v5049
  %v5498 = vsub.f32 0.0, %v5050
  %v5499 = vsub.f32 0.0, %v5051
  %v5500 = vsub.f32 0.0, %v5052
  %v5501 = vsub.f32 0.0, %v5053
  %v5502 = vsub.f32 0.0, %v5054
  %v5503 = vsub.f32 0.0, %v5055
  %v5504 = vsub.f32 0.0, %v5056
  %v5505 = vsub.f32 0.0, %v5057
  %v5506 = vsub.f32 0.0, %v5058
  %v5507 = vsub.f32 0.0, %v5059
  %v5508 = vsub.f32 0.0, %v5060
  %v5509 = vsub.f32 0.0, %v5061
  %v5510 = vsub.f32 0.0, %v5062
  %v5511 = vsub.f32 0.0, %v5063
  %v5512 = vsub.f32 0.0, %v5064
  %v5513 = vsub.f32 0.0, %v5065
  %v5514 = vsub.f32 0.0, %v5066
  %v5515 = vsub.f32 0.0, %v5067
  %v5516 = vsub.f32 0.0, %v5068
  %v5517 = vsub.f32 0.0, %v5069
  %v5518 = vsub.f32 0.0, %v5070
  %v5519 = vsub.f32 0.0, %v5071
  %v5520 = vsub.f32 0.0, %v5072
  %v5521 = vsub.f32 0.0, %v5073
  %v5522 = vsub.f32 0.0, %v5074
  %v5523 = vsub.f32 0.0, %v5075
  %v5524 = vsub.f32 0.0, %v5076
  %v5525 = vsub.f32 0.0, %v5077
  %v5526 = vsub.f32 0.0, %v5078
  %v5527 = vmul.f32 %v5495, %v5047
  %v5528 = vmul.f32 %v5496, %v5048
  %v5529 = vmul.f32 %v5497, %v5049
  %v5530 = vmul.f32 %v5498, %v5050
  %v5531 = vmul.f32 %v5499, %v5051
  %v5532 = vmul.f32 %v5500, %v5052
  %v5533 = vmul.f32 %v5501, %v5053
  %v5534 = vmul.f32 %v5502, %v5054
  %v5535 = vmul.f32 %v5503, %v5055
  %v5536 = vmul.f32 %v5504, %v5056
  %v5537 = vmul.f32 %v5505, %v5057
  %v5538 = vmul.f32 %v5506, %v5058
  %v5539 = vmul.f32 %v5507, %v5059
  %v5540 = vmul.f32 %v5508, %v5060
  %v5541 = vmul.f32 %v5509, %v5061
  %v5542 = vmul.f32 %v5510, %v5062
  %v5543 = vmul.f32 %v5511, %v5063
  %v5544 = vmul.f32 %v5512, %v5064
  %v5545 = vmul.f32 %v5513, %v5065
  %v5546 = vmul.f32 %v5514, %v5066
  %v5547 = vmul.f32 %v5515, %v5067
  %v5548 = vmul.f32 %v5516, %v5068
  %v5549 = vmul.f32 %v5517, %v5069
  %v5550 = vmul.f32 %v5518, %v5070
  %v5551 = vmul.f32 %v5519, %v5071
  %v5552 = vmul.f32 %v5520, %v5072
  %v5553 = vmul.f32 %v5521, %v5073
  %v5554 = vmul.f32 %v5522, %v5074
  %v5555 = vmul.f32 %v5523, %v5075
  %v5556 = vmul.f32 %v5524, %v5076
  %v5557 = vmul.f32 %v5525, %v5077
  %v5558 = vmul.f32 %v5526, %v5078
  %v5559 = vmul.f32 %v5527, 1.442695
  %v5560 = vpow.pop %v5559
  %v5561 = vmul.f32 %v5528, 1.442695
  %v5562 = vpow.pop %v5561
  %v5563 = vmul.f32 %v5529, 1.442695
  %v5564 = vpow.pop %v5563
  %v5565 = vmul.f32 %v5530, 1.442695
  %v5566 = vpow.pop %v5565
  %v5567 = vmul.f32 %v5531, 1.442695
  %v5568 = vpow.pop %v5567
  %v5569 = vmul.f32 %v5532, 1.442695
  %v5570 = vpow.pop %v5569
  %v5571 = vmul.f32 %v5533, 1.442695
  %v5572 = vpow.pop %v5571
  %v5573 = vmul.f32 %v5534, 1.442695
  %v5574 = vpow.pop %v5573
  %v5575 = vmul.f32 %v5535, 1.442695
  %v5576 = vpow.pop %v5575
  %v5577 = vmul.f32 %v5536, 1.442695
  %v5578 = vpow.pop %v5577
  %v5579 = vmul.f32 %v5537, 1.442695
  %v5580 = vpow.pop %v5579
  %v5581 = vmul.f32 %v5538, 1.442695
  %v5582 = vpow.pop %v5581
  %v5583 = vmul.f32 %v5539, 1.442695
  %v5584 = vpow.pop %v5583
  %v5585 = vmul.f32 %v5540, 1.442695
  %v5586 = vpow.pop %v5585
  %v5587 = vmul.f32 %v5541, 1.442695
  %v5588 = vpow.pop %v5587
  %v5589 = vmul.f32 %v5542, 1.442695
  %v5590 = vpow.pop %v5589
  %v5591 = vmul.f32 %v5543, 1.442695
  %v5592 = vpow.pop %v5591
  %v5593 = vmul.f32 %v5544, 1.442695
  %v5594 = vpow.pop %v5593
  %v5595 = vmul.f32 %v5545, 1.442695
  %v5596 = vpow.pop %v5595
  %v5597 = vmul.f32 %v5546, 1.442695
  %v5598 = vpow.pop %v5597
  %v5599 = vmul.f32 %v5547, 1.442695
  %v5600 = vpow.pop %v5599
  %v5601 = vmul.f32 %v5548, 1.442695
  %v5602 = vpow.pop %v5601
  %v5603 = vmul.f32 %v5549, 1.442695
  %v5604 = vpow.pop %v5603
  %v5605 = vmul.f32 %v5550, 1.442695
  %v5606 = vpow.pop %v5605
  %v5607 = vmul.f32 %v5551, 1.442695
  %v5608 = vpow.pop %v5607
  %v5609 = vmul.f32 %v5552, 1.442695
  %v5610 = vpow.pop %v5609
  %v5611 = vmul.f32 %v5553, 1.442695
  %v5612 = vpow.pop %v5611
  %v5613 = vmul.f32 %v5554, 1.442695
  %v5614 = vpow.pop %v5613
  %v5615 = vmul.f32 %v5555, 1.442695
  %v5616 = vpow.pop %v5615
  %v5617 = vmul.f32 %v5556, 1.442695
  %v5618 = vpow.pop %v5617
  %v5619 = vmul.f32 %v5557, 1.442695
  %v5620 = vpow.pop %v5619
  %v5621 = vmul.f32 %v5558, 1.442695
  %v5622 = vpow.pop %v5621
  %v5623 = vmul.f32 %v5463, %v5560
  %v5624 = vmul.f32 %v5464, %v5562
  %v5625 = vmul.f32 %v5465, %v5564
  %v5626 = vmul.f32 %v5466, %v5566
  %v5627 = vmul.f32 %v5467, %v5568
  %v5628 = vmul.f32 %v5468, %v5570
  %v5629 = vmul.f32 %v5469, %v5572
  %v5630 = vmul.f32 %v5470, %v5574
  %v5631 = vmul.f32 %v5471, %v5576
  %v5632 = vmul.f32 %v5472, %v5578
  %v5633 = vmul.f32 %v5473, %v5580
  %v5634 = vmul.f32 %v5474, %v5582
  %v5635 = vmul.f32 %v5475, %v5584
  %v5636 = vmul.f32 %v5476, %v5586
  %v5637 = vmul.f32 %v5477, %v5588
  %v5638 = vmul.f32 %v5478, %v5590
  %v5639 = vmul.f32 %v5479, %v5592
  %v5640 = vmul.f32 %v5480, %v5594
  %v5641 = vmul.f32 %v5481, %v5596
  %v5642 = vmul.f32 %v5482, %v5598
  %v5643 = vmul.f32 %v5483, %v5600
  %v5644 = vmul.f32 %v5484, %v5602
  %v5645 = vmul.f32 %v5485, %v5604
  %v5646 = vmul.f32 %v5486, %v5606
  %v5647 = vmul.f32 %v5487, %v5608
  %v5648 = vmul.f32 %v5488, %v5610
  %v5649 = vmul.f32 %v5489, %v5612
  %v5650 = vmul.f32 %v5490, %v5614
  %v5651 = vmul.f32 %v5491, %v5616
  %v5652 = vmul.f32 %v5492, %v5618
  %v5653 = vmul.f32 %v5493, %v5620
  %v5654 = vmul.f32 %v5494, %v5622
  %v5655 = vsub.f32 1.0, %v5623
  %v5656 = vsub.f32 1.0, %v5624
  %v5657 = vsub.f32 1.0, %v5625
  %v5658 = vsub.f32 1.0, %v5626
  %v5659 = vsub.f32 1.0, %v5627
  %v5660 = vsub.f32 1.0, %v5628
  %v5661 = vsub.f32 1.0, %v5629
  %v5662 = vsub.f32 1.0, %v5630
  %v5663 = vsub.f32 1.0, %v5631
  %v5664 = vsub.f32 1.0, %v5632
  %v5665 = vsub.f32 1.0, %v5633
  %v5666 = vsub.f32 1.0, %v5634
  %v5667 = vsub.f32 1.0, %v5635
  %v5668 = vsub.f32 1.0, %v5636
  %v5669 = vsub.f32 1.0, %v5637
  %v5670 = vsub.f32 1.0, %v5638
  %v5671 = vsub.f32 1.0, %v5639
  %v5672 = vsub.f32 1.0, %v5640
  %v5673 = vsub.f32 1.0, %v5641
  %v5674 = vsub.f32 1.0, %v5642
  %v5675 = vsub.f32 1.0, %v5643
  %v5676 = vsub.f32 1.0, %v5644
  %v5677 = vsub.f32 1.0, %v5645
  %v5678 = vsub.f32 1.0, %v5646
  %v5679 = vsub.f32 1.0, %v5647
  %v5680 = vsub.f32 1.0, %v5648
  %v5681 = vsub.f32 1.0, %v5649
  %v5682 = vsub.f32 1.0, %v5650
  %v5683 = vsub.f32 1.0, %v5651
  %v5684 = vsub.f32 1.0, %v5652
  %v5685 = vsub.f32 1.0, %v5653
  %v5686 = vsub.f32 1.0, %v5654
  %vm5687 = vcmp.ge.f32.partialorder %v5015, 0.0
  %vm5688 = vcmp.ge.f32.partialorder %v5016, 0.0
  %vm5689 = vcmp.ge.f32.partialorder %v5017, 0.0
  %vm5690 = vcmp.ge.f32.partialorder %v5018, 0.0
  %vm5691 = vcmp.ge.f32.partialorder %v5019, 0.0
  %vm5692 = vcmp.ge.f32.partialorder %v5020, 0.0
  %vm5693 = vcmp.ge.f32.partialorder %v5021, 0.0
  %vm5694 = vcmp.ge.f32.partialorder %v5022, 0.0
  %vm5695 = vcmp.ge.f32.partialorder %v5023, 0.0
  %vm5696 = vcmp.ge.f32.partialorder %v5024, 0.0
  %vm5697 = vcmp.ge.f32.partialorder %v5025, 0.0
  %vm5698 = vcmp.ge.f32.partialorder %v5026, 0.0
  %vm5699 = vcmp.ge.f32.partialorder %v5027, 0.0
  %vm5700 = vcmp.ge.f32.partialorder %v5028, 0.0
  %vm5701 = vcmp.ge.f32.partialorder %v5029, 0.0
  %vm5702 = vcmp.ge.f32.partialorder %v5030, 0.0
  %vm5703 = vcmp.ge.f32.partialorder %v5031, 0.0
  %vm5704 = vcmp.ge.f32.partialorder %v5032, 0.0
  %vm5705 = vcmp.ge.f32.partialorder %v5033, 0.0
  %vm5706 = vcmp.ge.f32.partialorder %v5034, 0.0
  %vm5707 = vcmp.ge.f32.partialorder %v5035, 0.0
  %vm5708 = vcmp.ge.f32.partialorder %v5036, 0.0
  %vm5709 = vcmp.ge.f32.partialorder %v5037, 0.0
  %vm5710 = vcmp.ge.f32.partialorder %v5038, 0.0
  %vm5711 = vcmp.ge.f32.partialorder %v5039, 0.0
  %vm5712 = vcmp.ge.f32.partialorder %v5040, 0.0
  %vm5713 = vcmp.ge.f32.partialorder %v5041, 0.0
  %vm5714 = vcmp.ge.f32.partialorder %v5042, 0.0
  %vm5715 = vcmp.ge.f32.partialorder %v5043, 0.0
  %vm5716 = vcmp.ge.f32.partialorder %v5044, 0.0
  %vm5717 = vcmp.ge.f32.partialorder %v5045, 0.0
  %vm5718 = vcmp.ge.f32.partialorder %v5046, 0.0
  %v5719 = vsub.f32 0.0, %v5655
  %v5720 = vsub.f32 0.0, %v5656
  %v5721 = vsub.f32 0.0, %v5657
  %v5722 = vsub.f32 0.0, %v5658
  %v5723 = vsub.f32 0.0, %v5659
  %v5724 = vsub.f32 0.0, %v5660
  %v5725 = vsub.f32 0.0, %v5661
  %v5726 = vsub.f32 0.0, %v5662
  %v5727 = vsub.f32 0.0, %v5663
  %v5728 = vsub.f32 0.0, %v5664
  %v5729 = vsub.f32 0.0, %v5665
  %v5730 = vsub.f32 0.0, %v5666
  %v5731 = vsub.f32 0.0, %v5667
  %v5732 = vsub.f32 0.0, %v5668
  %v5733 = vsub.f32 0.0, %v5669
  %v5734 = vsub.f32 0.0, %v5670
  %v5735 = vsub.f32 0.0, %v5671
  %v5736 = vsub.f32 0.0, %v5672
  %v5737 = vsub.f32 0.0, %v5673
  %v5738 = vsub.f32 0.0, %v5674
  %v5739 = vsub.f32 0.0, %v5675
  %v5740 = vsub.f32 0.0, %v5676
  %v5741 = vsub.f32 0.0, %v5677
  %v5742 = vsub.f32 0.0, %v5678
  %v5743 = vsub.f32 0.0, %v5679
  %v5744 = vsub.f32 0.0, %v5680
  %v5745 = vsub.f32 0.0, %v5681
  %v5746 = vsub.f32 0.0, %v5682
  %v5747 = vsub.f32 0.0, %v5683
  %v5748 = vsub.f32 0.0, %v5684
  %v5749 = vsub.f32 0.0, %v5685
  %v5750 = vsub.f32 0.0, %v5686
  %v5751 = vsel %vm5687, %v5655, %v5719
  %v5752 = vsel %vm5688, %v5656, %v5720
  %v5753 = vsel %vm5689, %v5657, %v5721
  %v5754 = vsel %vm5690, %v5658, %v5722
  %v5755 = vsel %vm5691, %v5659, %v5723
  %v5756 = vsel %vm5692, %v5660, %v5724
  %v5757 = vsel %vm5693, %v5661, %v5725
  %v5758 = vsel %vm5694, %v5662, %v5726
  %v5759 = vsel %vm5695, %v5663, %v5727
  %v5760 = vsel %vm5696, %v5664, %v5728
  %v5761 = vsel %vm5697, %v5665, %v5729
  %v5762 = vsel %vm5698, %v5666, %v5730
  %v5763 = vsel %vm5699, %v5667, %v5731
  %v5764 = vsel %vm5700, %v5668, %v5732
  %v5765 = vsel %vm5701, %v5669, %v5733
  %v5766 = vsel %vm5702, %v5670, %v5734
  %v5767 = vsel %vm5703, %v5671, %v5735
  %v5768 = vsel %vm5704, %v5672, %v5736
  %v5769 = vsel %vm5705, %v5673, %v5737
  %v5770 = vsel %vm5706, %v5674, %v5738
  %v5771 = vsel %vm5707, %v5675, %v5739
  %v5772 = vsel %vm5708, %v5676, %v5740
  %v5773 = vsel %vm5709, %v5677, %v5741
  %v5774 = vsel %vm5710, %v5678, %v5742
  %v5775 = vsel %vm5711, %v5679, %v5743
  %v5776 = vsel %vm5712, %v5680, %v5744
  %v5777 = vsel %vm5713, %v5681, %v5745
  %v5778 = vsel %vm5714, %v5682, %v5746
  %v5779 = vsel %vm5715, %v5683, %v5747
  %v5780 = vsel %vm5716, %v5684, %v5748
  %v5781 = vsel %vm5717, %v5685, %v5749
  %v5782 = vsel %vm5718, %v5686, %v5750
  %v5783 = vadd.f32 %v5751, 1.0
  %v5784 = vadd.f32 %v5752, 1.0
  %v5785 = vadd.f32 %v5753, 1.0
  %v5786 = vadd.f32 %v5754, 1.0
  %v5787 = vadd.f32 %v5755, 1.0
  %v5788 = vadd.f32 %v5756, 1.0
  %v5789 = vadd.f32 %v5757, 1.0
  %v5790 = vadd.f32 %v5758, 1.0
  %v5791 = vadd.f32 %v5759, 1.0
  %v5792 = vadd.f32 %v5760, 1.0
  %v5793 = vadd.f32 %v5761, 1.0
  %v5794 = vadd.f32 %v5762, 1.0
  %v5795 = vadd.f32 %v5763, 1.0
  %v5796 = vadd.f32 %v5764, 1.0
  %v5797 = vadd.f32 %v5765, 1.0
  %v5798 = vadd.f32 %v5766, 1.0
  %v5799 = vadd.f32 %v5767, 1.0
  %v5800 = vadd.f32 %v5768, 1.0
  %v5801 = vadd.f32 %v5769, 1.0
  %v5802 = vadd.f32 %v5770, 1.0
  %v5803 = vadd.f32 %v5771, 1.0
  %v5804 = vadd.f32 %v5772, 1.0
  %v5805 = vadd.f32 %v5773, 1.0
  %v5806 = vadd.f32 %v5774, 1.0
  %v5807 = vadd.f32 %v5775, 1.0
  %v5808 = vadd.f32 %v5776, 1.0
  %v5809 = vadd.f32 %v5777, 1.0
  %v5810 = vadd.f32 %v5778, 1.0
  %v5811 = vadd.f32 %v5779, 1.0
  %v5812 = vadd.f32 %v5780, 1.0
  %v5813 = vadd.f32 %v5781, 1.0
  %v5814 = vadd.f32 %v5782, 1.0
  %v5815 = vmul.f32 %v4983, %v5783
  %v5816 = vmul.f32 %v4984, %v5784
  %v5817 = vmul.f32 %v4985, %v5785
  %v5818 = vmul.f32 %v4986, %v5786
  %v5819 = vmul.f32 %v4987, %v5787
  %v5820 = vmul.f32 %v4988, %v5788
  %v5821 = vmul.f32 %v4989, %v5789
  %v5822 = vmul.f32 %v4990, %v5790
  %v5823 = vmul.f32 %v4991, %v5791
  %v5824 = vmul.f32 %v4992, %v5792
  %v5825 = vmul.f32 %v4993, %v5793
  %v5826 = vmul.f32 %v4994, %v5794
  %v5827 = vmul.f32 %v4995, %v5795
  %v5828 = vmul.f32 %v4996, %v5796
  %v5829 = vmul.f32 %v4997, %v5797
  %v5830 = vmul.f32 %v4998, %v5798
  %v5831 = vmul.f32 %v4999, %v5799
  %v5832 = vmul.f32 %v5000, %v5800
  %v5833 = vmul.f32 %v5001, %v5801
  %v5834 = vmul.f32 %v5002, %v5802
  %v5835 = vmul.f32 %v5003, %v5803
  %v5836 = vmul.f32 %v5004, %v5804
  %v5837 = vmul.f32 %v5005, %v5805
  %v5838 = vmul.f32 %v5006, %v5806
  %v5839 = vmul.f32 %v5007, %v5807
  %v5840 = vmul.f32 %v5008, %v5808
  %v5841 = vmul.f32 %v5009, %v5809
  %v5842 = vmul.f32 %v5010, %v5810
  %v5843 = vmul.f32 %v5011, %v5811
  %v5844 = vmul.f32 %v5012, %v5812
  %v5845 = vmul.f32 %v5013, %v5813
  %v5846 = vmul.f32 %v5014, %v5814
  %v5848 = vlaneseq
  %v5849 = vshrl.u32 %v5848, 7
  %v5850 = vsub.s32 0, %v5849
  %v5851 = vrot.slane %v3583, %v5850
  %5853 = vmatprep.subr.mxu0 0.0
  %v5854 = vand.u32 %v3582, 4294901760
  %5855 = vmatpush1.msra.mxu0 %v5854
  %5856 = vmatprep.subr.mxu0 0.0
  %v5857 = vand.u32 %v3581, 4294901760
  %5858 = vmatpush1.msra.mxu0 %v5857
  %5859 = vmatprep.subr.mxu0 0.0
  %v5860 = vand.u32 %v3580, 4294901760
  %5861 = vmatpush1.msra.mxu0 %v5860
  %5862 = vmatprep.subr.mxu0 0.0
  %v5863 = vand.u32 %v3579, 4294901760
  %5864 = vmatpush1.msra.mxu0 %v5863
  %5865 = vmatprep.subr.mxu0 0.0
  %v5866 = vand.u32 %v3578, 4294901760
  %5867 = vmatpush1.msra.mxu0 %v5866
  %5868 = vmatprep.subr.mxu0 0.0
  %v5869 = vand.u32 %v3577, 4294901760
  %5870 = vmatpush1.msra.mxu0 %v5869
  %5871 = vmatprep.subr.mxu0 0.0
  %v5872 = vand.u32 %v3576, 4294901760
  %5873 = vmatpush1.msra.mxu0 %v5872
  %5874 = vmatprep.subr.mxu0 0.0
  %v5875 = vand.u32 %v3575, 4294901760
  %5876 = vmatpush1.msra.mxu0 %v5875
  %5877 = vmatprep.subr.mxu0 0.0
  %v5878 = vand.u32 %v3574, 4294901760
  %5879 = vmatpush1.msra.mxu0 %v5878
  %5880 = vmatprep.subr.mxu0 0.0
  %v5881 = vand.u32 %v3573, 4294901760
  %5882 = vmatpush1.msra.mxu0 %v5881
  %5883 = vmatprep.subr.mxu0 0.0
  %v5884 = vand.u32 %v3572, 4294901760
  %5885 = vmatpush1.msra.mxu0 %v5884
  %5886 = vmatprep.subr.mxu0 0.0
  %v5887 = vand.u32 %v3571, 4294901760
  %5888 = vmatpush1.msra.mxu0 %v5887
  %5889 = vmatprep.subr.mxu0 0.0
  %v5890 = vand.u32 %v3570, 4294901760
  %5891 = vmatpush1.msra.mxu0 %v5890
  %5892 = vmatprep.subr.mxu0 0.0
  %v5893 = vand.u32 %v3569, 4294901760
  %5894 = vmatpush1.msra.mxu0 %v5893
  %5895 = vmatprep.subr.mxu0 0.0
  %v5896 = vand.u32 %v3568, 4294901760
  %5897 = vmatpush1.msra.mxu0 %v5896
  %5898 = vmatprep.subr.mxu0 0.0
  %v5899 = vand.u32 %v3567, 4294901760
  %5900 = vmatpush1.msra.mxu0 %v5899
  %5901 = vmatprep.subr.mxu0 0.0
  %5902 = vmatpush2.msra.mxu0 0.0
  %5903 = vmatprep.subr.mxu0 0.0
  %5904 = vmatpush2.msra.mxu0 0.0
  %5905 = vmatprep.subr.mxu0 0.0
  %5906 = vmatpush2.msra.mxu0 0.0
  %5907 = vmatprep.subr.mxu0 0.0
  %5908 = vmatpush2.msra.mxu0 0.0
  %5909 = vmatprep.subr.mxu0 0.0
  %5910 = vmatpush2.msra.mxu0 0.0
  %5911 = vmatprep.subr.mxu0 0.0
  %5912 = vmatpush2.msra.mxu0 0.0
  %5913 = vmatprep.subr.mxu0 0.0
  %5914 = vmatpush2.msra.mxu0 0.0
  %5915 = vmatprep.subr.mxu0 0.0
  %5916 = vmatpush2.msra.mxu0 0.0
  %5917 = vmatprep.subr.mxu0 0.0
  %5918 = vmatpush2.msra.mxu0 0.0
  %5919 = vmatprep.subr.mxu0 0.0
  %5920 = vmatpush2.msra.mxu0 0.0
  %5921 = vmatprep.subr.mxu0 0.0
  %5922 = vmatpush2.msra.mxu0 0.0
  %5923 = vmatprep.subr.mxu0 0.0
  %5924 = vmatpush2.msra.mxu0 0.0
  %5925 = vmatprep.subr.mxu0 0.0
  %5926 = vmatpush2.msra.mxu0 0.0
  %5927 = vmatprep.subr.mxu0 0.0
  %5928 = vmatpush2.msra.mxu0 0.0
  %5929 = vmatprep.subr.mxu0 0.0
  %5930 = vmatpush2.msra.mxu0 0.0
  %5931 = vmatprep.subr.mxu0 0.0
  %5932 = vmatpush2.msra.mxu0 0.0
  %5933 = vmatprep.mubr.f32.mxu0 0.0
  %v5934 = vand.u32 %v5815, 4294901760
  %v5935 = vsub.f32 %v5815, %v5934
  %v5936 = vand.u32 %v5935, 4294901760
  %v5937 = vsub.f32 %v5935, %v5936
  %v5938 = vand.u32 %v5937, 4294901760
  %5939 = vmatmul.mubr.f32.gmra.mxu0 %v5938
  %v5940 = vpop.f32.mrf.mxu0
  %v5941 = vadd.f32 %v5851, %v5940
  %v5942 = vpop.f32.mrf.mxu0
  %5943 = vmatprep.mubr.f32.mxu0 0.0
  %v5944 = vand.u32 %v5816, 4294901760
  %v5945 = vsub.f32 %v5816, %v5944
  %v5946 = vand.u32 %v5945, 4294901760
  %v5947 = vsub.f32 %v5945, %v5946
  %v5948 = vand.u32 %v5947, 4294901760
  %5949 = vmatmul.mubr.f32.gmra.mxu0 %v5948
  %v5950 = vpop.f32.mrf.mxu0
  %v5951 = vadd.f32 %v5851, %v5950
  %v5952 = vpop.f32.mrf.mxu0
  %5953 = vmatprep.mubr.f32.mxu0 0.0
  %v5954 = vand.u32 %v5817, 4294901760
  %v5955 = vsub.f32 %v5817, %v5954
  %v5956 = vand.u32 %v5955, 4294901760
  %v5957 = vsub.f32 %v5955, %v5956
  %v5958 = vand.u32 %v5957, 4294901760
  %5959 = vmatmul.mubr.f32.gmra.mxu0 %v5958
  %v5960 = vpop.f32.mrf.mxu0
  %v5961 = vadd.f32 %v5851, %v5960
  %v5962 = vpop.f32.mrf.mxu0
  %5963 = vmatprep.mubr.f32.mxu0 0.0
  %v5964 = vand.u32 %v5818, 4294901760
  %v5965 = vsub.f32 %v5818, %v5964
  %v5966 = vand.u32 %v5965, 4294901760
  %v5967 = vsub.f32 %v5965, %v5966
  %v5968 = vand.u32 %v5967, 4294901760
  %5969 = vmatmul.mubr.f32.gmra.mxu0 %v5968
  %v5970 = vpop.f32.mrf.mxu0
  %v5971 = vadd.f32 %v5851, %v5970
  %v5972 = vpop.f32.mrf.mxu0
  %5973 = vmatprep.mubr.f32.mxu0 0.0
  %v5974 = vand.u32 %v5819, 4294901760
  %v5975 = vsub.f32 %v5819, %v5974
  %v5976 = vand.u32 %v5975, 4294901760
  %v5977 = vsub.f32 %v5975, %v5976
  %v5978 = vand.u32 %v5977, 4294901760
  %5979 = vmatmul.mubr.f32.gmra.mxu0 %v5978
  %v5980 = vpop.f32.mrf.mxu0
  %v5981 = vadd.f32 %v5851, %v5980
  %v5982 = vpop.f32.mrf.mxu0
  %5983 = vmatprep.mubr.f32.mxu0 0.0
  %v5984 = vand.u32 %v5820, 4294901760
  %v5985 = vsub.f32 %v5820, %v5984
  %v5986 = vand.u32 %v5985, 4294901760
  %v5987 = vsub.f32 %v5985, %v5986
  %v5988 = vand.u32 %v5987, 4294901760
  %5989 = vmatmul.mubr.f32.gmra.mxu0 %v5988
  %v5990 = vpop.f32.mrf.mxu0
  %v5991 = vadd.f32 %v5851, %v5990
  %v5992 = vpop.f32.mrf.mxu0
  %5993 = vmatprep.mubr.f32.mxu0 0.0
  %v5994 = vand.u32 %v5821, 4294901760
  %v5995 = vsub.f32 %v5821, %v5994
  %v5996 = vand.u32 %v5995, 4294901760
  %v5997 = vsub.f32 %v5995, %v5996
  %v5998 = vand.u32 %v5997, 4294901760
  %5999 = vmatmul.mubr.f32.gmra.mxu0 %v5998
  %v6000 = vpop.f32.mrf.mxu0
  %v6001 = vadd.f32 %v5851, %v6000
  %v6002 = vpop.f32.mrf.mxu0
  %6003 = vmatprep.mubr.f32.mxu0 0.0
  %v6004 = vand.u32 %v5822, 4294901760
  %v6005 = vsub.f32 %v5822, %v6004
  %v6006 = vand.u32 %v6005, 4294901760
  %v6007 = vsub.f32 %v6005, %v6006
  %v6008 = vand.u32 %v6007, 4294901760
  %6009 = vmatmul.mubr.f32.gmra.mxu0 %v6008
  %v6010 = vpop.f32.mrf.mxu0
  %v6011 = vadd.f32 %v5851, %v6010
  %v6012 = vpop.f32.mrf.mxu0
  %6013 = vmatprep.mubr.f32.mxu0 0.0
  %v6014 = vand.u32 %v5823, 4294901760
  %v6015 = vsub.f32 %v5823, %v6014
  %v6016 = vand.u32 %v6015, 4294901760
  %v6017 = vsub.f32 %v6015, %v6016
  %v6018 = vand.u32 %v6017, 4294901760
  %6019 = vmatmul.mubr.f32.gmra.mxu0 %v6018
  %v6020 = vpop.f32.mrf.mxu0
  %v6021 = vadd.f32 %v5851, %v6020
  %v6022 = vpop.f32.mrf.mxu0
  %6023 = vmatprep.mubr.f32.mxu0 0.0
  %v6024 = vand.u32 %v5824, 4294901760
  %v6025 = vsub.f32 %v5824, %v6024
  %v6026 = vand.u32 %v6025, 4294901760
  %v6027 = vsub.f32 %v6025, %v6026
  %v6028 = vand.u32 %v6027, 4294901760
  %6029 = vmatmul.mubr.f32.gmra.mxu0 %v6028
  %v6030 = vpop.f32.mrf.mxu0
  %v6031 = vadd.f32 %v5851, %v6030
  %v6032 = vpop.f32.mrf.mxu0
  %6033 = vmatprep.mubr.f32.mxu0 0.0
  %v6034 = vand.u32 %v5825, 4294901760
  %v6035 = vsub.f32 %v5825, %v6034
  %v6036 = vand.u32 %v6035, 4294901760
  %v6037 = vsub.f32 %v6035, %v6036
  %v6038 = vand.u32 %v6037, 4294901760
  %6039 = vmatmul.mubr.f32.gmra.mxu0 %v6038
  %v6040 = vpop.f32.mrf.mxu0
  %v6041 = vadd.f32 %v5851, %v6040
  %v6042 = vpop.f32.mrf.mxu0
  %6043 = vmatprep.mubr.f32.mxu0 0.0
  %v6044 = vand.u32 %v5826, 4294901760
  %v6045 = vsub.f32 %v5826, %v6044
  %v6046 = vand.u32 %v6045, 4294901760
  %v6047 = vsub.f32 %v6045, %v6046
  %v6048 = vand.u32 %v6047, 4294901760
  %6049 = vmatmul.mubr.f32.gmra.mxu0 %v6048
  %v6050 = vpop.f32.mrf.mxu0
  %v6051 = vadd.f32 %v5851, %v6050
  %v6052 = vpop.f32.mrf.mxu0
  %6053 = vmatprep.mubr.f32.mxu0 0.0
  %v6054 = vand.u32 %v5827, 4294901760
  %v6055 = vsub.f32 %v5827, %v6054
  %v6056 = vand.u32 %v6055, 4294901760
  %v6057 = vsub.f32 %v6055, %v6056
  %v6058 = vand.u32 %v6057, 4294901760
  %6059 = vmatmul.mubr.f32.gmra.mxu0 %v6058
  %v6060 = vpop.f32.mrf.mxu0
  %v6061 = vadd.f32 %v5851, %v6060
  %v6062 = vpop.f32.mrf.mxu0
  %6063 = vmatprep.mubr.f32.mxu0 0.0
  %v6064 = vand.u32 %v5828, 4294901760
  %v6065 = vsub.f32 %v5828, %v6064
  %v6066 = vand.u32 %v6065, 4294901760
  %v6067 = vsub.f32 %v6065, %v6066
  %v6068 = vand.u32 %v6067, 4294901760
  %6069 = vmatmul.mubr.f32.gmra.mxu0 %v6068
  %v6070 = vpop.f32.mrf.mxu0
  %v6071 = vadd.f32 %v5851, %v6070
  %v6072 = vpop.f32.mrf.mxu0
  %6073 = vmatprep.mubr.f32.mxu0 0.0
  %v6074 = vand.u32 %v5829, 4294901760
  %v6075 = vsub.f32 %v5829, %v6074
  %v6076 = vand.u32 %v6075, 4294901760
  %v6077 = vsub.f32 %v6075, %v6076
  %v6078 = vand.u32 %v6077, 4294901760
  %6079 = vmatmul.mubr.f32.gmra.mxu0 %v6078
  %v6080 = vpop.f32.mrf.mxu0
  %v6081 = vadd.f32 %v5851, %v6080
  %v6082 = vpop.f32.mrf.mxu0
  %6083 = vmatprep.mubr.f32.mxu0 0.0
  %v6084 = vand.u32 %v5830, 4294901760
  %v6085 = vsub.f32 %v5830, %v6084
  %v6086 = vand.u32 %v6085, 4294901760
  %v6087 = vsub.f32 %v6085, %v6086
  %v6088 = vand.u32 %v6087, 4294901760
  %6089 = vmatmul.mubr.f32.gmra.mxu0 %v6088
  %v6090 = vpop.f32.mrf.mxu0
  %v6091 = vadd.f32 %v5851, %v6090
  %v6092 = vpop.f32.mrf.mxu0
  %6093 = vmatprep.mubr.f32.mxu0 0.0
  %v6094 = vand.u32 %v5831, 4294901760
  %v6095 = vsub.f32 %v5831, %v6094
  %v6096 = vand.u32 %v6095, 4294901760
  %v6097 = vsub.f32 %v6095, %v6096
  %v6098 = vand.u32 %v6097, 4294901760
  %6099 = vmatmul.mubr.f32.gmra.mxu0 %v6098
  %v6100 = vpop.f32.mrf.mxu0
  %v6101 = vadd.f32 %v5851, %v6100
  %v6102 = vpop.f32.mrf.mxu0
  %6103 = vmatprep.mubr.f32.mxu0 0.0
  %v6104 = vand.u32 %v5832, 4294901760
  %v6105 = vsub.f32 %v5832, %v6104
  %v6106 = vand.u32 %v6105, 4294901760
  %v6107 = vsub.f32 %v6105, %v6106
  %v6108 = vand.u32 %v6107, 4294901760
  %6109 = vmatmul.mubr.f32.gmra.mxu0 %v6108
  %v6110 = vpop.f32.mrf.mxu0
  %v6111 = vadd.f32 %v5851, %v6110
  %v6112 = vpop.f32.mrf.mxu0
  %6113 = vmatprep.mubr.f32.mxu0 0.0
  %v6114 = vand.u32 %v5833, 4294901760
  %v6115 = vsub.f32 %v5833, %v6114
  %v6116 = vand.u32 %v6115, 4294901760
  %v6117 = vsub.f32 %v6115, %v6116
  %v6118 = vand.u32 %v6117, 4294901760
  %6119 = vmatmul.mubr.f32.gmra.mxu0 %v6118
  %v6120 = vpop.f32.mrf.mxu0
  %v6121 = vadd.f32 %v5851, %v6120
  %v6122 = vpop.f32.mrf.mxu0
  %6123 = vmatprep.mubr.f32.mxu0 0.0
  %v6124 = vand.u32 %v5834, 4294901760
  %v6125 = vsub.f32 %v5834, %v6124
  %v6126 = vand.u32 %v6125, 4294901760
  %v6127 = vsub.f32 %v6125, %v6126
  %v6128 = vand.u32 %v6127, 4294901760
  %6129 = vmatmul.mubr.f32.gmra.mxu0 %v6128
  %v6130 = vpop.f32.mrf.mxu0
  %v6131 = vadd.f32 %v5851, %v6130
  %v6132 = vpop.f32.mrf.mxu0
  %6133 = vmatprep.mubr.f32.mxu0 0.0
  %v6134 = vand.u32 %v5835, 4294901760
  %v6135 = vsub.f32 %v5835, %v6134
  %v6136 = vand.u32 %v6135, 4294901760
  %v6137 = vsub.f32 %v6135, %v6136
  %v6138 = vand.u32 %v6137, 4294901760
  %6139 = vmatmul.mubr.f32.gmra.mxu0 %v6138
  %v6140 = vpop.f32.mrf.mxu0
  %v6141 = vadd.f32 %v5851, %v6140
  %v6142 = vpop.f32.mrf.mxu0
  %6143 = vmatprep.mubr.f32.mxu0 0.0
  %v6144 = vand.u32 %v5836, 4294901760
  %v6145 = vsub.f32 %v5836, %v6144
  %v6146 = vand.u32 %v6145, 4294901760
  %v6147 = vsub.f32 %v6145, %v6146
  %v6148 = vand.u32 %v6147, 4294901760
  %6149 = vmatmul.mubr.f32.gmra.mxu0 %v6148
  %v6150 = vpop.f32.mrf.mxu0
  %v6151 = vadd.f32 %v5851, %v6150
  %v6152 = vpop.f32.mrf.mxu0
  %6153 = vmatprep.mubr.f32.mxu0 0.0
  %v6154 = vand.u32 %v5837, 4294901760
  %v6155 = vsub.f32 %v5837, %v6154
  %v6156 = vand.u32 %v6155, 4294901760
  %v6157 = vsub.f32 %v6155, %v6156
  %v6158 = vand.u32 %v6157, 4294901760
  %6159 = vmatmul.mubr.f32.gmra.mxu0 %v6158
  %v6160 = vpop.f32.mrf.mxu0
  %v6161 = vadd.f32 %v5851, %v6160
  %v6162 = vpop.f32.mrf.mxu0
  %6163 = vmatprep.mubr.f32.mxu0 0.0
  %v6164 = vand.u32 %v5838, 4294901760
  %v6165 = vsub.f32 %v5838, %v6164
  %v6166 = vand.u32 %v6165, 4294901760
  %v6167 = vsub.f32 %v6165, %v6166
  %v6168 = vand.u32 %v6167, 4294901760
  %6169 = vmatmul.mubr.f32.gmra.mxu0 %v6168
  %v6170 = vpop.f32.mrf.mxu0
  %v6171 = vadd.f32 %v5851, %v6170
  %v6172 = vpop.f32.mrf.mxu0
  %6173 = vmatprep.mubr.f32.mxu0 0.0
  %v6174 = vand.u32 %v5839, 4294901760
  %v6175 = vsub.f32 %v5839, %v6174
  %v6176 = vand.u32 %v6175, 4294901760
  %v6177 = vsub.f32 %v6175, %v6176
  %v6178 = vand.u32 %v6177, 4294901760
  %6179 = vmatmul.mubr.f32.gmra.mxu0 %v6178
  %v6180 = vpop.f32.mrf.mxu0
  %v6181 = vadd.f32 %v5851, %v6180
  %v6182 = vpop.f32.mrf.mxu0
  %6183 = vmatprep.mubr.f32.mxu0 0.0
  %v6184 = vand.u32 %v5840, 4294901760
  %v6185 = vsub.f32 %v5840, %v6184
  %v6186 = vand.u32 %v6185, 4294901760
  %v6187 = vsub.f32 %v6185, %v6186
  %v6188 = vand.u32 %v6187, 4294901760
  %6189 = vmatmul.mubr.f32.gmra.mxu0 %v6188
  %v6190 = vpop.f32.mrf.mxu0
  %v6191 = vadd.f32 %v5851, %v6190
  %v6192 = vpop.f32.mrf.mxu0
  %6193 = vmatprep.mubr.f32.mxu0 0.0
  %v6194 = vand.u32 %v5841, 4294901760
  %v6195 = vsub.f32 %v5841, %v6194
  %v6196 = vand.u32 %v6195, 4294901760
  %v6197 = vsub.f32 %v6195, %v6196
  %v6198 = vand.u32 %v6197, 4294901760
  %6199 = vmatmul.mubr.f32.gmra.mxu0 %v6198
  %v6200 = vpop.f32.mrf.mxu0
  %v6201 = vadd.f32 %v5851, %v6200
  %v6202 = vpop.f32.mrf.mxu0
  %6203 = vmatprep.mubr.f32.mxu0 0.0
  %v6204 = vand.u32 %v5842, 4294901760
  %v6205 = vsub.f32 %v5842, %v6204
  %v6206 = vand.u32 %v6205, 4294901760
  %v6207 = vsub.f32 %v6205, %v6206
  %v6208 = vand.u32 %v6207, 4294901760
  %6209 = vmatmul.mubr.f32.gmra.mxu0 %v6208
  %v6210 = vpop.f32.mrf.mxu0
  %v6211 = vadd.f32 %v5851, %v6210
  %v6212 = vpop.f32.mrf.mxu0
  %6213 = vmatprep.mubr.f32.mxu0 0.0
  %v6214 = vand.u32 %v5843, 4294901760
  %v6215 = vsub.f32 %v5843, %v6214
  %v6216 = vand.u32 %v6215, 4294901760
  %v6217 = vsub.f32 %v6215, %v6216
  %v6218 = vand.u32 %v6217, 4294901760
  %6219 = vmatmul.mubr.f32.gmra.mxu0 %v6218
  %v6220 = vpop.f32.mrf.mxu0
  %v6221 = vadd.f32 %v5851, %v6220
  %v6222 = vpop.f32.mrf.mxu0
  %6223 = vmatprep.mubr.f32.mxu0 0.0
  %v6224 = vand.u32 %v5844, 4294901760
  %v6225 = vsub.f32 %v5844, %v6224
  %v6226 = vand.u32 %v6225, 4294901760
  %v6227 = vsub.f32 %v6225, %v6226
  %v6228 = vand.u32 %v6227, 4294901760
  %6229 = vmatmul.mubr.f32.gmra.mxu0 %v6228
  %v6230 = vpop.f32.mrf.mxu0
  %v6231 = vadd.f32 %v5851, %v6230
  %v6232 = vpop.f32.mrf.mxu0
  %6233 = vmatprep.mubr.f32.mxu0 0.0
  %v6234 = vand.u32 %v5845, 4294901760
  %v6235 = vsub.f32 %v5845, %v6234
  %v6236 = vand.u32 %v6235, 4294901760
  %v6237 = vsub.f32 %v6235, %v6236
  %v6238 = vand.u32 %v6237, 4294901760
  %6239 = vmatmul.mubr.f32.gmra.mxu0 %v6238
  %v6240 = vpop.f32.mrf.mxu0
  %v6241 = vadd.f32 %v5851, %v6240
  %v6242 = vpop.f32.mrf.mxu0
  %6243 = vmatprep.mubr.f32.mxu0 0.0
  %v6244 = vand.u32 %v5846, 4294901760
  %v6245 = vsub.f32 %v5846, %v6244
  %v6246 = vand.u32 %v6245, 4294901760
  %v6247 = vsub.f32 %v6245, %v6246
  %v6248 = vand.u32 %v6247, 4294901760
  %6249 = vmatmul.mubr.f32.gmra.mxu0 %v6248
  %v6250 = vpop.f32.mrf.mxu0
  %v6251 = vadd.f32 %v5851, %v6250
  %v6252 = vpop.f32.mrf.mxu0
  %6253 = vdwg.mxu0
  %6254 = vmatprep.subr.mxu0 0.0
  %v6255 = vand.u32 %v3582, 4294901760
  %v6256 = vsub.f32 %v3582, %v6255
  %v6257 = vand.u32 %v6256, 4294901760
  %v6258 = vsub.f32 %v6256, %v6257
  %v6259 = vand.u32 %v6258, 4294901760
  %6260 = vmatpush1.msra.mxu0 %v6259
  %6261 = vmatprep.subr.mxu0 0.0
  %v6262 = vand.u32 %v3581, 4294901760
  %v6263 = vsub.f32 %v3581, %v6262
  %v6264 = vand.u32 %v6263, 4294901760
  %v6265 = vsub.f32 %v6263, %v6264
  %v6266 = vand.u32 %v6265, 4294901760
  %6267 = vmatpush1.msra.mxu0 %v6266
  %6268 = vmatprep.subr.mxu0 0.0
  %v6269 = vand.u32 %v3580, 4294901760
  %v6270 = vsub.f32 %v3580, %v6269
  %v6271 = vand.u32 %v6270, 4294901760
  %v6272 = vsub.f32 %v6270, %v6271
  %v6273 = vand.u32 %v6272, 4294901760
  %6274 = vmatpush1.msra.mxu0 %v6273
  %6275 = vmatprep.subr.mxu0 0.0
  %v6276 = vand.u32 %v3579, 4294901760
  %v6277 = vsub.f32 %v3579, %v6276
  %v6278 = vand.u32 %v6277, 4294901760
  %v6279 = vsub.f32 %v6277, %v6278
  %v6280 = vand.u32 %v6279, 4294901760
  %6281 = vmatpush1.msra.mxu0 %v6280
  %6282 = vmatprep.subr.mxu0 0.0
  %v6283 = vand.u32 %v3578, 4294901760
  %v6284 = vsub.f32 %v3578, %v6283
  %v6285 = vand.u32 %v6284, 4294901760
  %v6286 = vsub.f32 %v6284, %v6285
  %v6287 = vand.u32 %v6286, 4294901760
  %6288 = vmatpush1.msra.mxu0 %v6287
  %6289 = vmatprep.subr.mxu0 0.0
  %v6290 = vand.u32 %v3577, 4294901760
  %v6291 = vsub.f32 %v3577, %v6290
  %v6292 = vand.u32 %v6291, 4294901760
  %v6293 = vsub.f32 %v6291, %v6292
  %v6294 = vand.u32 %v6293, 4294901760
  %6295 = vmatpush1.msra.mxu0 %v6294
  %6296 = vmatprep.subr.mxu0 0.0
  %v6297 = vand.u32 %v3576, 4294901760
  %v6298 = vsub.f32 %v3576, %v6297
  %v6299 = vand.u32 %v6298, 4294901760
  %v6300 = vsub.f32 %v6298, %v6299
  %v6301 = vand.u32 %v6300, 4294901760
  %6302 = vmatpush1.msra.mxu0 %v6301
  %6303 = vmatprep.subr.mxu0 0.0
  %v6304 = vand.u32 %v3575, 4294901760
  %v6305 = vsub.f32 %v3575, %v6304
  %v6306 = vand.u32 %v6305, 4294901760
  %v6307 = vsub.f32 %v6305, %v6306
  %v6308 = vand.u32 %v6307, 4294901760
  %6309 = vmatpush1.msra.mxu0 %v6308
  %6310 = vmatprep.subr.mxu0 0.0
  %v6311 = vand.u32 %v3574, 4294901760
  %v6312 = vsub.f32 %v3574, %v6311
  %v6313 = vand.u32 %v6312, 4294901760
  %v6314 = vsub.f32 %v6312, %v6313
  %v6315 = vand.u32 %v6314, 4294901760
  %6316 = vmatpush1.msra.mxu0 %v6315
  %6317 = vmatprep.subr.mxu0 0.0
  %v6318 = vand.u32 %v3573, 4294901760
  %v6319 = vsub.f32 %v3573, %v6318
  %v6320 = vand.u32 %v6319, 4294901760
  %v6321 = vsub.f32 %v6319, %v6320
  %v6322 = vand.u32 %v6321, 4294901760
  %6323 = vmatpush1.msra.mxu0 %v6322
  %6324 = vmatprep.subr.mxu0 0.0
  %v6325 = vand.u32 %v3572, 4294901760
  %v6326 = vsub.f32 %v3572, %v6325
  %v6327 = vand.u32 %v6326, 4294901760
  %v6328 = vsub.f32 %v6326, %v6327
  %v6329 = vand.u32 %v6328, 4294901760
  %6330 = vmatpush1.msra.mxu0 %v6329
  %6331 = vmatprep.subr.mxu0 0.0
  %v6332 = vand.u32 %v3571, 4294901760
  %v6333 = vsub.f32 %v3571, %v6332
  %v6334 = vand.u32 %v6333, 4294901760
  %v6335 = vsub.f32 %v6333, %v6334
  %v6336 = vand.u32 %v6335, 4294901760
  %6337 = vmatpush1.msra.mxu0 %v6336
  %6338 = vmatprep.subr.mxu0 0.0
  %v6339 = vand.u32 %v3570, 4294901760
  %v6340 = vsub.f32 %v3570, %v6339
  %v6341 = vand.u32 %v6340, 4294901760
  %v6342 = vsub.f32 %v6340, %v6341
  %v6343 = vand.u32 %v6342, 4294901760
  %6344 = vmatpush1.msra.mxu0 %v6343
  %6345 = vmatprep.subr.mxu0 0.0
  %v6346 = vand.u32 %v3569, 4294901760
  %v6347 = vsub.f32 %v3569, %v6346
  %v6348 = vand.u32 %v6347, 4294901760
  %v6349 = vsub.f32 %v6347, %v6348
  %v6350 = vand.u32 %v6349, 4294901760
  %6351 = vmatpush1.msra.mxu0 %v6350
  %6352 = vmatprep.subr.mxu0 0.0
  %v6353 = vand.u32 %v3568, 4294901760
  %v6354 = vsub.f32 %v3568, %v6353
  %v6355 = vand.u32 %v6354, 4294901760
  %v6356 = vsub.f32 %v6354, %v6355
  %v6357 = vand.u32 %v6356, 4294901760
  %6358 = vmatpush1.msra.mxu0 %v6357
  %6359 = vmatprep.subr.mxu0 0.0
  %v6360 = vand.u32 %v3567, 4294901760
  %v6361 = vsub.f32 %v3567, %v6360
  %v6362 = vand.u32 %v6361, 4294901760
  %v6363 = vsub.f32 %v6361, %v6362
  %v6364 = vand.u32 %v6363, 4294901760
  %6365 = vmatpush1.msra.mxu0 %v6364
  %6366 = vmatprep.subr.mxu0 0.0
  %6367 = vmatpush2.msra.mxu0 0.0
  %6368 = vmatprep.subr.mxu0 0.0
  %6369 = vmatpush2.msra.mxu0 0.0
  %6370 = vmatprep.subr.mxu0 0.0
  %6371 = vmatpush2.msra.mxu0 0.0
  %6372 = vmatprep.subr.mxu0 0.0
  %6373 = vmatpush2.msra.mxu0 0.0
  %6374 = vmatprep.subr.mxu0 0.0
  %6375 = vmatpush2.msra.mxu0 0.0
  %6376 = vmatprep.subr.mxu0 0.0
  %6377 = vmatpush2.msra.mxu0 0.0
  %6378 = vmatprep.subr.mxu0 0.0
  %6379 = vmatpush2.msra.mxu0 0.0
  %6380 = vmatprep.subr.mxu0 0.0
  %6381 = vmatpush2.msra.mxu0 0.0
  %6382 = vmatprep.subr.mxu0 0.0
  %6383 = vmatpush2.msra.mxu0 0.0
  %6384 = vmatprep.subr.mxu0 0.0
  %6385 = vmatpush2.msra.mxu0 0.0
  %6386 = vmatprep.subr.mxu0 0.0
  %6387 = vmatpush2.msra.mxu0 0.0
  %6388 = vmatprep.subr.mxu0 0.0
  %6389 = vmatpush2.msra.mxu0 0.0
  %6390 = vmatprep.subr.mxu0 0.0
  %6391 = vmatpush2.msra.mxu0 0.0
  %6392 = vmatprep.subr.mxu0 0.0
  %6393 = vmatpush2.msra.mxu0 0.0
  %6394 = vmatprep.subr.mxu0 0.0
  %6395 = vmatpush2.msra.mxu0 0.0
  %6396 = vmatprep.subr.mxu0 0.0
  %6397 = vmatpush2.msra.mxu0 0.0
  %6398 = vmatprep.mubr.f32.mxu0 0.0
  %v6399 = vand.u32 %v5815, 4294901760
  %6400 = vmatmul.mubr.f32.gmra.mxu0 %v6399
  %v6401 = vpop.f32.mrf.mxu0
  %v6402 = vadd.f32 %v5941, %v6401
  %v6403 = vpop.f32.mrf.mxu0
  %6404 = vmatprep.mubr.f32.mxu0 0.0
  %v6405 = vand.u32 %v5816, 4294901760
  %6406 = vmatmul.mubr.f32.gmra.mxu0 %v6405
  %v6407 = vpop.f32.mrf.mxu0
  %v6408 = vadd.f32 %v5951, %v6407
  %v6409 = vpop.f32.mrf.mxu0
  %6410 = vmatprep.mubr.f32.mxu0 0.0
  %v6411 = vand.u32 %v5817, 4294901760
  %6412 = vmatmul.mubr.f32.gmra.mxu0 %v6411
  %v6413 = vpop.f32.mrf.mxu0
  %v6414 = vadd.f32 %v5961, %v6413
  %v6415 = vpop.f32.mrf.mxu0
  %6416 = vmatprep.mubr.f32.mxu0 0.0
  %v6417 = vand.u32 %v5818, 4294901760
  %6418 = vmatmul.mubr.f32.gmra.mxu0 %v6417
  %v6419 = vpop.f32.mrf.mxu0
  %v6420 = vadd.f32 %v5971, %v6419
  %v6421 = vpop.f32.mrf.mxu0
  %6422 = vmatprep.mubr.f32.mxu0 0.0
  %v6423 = vand.u32 %v5819, 4294901760
  %6424 = vmatmul.mubr.f32.gmra.mxu0 %v6423
  %v6425 = vpop.f32.mrf.mxu0
  %v6426 = vadd.f32 %v5981, %v6425
  %v6427 = vpop.f32.mrf.mxu0
  %6428 = vmatprep.mubr.f32.mxu0 0.0
  %v6429 = vand.u32 %v5820, 4294901760
  %6430 = vmatmul.mubr.f32.gmra.mxu0 %v6429
  %v6431 = vpop.f32.mrf.mxu0
  %v6432 = vadd.f32 %v5991, %v6431
  %v6433 = vpop.f32.mrf.mxu0
  %6434 = vmatprep.mubr.f32.mxu0 0.0
  %v6435 = vand.u32 %v5821, 4294901760
  %6436 = vmatmul.mubr.f32.gmra.mxu0 %v6435
  %v6437 = vpop.f32.mrf.mxu0
  %v6438 = vadd.f32 %v6001, %v6437
  %v6439 = vpop.f32.mrf.mxu0
  %6440 = vmatprep.mubr.f32.mxu0 0.0
  %v6441 = vand.u32 %v5822, 4294901760
  %6442 = vmatmul.mubr.f32.gmra.mxu0 %v6441
  %v6443 = vpop.f32.mrf.mxu0
  %v6444 = vadd.f32 %v6011, %v6443
  %v6445 = vpop.f32.mrf.mxu0
  %6446 = vmatprep.mubr.f32.mxu0 0.0
  %v6447 = vand.u32 %v5823, 4294901760
  %6448 = vmatmul.mubr.f32.gmra.mxu0 %v6447
  %v6449 = vpop.f32.mrf.mxu0
  %v6450 = vadd.f32 %v6021, %v6449
  %v6451 = vpop.f32.mrf.mxu0
  %6452 = vmatprep.mubr.f32.mxu0 0.0
  %v6453 = vand.u32 %v5824, 4294901760
  %6454 = vmatmul.mubr.f32.gmra.mxu0 %v6453
  %v6455 = vpop.f32.mrf.mxu0
  %v6456 = vadd.f32 %v6031, %v6455
  %v6457 = vpop.f32.mrf.mxu0
  %6458 = vmatprep.mubr.f32.mxu0 0.0
  %v6459 = vand.u32 %v5825, 4294901760
  %6460 = vmatmul.mubr.f32.gmra.mxu0 %v6459
  %v6461 = vpop.f32.mrf.mxu0
  %v6462 = vadd.f32 %v6041, %v6461
  %v6463 = vpop.f32.mrf.mxu0
  %6464 = vmatprep.mubr.f32.mxu0 0.0
  %v6465 = vand.u32 %v5826, 4294901760
  %6466 = vmatmul.mubr.f32.gmra.mxu0 %v6465
  %v6467 = vpop.f32.mrf.mxu0
  %v6468 = vadd.f32 %v6051, %v6467
  %v6469 = vpop.f32.mrf.mxu0
  %6470 = vmatprep.mubr.f32.mxu0 0.0
  %v6471 = vand.u32 %v5827, 4294901760
  %6472 = vmatmul.mubr.f32.gmra.mxu0 %v6471
  %v6473 = vpop.f32.mrf.mxu0
  %v6474 = vadd.f32 %v6061, %v6473
  %v6475 = vpop.f32.mrf.mxu0
  %6476 = vmatprep.mubr.f32.mxu0 0.0
  %v6477 = vand.u32 %v5828, 4294901760
  %6478 = vmatmul.mubr.f32.gmra.mxu0 %v6477
  %v6479 = vpop.f32.mrf.mxu0
  %v6480 = vadd.f32 %v6071, %v6479
  %v6481 = vpop.f32.mrf.mxu0
  %6482 = vmatprep.mubr.f32.mxu0 0.0
  %v6483 = vand.u32 %v5829, 4294901760
  %6484 = vmatmul.mubr.f32.gmra.mxu0 %v6483
  %v6485 = vpop.f32.mrf.mxu0
  %v6486 = vadd.f32 %v6081, %v6485
  %v6487 = vpop.f32.mrf.mxu0
  %6488 = vmatprep.mubr.f32.mxu0 0.0
  %v6489 = vand.u32 %v5830, 4294901760
  %6490 = vmatmul.mubr.f32.gmra.mxu0 %v6489
  %v6491 = vpop.f32.mrf.mxu0
  %v6492 = vadd.f32 %v6091, %v6491
  %v6493 = vpop.f32.mrf.mxu0
  %6494 = vmatprep.mubr.f32.mxu0 0.0
  %v6495 = vand.u32 %v5831, 4294901760
  %6496 = vmatmul.mubr.f32.gmra.mxu0 %v6495
  %v6497 = vpop.f32.mrf.mxu0
  %v6498 = vadd.f32 %v6101, %v6497
  %v6499 = vpop.f32.mrf.mxu0
  %6500 = vmatprep.mubr.f32.mxu0 0.0
  %v6501 = vand.u32 %v5832, 4294901760
  %6502 = vmatmul.mubr.f32.gmra.mxu0 %v6501
  %v6503 = vpop.f32.mrf.mxu0
  %v6504 = vadd.f32 %v6111, %v6503
  %v6505 = vpop.f32.mrf.mxu0
  %6506 = vmatprep.mubr.f32.mxu0 0.0
  %v6507 = vand.u32 %v5833, 4294901760
  %6508 = vmatmul.mubr.f32.gmra.mxu0 %v6507
  %v6509 = vpop.f32.mrf.mxu0
  %v6510 = vadd.f32 %v6121, %v6509
  %v6511 = vpop.f32.mrf.mxu0
  %6512 = vmatprep.mubr.f32.mxu0 0.0
  %v6513 = vand.u32 %v5834, 4294901760
  %6514 = vmatmul.mubr.f32.gmra.mxu0 %v6513
  %v6515 = vpop.f32.mrf.mxu0
  %v6516 = vadd.f32 %v6131, %v6515
  %v6517 = vpop.f32.mrf.mxu0
  %6518 = vmatprep.mubr.f32.mxu0 0.0
  %v6519 = vand.u32 %v5835, 4294901760
  %6520 = vmatmul.mubr.f32.gmra.mxu0 %v6519
  %v6521 = vpop.f32.mrf.mxu0
  %v6522 = vadd.f32 %v6141, %v6521
  %v6523 = vpop.f32.mrf.mxu0
  %6524 = vmatprep.mubr.f32.mxu0 0.0
  %v6525 = vand.u32 %v5836, 4294901760
  %6526 = vmatmul.mubr.f32.gmra.mxu0 %v6525
  %v6527 = vpop.f32.mrf.mxu0
  %v6528 = vadd.f32 %v6151, %v6527
  %v6529 = vpop.f32.mrf.mxu0
  %6530 = vmatprep.mubr.f32.mxu0 0.0
  %v6531 = vand.u32 %v5837, 4294901760
  %6532 = vmatmul.mubr.f32.gmra.mxu0 %v6531
  %v6533 = vpop.f32.mrf.mxu0
  %v6534 = vadd.f32 %v6161, %v6533
  %v6535 = vpop.f32.mrf.mxu0
  %6536 = vmatprep.mubr.f32.mxu0 0.0
  %v6537 = vand.u32 %v5838, 4294901760
  %6538 = vmatmul.mubr.f32.gmra.mxu0 %v6537
  %v6539 = vpop.f32.mrf.mxu0
  %v6540 = vadd.f32 %v6171, %v6539
  %v6541 = vpop.f32.mrf.mxu0
  %6542 = vmatprep.mubr.f32.mxu0 0.0
  %v6543 = vand.u32 %v5839, 4294901760
  %6544 = vmatmul.mubr.f32.gmra.mxu0 %v6543
  %v6545 = vpop.f32.mrf.mxu0
  %v6546 = vadd.f32 %v6181, %v6545
  %v6547 = vpop.f32.mrf.mxu0
  %6548 = vmatprep.mubr.f32.mxu0 0.0
  %v6549 = vand.u32 %v5840, 4294901760
  %6550 = vmatmul.mubr.f32.gmra.mxu0 %v6549
  %v6551 = vpop.f32.mrf.mxu0
  %v6552 = vadd.f32 %v6191, %v6551
  %v6553 = vpop.f32.mrf.mxu0
  %6554 = vmatprep.mubr.f32.mxu0 0.0
  %v6555 = vand.u32 %v5841, 4294901760
  %6556 = vmatmul.mubr.f32.gmra.mxu0 %v6555
  %v6557 = vpop.f32.mrf.mxu0
  %v6558 = vadd.f32 %v6201, %v6557
  %v6559 = vpop.f32.mrf.mxu0
  %6560 = vmatprep.mubr.f32.mxu0 0.0
  %v6561 = vand.u32 %v5842, 4294901760
  %6562 = vmatmul.mubr.f32.gmra.mxu0 %v6561
  %v6563 = vpop.f32.mrf.mxu0
  %v6564 = vadd.f32 %v6211, %v6563
  %v6565 = vpop.f32.mrf.mxu0
  %6566 = vmatprep.mubr.f32.mxu0 0.0
  %v6567 = vand.u32 %v5843, 4294901760
  %6568 = vmatmul.mubr.f32.gmra.mxu0 %v6567
  %v6569 = vpop.f32.mrf.mxu0
  %v6570 = vadd.f32 %v6221, %v6569
  %v6571 = vpop.f32.mrf.mxu0
  %6572 = vmatprep.mubr.f32.mxu0 0.0
  %v6573 = vand.u32 %v5844, 4294901760
  %6574 = vmatmul.mubr.f32.gmra.mxu0 %v6573
  %v6575 = vpop.f32.mrf.mxu0
  %v6576 = vadd.f32 %v6231, %v6575
  %v6577 = vpop.f32.mrf.mxu0
  %6578 = vmatprep.mubr.f32.mxu0 0.0
  %v6579 = vand.u32 %v5845, 4294901760
  %6580 = vmatmul.mubr.f32.gmra.mxu0 %v6579
  %v6581 = vpop.f32.mrf.mxu0
  %v6582 = vadd.f32 %v6241, %v6581
  %v6583 = vpop.f32.mrf.mxu0
  %6584 = vmatprep.mubr.f32.mxu0 0.0
  %v6585 = vand.u32 %v5846, 4294901760
  %6586 = vmatmul.mubr.f32.gmra.mxu0 %v6585
  %v6587 = vpop.f32.mrf.mxu0
  %v6588 = vadd.f32 %v6251, %v6587
  %v6589 = vpop.f32.mrf.mxu0
  %6590 = vdwg.mxu0
  %6591 = vmatprep.subr.mxu0 0.0
  %v6592 = vand.u32 %v3582, 4294901760
  %v6593 = vsub.f32 %v3582, %v6592
  %6594 = vmatpush1.msra.mxu0 %v6593
  %6595 = vmatprep.subr.mxu0 0.0
  %v6596 = vand.u32 %v3581, 4294901760
  %v6597 = vsub.f32 %v3581, %v6596
  %6598 = vmatpush1.msra.mxu0 %v6597
  %6599 = vmatprep.subr.mxu0 0.0
  %v6600 = vand.u32 %v3580, 4294901760
  %v6601 = vsub.f32 %v3580, %v6600
  %6602 = vmatpush1.msra.mxu0 %v6601
  %6603 = vmatprep.subr.mxu0 0.0
  %v6604 = vand.u32 %v3579, 4294901760
  %v6605 = vsub.f32 %v3579, %v6604
  %6606 = vmatpush1.msra.mxu0 %v6605
  %6607 = vmatprep.subr.mxu0 0.0
  %v6608 = vand.u32 %v3578, 4294901760
  %v6609 = vsub.f32 %v3578, %v6608
  %6610 = vmatpush1.msra.mxu0 %v6609
  %6611 = vmatprep.subr.mxu0 0.0
  %v6612 = vand.u32 %v3577, 4294901760
  %v6613 = vsub.f32 %v3577, %v6612
  %6614 = vmatpush1.msra.mxu0 %v6613
  %6615 = vmatprep.subr.mxu0 0.0
  %v6616 = vand.u32 %v3576, 4294901760
  %v6617 = vsub.f32 %v3576, %v6616
  %6618 = vmatpush1.msra.mxu0 %v6617
  %6619 = vmatprep.subr.mxu0 0.0
  %v6620 = vand.u32 %v3575, 4294901760
  %v6621 = vsub.f32 %v3575, %v6620
  %6622 = vmatpush1.msra.mxu0 %v6621
  %6623 = vmatprep.subr.mxu0 0.0
  %v6624 = vand.u32 %v3574, 4294901760
  %v6625 = vsub.f32 %v3574, %v6624
  %6626 = vmatpush1.msra.mxu0 %v6625
  %6627 = vmatprep.subr.mxu0 0.0
  %v6628 = vand.u32 %v3573, 4294901760
  %v6629 = vsub.f32 %v3573, %v6628
  %6630 = vmatpush1.msra.mxu0 %v6629
  %6631 = vmatprep.subr.mxu0 0.0
  %v6632 = vand.u32 %v3572, 4294901760
  %v6633 = vsub.f32 %v3572, %v6632
  %6634 = vmatpush1.msra.mxu0 %v6633
  %6635 = vmatprep.subr.mxu0 0.0
  %v6636 = vand.u32 %v3571, 4294901760
  %v6637 = vsub.f32 %v3571, %v6636
  %6638 = vmatpush1.msra.mxu0 %v6637
  %6639 = vmatprep.subr.mxu0 0.0
  %v6640 = vand.u32 %v3570, 4294901760
  %v6641 = vsub.f32 %v3570, %v6640
  %6642 = vmatpush1.msra.mxu0 %v6641
  %6643 = vmatprep.subr.mxu0 0.0
  %v6644 = vand.u32 %v3569, 4294901760
  %v6645 = vsub.f32 %v3569, %v6644
  %6646 = vmatpush1.msra.mxu0 %v6645
  %6647 = vmatprep.subr.mxu0 0.0
  %v6648 = vand.u32 %v3568, 4294901760
  %v6649 = vsub.f32 %v3568, %v6648
  %6650 = vmatpush1.msra.mxu0 %v6649
  %6651 = vmatprep.subr.mxu0 0.0
  %v6652 = vand.u32 %v3567, 4294901760
  %v6653 = vsub.f32 %v3567, %v6652
  %6654 = vmatpush1.msra.mxu0 %v6653
  %6655 = vmatprep.subr.mxu0 0.0
  %6656 = vmatpush2.msra.mxu0 0.0
  %6657 = vmatprep.subr.mxu0 0.0
  %6658 = vmatpush2.msra.mxu0 0.0
  %6659 = vmatprep.subr.mxu0 0.0
  %6660 = vmatpush2.msra.mxu0 0.0
  %6661 = vmatprep.subr.mxu0 0.0
  %6662 = vmatpush2.msra.mxu0 0.0
  %6663 = vmatprep.subr.mxu0 0.0
  %6664 = vmatpush2.msra.mxu0 0.0
  %6665 = vmatprep.subr.mxu0 0.0
  %6666 = vmatpush2.msra.mxu0 0.0
  %6667 = vmatprep.subr.mxu0 0.0
  %6668 = vmatpush2.msra.mxu0 0.0
  %6669 = vmatprep.subr.mxu0 0.0
  %6670 = vmatpush2.msra.mxu0 0.0
  %6671 = vmatprep.subr.mxu0 0.0
  %6672 = vmatpush2.msra.mxu0 0.0
  %6673 = vmatprep.subr.mxu0 0.0
  %6674 = vmatpush2.msra.mxu0 0.0
  %6675 = vmatprep.subr.mxu0 0.0
  %6676 = vmatpush2.msra.mxu0 0.0
  %6677 = vmatprep.subr.mxu0 0.0
  %6678 = vmatpush2.msra.mxu0 0.0
  %6679 = vmatprep.subr.mxu0 0.0
  %6680 = vmatpush2.msra.mxu0 0.0
  %6681 = vmatprep.subr.mxu0 0.0
  %6682 = vmatpush2.msra.mxu0 0.0
  %6683 = vmatprep.subr.mxu0 0.0
  %6684 = vmatpush2.msra.mxu0 0.0
  %6685 = vmatprep.subr.mxu0 0.0
  %6686 = vmatpush2.msra.mxu0 0.0
  %6687 = vmatprep.mubr.f32.mxu0 0.0
  %v6688 = vand.u32 %v5815, 4294901760
  %v6689 = vsub.f32 %v5815, %v6688
  %6690 = vmatmul.mubr.f32.gmra.mxu0 %v6689
  %v6691 = vpop.f32.mrf.mxu0
  %v6692 = vadd.f32 %v6402, %v6691
  %v6693 = vpop.f32.mrf.mxu0
  %6694 = vmatprep.mubr.f32.mxu0 0.0
  %v6695 = vand.u32 %v5816, 4294901760
  %v6696 = vsub.f32 %v5816, %v6695
  %6697 = vmatmul.mubr.f32.gmra.mxu0 %v6696
  %v6698 = vpop.f32.mrf.mxu0
  %v6699 = vadd.f32 %v6408, %v6698
  %v6700 = vpop.f32.mrf.mxu0
  %6701 = vmatprep.mubr.f32.mxu0 0.0
  %v6702 = vand.u32 %v5817, 4294901760
  %v6703 = vsub.f32 %v5817, %v6702
  %6704 = vmatmul.mubr.f32.gmra.mxu0 %v6703
  %v6705 = vpop.f32.mrf.mxu0
  %v6706 = vadd.f32 %v6414, %v6705
  %v6707 = vpop.f32.mrf.mxu0
  %6708 = vmatprep.mubr.f32.mxu0 0.0
  %v6709 = vand.u32 %v5818, 4294901760
  %v6710 = vsub.f32 %v5818, %v6709
  %6711 = vmatmul.mubr.f32.gmra.mxu0 %v6710
  %v6712 = vpop.f32.mrf.mxu0
  %v6713 = vadd.f32 %v6420, %v6712
  %v6714 = vpop.f32.mrf.mxu0
  %6715 = vmatprep.mubr.f32.mxu0 0.0
  %v6716 = vand.u32 %v5819, 4294901760
  %v6717 = vsub.f32 %v5819, %v6716
  %6718 = vmatmul.mubr.f32.gmra.mxu0 %v6717
  %v6719 = vpop.f32.mrf.mxu0
  %v6720 = vadd.f32 %v6426, %v6719
  %v6721 = vpop.f32.mrf.mxu0
  %6722 = vmatprep.mubr.f32.mxu0 0.0
  %v6723 = vand.u32 %v5820, 4294901760
  %v6724 = vsub.f32 %v5820, %v6723
  %6725 = vmatmul.mubr.f32.gmra.mxu0 %v6724
  %v6726 = vpop.f32.mrf.mxu0
  %v6727 = vadd.f32 %v6432, %v6726
  %v6728 = vpop.f32.mrf.mxu0
  %6729 = vmatprep.mubr.f32.mxu0 0.0
  %v6730 = vand.u32 %v5821, 4294901760
  %v6731 = vsub.f32 %v5821, %v6730
  %6732 = vmatmul.mubr.f32.gmra.mxu0 %v6731
  %v6733 = vpop.f32.mrf.mxu0
  %v6734 = vadd.f32 %v6438, %v6733
  %v6735 = vpop.f32.mrf.mxu0
  %6736 = vmatprep.mubr.f32.mxu0 0.0
  %v6737 = vand.u32 %v5822, 4294901760
  %v6738 = vsub.f32 %v5822, %v6737
  %6739 = vmatmul.mubr.f32.gmra.mxu0 %v6738
  %v6740 = vpop.f32.mrf.mxu0
  %v6741 = vadd.f32 %v6444, %v6740
  %v6742 = vpop.f32.mrf.mxu0
  %6743 = vmatprep.mubr.f32.mxu0 0.0
  %v6744 = vand.u32 %v5823, 4294901760
  %v6745 = vsub.f32 %v5823, %v6744
  %6746 = vmatmul.mubr.f32.gmra.mxu0 %v6745
  %v6747 = vpop.f32.mrf.mxu0
  %v6748 = vadd.f32 %v6450, %v6747
  %v6749 = vpop.f32.mrf.mxu0
  %6750 = vmatprep.mubr.f32.mxu0 0.0
  %v6751 = vand.u32 %v5824, 4294901760
  %v6752 = vsub.f32 %v5824, %v6751
  %6753 = vmatmul.mubr.f32.gmra.mxu0 %v6752
  %v6754 = vpop.f32.mrf.mxu0
  %v6755 = vadd.f32 %v6456, %v6754
  %v6756 = vpop.f32.mrf.mxu0
  %6757 = vmatprep.mubr.f32.mxu0 0.0
  %v6758 = vand.u32 %v5825, 4294901760
  %v6759 = vsub.f32 %v5825, %v6758
  %6760 = vmatmul.mubr.f32.gmra.mxu0 %v6759
  %v6761 = vpop.f32.mrf.mxu0
  %v6762 = vadd.f32 %v6462, %v6761
  %v6763 = vpop.f32.mrf.mxu0
  %6764 = vmatprep.mubr.f32.mxu0 0.0
  %v6765 = vand.u32 %v5826, 4294901760
  %v6766 = vsub.f32 %v5826, %v6765
  %6767 = vmatmul.mubr.f32.gmra.mxu0 %v6766
  %v6768 = vpop.f32.mrf.mxu0
  %v6769 = vadd.f32 %v6468, %v6768
  %v6770 = vpop.f32.mrf.mxu0
  %6771 = vmatprep.mubr.f32.mxu0 0.0
  %v6772 = vand.u32 %v5827, 4294901760
  %v6773 = vsub.f32 %v5827, %v6772
  %6774 = vmatmul.mubr.f32.gmra.mxu0 %v6773
  %v6775 = vpop.f32.mrf.mxu0
  %v6776 = vadd.f32 %v6474, %v6775
  %v6777 = vpop.f32.mrf.mxu0
  %6778 = vmatprep.mubr.f32.mxu0 0.0
  %v6779 = vand.u32 %v5828, 4294901760
  %v6780 = vsub.f32 %v5828, %v6779
  %6781 = vmatmul.mubr.f32.gmra.mxu0 %v6780
  %v6782 = vpop.f32.mrf.mxu0
  %v6783 = vadd.f32 %v6480, %v6782
  %v6784 = vpop.f32.mrf.mxu0
  %6785 = vmatprep.mubr.f32.mxu0 0.0
  %v6786 = vand.u32 %v5829, 4294901760
  %v6787 = vsub.f32 %v5829, %v6786
  %6788 = vmatmul.mubr.f32.gmra.mxu0 %v6787
  %v6789 = vpop.f32.mrf.mxu0
  %v6790 = vadd.f32 %v6486, %v6789
  %v6791 = vpop.f32.mrf.mxu0
  %6792 = vmatprep.mubr.f32.mxu0 0.0
  %v6793 = vand.u32 %v5830, 4294901760
  %v6794 = vsub.f32 %v5830, %v6793
  %6795 = vmatmul.mubr.f32.gmra.mxu0 %v6794
  %v6796 = vpop.f32.mrf.mxu0
  %v6797 = vadd.f32 %v6492, %v6796
  %v6798 = vpop.f32.mrf.mxu0
  %6799 = vmatprep.mubr.f32.mxu0 0.0
  %v6800 = vand.u32 %v5831, 4294901760
  %v6801 = vsub.f32 %v5831, %v6800
  %6802 = vmatmul.mubr.f32.gmra.mxu0 %v6801
  %v6803 = vpop.f32.mrf.mxu0
  %v6804 = vadd.f32 %v6498, %v6803
  %v6805 = vpop.f32.mrf.mxu0
  %6806 = vmatprep.mubr.f32.mxu0 0.0
  %v6807 = vand.u32 %v5832, 4294901760
  %v6808 = vsub.f32 %v5832, %v6807
  %6809 = vmatmul.mubr.f32.gmra.mxu0 %v6808
  %v6810 = vpop.f32.mrf.mxu0
  %v6811 = vadd.f32 %v6504, %v6810
  %v6812 = vpop.f32.mrf.mxu0
  %6813 = vmatprep.mubr.f32.mxu0 0.0
  %v6814 = vand.u32 %v5833, 4294901760
  %v6815 = vsub.f32 %v5833, %v6814
  %6816 = vmatmul.mubr.f32.gmra.mxu0 %v6815
  %v6817 = vpop.f32.mrf.mxu0
  %v6818 = vadd.f32 %v6510, %v6817
  %v6819 = vpop.f32.mrf.mxu0
  %6820 = vmatprep.mubr.f32.mxu0 0.0
  %v6821 = vand.u32 %v5834, 4294901760
  %v6822 = vsub.f32 %v5834, %v6821
  %6823 = vmatmul.mubr.f32.gmra.mxu0 %v6822
  %v6824 = vpop.f32.mrf.mxu0
  %v6825 = vadd.f32 %v6516, %v6824
  %v6826 = vpop.f32.mrf.mxu0
  %6827 = vmatprep.mubr.f32.mxu0 0.0
  %v6828 = vand.u32 %v5835, 4294901760
  %v6829 = vsub.f32 %v5835, %v6828
  %6830 = vmatmul.mubr.f32.gmra.mxu0 %v6829
  %v6831 = vpop.f32.mrf.mxu0
  %v6832 = vadd.f32 %v6522, %v6831
  %v6833 = vpop.f32.mrf.mxu0
  %6834 = vmatprep.mubr.f32.mxu0 0.0
  %v6835 = vand.u32 %v5836, 4294901760
  %v6836 = vsub.f32 %v5836, %v6835
  %6837 = vmatmul.mubr.f32.gmra.mxu0 %v6836
  %v6838 = vpop.f32.mrf.mxu0
  %v6839 = vadd.f32 %v6528, %v6838
  %v6840 = vpop.f32.mrf.mxu0
  %6841 = vmatprep.mubr.f32.mxu0 0.0
  %v6842 = vand.u32 %v5837, 4294901760
  %v6843 = vsub.f32 %v5837, %v6842
  %6844 = vmatmul.mubr.f32.gmra.mxu0 %v6843
  %v6845 = vpop.f32.mrf.mxu0
  %v6846 = vadd.f32 %v6534, %v6845
  %v6847 = vpop.f32.mrf.mxu0
  %6848 = vmatprep.mubr.f32.mxu0 0.0
  %v6849 = vand.u32 %v5838, 4294901760
  %v6850 = vsub.f32 %v5838, %v6849
  %6851 = vmatmul.mubr.f32.gmra.mxu0 %v6850
  %v6852 = vpop.f32.mrf.mxu0
  %v6853 = vadd.f32 %v6540, %v6852
  %v6854 = vpop.f32.mrf.mxu0
  %6855 = vmatprep.mubr.f32.mxu0 0.0
  %v6856 = vand.u32 %v5839, 4294901760
  %v6857 = vsub.f32 %v5839, %v6856
  %6858 = vmatmul.mubr.f32.gmra.mxu0 %v6857
  %v6859 = vpop.f32.mrf.mxu0
  %v6860 = vadd.f32 %v6546, %v6859
  %v6861 = vpop.f32.mrf.mxu0
  %6862 = vmatprep.mubr.f32.mxu0 0.0
  %v6863 = vand.u32 %v5840, 4294901760
  %v6864 = vsub.f32 %v5840, %v6863
  %6865 = vmatmul.mubr.f32.gmra.mxu0 %v6864
  %v6866 = vpop.f32.mrf.mxu0
  %v6867 = vadd.f32 %v6552, %v6866
  %v6868 = vpop.f32.mrf.mxu0
  %6869 = vmatprep.mubr.f32.mxu0 0.0
  %v6870 = vand.u32 %v5841, 4294901760
  %v6871 = vsub.f32 %v5841, %v6870
  %6872 = vmatmul.mubr.f32.gmra.mxu0 %v6871
  %v6873 = vpop.f32.mrf.mxu0
  %v6874 = vadd.f32 %v6558, %v6873
  %v6875 = vpop.f32.mrf.mxu0
  %6876 = vmatprep.mubr.f32.mxu0 0.0
  %v6877 = vand.u32 %v5842, 4294901760
  %v6878 = vsub.f32 %v5842, %v6877
  %6879 = vmatmul.mubr.f32.gmra.mxu0 %v6878
  %v6880 = vpop.f32.mrf.mxu0
  %v6881 = vadd.f32 %v6564, %v6880
  %v6882 = vpop.f32.mrf.mxu0
  %6883 = vmatprep.mubr.f32.mxu0 0.0
  %v6884 = vand.u32 %v5843, 4294901760
  %v6885 = vsub.f32 %v5843, %v6884
  %6886 = vmatmul.mubr.f32.gmra.mxu0 %v6885
  %v6887 = vpop.f32.mrf.mxu0
  %v6888 = vadd.f32 %v6570, %v6887
  %v6889 = vpop.f32.mrf.mxu0
  %6890 = vmatprep.mubr.f32.mxu0 0.0
  %v6891 = vand.u32 %v5844, 4294901760
  %v6892 = vsub.f32 %v5844, %v6891
  %6893 = vmatmul.mubr.f32.gmra.mxu0 %v6892
  %v6894 = vpop.f32.mrf.mxu0
  %v6895 = vadd.f32 %v6576, %v6894
  %v6896 = vpop.f32.mrf.mxu0
  %6897 = vmatprep.mubr.f32.mxu0 0.0
  %v6898 = vand.u32 %v5845, 4294901760
  %v6899 = vsub.f32 %v5845, %v6898
  %6900 = vmatmul.mubr.f32.gmra.mxu0 %v6899
  %v6901 = vpop.f32.mrf.mxu0
  %v6902 = vadd.f32 %v6582, %v6901
  %v6903 = vpop.f32.mrf.mxu0
  %6904 = vmatprep.mubr.f32.mxu0 0.0
  %v6905 = vand.u32 %v5846, 4294901760
  %v6906 = vsub.f32 %v5846, %v6905
  %6907 = vmatmul.mubr.f32.gmra.mxu0 %v6906
  %v6908 = vpop.f32.mrf.mxu0
  %v6909 = vadd.f32 %v6588, %v6908
  %v6910 = vpop.f32.mrf.mxu0
  %6911 = vdwg.mxu0
  %6912 = vmatprep.subr.mxu0 0.0
  %v6913 = vand.u32 %v3582, 4294901760
  %6914 = vmatpush1.msra.mxu0 %v6913
  %6915 = vmatprep.subr.mxu0 0.0
  %v6916 = vand.u32 %v3581, 4294901760
  %6917 = vmatpush1.msra.mxu0 %v6916
  %6918 = vmatprep.subr.mxu0 0.0
  %v6919 = vand.u32 %v3580, 4294901760
  %6920 = vmatpush1.msra.mxu0 %v6919
  %6921 = vmatprep.subr.mxu0 0.0
  %v6922 = vand.u32 %v3579, 4294901760
  %6923 = vmatpush1.msra.mxu0 %v6922
  %6924 = vmatprep.subr.mxu0 0.0
  %v6925 = vand.u32 %v3578, 4294901760
  %6926 = vmatpush1.msra.mxu0 %v6925
  %6927 = vmatprep.subr.mxu0 0.0
  %v6928 = vand.u32 %v3577, 4294901760
  %6929 = vmatpush1.msra.mxu0 %v6928
  %6930 = vmatprep.subr.mxu0 0.0
  %v6931 = vand.u32 %v3576, 4294901760
  %6932 = vmatpush1.msra.mxu0 %v6931
  %6933 = vmatprep.subr.mxu0 0.0
  %v6934 = vand.u32 %v3575, 4294901760
  %6935 = vmatpush1.msra.mxu0 %v6934
  %6936 = vmatprep.subr.mxu0 0.0
  %v6937 = vand.u32 %v3574, 4294901760
  %6938 = vmatpush1.msra.mxu0 %v6937
  %6939 = vmatprep.subr.mxu0 0.0
  %v6940 = vand.u32 %v3573, 4294901760
  %6941 = vmatpush1.msra.mxu0 %v6940
  %6942 = vmatprep.subr.mxu0 0.0
  %v6943 = vand.u32 %v3572, 4294901760
  %6944 = vmatpush1.msra.mxu0 %v6943
  %6945 = vmatprep.subr.mxu0 0.0
  %v6946 = vand.u32 %v3571, 4294901760
  %6947 = vmatpush1.msra.mxu0 %v6946
  %6948 = vmatprep.subr.mxu0 0.0
  %v6949 = vand.u32 %v3570, 4294901760
  %6950 = vmatpush1.msra.mxu0 %v6949
  %6951 = vmatprep.subr.mxu0 0.0
  %v6952 = vand.u32 %v3569, 4294901760
  %6953 = vmatpush1.msra.mxu0 %v6952
  %6954 = vmatprep.subr.mxu0 0.0
  %v6955 = vand.u32 %v3568, 4294901760
  %6956 = vmatpush1.msra.mxu0 %v6955
  %6957 = vmatprep.subr.mxu0 0.0
  %v6958 = vand.u32 %v3567, 4294901760
  %6959 = vmatpush1.msra.mxu0 %v6958
  %6960 = vmatprep.subr.mxu0 0.0
  %6961 = vmatpush2.msra.mxu0 0.0
  %6962 = vmatprep.subr.mxu0 0.0
  %6963 = vmatpush2.msra.mxu0 0.0
  %6964 = vmatprep.subr.mxu0 0.0
  %6965 = vmatpush2.msra.mxu0 0.0
  %6966 = vmatprep.subr.mxu0 0.0
  %6967 = vmatpush2.msra.mxu0 0.0
  %6968 = vmatprep.subr.mxu0 0.0
  %6969 = vmatpush2.msra.mxu0 0.0
  %6970 = vmatprep.subr.mxu0 0.0
  %6971 = vmatpush2.msra.mxu0 0.0
  %6972 = vmatprep.subr.mxu0 0.0
  %6973 = vmatpush2.msra.mxu0 0.0
  %6974 = vmatprep.subr.mxu0 0.0
  %6975 = vmatpush2.msra.mxu0 0.0
  %6976 = vmatprep.subr.mxu0 0.0
  %6977 = vmatpush2.msra.mxu0 0.0
  %6978 = vmatprep.subr.mxu0 0.0
  %6979 = vmatpush2.msra.mxu0 0.0
  %6980 = vmatprep.subr.mxu0 0.0
  %6981 = vmatpush2.msra.mxu0 0.0
  %6982 = vmatprep.subr.mxu0 0.0
  %6983 = vmatpush2.msra.mxu0 0.0
  %6984 = vmatprep.subr.mxu0 0.0
  %6985 = vmatpush2.msra.mxu0 0.0
  %6986 = vmatprep.subr.mxu0 0.0
  %6987 = vmatpush2.msra.mxu0 0.0
  %6988 = vmatprep.subr.mxu0 0.0
  %6989 = vmatpush2.msra.mxu0 0.0
  %6990 = vmatprep.subr.mxu0 0.0
  %6991 = vmatpush2.msra.mxu0 0.0
  %6992 = vmatprep.mubr.f32.mxu0 0.0
  %v6993 = vand.u32 %v5815, 4294901760
  %v6994 = vsub.f32 %v5815, %v6993
  %v6995 = vand.u32 %v6994, 4294901760
  %6996 = vmatmul.mubr.f32.gmra.mxu0 %v6995
  %v6997 = vpop.f32.mrf.mxu0
  %v6998 = vadd.f32 %v6692, %v6997
  %v6999 = vpop.f32.mrf.mxu0
  %7000 = vmatprep.mubr.f32.mxu0 0.0
  %v7001 = vand.u32 %v5816, 4294901760
  %v7002 = vsub.f32 %v5816, %v7001
  %v7003 = vand.u32 %v7002, 4294901760
  %7004 = vmatmul.mubr.f32.gmra.mxu0 %v7003
  %v7005 = vpop.f32.mrf.mxu0
  %v7006 = vadd.f32 %v6699, %v7005
  %v7007 = vpop.f32.mrf.mxu0
  %7008 = vmatprep.mubr.f32.mxu0 0.0
  %v7009 = vand.u32 %v5817, 4294901760
  %v7010 = vsub.f32 %v5817, %v7009
  %v7011 = vand.u32 %v7010, 4294901760
  %7012 = vmatmul.mubr.f32.gmra.mxu0 %v7011
  %v7013 = vpop.f32.mrf.mxu0
  %v7014 = vadd.f32 %v6706, %v7013
  %v7015 = vpop.f32.mrf.mxu0
  %7016 = vmatprep.mubr.f32.mxu0 0.0
  %v7017 = vand.u32 %v5818, 4294901760
  %v7018 = vsub.f32 %v5818, %v7017
  %v7019 = vand.u32 %v7018, 4294901760
  %7020 = vmatmul.mubr.f32.gmra.mxu0 %v7019
  %v7021 = vpop.f32.mrf.mxu0
  %v7022 = vadd.f32 %v6713, %v7021
  %v7023 = vpop.f32.mrf.mxu0
  %7024 = vmatprep.mubr.f32.mxu0 0.0
  %v7025 = vand.u32 %v5819, 4294901760
  %v7026 = vsub.f32 %v5819, %v7025
  %v7027 = vand.u32 %v7026, 4294901760
  %7028 = vmatmul.mubr.f32.gmra.mxu0 %v7027
  %v7029 = vpop.f32.mrf.mxu0
  %v7030 = vadd.f32 %v6720, %v7029
  %v7031 = vpop.f32.mrf.mxu0
  %7032 = vmatprep.mubr.f32.mxu0 0.0
  %v7033 = vand.u32 %v5820, 4294901760
  %v7034 = vsub.f32 %v5820, %v7033
  %v7035 = vand.u32 %v7034, 4294901760
  %7036 = vmatmul.mubr.f32.gmra.mxu0 %v7035
  %v7037 = vpop.f32.mrf.mxu0
  %v7038 = vadd.f32 %v6727, %v7037
  %v7039 = vpop.f32.mrf.mxu0
  %7040 = vmatprep.mubr.f32.mxu0 0.0
  %v7041 = vand.u32 %v5821, 4294901760
  %v7042 = vsub.f32 %v5821, %v7041
  %v7043 = vand.u32 %v7042, 4294901760
  %7044 = vmatmul.mubr.f32.gmra.mxu0 %v7043
  %v7045 = vpop.f32.mrf.mxu0
  %v7046 = vadd.f32 %v6734, %v7045
  %v7047 = vpop.f32.mrf.mxu0
  %7048 = vmatprep.mubr.f32.mxu0 0.0
  %v7049 = vand.u32 %v5822, 4294901760
  %v7050 = vsub.f32 %v5822, %v7049
  %v7051 = vand.u32 %v7050, 4294901760
  %7052 = vmatmul.mubr.f32.gmra.mxu0 %v7051
  %v7053 = vpop.f32.mrf.mxu0
  %v7054 = vadd.f32 %v6741, %v7053
  %v7055 = vpop.f32.mrf.mxu0
  %7056 = vmatprep.mubr.f32.mxu0 0.0
  %v7057 = vand.u32 %v5823, 4294901760
  %v7058 = vsub.f32 %v5823, %v7057
  %v7059 = vand.u32 %v7058, 4294901760
  %7060 = vmatmul.mubr.f32.gmra.mxu0 %v7059
  %v7061 = vpop.f32.mrf.mxu0
  %v7062 = vadd.f32 %v6748, %v7061
  %v7063 = vpop.f32.mrf.mxu0
  %7064 = vmatprep.mubr.f32.mxu0 0.0
  %v7065 = vand.u32 %v5824, 4294901760
  %v7066 = vsub.f32 %v5824, %v7065
  %v7067 = vand.u32 %v7066, 4294901760
  %7068 = vmatmul.mubr.f32.gmra.mxu0 %v7067
  %v7069 = vpop.f32.mrf.mxu0
  %v7070 = vadd.f32 %v6755, %v7069
  %v7071 = vpop.f32.mrf.mxu0
  %7072 = vmatprep.mubr.f32.mxu0 0.0
  %v7073 = vand.u32 %v5825, 4294901760
  %v7074 = vsub.f32 %v5825, %v7073
  %v7075 = vand.u32 %v7074, 4294901760
  %7076 = vmatmul.mubr.f32.gmra.mxu0 %v7075
  %v7077 = vpop.f32.mrf.mxu0
  %v7078 = vadd.f32 %v6762, %v7077
  %v7079 = vpop.f32.mrf.mxu0
  %7080 = vmatprep.mubr.f32.mxu0 0.0
  %v7081 = vand.u32 %v5826, 4294901760
  %v7082 = vsub.f32 %v5826, %v7081
  %v7083 = vand.u32 %v7082, 4294901760
  %7084 = vmatmul.mubr.f32.gmra.mxu0 %v7083
  %v7085 = vpop.f32.mrf.mxu0
  %v7086 = vadd.f32 %v6769, %v7085
  %v7087 = vpop.f32.mrf.mxu0
  %7088 = vmatprep.mubr.f32.mxu0 0.0
  %v7089 = vand.u32 %v5827, 4294901760
  %v7090 = vsub.f32 %v5827, %v7089
  %v7091 = vand.u32 %v7090, 4294901760
  %7092 = vmatmul.mubr.f32.gmra.mxu0 %v7091
  %v7093 = vpop.f32.mrf.mxu0
  %v7094 = vadd.f32 %v6776, %v7093
  %v7095 = vpop.f32.mrf.mxu0
  %7096 = vmatprep.mubr.f32.mxu0 0.0
  %v7097 = vand.u32 %v5828, 4294901760
  %v7098 = vsub.f32 %v5828, %v7097
  %v7099 = vand.u32 %v7098, 4294901760
  %7100 = vmatmul.mubr.f32.gmra.mxu0 %v7099
  %v7101 = vpop.f32.mrf.mxu0
  %v7102 = vadd.f32 %v6783, %v7101
  %v7103 = vpop.f32.mrf.mxu0
  %7104 = vmatprep.mubr.f32.mxu0 0.0
  %v7105 = vand.u32 %v5829, 4294901760
  %v7106 = vsub.f32 %v5829, %v7105
  %v7107 = vand.u32 %v7106, 4294901760
  %7108 = vmatmul.mubr.f32.gmra.mxu0 %v7107
  %v7109 = vpop.f32.mrf.mxu0
  %v7110 = vadd.f32 %v6790, %v7109
  %v7111 = vpop.f32.mrf.mxu0
  %7112 = vmatprep.mubr.f32.mxu0 0.0
  %v7113 = vand.u32 %v5830, 4294901760
  %v7114 = vsub.f32 %v5830, %v7113
  %v7115 = vand.u32 %v7114, 4294901760
  %7116 = vmatmul.mubr.f32.gmra.mxu0 %v7115
  %v7117 = vpop.f32.mrf.mxu0
  %v7118 = vadd.f32 %v6797, %v7117
  %v7119 = vpop.f32.mrf.mxu0
  %7120 = vmatprep.mubr.f32.mxu0 0.0
  %v7121 = vand.u32 %v5831, 4294901760
  %v7122 = vsub.f32 %v5831, %v7121
  %v7123 = vand.u32 %v7122, 4294901760
  %7124 = vmatmul.mubr.f32.gmra.mxu0 %v7123
  %v7125 = vpop.f32.mrf.mxu0
  %v7126 = vadd.f32 %v6804, %v7125
  %v7127 = vpop.f32.mrf.mxu0
  %7128 = vmatprep.mubr.f32.mxu0 0.0
  %v7129 = vand.u32 %v5832, 4294901760
  %v7130 = vsub.f32 %v5832, %v7129
  %v7131 = vand.u32 %v7130, 4294901760
  %7132 = vmatmul.mubr.f32.gmra.mxu0 %v7131
  %v7133 = vpop.f32.mrf.mxu0
  %v7134 = vadd.f32 %v6811, %v7133
  %v7135 = vpop.f32.mrf.mxu0
  %7136 = vmatprep.mubr.f32.mxu0 0.0
  %v7137 = vand.u32 %v5833, 4294901760
  %v7138 = vsub.f32 %v5833, %v7137
  %v7139 = vand.u32 %v7138, 4294901760
  %7140 = vmatmul.mubr.f32.gmra.mxu0 %v7139
  %v7141 = vpop.f32.mrf.mxu0
  %v7142 = vadd.f32 %v6818, %v7141
  %v7143 = vpop.f32.mrf.mxu0
  %7144 = vmatprep.mubr.f32.mxu0 0.0
  %v7145 = vand.u32 %v5834, 4294901760
  %v7146 = vsub.f32 %v5834, %v7145
  %v7147 = vand.u32 %v7146, 4294901760
  %7148 = vmatmul.mubr.f32.gmra.mxu0 %v7147
  %v7149 = vpop.f32.mrf.mxu0
  %v7150 = vadd.f32 %v6825, %v7149
  %v7151 = vpop.f32.mrf.mxu0
  %7152 = vmatprep.mubr.f32.mxu0 0.0
  %v7153 = vand.u32 %v5835, 4294901760
  %v7154 = vsub.f32 %v5835, %v7153
  %v7155 = vand.u32 %v7154, 4294901760
  %7156 = vmatmul.mubr.f32.gmra.mxu0 %v7155
  %v7157 = vpop.f32.mrf.mxu0
  %v7158 = vadd.f32 %v6832, %v7157
  %v7159 = vpop.f32.mrf.mxu0
  %7160 = vmatprep.mubr.f32.mxu0 0.0
  %v7161 = vand.u32 %v5836, 4294901760
  %v7162 = vsub.f32 %v5836, %v7161
  %v7163 = vand.u32 %v7162, 4294901760
  %7164 = vmatmul.mubr.f32.gmra.mxu0 %v7163
  %v7165 = vpop.f32.mrf.mxu0
  %v7166 = vadd.f32 %v6839, %v7165
  %v7167 = vpop.f32.mrf.mxu0
  %7168 = vmatprep.mubr.f32.mxu0 0.0
  %v7169 = vand.u32 %v5837, 4294901760
  %v7170 = vsub.f32 %v5837, %v7169
  %v7171 = vand.u32 %v7170, 4294901760
  %7172 = vmatmul.mubr.f32.gmra.mxu0 %v7171
  %v7173 = vpop.f32.mrf.mxu0
  %v7174 = vadd.f32 %v6846, %v7173
  %v7175 = vpop.f32.mrf.mxu0
  %7176 = vmatprep.mubr.f32.mxu0 0.0
  %v7177 = vand.u32 %v5838, 4294901760
  %v7178 = vsub.f32 %v5838, %v7177
  %v7179 = vand.u32 %v7178, 4294901760
  %7180 = vmatmul.mubr.f32.gmra.mxu0 %v7179
  %v7181 = vpop.f32.mrf.mxu0
  %v7182 = vadd.f32 %v6853, %v7181
  %v7183 = vpop.f32.mrf.mxu0
  %7184 = vmatprep.mubr.f32.mxu0 0.0
  %v7185 = vand.u32 %v5839, 4294901760
  %v7186 = vsub.f32 %v5839, %v7185
  %v7187 = vand.u32 %v7186, 4294901760
  %7188 = vmatmul.mubr.f32.gmra.mxu0 %v7187
  %v7189 = vpop.f32.mrf.mxu0
  %v7190 = vadd.f32 %v6860, %v7189
  %v7191 = vpop.f32.mrf.mxu0
  %7192 = vmatprep.mubr.f32.mxu0 0.0
  %v7193 = vand.u32 %v5840, 4294901760
  %v7194 = vsub.f32 %v5840, %v7193
  %v7195 = vand.u32 %v7194, 4294901760
  %7196 = vmatmul.mubr.f32.gmra.mxu0 %v7195
  %v7197 = vpop.f32.mrf.mxu0
  %v7198 = vadd.f32 %v6867, %v7197
  %v7199 = vpop.f32.mrf.mxu0
  %7200 = vmatprep.mubr.f32.mxu0 0.0
  %v7201 = vand.u32 %v5841, 4294901760
  %v7202 = vsub.f32 %v5841, %v7201
  %v7203 = vand.u32 %v7202, 4294901760
  %7204 = vmatmul.mubr.f32.gmra.mxu0 %v7203
  %v7205 = vpop.f32.mrf.mxu0
  %v7206 = vadd.f32 %v6874, %v7205
  %v7207 = vpop.f32.mrf.mxu0
  %7208 = vmatprep.mubr.f32.mxu0 0.0
  %v7209 = vand.u32 %v5842, 4294901760
  %v7210 = vsub.f32 %v5842, %v7209
  %v7211 = vand.u32 %v7210, 4294901760
  %7212 = vmatmul.mubr.f32.gmra.mxu0 %v7211
  %v7213 = vpop.f32.mrf.mxu0
  %v7214 = vadd.f32 %v6881, %v7213
  %v7215 = vpop.f32.mrf.mxu0
  %7216 = vmatprep.mubr.f32.mxu0 0.0
  %v7217 = vand.u32 %v5843, 4294901760
  %v7218 = vsub.f32 %v5843, %v7217
  %v7219 = vand.u32 %v7218, 4294901760
  %7220 = vmatmul.mubr.f32.gmra.mxu0 %v7219
  %v7221 = vpop.f32.mrf.mxu0
  %v7222 = vadd.f32 %v6888, %v7221
  %v7223 = vpop.f32.mrf.mxu0
  %7224 = vmatprep.mubr.f32.mxu0 0.0
  %v7225 = vand.u32 %v5844, 4294901760
  %v7226 = vsub.f32 %v5844, %v7225
  %v7227 = vand.u32 %v7226, 4294901760
  %7228 = vmatmul.mubr.f32.gmra.mxu0 %v7227
  %v7229 = vpop.f32.mrf.mxu0
  %v7230 = vadd.f32 %v6895, %v7229
  %v7231 = vpop.f32.mrf.mxu0
  %7232 = vmatprep.mubr.f32.mxu0 0.0
  %v7233 = vand.u32 %v5845, 4294901760
  %v7234 = vsub.f32 %v5845, %v7233
  %v7235 = vand.u32 %v7234, 4294901760
  %7236 = vmatmul.mubr.f32.gmra.mxu0 %v7235
  %v7237 = vpop.f32.mrf.mxu0
  %v7238 = vadd.f32 %v6902, %v7237
  %v7239 = vpop.f32.mrf.mxu0
  %7240 = vmatprep.mubr.f32.mxu0 0.0
  %v7241 = vand.u32 %v5846, 4294901760
  %v7242 = vsub.f32 %v5846, %v7241
  %v7243 = vand.u32 %v7242, 4294901760
  %7244 = vmatmul.mubr.f32.gmra.mxu0 %v7243
  %v7245 = vpop.f32.mrf.mxu0
  %v7246 = vadd.f32 %v6909, %v7245
  %v7247 = vpop.f32.mrf.mxu0
  %7248 = vdwg.mxu0
  %7249 = vmatprep.subr.mxu0 0.0
  %v7250 = vand.u32 %v3582, 4294901760
  %v7251 = vsub.f32 %v3582, %v7250
  %v7252 = vand.u32 %v7251, 4294901760
  %7253 = vmatpush1.msra.mxu0 %v7252
  %7254 = vmatprep.subr.mxu0 0.0
  %v7255 = vand.u32 %v3581, 4294901760
  %v7256 = vsub.f32 %v3581, %v7255
  %v7257 = vand.u32 %v7256, 4294901760
  %7258 = vmatpush1.msra.mxu0 %v7257
  %7259 = vmatprep.subr.mxu0 0.0
  %v7260 = vand.u32 %v3580, 4294901760
  %v7261 = vsub.f32 %v3580, %v7260
  %v7262 = vand.u32 %v7261, 4294901760
  %7263 = vmatpush1.msra.mxu0 %v7262
  %7264 = vmatprep.subr.mxu0 0.0
  %v7265 = vand.u32 %v3579, 4294901760
  %v7266 = vsub.f32 %v3579, %v7265
  %v7267 = vand.u32 %v7266, 4294901760
  %7268 = vmatpush1.msra.mxu0 %v7267
  %7269 = vmatprep.subr.mxu0 0.0
  %v7270 = vand.u32 %v3578, 4294901760
  %v7271 = vsub.f32 %v3578, %v7270
  %v7272 = vand.u32 %v7271, 4294901760
  %7273 = vmatpush1.msra.mxu0 %v7272
  %7274 = vmatprep.subr.mxu0 0.0
  %v7275 = vand.u32 %v3577, 4294901760
  %v7276 = vsub.f32 %v3577, %v7275
  %v7277 = vand.u32 %v7276, 4294901760
  %7278 = vmatpush1.msra.mxu0 %v7277
  %7279 = vmatprep.subr.mxu0 0.0
  %v7280 = vand.u32 %v3576, 4294901760
  %v7281 = vsub.f32 %v3576, %v7280
  %v7282 = vand.u32 %v7281, 4294901760
  %7283 = vmatpush1.msra.mxu0 %v7282
  %7284 = vmatprep.subr.mxu0 0.0
  %v7285 = vand.u32 %v3575, 4294901760
  %v7286 = vsub.f32 %v3575, %v7285
  %v7287 = vand.u32 %v7286, 4294901760
  %7288 = vmatpush1.msra.mxu0 %v7287
  %7289 = vmatprep.subr.mxu0 0.0
  %v7290 = vand.u32 %v3574, 4294901760
  %v7291 = vsub.f32 %v3574, %v7290
  %v7292 = vand.u32 %v7291, 4294901760
  %7293 = vmatpush1.msra.mxu0 %v7292
  %7294 = vmatprep.subr.mxu0 0.0
  %v7295 = vand.u32 %v3573, 4294901760
  %v7296 = vsub.f32 %v3573, %v7295
  %v7297 = vand.u32 %v7296, 4294901760
  %7298 = vmatpush1.msra.mxu0 %v7297
  %7299 = vmatprep.subr.mxu0 0.0
  %v7300 = vand.u32 %v3572, 4294901760
  %v7301 = vsub.f32 %v3572, %v7300
  %v7302 = vand.u32 %v7301, 4294901760
  %7303 = vmatpush1.msra.mxu0 %v7302
  %7304 = vmatprep.subr.mxu0 0.0
  %v7305 = vand.u32 %v3571, 4294901760
  %v7306 = vsub.f32 %v3571, %v7305
  %v7307 = vand.u32 %v7306, 4294901760
  %7308 = vmatpush1.msra.mxu0 %v7307
  %7309 = vmatprep.subr.mxu0 0.0
  %v7310 = vand.u32 %v3570, 4294901760
  %v7311 = vsub.f32 %v3570, %v7310
  %v7312 = vand.u32 %v7311, 4294901760
  %7313 = vmatpush1.msra.mxu0 %v7312
  %7314 = vmatprep.subr.mxu0 0.0
  %v7315 = vand.u32 %v3569, 4294901760
  %v7316 = vsub.f32 %v3569, %v7315
  %v7317 = vand.u32 %v7316, 4294901760
  %7318 = vmatpush1.msra.mxu0 %v7317
  %7319 = vmatprep.subr.mxu0 0.0
  %v7320 = vand.u32 %v3568, 4294901760
  %v7321 = vsub.f32 %v3568, %v7320
  %v7322 = vand.u32 %v7321, 4294901760
  %7323 = vmatpush1.msra.mxu0 %v7322
  %7324 = vmatprep.subr.mxu0 0.0
  %v7325 = vand.u32 %v3567, 4294901760
  %v7326 = vsub.f32 %v3567, %v7325
  %v7327 = vand.u32 %v7326, 4294901760
  %7328 = vmatpush1.msra.mxu0 %v7327
  %7329 = vmatprep.subr.mxu0 0.0
  %7330 = vmatpush2.msra.mxu0 0.0
  %7331 = vmatprep.subr.mxu0 0.0
  %7332 = vmatpush2.msra.mxu0 0.0
  %7333 = vmatprep.subr.mxu0 0.0
  %7334 = vmatpush2.msra.mxu0 0.0
  %7335 = vmatprep.subr.mxu0 0.0
  %7336 = vmatpush2.msra.mxu0 0.0
  %7337 = vmatprep.subr.mxu0 0.0
  %7338 = vmatpush2.msra.mxu0 0.0
  %7339 = vmatprep.subr.mxu0 0.0
  %7340 = vmatpush2.msra.mxu0 0.0
  %7341 = vmatprep.subr.mxu0 0.0
  %7342 = vmatpush2.msra.mxu0 0.0
  %7343 = vmatprep.subr.mxu0 0.0
  %7344 = vmatpush2.msra.mxu0 0.0
  %7345 = vmatprep.subr.mxu0 0.0
  %7346 = vmatpush2.msra.mxu0 0.0
  %7347 = vmatprep.subr.mxu0 0.0
  %7348 = vmatpush2.msra.mxu0 0.0
  %7349 = vmatprep.subr.mxu0 0.0
  %7350 = vmatpush2.msra.mxu0 0.0
  %7351 = vmatprep.subr.mxu0 0.0
  %7352 = vmatpush2.msra.mxu0 0.0
  %7353 = vmatprep.subr.mxu0 0.0
  %7354 = vmatpush2.msra.mxu0 0.0
  %7355 = vmatprep.subr.mxu0 0.0
  %7356 = vmatpush2.msra.mxu0 0.0
  %7357 = vmatprep.subr.mxu0 0.0
  %7358 = vmatpush2.msra.mxu0 0.0
  %7359 = vmatprep.subr.mxu0 0.0
  %7360 = vmatpush2.msra.mxu0 0.0
  %7361 = vmatprep.mubr.f32.mxu0 0.0
  %v7362 = vand.u32 %v5815, 4294901760
  %7363 = vmatmul.mubr.f32.gmra.mxu0 %v7362
  %v7364 = vpop.f32.mrf.mxu0
  %v7365 = vadd.f32 %v6998, %v7364
  %v7366 = vpop.f32.mrf.mxu0
  %7367 = vmatprep.mubr.f32.mxu0 0.0
  %v7368 = vand.u32 %v5816, 4294901760
  %7369 = vmatmul.mubr.f32.gmra.mxu0 %v7368
  %v7370 = vpop.f32.mrf.mxu0
  %v7371 = vadd.f32 %v7006, %v7370
  %v7372 = vpop.f32.mrf.mxu0
  %7373 = vmatprep.mubr.f32.mxu0 0.0
  %v7374 = vand.u32 %v5817, 4294901760
  %7375 = vmatmul.mubr.f32.gmra.mxu0 %v7374
  %v7376 = vpop.f32.mrf.mxu0
  %v7377 = vadd.f32 %v7014, %v7376
  %v7378 = vpop.f32.mrf.mxu0
  %7379 = vmatprep.mubr.f32.mxu0 0.0
  %v7380 = vand.u32 %v5818, 4294901760
  %7381 = vmatmul.mubr.f32.gmra.mxu0 %v7380
  %v7382 = vpop.f32.mrf.mxu0
  %v7383 = vadd.f32 %v7022, %v7382
  %v7384 = vpop.f32.mrf.mxu0
  %7385 = vmatprep.mubr.f32.mxu0 0.0
  %v7386 = vand.u32 %v5819, 4294901760
  %7387 = vmatmul.mubr.f32.gmra.mxu0 %v7386
  %v7388 = vpop.f32.mrf.mxu0
  %v7389 = vadd.f32 %v7030, %v7388
  %v7390 = vpop.f32.mrf.mxu0
  %7391 = vmatprep.mubr.f32.mxu0 0.0
  %v7392 = vand.u32 %v5820, 4294901760
  %7393 = vmatmul.mubr.f32.gmra.mxu0 %v7392
  %v7394 = vpop.f32.mrf.mxu0
  %v7395 = vadd.f32 %v7038, %v7394
  %v7396 = vpop.f32.mrf.mxu0
  %7397 = vmatprep.mubr.f32.mxu0 0.0
  %v7398 = vand.u32 %v5821, 4294901760
  %7399 = vmatmul.mubr.f32.gmra.mxu0 %v7398
  %v7400 = vpop.f32.mrf.mxu0
  %v7401 = vadd.f32 %v7046, %v7400
  %v7402 = vpop.f32.mrf.mxu0
  %7403 = vmatprep.mubr.f32.mxu0 0.0
  %v7404 = vand.u32 %v5822, 4294901760
  %7405 = vmatmul.mubr.f32.gmra.mxu0 %v7404
  %v7406 = vpop.f32.mrf.mxu0
  %v7407 = vadd.f32 %v7054, %v7406
  %v7408 = vpop.f32.mrf.mxu0
  %7409 = vmatprep.mubr.f32.mxu0 0.0
  %v7410 = vand.u32 %v5823, 4294901760
  %7411 = vmatmul.mubr.f32.gmra.mxu0 %v7410
  %v7412 = vpop.f32.mrf.mxu0
  %v7413 = vadd.f32 %v7062, %v7412
  %v7414 = vpop.f32.mrf.mxu0
  %7415 = vmatprep.mubr.f32.mxu0 0.0
  %v7416 = vand.u32 %v5824, 4294901760
  %7417 = vmatmul.mubr.f32.gmra.mxu0 %v7416
  %v7418 = vpop.f32.mrf.mxu0
  %v7419 = vadd.f32 %v7070, %v7418
  %v7420 = vpop.f32.mrf.mxu0
  %7421 = vmatprep.mubr.f32.mxu0 0.0
  %v7422 = vand.u32 %v5825, 4294901760
  %7423 = vmatmul.mubr.f32.gmra.mxu0 %v7422
  %v7424 = vpop.f32.mrf.mxu0
  %v7425 = vadd.f32 %v7078, %v7424
  %v7426 = vpop.f32.mrf.mxu0
  %7427 = vmatprep.mubr.f32.mxu0 0.0
  %v7428 = vand.u32 %v5826, 4294901760
  %7429 = vmatmul.mubr.f32.gmra.mxu0 %v7428
  %v7430 = vpop.f32.mrf.mxu0
  %v7431 = vadd.f32 %v7086, %v7430
  %v7432 = vpop.f32.mrf.mxu0
  %7433 = vmatprep.mubr.f32.mxu0 0.0
  %v7434 = vand.u32 %v5827, 4294901760
  %7435 = vmatmul.mubr.f32.gmra.mxu0 %v7434
  %v7436 = vpop.f32.mrf.mxu0
  %v7437 = vadd.f32 %v7094, %v7436
  %v7438 = vpop.f32.mrf.mxu0
  %7439 = vmatprep.mubr.f32.mxu0 0.0
  %v7440 = vand.u32 %v5828, 4294901760
  %7441 = vmatmul.mubr.f32.gmra.mxu0 %v7440
  %v7442 = vpop.f32.mrf.mxu0
  %v7443 = vadd.f32 %v7102, %v7442
  %v7444 = vpop.f32.mrf.mxu0
  %7445 = vmatprep.mubr.f32.mxu0 0.0
  %v7446 = vand.u32 %v5829, 4294901760
  %7447 = vmatmul.mubr.f32.gmra.mxu0 %v7446
  %v7448 = vpop.f32.mrf.mxu0
  %v7449 = vadd.f32 %v7110, %v7448
  %v7450 = vpop.f32.mrf.mxu0
  %7451 = vmatprep.mubr.f32.mxu0 0.0
  %v7452 = vand.u32 %v5830, 4294901760
  %7453 = vmatmul.mubr.f32.gmra.mxu0 %v7452
  %v7454 = vpop.f32.mrf.mxu0
  %v7455 = vadd.f32 %v7118, %v7454
  %v7456 = vpop.f32.mrf.mxu0
  %7457 = vmatprep.mubr.f32.mxu0 0.0
  %v7458 = vand.u32 %v5831, 4294901760
  %7459 = vmatmul.mubr.f32.gmra.mxu0 %v7458
  %v7460 = vpop.f32.mrf.mxu0
  %v7461 = vadd.f32 %v7126, %v7460
  %v7462 = vpop.f32.mrf.mxu0
  %7463 = vmatprep.mubr.f32.mxu0 0.0
  %v7464 = vand.u32 %v5832, 4294901760
  %7465 = vmatmul.mubr.f32.gmra.mxu0 %v7464
  %v7466 = vpop.f32.mrf.mxu0
  %v7467 = vadd.f32 %v7134, %v7466
  %v7468 = vpop.f32.mrf.mxu0
  %7469 = vmatprep.mubr.f32.mxu0 0.0
  %v7470 = vand.u32 %v5833, 4294901760
  %7471 = vmatmul.mubr.f32.gmra.mxu0 %v7470
  %v7472 = vpop.f32.mrf.mxu0
  %v7473 = vadd.f32 %v7142, %v7472
  %v7474 = vpop.f32.mrf.mxu0
  %7475 = vmatprep.mubr.f32.mxu0 0.0
  %v7476 = vand.u32 %v5834, 4294901760
  %7477 = vmatmul.mubr.f32.gmra.mxu0 %v7476
  %v7478 = vpop.f32.mrf.mxu0
  %v7479 = vadd.f32 %v7150, %v7478
  %v7480 = vpop.f32.mrf.mxu0
  %7481 = vmatprep.mubr.f32.mxu0 0.0
  %v7482 = vand.u32 %v5835, 4294901760
  %7483 = vmatmul.mubr.f32.gmra.mxu0 %v7482
  %v7484 = vpop.f32.mrf.mxu0
  %v7485 = vadd.f32 %v7158, %v7484
  %v7486 = vpop.f32.mrf.mxu0
  %7487 = vmatprep.mubr.f32.mxu0 0.0
  %v7488 = vand.u32 %v5836, 4294901760
  %7489 = vmatmul.mubr.f32.gmra.mxu0 %v7488
  %v7490 = vpop.f32.mrf.mxu0
  %v7491 = vadd.f32 %v7166, %v7490
  %v7492 = vpop.f32.mrf.mxu0
  %7493 = vmatprep.mubr.f32.mxu0 0.0
  %v7494 = vand.u32 %v5837, 4294901760
  %7495 = vmatmul.mubr.f32.gmra.mxu0 %v7494
  %v7496 = vpop.f32.mrf.mxu0
  %v7497 = vadd.f32 %v7174, %v7496
  %v7498 = vpop.f32.mrf.mxu0
  %7499 = vmatprep.mubr.f32.mxu0 0.0
  %v7500 = vand.u32 %v5838, 4294901760
  %7501 = vmatmul.mubr.f32.gmra.mxu0 %v7500
  %v7502 = vpop.f32.mrf.mxu0
  %v7503 = vadd.f32 %v7182, %v7502
  %v7504 = vpop.f32.mrf.mxu0
  %7505 = vmatprep.mubr.f32.mxu0 0.0
  %v7506 = vand.u32 %v5839, 4294901760
  %7507 = vmatmul.mubr.f32.gmra.mxu0 %v7506
  %v7508 = vpop.f32.mrf.mxu0
  %v7509 = vadd.f32 %v7190, %v7508
  %v7510 = vpop.f32.mrf.mxu0
  %7511 = vmatprep.mubr.f32.mxu0 0.0
  %v7512 = vand.u32 %v5840, 4294901760
  %7513 = vmatmul.mubr.f32.gmra.mxu0 %v7512
  %v7514 = vpop.f32.mrf.mxu0
  %v7515 = vadd.f32 %v7198, %v7514
  %v7516 = vpop.f32.mrf.mxu0
  %7517 = vmatprep.mubr.f32.mxu0 0.0
  %v7518 = vand.u32 %v5841, 4294901760
  %7519 = vmatmul.mubr.f32.gmra.mxu0 %v7518
  %v7520 = vpop.f32.mrf.mxu0
  %v7521 = vadd.f32 %v7206, %v7520
  %v7522 = vpop.f32.mrf.mxu0
  %7523 = vmatprep.mubr.f32.mxu0 0.0
  %v7524 = vand.u32 %v5842, 4294901760
  %7525 = vmatmul.mubr.f32.gmra.mxu0 %v7524
  %v7526 = vpop.f32.mrf.mxu0
  %v7527 = vadd.f32 %v7214, %v7526
  %v7528 = vpop.f32.mrf.mxu0
  %7529 = vmatprep.mubr.f32.mxu0 0.0
  %v7530 = vand.u32 %v5843, 4294901760
  %7531 = vmatmul.mubr.f32.gmra.mxu0 %v7530
  %v7532 = vpop.f32.mrf.mxu0
  %v7533 = vadd.f32 %v7222, %v7532
  %v7534 = vpop.f32.mrf.mxu0
  %7535 = vmatprep.mubr.f32.mxu0 0.0
  %v7536 = vand.u32 %v5844, 4294901760
  %7537 = vmatmul.mubr.f32.gmra.mxu0 %v7536
  %v7538 = vpop.f32.mrf.mxu0
  %v7539 = vadd.f32 %v7230, %v7538
  %v7540 = vpop.f32.mrf.mxu0
  %7541 = vmatprep.mubr.f32.mxu0 0.0
  %v7542 = vand.u32 %v5845, 4294901760
  %7543 = vmatmul.mubr.f32.gmra.mxu0 %v7542
  %v7544 = vpop.f32.mrf.mxu0
  %v7545 = vadd.f32 %v7238, %v7544
  %v7546 = vpop.f32.mrf.mxu0
  %7547 = vmatprep.mubr.f32.mxu0 0.0
  %v7548 = vand.u32 %v5846, 4294901760
  %7549 = vmatmul.mubr.f32.gmra.mxu0 %v7548
  %v7550 = vpop.f32.mrf.mxu0
  %v7551 = vadd.f32 %v7246, %v7550
  %v7552 = vpop.f32.mrf.mxu0
  %7553 = vdwg.mxu0
  %7554 = vmatprep.subr.mxu0 0.0
  %v7555 = vand.u32 %v3582, 4294901760
  %7556 = vmatpush1.msra.mxu0 %v7555
  %7557 = vmatprep.subr.mxu0 0.0
  %v7558 = vand.u32 %v3581, 4294901760
  %7559 = vmatpush1.msra.mxu0 %v7558
  %7560 = vmatprep.subr.mxu0 0.0
  %v7561 = vand.u32 %v3580, 4294901760
  %7562 = vmatpush1.msra.mxu0 %v7561
  %7563 = vmatprep.subr.mxu0 0.0
  %v7564 = vand.u32 %v3579, 4294901760
  %7565 = vmatpush1.msra.mxu0 %v7564
  %7566 = vmatprep.subr.mxu0 0.0
  %v7567 = vand.u32 %v3578, 4294901760
  %7568 = vmatpush1.msra.mxu0 %v7567
  %7569 = vmatprep.subr.mxu0 0.0
  %v7570 = vand.u32 %v3577, 4294901760
  %7571 = vmatpush1.msra.mxu0 %v7570
  %7572 = vmatprep.subr.mxu0 0.0
  %v7573 = vand.u32 %v3576, 4294901760
  %7574 = vmatpush1.msra.mxu0 %v7573
  %7575 = vmatprep.subr.mxu0 0.0
  %v7576 = vand.u32 %v3575, 4294901760
  %7577 = vmatpush1.msra.mxu0 %v7576
  %7578 = vmatprep.subr.mxu0 0.0
  %v7579 = vand.u32 %v3574, 4294901760
  %7580 = vmatpush1.msra.mxu0 %v7579
  %7581 = vmatprep.subr.mxu0 0.0
  %v7582 = vand.u32 %v3573, 4294901760
  %7583 = vmatpush1.msra.mxu0 %v7582
  %7584 = vmatprep.subr.mxu0 0.0
  %v7585 = vand.u32 %v3572, 4294901760
  %7586 = vmatpush1.msra.mxu0 %v7585
  %7587 = vmatprep.subr.mxu0 0.0
  %v7588 = vand.u32 %v3571, 4294901760
  %7589 = vmatpush1.msra.mxu0 %v7588
  %7590 = vmatprep.subr.mxu0 0.0
  %v7591 = vand.u32 %v3570, 4294901760
  %7592 = vmatpush1.msra.mxu0 %v7591
  %7593 = vmatprep.subr.mxu0 0.0
  %v7594 = vand.u32 %v3569, 4294901760
  %7595 = vmatpush1.msra.mxu0 %v7594
  %7596 = vmatprep.subr.mxu0 0.0
  %v7597 = vand.u32 %v3568, 4294901760
  %7598 = vmatpush1.msra.mxu0 %v7597
  %7599 = vmatprep.subr.mxu0 0.0
  %v7600 = vand.u32 %v3567, 4294901760
  %7601 = vmatpush1.msra.mxu0 %v7600
  %7602 = vmatprep.subr.mxu0 0.0
  %7603 = vmatpush2.msra.mxu0 0.0
  %7604 = vmatprep.subr.mxu0 0.0
  %7605 = vmatpush2.msra.mxu0 0.0
  %7606 = vmatprep.subr.mxu0 0.0
  %7607 = vmatpush2.msra.mxu0 0.0
  %7608 = vmatprep.subr.mxu0 0.0
  %7609 = vmatpush2.msra.mxu0 0.0
  %7610 = vmatprep.subr.mxu0 0.0
  %7611 = vmatpush2.msra.mxu0 0.0
  %7612 = vmatprep.subr.mxu0 0.0
  %7613 = vmatpush2.msra.mxu0 0.0
  %7614 = vmatprep.subr.mxu0 0.0
  %7615 = vmatpush2.msra.mxu0 0.0
  %7616 = vmatprep.subr.mxu0 0.0
  %7617 = vmatpush2.msra.mxu0 0.0
  %7618 = vmatprep.subr.mxu0 0.0
  %7619 = vmatpush2.msra.mxu0 0.0
  %7620 = vmatprep.subr.mxu0 0.0
  %7621 = vmatpush2.msra.mxu0 0.0
  %7622 = vmatprep.subr.mxu0 0.0
  %7623 = vmatpush2.msra.mxu0 0.0
  %7624 = vmatprep.subr.mxu0 0.0
  %7625 = vmatpush2.msra.mxu0 0.0
  %7626 = vmatprep.subr.mxu0 0.0
  %7627 = vmatpush2.msra.mxu0 0.0
  %7628 = vmatprep.subr.mxu0 0.0
  %7629 = vmatpush2.msra.mxu0 0.0
  %7630 = vmatprep.subr.mxu0 0.0
  %7631 = vmatpush2.msra.mxu0 0.0
  %7632 = vmatprep.subr.mxu0 0.0
  %7633 = vmatpush2.msra.mxu0 0.0
  %7634 = vmatprep.mubr.f32.mxu0 0.0
  %v7635 = vand.u32 %v5815, 4294901760
  %7636 = vmatmul.mubr.f32.gmra.mxu0 %v7635
  %v7637 = vpop.f32.mrf.mxu0
  %v7638 = vadd.f32 %v7365, %v7637
  %v7639 = vpop.f32.mrf.mxu0
  %7640 = vmatprep.mubr.f32.mxu0 0.0
  %v7641 = vand.u32 %v5816, 4294901760
  %7642 = vmatmul.mubr.f32.gmra.mxu0 %v7641
  %v7643 = vpop.f32.mrf.mxu0
  %v7644 = vadd.f32 %v7371, %v7643
  %v7645 = vpop.f32.mrf.mxu0
  %7646 = vmatprep.mubr.f32.mxu0 0.0
  %v7647 = vand.u32 %v5817, 4294901760
  %7648 = vmatmul.mubr.f32.gmra.mxu0 %v7647
  %v7649 = vpop.f32.mrf.mxu0
  %v7650 = vadd.f32 %v7377, %v7649
  %v7651 = vpop.f32.mrf.mxu0
  %7652 = vmatprep.mubr.f32.mxu0 0.0
  %v7653 = vand.u32 %v5818, 4294901760
  %7654 = vmatmul.mubr.f32.gmra.mxu0 %v7653
  %v7655 = vpop.f32.mrf.mxu0
  %v7656 = vadd.f32 %v7383, %v7655
  %v7657 = vpop.f32.mrf.mxu0
  %7658 = vmatprep.mubr.f32.mxu0 0.0
  %v7659 = vand.u32 %v5819, 4294901760
  %7660 = vmatmul.mubr.f32.gmra.mxu0 %v7659
  %v7661 = vpop.f32.mrf.mxu0
  %v7662 = vadd.f32 %v7389, %v7661
  %v7663 = vpop.f32.mrf.mxu0
  %7664 = vmatprep.mubr.f32.mxu0 0.0
  %v7665 = vand.u32 %v5820, 4294901760
  %7666 = vmatmul.mubr.f32.gmra.mxu0 %v7665
  %v7667 = vpop.f32.mrf.mxu0
  %v7668 = vadd.f32 %v7395, %v7667
  %v7669 = vpop.f32.mrf.mxu0
  %7670 = vmatprep.mubr.f32.mxu0 0.0
  %v7671 = vand.u32 %v5821, 4294901760
  %7672 = vmatmul.mubr.f32.gmra.mxu0 %v7671
  %v7673 = vpop.f32.mrf.mxu0
  %v7674 = vadd.f32 %v7401, %v7673
  %v7675 = vpop.f32.mrf.mxu0
  %7676 = vmatprep.mubr.f32.mxu0 0.0
  %v7677 = vand.u32 %v5822, 4294901760
  %7678 = vmatmul.mubr.f32.gmra.mxu0 %v7677
  %v7679 = vpop.f32.mrf.mxu0
  %v7680 = vadd.f32 %v7407, %v7679
  %v7681 = vpop.f32.mrf.mxu0
  %7682 = vmatprep.mubr.f32.mxu0 0.0
  %v7683 = vand.u32 %v5823, 4294901760
  %7684 = vmatmul.mubr.f32.gmra.mxu0 %v7683
  %v7685 = vpop.f32.mrf.mxu0
  %v7686 = vadd.f32 %v7413, %v7685
  %v7687 = vpop.f32.mrf.mxu0
  %7688 = vmatprep.mubr.f32.mxu0 0.0
  %v7689 = vand.u32 %v5824, 4294901760
  %7690 = vmatmul.mubr.f32.gmra.mxu0 %v7689
  %v7691 = vpop.f32.mrf.mxu0
  %v7692 = vadd.f32 %v7419, %v7691
  %v7693 = vpop.f32.mrf.mxu0
  %7694 = vmatprep.mubr.f32.mxu0 0.0
  %v7695 = vand.u32 %v5825, 4294901760
  %7696 = vmatmul.mubr.f32.gmra.mxu0 %v7695
  %v7697 = vpop.f32.mrf.mxu0
  %v7698 = vadd.f32 %v7425, %v7697
  %v7699 = vpop.f32.mrf.mxu0
  %7700 = vmatprep.mubr.f32.mxu0 0.0
  %v7701 = vand.u32 %v5826, 4294901760
  %7702 = vmatmul.mubr.f32.gmra.mxu0 %v7701
  %v7703 = vpop.f32.mrf.mxu0
  %v7704 = vadd.f32 %v7431, %v7703
  %v7705 = vpop.f32.mrf.mxu0
  %7706 = vmatprep.mubr.f32.mxu0 0.0
  %v7707 = vand.u32 %v5827, 4294901760
  %7708 = vmatmul.mubr.f32.gmra.mxu0 %v7707
  %v7709 = vpop.f32.mrf.mxu0
  %v7710 = vadd.f32 %v7437, %v7709
  %v7711 = vpop.f32.mrf.mxu0
  %7712 = vmatprep.mubr.f32.mxu0 0.0
  %v7713 = vand.u32 %v5828, 4294901760
  %7714 = vmatmul.mubr.f32.gmra.mxu0 %v7713
  %v7715 = vpop.f32.mrf.mxu0
  %v7716 = vadd.f32 %v7443, %v7715
  %v7717 = vpop.f32.mrf.mxu0
  %7718 = vmatprep.mubr.f32.mxu0 0.0
  %v7719 = vand.u32 %v5829, 4294901760
  %7720 = vmatmul.mubr.f32.gmra.mxu0 %v7719
  %v7721 = vpop.f32.mrf.mxu0
  %v7722 = vadd.f32 %v7449, %v7721
  %v7723 = vpop.f32.mrf.mxu0
  %7724 = vmatprep.mubr.f32.mxu0 0.0
  %v7725 = vand.u32 %v5830, 4294901760
  %7726 = vmatmul.mubr.f32.gmra.mxu0 %v7725
  %v7727 = vpop.f32.mrf.mxu0
  %v7728 = vadd.f32 %v7455, %v7727
  %v7729 = vpop.f32.mrf.mxu0
  %7730 = vmatprep.mubr.f32.mxu0 0.0
  %v7731 = vand.u32 %v5831, 4294901760
  %7732 = vmatmul.mubr.f32.gmra.mxu0 %v7731
  %v7733 = vpop.f32.mrf.mxu0
  %v7734 = vadd.f32 %v7461, %v7733
  %v7735 = vpop.f32.mrf.mxu0
  %7736 = vmatprep.mubr.f32.mxu0 0.0
  %v7737 = vand.u32 %v5832, 4294901760
  %7738 = vmatmul.mubr.f32.gmra.mxu0 %v7737
  %v7739 = vpop.f32.mrf.mxu0
  %v7740 = vadd.f32 %v7467, %v7739
  %v7741 = vpop.f32.mrf.mxu0
  %7742 = vmatprep.mubr.f32.mxu0 0.0
  %v7743 = vand.u32 %v5833, 4294901760
  %7744 = vmatmul.mubr.f32.gmra.mxu0 %v7743
  %v7745 = vpop.f32.mrf.mxu0
  %v7746 = vadd.f32 %v7473, %v7745
  %v7747 = vpop.f32.mrf.mxu0
  %7748 = vmatprep.mubr.f32.mxu0 0.0
  %v7749 = vand.u32 %v5834, 4294901760
  %7750 = vmatmul.mubr.f32.gmra.mxu0 %v7749
  %v7751 = vpop.f32.mrf.mxu0
  %v7752 = vadd.f32 %v7479, %v7751
  %v7753 = vpop.f32.mrf.mxu0
  %7754 = vmatprep.mubr.f32.mxu0 0.0
  %v7755 = vand.u32 %v5835, 4294901760
  %7756 = vmatmul.mubr.f32.gmra.mxu0 %v7755
  %v7757 = vpop.f32.mrf.mxu0
  %v7758 = vadd.f32 %v7485, %v7757
  %v7759 = vpop.f32.mrf.mxu0
  %7760 = vmatprep.mubr.f32.mxu0 0.0
  %v7761 = vand.u32 %v5836, 4294901760
  %7762 = vmatmul.mubr.f32.gmra.mxu0 %v7761
  %v7763 = vpop.f32.mrf.mxu0
  %v7764 = vadd.f32 %v7491, %v7763
  %v7765 = vpop.f32.mrf.mxu0
  %7766 = vmatprep.mubr.f32.mxu0 0.0
  %v7767 = vand.u32 %v5837, 4294901760
  %7768 = vmatmul.mubr.f32.gmra.mxu0 %v7767
  %v7769 = vpop.f32.mrf.mxu0
  %v7770 = vadd.f32 %v7497, %v7769
  %v7771 = vpop.f32.mrf.mxu0
  %7772 = vmatprep.mubr.f32.mxu0 0.0
  %v7773 = vand.u32 %v5838, 4294901760
  %7774 = vmatmul.mubr.f32.gmra.mxu0 %v7773
  %v7775 = vpop.f32.mrf.mxu0
  %v7776 = vadd.f32 %v7503, %v7775
  %v7777 = vpop.f32.mrf.mxu0
  %7778 = vmatprep.mubr.f32.mxu0 0.0
  %v7779 = vand.u32 %v5839, 4294901760
  %7780 = vmatmul.mubr.f32.gmra.mxu0 %v7779
  %v7781 = vpop.f32.mrf.mxu0
  %v7782 = vadd.f32 %v7509, %v7781
  %v7783 = vpop.f32.mrf.mxu0
  %7784 = vmatprep.mubr.f32.mxu0 0.0
  %v7785 = vand.u32 %v5840, 4294901760
  %7786 = vmatmul.mubr.f32.gmra.mxu0 %v7785
  %v7787 = vpop.f32.mrf.mxu0
  %v7788 = vadd.f32 %v7515, %v7787
  %v7789 = vpop.f32.mrf.mxu0
  %7790 = vmatprep.mubr.f32.mxu0 0.0
  %v7791 = vand.u32 %v5841, 4294901760
  %7792 = vmatmul.mubr.f32.gmra.mxu0 %v7791
  %v7793 = vpop.f32.mrf.mxu0
  %v7794 = vadd.f32 %v7521, %v7793
  %v7795 = vpop.f32.mrf.mxu0
  %7796 = vmatprep.mubr.f32.mxu0 0.0
  %v7797 = vand.u32 %v5842, 4294901760
  %7798 = vmatmul.mubr.f32.gmra.mxu0 %v7797
  %v7799 = vpop.f32.mrf.mxu0
  %v7800 = vadd.f32 %v7527, %v7799
  %v7801 = vpop.f32.mrf.mxu0
  %7802 = vmatprep.mubr.f32.mxu0 0.0
  %v7803 = vand.u32 %v5843, 4294901760
  %7804 = vmatmul.mubr.f32.gmra.mxu0 %v7803
  %v7805 = vpop.f32.mrf.mxu0
  %v7806 = vadd.f32 %v7533, %v7805
  %v7807 = vpop.f32.mrf.mxu0
  %7808 = vmatprep.mubr.f32.mxu0 0.0
  %v7809 = vand.u32 %v5844, 4294901760
  %7810 = vmatmul.mubr.f32.gmra.mxu0 %v7809
  %v7811 = vpop.f32.mrf.mxu0
  %v7812 = vadd.f32 %v7539, %v7811
  %v7813 = vpop.f32.mrf.mxu0
  %7814 = vmatprep.mubr.f32.mxu0 0.0
  %v7815 = vand.u32 %v5845, 4294901760
  %7816 = vmatmul.mubr.f32.gmra.mxu0 %v7815
  %v7817 = vpop.f32.mrf.mxu0
  %v7818 = vadd.f32 %v7545, %v7817
  %v7819 = vpop.f32.mrf.mxu0
  %7820 = vmatprep.mubr.f32.mxu0 0.0
  %v7821 = vand.u32 %v5846, 4294901760
  %7822 = vmatmul.mubr.f32.gmra.mxu0 %v7821
  %v7823 = vpop.f32.mrf.mxu0
  %v7824 = vadd.f32 %v7551, %v7823
  %v7825 = vpop.f32.mrf.mxu0
  %7826 = vdwg.mxu0
  %7827 = vst.msk [vmem:[%s7] sm:$0xff] %vm101, %v7638
  %7828 = vst.msk [vmem:[%s7 + $0x8] sm:$0xff] %vm101, %v7644
  %7829 = vst.msk [vmem:[%s7 + $0x10] sm:$0xff] %vm101, %v7650
  %7830 = vst.msk [vmem:[%s7 + $0x18] sm:$0xff] %vm101, %v7656
  %7831 = vst.msk [vmem:[%s7 + $0x20] sm:$0xff] %vm101, %v7662
  %7832 = vst.msk [vmem:[%s7 + $0x28] sm:$0xff] %vm101, %v7668
  %7833 = vst.msk [vmem:[%s7 + $0x30] sm:$0xff] %vm101, %v7674
  %7834 = vst.msk [vmem:[%s7 + $0x38] sm:$0xff] %vm101, %v7680
  %7835 = vst.msk [vmem:[%s7 + $0x40] sm:$0xff] %vm101, %v7686
  %7836 = vst.msk [vmem:[%s7 + $0x48] sm:$0xff] %vm101, %v7692
  %7837 = vst.msk [vmem:[%s7 + $0x50] sm:$0xff] %vm101, %v7698
  %7838 = vst.msk [vmem:[%s7 + $0x58] sm:$0xff] %vm101, %v7704
  %7839 = vst.msk [vmem:[%s7 + $0x60] sm:$0xff] %vm101, %v7710
  %7840 = vst.msk [vmem:[%s7 + $0x68] sm:$0xff] %vm101, %v7716
  %7841 = vst.msk [vmem:[%s7 + $0x70] sm:$0xff] %vm101, %v7722
  %7842 = vst.msk [vmem:[%s7 + $0x78] sm:$0xff] %vm101, %v7728
  %7843 = vst.msk [vmem:[%s7 + $0x80] sm:$0xff] %vm101, %v7734
  %7844 = vst.msk [vmem:[%s7 + $0x88] sm:$0xff] %vm101, %v7740
  %7845 = vst.msk [vmem:[%s7 + $0x90] sm:$0xff] %vm101, %v7746
  %7846 = vst.msk [vmem:[%s7 + $0x98] sm:$0xff] %vm101, %v7752
  %7847 = vst.msk [vmem:[%s7 + $0xa0] sm:$0xff] %vm101, %v7758
  %7848 = vst.msk [vmem:[%s7 + $0xa8] sm:$0xff] %vm101, %v7764
  %7849 = vst.msk [vmem:[%s7 + $0xb0] sm:$0xff] %vm101, %v7770
  %7850 = vst.msk [vmem:[%s7 + $0xb8] sm:$0xff] %vm101, %v7776
  %7851 = vst.msk [vmem:[%s7 + $0xc0] sm:$0xff] %vm101, %v7782
  %7852 = vst.msk [vmem:[%s7 + $0xc8] sm:$0xff] %vm101, %v7788
  %7853 = vst.msk [vmem:[%s7 + $0xd0] sm:$0xff] %vm101, %v7794
  %7854 = vst.msk [vmem:[%s7 + $0xd8] sm:$0xff] %vm101, %v7800
  %7855 = vst.msk [vmem:[%s7 + $0xe0] sm:$0xff] %vm101, %v7806
  %7856 = vst.msk [vmem:[%s7 + $0xe8] sm:$0xff] %vm101, %v7812
  %7857 = vst.msk [vmem:[%s7 + $0xf0] sm:$0xff] %vm101, %v7818
  %7858 = vst.msk [vmem:[%s7 + $0xf8] sm:$0xff] %vm101, %v7824
  %v7859 = vld [vmem:[#allocation2 + $0x148] sm:$0xff]
  %v7860 = vld [vmem:[#allocation2 + $0x150] sm:$0xff]
  %v7861 = vld [vmem:[#allocation2 + $0x158] sm:$0xff]
  %v7862 = vld [vmem:[#allocation2 + $0x160] sm:$0xff]
  %v7863 = vld [vmem:[#allocation2 + $0x168] sm:$0xff]
  %v7864 = vld [vmem:[#allocation2 + $0x170] sm:$0xff]
  %v7865 = vld [vmem:[#allocation2 + $0x178] sm:$0xff]
  %v7866 = vld [vmem:[#allocation2 + $0x180] sm:$0xff]
  %v7867 = vld [vmem:[#allocation2 + $0x188] sm:$0xff]
  %v7868 = vld [vmem:[#allocation2 + $0x190] sm:$0xff]
  %v7869 = vld [vmem:[#allocation2 + $0x198] sm:$0xff]
  %v7870 = vld [vmem:[#allocation2 + $0x1a0] sm:$0xff]
  %v7871 = vld [vmem:[#allocation2 + $0x1a8] sm:$0xff]
  %v7872 = vld [vmem:[#allocation2 + $0x1b0] sm:$0xff]
  %v7873 = vld [vmem:[#allocation2 + $0x1b8] sm:$0xff]
  %v7874 = vld [vmem:[#allocation2 + $0x1c0] sm:$0xff]
  %v7875 = vld [vmem:[#allocation2 + $0x1c8] sm:$0xff]
  %v7876 = vld [vmem:[#allocation2 + $0x1d0] sm:$0xff]
  %v7877 = vld [vmem:[#allocation2 + $0x1d8] sm:$0xff]
  %v7878 = vld [vmem:[#allocation2 + $0x1e0] sm:$0xff]
  %v7879 = vld [vmem:[#allocation2 + $0x1e8] sm:$0xff]
  %v7880 = vld [vmem:[#allocation2 + $0x1f0] sm:$0xff]
  %v7881 = vld [vmem:[#allocation2 + $0x1f8] sm:$0xff]
  %v7882 = vld [vmem:[#allocation2 + $0x200] sm:$0xff]
  %v7883 = vld [vmem:[#allocation2 + $0x208] sm:$0xff]
  %v7884 = vld [vmem:[#allocation2 + $0x210] sm:$0xff]
  %v7885 = vld [vmem:[#allocation2 + $0x218] sm:$0xff]
  %v7886 = vld [vmem:[#allocation2 + $0x220] sm:$0xff]
  %v7887 = vld [vmem:[#allocation2 + $0x228] sm:$0xff]
  %v7888 = vld [vmem:[#allocation2 + $0x230] sm:$0xff]
  %v7889 = vld [vmem:[#allocation2 + $0x238] sm:$0xff]
  %v7890 = vld [vmem:[#allocation2 + $0x240] sm:$0xff]
  %v7891 = vmul.f32 %v7859, %v4228
  %v7892 = vmul.f32 %v7860, %v4228
  %v7893 = vmul.f32 %v7861, %v4228
  %v7894 = vmul.f32 %v7862, %v4228
  %v7895 = vmul.f32 %v7863, %v4228
  %v7896 = vmul.f32 %v7864, %v4228
  %v7897 = vmul.f32 %v7865, %v4228
  %v7898 = vmul.f32 %v7866, %v4228
  %v7899 = vmul.f32 %v7867, %v4228
  %v7900 = vmul.f32 %v7868, %v4228
  %v7901 = vmul.f32 %v7869, %v4228
  %v7902 = vmul.f32 %v7870, %v4228
  %v7903 = vmul.f32 %v7871, %v4228
  %v7904 = vmul.f32 %v7872, %v4228
  %v7905 = vmul.f32 %v7873, %v4228
  %v7906 = vmul.f32 %v7874, %v4228
  %v7907 = vmul.f32 %v7875, %v4228
  %v7908 = vmul.f32 %v7876, %v4228
  %v7909 = vmul.f32 %v7877, %v4228
  %v7910 = vmul.f32 %v7878, %v4228
  %v7911 = vmul.f32 %v7879, %v4228
  %v7912 = vmul.f32 %v7880, %v4228
  %v7913 = vmul.f32 %v7881, %v4228
  %v7914 = vmul.f32 %v7882, %v4228
  %v7915 = vmul.f32 %v7883, %v4228
  %v7916 = vmul.f32 %v7884, %v4228
  %v7917 = vmul.f32 %v7885, %v4228
  %v7918 = vmul.f32 %v7886, %v4228
  %v7919 = vmul.f32 %v7887, %v4228
  %v7920 = vmul.f32 %v7888, %v4228
  %v7921 = vmul.f32 %v7889, %v4228
  %v7922 = vmul.f32 %v7890, %v4228
  %v7923 = vld [vmem:[#allocation2 + $0x138] sm:$0xff]
  %v7924 = vld [vmem:[#allocation2 + $0x140] sm:$0xff]
  %v7925 = vmul.f32 %v7923, %v4266
  %v7926 = vmul.f32 %v7924, %v4266
  %v7927 = vmul.f32 %v7859, %v4266
  %v7928 = vmul.f32 %v7860, %v4266
  %v7929 = vmul.f32 %v7861, %v4266
  %v7930 = vmul.f32 %v7862, %v4266
  %v7931 = vmul.f32 %v7863, %v4266
  %v7932 = vmul.f32 %v7864, %v4266
  %v7933 = vmul.f32 %v7865, %v4266
  %v7934 = vmul.f32 %v7866, %v4266
  %v7935 = vmul.f32 %v7867, %v4266
  %v7936 = vmul.f32 %v7868, %v4266
  %v7937 = vmul.f32 %v7869, %v4266
  %v7938 = vmul.f32 %v7870, %v4266
  %v7939 = vmul.f32 %v7871, %v4266
  %v7940 = vmul.f32 %v7872, %v4266
  %v7941 = vmul.f32 %v7873, %v4266
  %v7942 = vmul.f32 %v7874, %v4266
  %v7943 = vmul.f32 %v7875, %v4266
  %v7944 = vmul.f32 %v7876, %v4266
  %v7945 = vmul.f32 %v7877, %v4266
  %v7946 = vmul.f32 %v7878, %v4266
  %v7947 = vmul.f32 %v7879, %v4266
  %v7948 = vmul.f32 %v7880, %v4266
  %v7949 = vmul.f32 %v7881, %v4266
  %v7950 = vmul.f32 %v7882, %v4266
  %v7951 = vmul.f32 %v7883, %v4266
  %v7952 = vmul.f32 %v7884, %v4266
  %v7953 = vmul.f32 %v7885, %v4266
  %v7954 = vmul.f32 %v7886, %v4266
  %v7955 = vmul.f32 %v7887, %v4266
  %v7956 = vmul.f32 %v7888, %v4266
  %v7957 = vadd.f32 %v7891, %v7925
  %v7958 = vadd.f32 %v7892, %v7926
  %v7959 = vadd.f32 %v7893, %v7927
  %v7960 = vadd.f32 %v7894, %v7928
  %v7961 = vadd.f32 %v7895, %v7929
  %v7962 = vadd.f32 %v7896, %v7930
  %v7963 = vadd.f32 %v7897, %v7931
  %v7964 = vadd.f32 %v7898, %v7932
  %v7965 = vadd.f32 %v7899, %v7933
  %v7966 = vadd.f32 %v7900, %v7934
  %v7967 = vadd.f32 %v7901, %v7935
  %v7968 = vadd.f32 %v7902, %v7936
  %v7969 = vadd.f32 %v7903, %v7937
  %v7970 = vadd.f32 %v7904, %v7938
  %v7971 = vadd.f32 %v7905, %v7939
  %v7972 = vadd.f32 %v7906, %v7940
  %v7973 = vadd.f32 %v7907, %v7941
  %v7974 = vadd.f32 %v7908, %v7942
  %v7975 = vadd.f32 %v7909, %v7943
  %v7976 = vadd.f32 %v7910, %v7944
  %v7977 = vadd.f32 %v7911, %v7945
  %v7978 = vadd.f32 %v7912, %v7946
  %v7979 = vadd.f32 %v7913, %v7947
  %v7980 = vadd.f32 %v7914, %v7948
  %v7981 = vadd.f32 %v7915, %v7949
  %v7982 = vadd.f32 %v7916, %v7950
  %v7983 = vadd.f32 %v7917, %v7951
  %v7984 = vadd.f32 %v7918, %v7952
  %v7985 = vadd.f32 %v7919, %v7953
  %v7986 = vadd.f32 %v7920, %v7954
  %v7987 = vadd.f32 %v7921, %v7955
  %v7988 = vadd.f32 %v7922, %v7956
  %v7989 = vld [vmem:[#allocation2 + $0x248] sm:$0xff]
  %v7990 = vld [vmem:[#allocation2 + $0x250] sm:$0xff]
  %v7991 = vmul.f32 %v7861, %v4336
  %v7992 = vmul.f32 %v7862, %v4336
  %v7993 = vmul.f32 %v7863, %v4336
  %v7994 = vmul.f32 %v7864, %v4336
  %v7995 = vmul.f32 %v7865, %v4336
  %v7996 = vmul.f32 %v7866, %v4336
  %v7997 = vmul.f32 %v7867, %v4336
  %v7998 = vmul.f32 %v7868, %v4336
  %v7999 = vmul.f32 %v7869, %v4336
  %v8000 = vmul.f32 %v7870, %v4336
  %v8001 = vmul.f32 %v7871, %v4336
  %v8002 = vmul.f32 %v7872, %v4336
  %v8003 = vmul.f32 %v7873, %v4336
  %v8004 = vmul.f32 %v7874, %v4336
  %v8005 = vmul.f32 %v7875, %v4336
  %v8006 = vmul.f32 %v7876, %v4336
  %v8007 = vmul.f32 %v7877, %v4336
  %v8008 = vmul.f32 %v7878, %v4336
  %v8009 = vmul.f32 %v7879, %v4336
  %v8010 = vmul.f32 %v7880, %v4336
  %v8011 = vmul.f32 %v7881, %v4336
  %v8012 = vmul.f32 %v7882, %v4336
  %v8013 = vmul.f32 %v7883, %v4336
  %v8014 = vmul.f32 %v7884, %v4336
  %v8015 = vmul.f32 %v7885, %v4336
  %v8016 = vmul.f32 %v7886, %v4336
  %v8017 = vmul.f32 %v7887, %v4336
  %v8018 = vmul.f32 %v7888, %v4336
  %v8019 = vmul.f32 %v7889, %v4336
  %v8020 = vmul.f32 %v7890, %v4336
  %v8021 = vmul.f32 %v7989, %v4336
  %v8022 = vmul.f32 %v7990, %v4336
  %v8023 = vadd.f32 %v7957, %v7991
  %v8024 = vadd.f32 %v7958, %v7992
  %v8025 = vadd.f32 %v7959, %v7993
  %v8026 = vadd.f32 %v7960, %v7994
  %v8027 = vadd.f32 %v7961, %v7995
  %v8028 = vadd.f32 %v7962, %v7996
  %v8029 = vadd.f32 %v7963, %v7997
  %v8030 = vadd.f32 %v7964, %v7998
  %v8031 = vadd.f32 %v7965, %v7999
  %v8032 = vadd.f32 %v7966, %v8000
  %v8033 = vadd.f32 %v7967, %v8001
  %v8034 = vadd.f32 %v7968, %v8002
  %v8035 = vadd.f32 %v7969, %v8003
  %v8036 = vadd.f32 %v7970, %v8004
  %v8037 = vadd.f32 %v7971, %v8005
  %v8038 = vadd.f32 %v7972, %v8006
  %v8039 = vadd.f32 %v7973, %v8007
  %v8040 = vadd.f32 %v7974, %v8008
  %v8041 = vadd.f32 %v7975, %v8009
  %v8042 = vadd.f32 %v7976, %v8010
  %v8043 = vadd.f32 %v7977, %v8011
  %v8044 = vadd.f32 %v7978, %v8012
  %v8045 = vadd.f32 %v7979, %v8013
  %v8046 = vadd.f32 %v7980, %v8014
  %v8047 = vadd.f32 %v7981, %v8015
  %v8048 = vadd.f32 %v7982, %v8016
  %v8049 = vadd.f32 %v7983, %v8017
  %v8050 = vadd.f32 %v7984, %v8018
  %v8051 = vadd.f32 %v7985, %v8019
  %v8052 = vadd.f32 %v7986, %v8020
  %v8053 = vadd.f32 %v7987, %v8021
  %v8054 = vadd.f32 %v7988, %v8022
  %v8055 = vld [vmem:[#allocation2 + $0x137] sm:$0xff]
  %v8056 = vld [vmem:[#allocation2 + $0x13f] sm:$0xff]
  %v8057 = vld [vmem:[#allocation2 + $0x147] sm:$0xff]
  %v8058 = vld [vmem:[#allocation2 + $0x14f] sm:$0xff]
  %v8059 = vld [vmem:[#allocation2 + $0x157] sm:$0xff]
  %v8060 = vld [vmem:[#allocation2 + $0x15f] sm:$0xff]
  %v8061 = vld [vmem:[#allocation2 + $0x167] sm:$0xff]
  %v8062 = vld [vmem:[#allocation2 + $0x16f] sm:$0xff]
  %v8063 = vld [vmem:[#allocation2 + $0x177] sm:$0xff]
  %v8064 = vld [vmem:[#allocation2 + $0x17f] sm:$0xff]
  %v8065 = vld [vmem:[#allocation2 + $0x187] sm:$0xff]
  %v8066 = vld [vmem:[#allocation2 + $0x18f] sm:$0xff]
  %v8067 = vld [vmem:[#allocation2 + $0x197] sm:$0xff]
  %v8068 = vld [vmem:[#allocation2 + $0x19f] sm:$0xff]
  %v8069 = vld [vmem:[#allocation2 + $0x1a7] sm:$0xff]
  %v8070 = vld [vmem:[#allocation2 + $0x1af] sm:$0xff]
  %v8071 = vld [vmem:[#allocation2 + $0x1b7] sm:$0xff]
  %v8072 = vld [vmem:[#allocation2 + $0x1bf] sm:$0xff]
  %v8073 = vld [vmem:[#allocation2 + $0x1c7] sm:$0xff]
  %v8074 = vld [vmem:[#allocation2 + $0x1cf] sm:$0xff]
  %v8075 = vld [vmem:[#allocation2 + $0x1d7] sm:$0xff]
  %v8076 = vld [vmem:[#allocation2 + $0x1df] sm:$0xff]
  %v8077 = vld [vmem:[#allocation2 + $0x1e7] sm:$0xff]
  %v8078 = vld [vmem:[#allocation2 + $0x1ef] sm:$0xff]
  %v8079 = vld [vmem:[#allocation2 + $0x1f7] sm:$0xff]
  %v8080 = vld [vmem:[#allocation2 + $0x1ff] sm:$0xff]
  %v8081 = vld [vmem:[#allocation2 + $0x207] sm:$0xff]
  %v8082 = vld [vmem:[#allocation2 + $0x20f] sm:$0xff]
  %v8083 = vld [vmem:[#allocation2 + $0x217] sm:$0xff]
  %v8084 = vld [vmem:[#allocation2 + $0x21f] sm:$0xff]
  %v8085 = vld [vmem:[#allocation2 + $0x227] sm:$0xff]
  %v8086 = vld [vmem:[#allocation2 + $0x22f] sm:$0xff]
  %v8087 = vmul.f32 %v8055, %v4436
  %v8088 = vmul.f32 %v8056, %v4436
  %v8089 = vmul.f32 %v8057, %v4436
  %v8090 = vmul.f32 %v8058, %v4436
  %v8091 = vmul.f32 %v8059, %v4436
  %v8092 = vmul.f32 %v8060, %v4436
  %v8093 = vmul.f32 %v8061, %v4436
  %v8094 = vmul.f32 %v8062, %v4436
  %v8095 = vmul.f32 %v8063, %v4436
  %v8096 = vmul.f32 %v8064, %v4436
  %v8097 = vmul.f32 %v8065, %v4436
  %v8098 = vmul.f32 %v8066, %v4436
  %v8099 = vmul.f32 %v8067, %v4436
  %v8100 = vmul.f32 %v8068, %v4436
  %v8101 = vmul.f32 %v8069, %v4436
  %v8102 = vmul.f32 %v8070, %v4436
  %v8103 = vmul.f32 %v8071, %v4436
  %v8104 = vmul.f32 %v8072, %v4436
  %v8105 = vmul.f32 %v8073, %v4436
  %v8106 = vmul.f32 %v8074, %v4436
  %v8107 = vmul.f32 %v8075, %v4436
  %v8108 = vmul.f32 %v8076, %v4436
  %v8109 = vmul.f32 %v8077, %v4436
  %v8110 = vmul.f32 %v8078, %v4436
  %v8111 = vmul.f32 %v8079, %v4436
  %v8112 = vmul.f32 %v8080, %v4436
  %v8113 = vmul.f32 %v8081, %v4436
  %v8114 = vmul.f32 %v8082, %v4436
  %v8115 = vmul.f32 %v8083, %v4436
  %v8116 = vmul.f32 %v8084, %v4436
  %v8117 = vmul.f32 %v8085, %v4436
  %v8118 = vmul.f32 %v8086, %v4436
  %v8119 = vld [vmem:[#allocation2 + $0x237] sm:$0xff]
  %v8120 = vld [vmem:[#allocation2 + $0x23f] sm:$0xff]
  %v8121 = vmul.f32 %v8057, %v4474
  %v8122 = vmul.f32 %v8058, %v4474
  %v8123 = vmul.f32 %v8059, %v4474
  %v8124 = vmul.f32 %v8060, %v4474
  %v8125 = vmul.f32 %v8061, %v4474
  %v8126 = vmul.f32 %v8062, %v4474
  %v8127 = vmul.f32 %v8063, %v4474
  %v8128 = vmul.f32 %v8064, %v4474
  %v8129 = vmul.f32 %v8065, %v4474
  %v8130 = vmul.f32 %v8066, %v4474
  %v8131 = vmul.f32 %v8067, %v4474
  %v8132 = vmul.f32 %v8068, %v4474
  %v8133 = vmul.f32 %v8069, %v4474
  %v8134 = vmul.f32 %v8070, %v4474
  %v8135 = vmul.f32 %v8071, %v4474
  %v8136 = vmul.f32 %v8072, %v4474
  %v8137 = vmul.f32 %v8073, %v4474
  %v8138 = vmul.f32 %v8074, %v4474
  %v8139 = vmul.f32 %v8075, %v4474
  %v8140 = vmul.f32 %v8076, %v4474
  %v8141 = vmul.f32 %v8077, %v4474
  %v8142 = vmul.f32 %v8078, %v4474
  %v8143 = vmul.f32 %v8079, %v4474
  %v8144 = vmul.f32 %v8080, %v4474
  %v8145 = vmul.f32 %v8081, %v4474
  %v8146 = vmul.f32 %v8082, %v4474
  %v8147 = vmul.f32 %v8083, %v4474
  %v8148 = vmul.f32 %v8084, %v4474
  %v8149 = vmul.f32 %v8085, %v4474
  %v8150 = vmul.f32 %v8086, %v4474
  %v8151 = vmul.f32 %v8119, %v4474
  %v8152 = vmul.f32 %v8120, %v4474
  %v8153 = vadd.f32 %v8087, %v8121
  %v8154 = vadd.f32 %v8088, %v8122
  %v8155 = vadd.f32 %v8089, %v8123
  %v8156 = vadd.f32 %v8090, %v8124
  %v8157 = vadd.f32 %v8091, %v8125
  %v8158 = vadd.f32 %v8092, %v8126
  %v8159 = vadd.f32 %v8093, %v8127
  %v8160 = vadd.f32 %v8094, %v8128
  %v8161 = vadd.f32 %v8095, %v8129
  %v8162 = vadd.f32 %v8096, %v8130
  %v8163 = vadd.f32 %v8097, %v8131
  %v8164 = vadd.f32 %v8098, %v8132
  %v8165 = vadd.f32 %v8099, %v8133
  %v8166 = vadd.f32 %v8100, %v8134
  %v8167 = vadd.f32 %v8101, %v8135
  %v8168 = vadd.f32 %v8102, %v8136
  %v8169 = vadd.f32 %v8103, %v8137
  %v8170 = vadd.f32 %v8104, %v8138
  %v8171 = vadd.f32 %v8105, %v8139
  %v8172 = vadd.f32 %v8106, %v8140
  %v8173 = vadd.f32 %v8107, %v8141
  %v8174 = vadd.f32 %v8108, %v8142
  %v8175 = vadd.f32 %v8109, %v8143
  %v8176 = vadd.f32 %v8110, %v8144
  %v8177 = vadd.f32 %v8111, %v8145
  %v8178 = vadd.f32 %v8112, %v8146
  %v8179 = vadd.f32 %v8113, %v8147
  %v8180 = vadd.f32 %v8114, %v8148
  %v8181 = vadd.f32 %v8115, %v8149
  %v8182 = vadd.f32 %v8116, %v8150
  %v8183 = vadd.f32 %v8117, %v8151
  %v8184 = vadd.f32 %v8118, %v8152
  %v8185 = vld [vmem:[#allocation2 + $0x247] sm:$0xff]
  %v8186 = vld [vmem:[#allocation2 + $0x24f] sm:$0xff]
  %v8187 = vmul.f32 %v8059, %v4544
  %v8188 = vmul.f32 %v8060, %v4544
  %v8189 = vmul.f32 %v8061, %v4544
  %v8190 = vmul.f32 %v8062, %v4544
  %v8191 = vmul.f32 %v8063, %v4544
  %v8192 = vmul.f32 %v8064, %v4544
  %v8193 = vmul.f32 %v8065, %v4544
  %v8194 = vmul.f32 %v8066, %v4544
  %v8195 = vmul.f32 %v8067, %v4544
  %v8196 = vmul.f32 %v8068, %v4544
  %v8197 = vmul.f32 %v8069, %v4544
  %v8198 = vmul.f32 %v8070, %v4544
  %v8199 = vmul.f32 %v8071, %v4544
  %v8200 = vmul.f32 %v8072, %v4544
  %v8201 = vmul.f32 %v8073, %v4544
  %v8202 = vmul.f32 %v8074, %v4544
  %v8203 = vmul.f32 %v8075, %v4544
  %v8204 = vmul.f32 %v8076, %v4544
  %v8205 = vmul.f32 %v8077, %v4544
  %v8206 = vmul.f32 %v8078, %v4544
  %v8207 = vmul.f32 %v8079, %v4544
  %v8208 = vmul.f32 %v8080, %v4544
  %v8209 = vmul.f32 %v8081, %v4544
  %v8210 = vmul.f32 %v8082, %v4544
  %v8211 = vmul.f32 %v8083, %v4544
  %v8212 = vmul.f32 %v8084, %v4544
  %v8213 = vmul.f32 %v8085, %v4544
  %v8214 = vmul.f32 %v8086, %v4544
  %v8215 = vmul.f32 %v8119, %v4544
  %v8216 = vmul.f32 %v8120, %v4544
  %v8217 = vmul.f32 %v8185, %v4544
  %v8218 = vmul.f32 %v8186, %v4544
  %v8219 = vadd.f32 %v8153, %v8187
  %v8220 = vadd.f32 %v8154, %v8188
  %v8221 = vadd.f32 %v8155, %v8189
  %v8222 = vadd.f32 %v8156, %v8190
  %v8223 = vadd.f32 %v8157, %v8191
  %v8224 = vadd.f32 %v8158, %v8192
  %v8225 = vadd.f32 %v8159, %v8193
  %v8226 = vadd.f32 %v8160, %v8194
  %v8227 = vadd.f32 %v8161, %v8195
  %v8228 = vadd.f32 %v8162, %v8196
  %v8229 = vadd.f32 %v8163, %v8197
  %v8230 = vadd.f32 %v8164, %v8198
  %v8231 = vadd.f32 %v8165, %v8199
  %v8232 = vadd.f32 %v8166, %v8200
  %v8233 = vadd.f32 %v8167, %v8201
  %v8234 = vadd.f32 %v8168, %v8202
  %v8235 = vadd.f32 %v8169, %v8203
  %v8236 = vadd.f32 %v8170, %v8204
  %v8237 = vadd.f32 %v8171, %v8205
  %v8238 = vadd.f32 %v8172, %v8206
  %v8239 = vadd.f32 %v8173, %v8207
  %v8240 = vadd.f32 %v8174, %v8208
  %v8241 = vadd.f32 %v8175, %v8209
  %v8242 = vadd.f32 %v8176, %v8210
  %v8243 = vadd.f32 %v8177, %v8211
  %v8244 = vadd.f32 %v8178, %v8212
  %v8245 = vadd.f32 %v8179, %v8213
  %v8246 = vadd.f32 %v8180, %v8214
  %v8247 = vadd.f32 %v8181, %v8215
  %v8248 = vadd.f32 %v8182, %v8216
  %v8249 = vadd.f32 %v8183, %v8217
  %v8250 = vadd.f32 %v8184, %v8218
  %v8251 = vld [vmem:[#allocation2 + $0x139] sm:$0xff]
  %v8252 = vld [vmem:[#allocation2 + $0x141] sm:$0xff]
  %v8253 = vld [vmem:[#allocation2 + $0x149] sm:$0xff]
  %v8254 = vld [vmem:[#allocation2 + $0x151] sm:$0xff]
  %v8255 = vld [vmem:[#allocation2 + $0x159] sm:$0xff]
  %v8256 = vld [vmem:[#allocation2 + $0x161] sm:$0xff]
  %v8257 = vld [vmem:[#allocation2 + $0x169] sm:$0xff]
  %v8258 = vld [vmem:[#allocation2 + $0x171] sm:$0xff]
  %v8259 = vld [vmem:[#allocation2 + $0x179] sm:$0xff]
  %v8260 = vld [vmem:[#allocation2 + $0x181] sm:$0xff]
  %v8261 = vld [vmem:[#allocation2 + $0x189] sm:$0xff]
  %v8262 = vld [vmem:[#allocation2 + $0x191] sm:$0xff]
  %v8263 = vld [vmem:[#allocation2 + $0x199] sm:$0xff]
  %v8264 = vld [vmem:[#allocation2 + $0x1a1] sm:$0xff]
  %v8265 = vld [vmem:[#allocation2 + $0x1a9] sm:$0xff]
  %v8266 = vld [vmem:[#allocation2 + $0x1b1] sm:$0xff]
  %v8267 = vld [vmem:[#allocation2 + $0x1b9] sm:$0xff]
  %v8268 = vld [vmem:[#allocation2 + $0x1c1] sm:$0xff]
  %v8269 = vld [vmem:[#allocation2 + $0x1c9] sm:$0xff]
  %v8270 = vld [vmem:[#allocation2 + $0x1d1] sm:$0xff]
  %v8271 = vld [vmem:[#allocation2 + $0x1d9] sm:$0xff]
  %v8272 = vld [vmem:[#allocation2 + $0x1e1] sm:$0xff]
  %v8273 = vld [vmem:[#allocation2 + $0x1e9] sm:$0xff]
  %v8274 = vld [vmem:[#allocation2 + $0x1f1] sm:$0xff]
  %v8275 = vld [vmem:[#allocation2 + $0x1f9] sm:$0xff]
  %v8276 = vld [vmem:[#allocation2 + $0x201] sm:$0xff]
  %v8277 = vld [vmem:[#allocation2 + $0x209] sm:$0xff]
  %v8278 = vld [vmem:[#allocation2 + $0x211] sm:$0xff]
  %v8279 = vld [vmem:[#allocation2 + $0x219] sm:$0xff]
  %v8280 = vld [vmem:[#allocation2 + $0x221] sm:$0xff]
  %v8281 = vld [vmem:[#allocation2 + $0x229] sm:$0xff]
  %v8282 = vld [vmem:[#allocation2 + $0x231] sm:$0xff]
  %v8283 = vmul.f32 %v8251, %v4644
  %v8284 = vmul.f32 %v8252, %v4644
  %v8285 = vmul.f32 %v8253, %v4644
  %v8286 = vmul.f32 %v8254, %v4644
  %v8287 = vmul.f32 %v8255, %v4644
  %v8288 = vmul.f32 %v8256, %v4644
  %v8289 = vmul.f32 %v8257, %v4644
  %v8290 = vmul.f32 %v8258, %v4644
  %v8291 = vmul.f32 %v8259, %v4644
  %v8292 = vmul.f32 %v8260, %v4644
  %v8293 = vmul.f32 %v8261, %v4644
  %v8294 = vmul.f32 %v8262, %v4644
  %v8295 = vmul.f32 %v8263, %v4644
  %v8296 = vmul.f32 %v8264, %v4644
  %v8297 = vmul.f32 %v8265, %v4644
  %v8298 = vmul.f32 %v8266, %v4644
  %v8299 = vmul.f32 %v8267, %v4644
  %v8300 = vmul.f32 %v8268, %v4644
  %v8301 = vmul.f32 %v8269, %v4644
  %v8302 = vmul.f32 %v8270, %v4644
  %v8303 = vmul.f32 %v8271, %v4644
  %v8304 = vmul.f32 %v8272, %v4644
  %v8305 = vmul.f32 %v8273, %v4644
  %v8306 = vmul.f32 %v8274, %v4644
  %v8307 = vmul.f32 %v8275, %v4644
  %v8308 = vmul.f32 %v8276, %v4644
  %v8309 = vmul.f32 %v8277, %v4644
  %v8310 = vmul.f32 %v8278, %v4644
  %v8311 = vmul.f32 %v8279, %v4644
  %v8312 = vmul.f32 %v8280, %v4644
  %v8313 = vmul.f32 %v8281, %v4644
  %v8314 = vmul.f32 %v8282, %v4644
  %v8315 = vld [vmem:[#allocation2 + $0x239] sm:$0xff]
  %v8316 = vld [vmem:[#allocation2 + $0x241] sm:$0xff]
  %v8317 = vmul.f32 %v8253, %v4682
  %v8318 = vmul.f32 %v8254, %v4682
  %v8319 = vmul.f32 %v8255, %v4682
  %v8320 = vmul.f32 %v8256, %v4682
  %v8321 = vmul.f32 %v8257, %v4682
  %v8322 = vmul.f32 %v8258, %v4682
  %v8323 = vmul.f32 %v8259, %v4682
  %v8324 = vmul.f32 %v8260, %v4682
  %v8325 = vmul.f32 %v8261, %v4682
  %v8326 = vmul.f32 %v8262, %v4682
  %v8327 = vmul.f32 %v8263, %v4682
  %v8328 = vmul.f32 %v8264, %v4682
  %v8329 = vmul.f32 %v8265, %v4682
  %v8330 = vmul.f32 %v8266, %v4682
  %v8331 = vmul.f32 %v8267, %v4682
  %v8332 = vmul.f32 %v8268, %v4682
  %v8333 = vmul.f32 %v8269, %v4682
  %v8334 = vmul.f32 %v8270, %v4682
  %v8335 = vmul.f32 %v8271, %v4682
  %v8336 = vmul.f32 %v8272, %v4682
  %v8337 = vmul.f32 %v8273, %v4682
  %v8338 = vmul.f32 %v8274, %v4682
  %v8339 = vmul.f32 %v8275, %v4682
  %v8340 = vmul.f32 %v8276, %v4682
  %v8341 = vmul.f32 %v8277, %v4682
  %v8342 = vmul.f32 %v8278, %v4682
  %v8343 = vmul.f32 %v8279, %v4682
  %v8344 = vmul.f32 %v8280, %v4682
  %v8345 = vmul.f32 %v8281, %v4682
  %v8346 = vmul.f32 %v8282, %v4682
  %v8347 = vmul.f32 %v8315, %v4682
  %v8348 = vmul.f32 %v8316, %v4682
  %v8349 = vadd.f32 %v8283, %v8317
  %v8350 = vadd.f32 %v8284, %v8318
  %v8351 = vadd.f32 %v8285, %v8319
  %v8352 = vadd.f32 %v8286, %v8320
  %v8353 = vadd.f32 %v8287, %v8321
  %v8354 = vadd.f32 %v8288, %v8322
  %v8355 = vadd.f32 %v8289, %v8323
  %v8356 = vadd.f32 %v8290, %v8324
  %v8357 = vadd.f32 %v8291, %v8325
  %v8358 = vadd.f32 %v8292, %v8326
  %v8359 = vadd.f32 %v8293, %v8327
  %v8360 = vadd.f32 %v8294, %v8328
  %v8361 = vadd.f32 %v8295, %v8329
  %v8362 = vadd.f32 %v8296, %v8330
  %v8363 = vadd.f32 %v8297, %v8331
  %v8364 = vadd.f32 %v8298, %v8332
  %v8365 = vadd.f32 %v8299, %v8333
  %v8366 = vadd.f32 %v8300, %v8334
  %v8367 = vadd.f32 %v8301, %v8335
  %v8368 = vadd.f32 %v8302, %v8336
  %v8369 = vadd.f32 %v8303, %v8337
  %v8370 = vadd.f32 %v8304, %v8338
  %v8371 = vadd.f32 %v8305, %v8339
  %v8372 = vadd.f32 %v8306, %v8340
  %v8373 = vadd.f32 %v8307, %v8341
  %v8374 = vadd.f32 %v8308, %v8342
  %v8375 = vadd.f32 %v8309, %v8343
  %v8376 = vadd.f32 %v8310, %v8344
  %v8377 = vadd.f32 %v8311, %v8345
  %v8378 = vadd.f32 %v8312, %v8346
  %v8379 = vadd.f32 %v8313, %v8347
  %v8380 = vadd.f32 %v8314, %v8348
  %v8381 = vld [vmem:[#allocation2 + $0x249] sm:$0xff]
  %v8382 = vld [vmem:[#allocation2 + $0x251] sm:$0xff]
  %v8383 = vmul.f32 %v8255, %v4752
  %v8384 = vmul.f32 %v8256, %v4752
  %v8385 = vmul.f32 %v8257, %v4752
  %v8386 = vmul.f32 %v8258, %v4752
  %v8387 = vmul.f32 %v8259, %v4752
  %v8388 = vmul.f32 %v8260, %v4752
  %v8389 = vmul.f32 %v8261, %v4752
  %v8390 = vmul.f32 %v8262, %v4752
  %v8391 = vmul.f32 %v8263, %v4752
  %v8392 = vmul.f32 %v8264, %v4752
  %v8393 = vmul.f32 %v8265, %v4752
  %v8394 = vmul.f32 %v8266, %v4752
  %v8395 = vmul.f32 %v8267, %v4752
  %v8396 = vmul.f32 %v8268, %v4752
  %v8397 = vmul.f32 %v8269, %v4752
  %v8398 = vmul.f32 %v8270, %v4752
  %v8399 = vmul.f32 %v8271, %v4752
  %v8400 = vmul.f32 %v8272, %v4752
  %v8401 = vmul.f32 %v8273, %v4752
  %v8402 = vmul.f32 %v8274, %v4752
  %v8403 = vmul.f32 %v8275, %v4752
  %v8404 = vmul.f32 %v8276, %v4752
  %v8405 = vmul.f32 %v8277, %v4752
  %v8406 = vmul.f32 %v8278, %v4752
  %v8407 = vmul.f32 %v8279, %v4752
  %v8408 = vmul.f32 %v8280, %v4752
  %v8409 = vmul.f32 %v8281, %v4752
  %v8410 = vmul.f32 %v8282, %v4752
  %v8411 = vmul.f32 %v8315, %v4752
  %v8412 = vmul.f32 %v8316, %v4752
  %v8413 = vmul.f32 %v8381, %v4752
  %v8414 = vmul.f32 %v8382, %v4752
  %v8415 = vadd.f32 %v8349, %v8383
  %v8416 = vadd.f32 %v8350, %v8384
  %v8417 = vadd.f32 %v8351, %v8385
  %v8418 = vadd.f32 %v8352, %v8386
  %v8419 = vadd.f32 %v8353, %v8387
  %v8420 = vadd.f32 %v8354, %v8388
  %v8421 = vadd.f32 %v8355, %v8389
  %v8422 = vadd.f32 %v8356, %v8390
  %v8423 = vadd.f32 %v8357, %v8391
  %v8424 = vadd.f32 %v8358, %v8392
  %v8425 = vadd.f32 %v8359, %v8393
  %v8426 = vadd.f32 %v8360, %v8394
  %v8427 = vadd.f32 %v8361, %v8395
  %v8428 = vadd.f32 %v8362, %v8396
  %v8429 = vadd.f32 %v8363, %v8397
  %v8430 = vadd.f32 %v8364, %v8398
  %v8431 = vadd.f32 %v8365, %v8399
  %v8432 = vadd.f32 %v8366, %v8400
  %v8433 = vadd.f32 %v8367, %v8401
  %v8434 = vadd.f32 %v8368, %v8402
  %v8435 = vadd.f32 %v8369, %v8403
  %v8436 = vadd.f32 %v8370, %v8404
  %v8437 = vadd.f32 %v8371, %v8405
  %v8438 = vadd.f32 %v8372, %v8406
  %v8439 = vadd.f32 %v8373, %v8407
  %v8440 = vadd.f32 %v8374, %v8408
  %v8441 = vadd.f32 %v8375, %v8409
  %v8442 = vadd.f32 %v8376, %v8410
  %v8443 = vadd.f32 %v8377, %v8411
  %v8444 = vadd.f32 %v8378, %v8412
  %v8445 = vadd.f32 %v8379, %v8413
  %v8446 = vadd.f32 %v8380, %v8414
  %v8447 = vmul.f32 %v4065, %v8219
  %v8448 = vmul.f32 %v4066, %v8220
  %v8449 = vmul.f32 %v4067, %v8221
  %v8450 = vmul.f32 %v4068, %v8222
  %v8451 = vmul.f32 %v4069, %v8223
  %v8452 = vmul.f32 %v4070, %v8224
  %v8453 = vmul.f32 %v4071, %v8225
  %v8454 = vmul.f32 %v4072, %v8226
  %v8455 = vmul.f32 %v4073, %v8227
  %v8456 = vmul.f32 %v4074, %v8228
  %v8457 = vmul.f32 %v4075, %v8229
  %v8458 = vmul.f32 %v4076, %v8230
  %v8459 = vmul.f32 %v4077, %v8231
  %v8460 = vmul.f32 %v4078, %v8232
  %v8461 = vmul.f32 %v4079, %v8233
  %v8462 = vmul.f32 %v4080, %v8234
  %v8463 = vmul.f32 %v4081, %v8235
  %v8464 = vmul.f32 %v4082, %v8236
  %v8465 = vmul.f32 %v4083, %v8237
  %v8466 = vmul.f32 %v4084, %v8238
  %v8467 = vmul.f32 %v4085, %v8239
  %v8468 = vmul.f32 %v4086, %v8240
  %v8469 = vmul.f32 %v4087, %v8241
  %v8470 = vmul.f32 %v4088, %v8242
  %v8471 = vmul.f32 %v4089, %v8243
  %v8472 = vmul.f32 %v4090, %v8244
  %v8473 = vmul.f32 %v4091, %v8245
  %v8474 = vmul.f32 %v4092, %v8246
  %v8475 = vmul.f32 %v4093, %v8247
  %v8476 = vmul.f32 %v4094, %v8248
  %v8477 = vmul.f32 %v4095, %v8249
  %v8478 = vmul.f32 %v4096, %v8250
  %v8479 = vadd.f32 %v8023, %v8447
  %v8480 = vadd.f32 %v8024, %v8448
  %v8481 = vadd.f32 %v8025, %v8449
  %v8482 = vadd.f32 %v8026, %v8450
  %v8483 = vadd.f32 %v8027, %v8451
  %v8484 = vadd.f32 %v8028, %v8452
  %v8485 = vadd.f32 %v8029, %v8453
  %v8486 = vadd.f32 %v8030, %v8454
  %v8487 = vadd.f32 %v8031, %v8455
  %v8488 = vadd.f32 %v8032, %v8456
  %v8489 = vadd.f32 %v8033, %v8457
  %v8490 = vadd.f32 %v8034, %v8458
  %v8491 = vadd.f32 %v8035, %v8459
  %v8492 = vadd.f32 %v8036, %v8460
  %v8493 = vadd.f32 %v8037, %v8461
  %v8494 = vadd.f32 %v8038, %v8462
  %v8495 = vadd.f32 %v8039, %v8463
  %v8496 = vadd.f32 %v8040, %v8464
  %v8497 = vadd.f32 %v8041, %v8465
  %v8498 = vadd.f32 %v8042, %v8466
  %v8499 = vadd.f32 %v8043, %v8467
  %v8500 = vadd.f32 %v8044, %v8468
  %v8501 = vadd.f32 %v8045, %v8469
  %v8502 = vadd.f32 %v8046, %v8470
  %v8503 = vadd.f32 %v8047, %v8471
  %v8504 = vadd.f32 %v8048, %v8472
  %v8505 = vadd.f32 %v8049, %v8473
  %v8506 = vadd.f32 %v8050, %v8474
  %v8507 = vadd.f32 %v8051, %v8475
  %v8508 = vadd.f32 %v8052, %v8476
  %v8509 = vadd.f32 %v8053, %v8477
  %v8510 = vadd.f32 %v8054, %v8478
  %v8511 = vmul.f32 %v4161, %v8415
  %v8512 = vmul.f32 %v4162, %v8416
  %v8513 = vmul.f32 %v4163, %v8417
  %v8514 = vmul.f32 %v4164, %v8418
  %v8515 = vmul.f32 %v4165, %v8419
  %v8516 = vmul.f32 %v4166, %v8420
  %v8517 = vmul.f32 %v4167, %v8421
  %v8518 = vmul.f32 %v4168, %v8422
  %v8519 = vmul.f32 %v4169, %v8423
  %v8520 = vmul.f32 %v4170, %v8424
  %v8521 = vmul.f32 %v4171, %v8425
  %v8522 = vmul.f32 %v4172, %v8426
  %v8523 = vmul.f32 %v4173, %v8427
  %v8524 = vmul.f32 %v4174, %v8428
  %v8525 = vmul.f32 %v4175, %v8429
  %v8526 = vmul.f32 %v4176, %v8430
  %v8527 = vmul.f32 %v4177, %v8431
  %v8528 = vmul.f32 %v4178, %v8432
  %v8529 = vmul.f32 %v4179, %v8433
  %v8530 = vmul.f32 %v4180, %v8434
  %v8531 = vmul.f32 %v4181, %v8435
  %v8532 = vmul.f32 %v4182, %v8436
  %v8533 = vmul.f32 %v4183, %v8437
  %v8534 = vmul.f32 %v4184, %v8438
  %v8535 = vmul.f32 %v4185, %v8439
  %v8536 = vmul.f32 %v4186, %v8440
  %v8537 = vmul.f32 %v4187, %v8441
  %v8538 = vmul.f32 %v4188, %v8442
  %v8539 = vmul.f32 %v4189, %v8443
  %v8540 = vmul.f32 %v4190, %v8444
  %v8541 = vmul.f32 %v4191, %v8445
  %v8542 = vmul.f32 %v4192, %v8446
  %v8543 = vadd.f32 %v8479, %v8511
  %v8544 = vadd.f32 %v8480, %v8512
  %v8545 = vadd.f32 %v8481, %v8513
  %v8546 = vadd.f32 %v8482, %v8514
  %v8547 = vadd.f32 %v8483, %v8515
  %v8548 = vadd.f32 %v8484, %v8516
  %v8549 = vadd.f32 %v8485, %v8517
  %v8550 = vadd.f32 %v8486, %v8518
  %v8551 = vadd.f32 %v8487, %v8519
  %v8552 = vadd.f32 %v8488, %v8520
  %v8553 = vadd.f32 %v8489, %v8521
  %v8554 = vadd.f32 %v8490, %v8522
  %v8555 = vadd.f32 %v8491, %v8523
  %v8556 = vadd.f32 %v8492, %v8524
  %v8557 = vadd.f32 %v8493, %v8525
  %v8558 = vadd.f32 %v8494, %v8526
  %v8559 = vadd.f32 %v8495, %v8527
  %v8560 = vadd.f32 %v8496, %v8528
  %v8561 = vadd.f32 %v8497, %v8529
  %v8562 = vadd.f32 %v8498, %v8530
  %v8563 = vadd.f32 %v8499, %v8531
  %v8564 = vadd.f32 %v8500, %v8532
  %v8565 = vadd.f32 %v8501, %v8533
  %v8566 = vadd.f32 %v8502, %v8534
  %v8567 = vadd.f32 %v8503, %v8535
  %v8568 = vadd.f32 %v8504, %v8536
  %v8569 = vadd.f32 %v8505, %v8537
  %v8570 = vadd.f32 %v8506, %v8538
  %v8571 = vadd.f32 %v8507, %v8539
  %v8572 = vadd.f32 %v8508, %v8540
  %v8573 = vadd.f32 %v8509, %v8541
  %v8574 = vadd.f32 %v8510, %v8542
  %v8575 = vadd.f32 %v8543, %v4949
  %v8576 = vadd.f32 %v8544, %v4949
  %v8577 = vadd.f32 %v8545, %v4949
  %v8578 = vadd.f32 %v8546, %v4949
  %v8579 = vadd.f32 %v8547, %v4949
  %v8580 = vadd.f32 %v8548, %v4949
  %v8581 = vadd.f32 %v8549, %v4949
  %v8582 = vadd.f32 %v8550, %v4949
  %v8583 = vadd.f32 %v8551, %v4949
  %v8584 = vadd.f32 %v8552, %v4949
  %v8585 = vadd.f32 %v8553, %v4949
  %v8586 = vadd.f32 %v8554, %v4949
  %v8587 = vadd.f32 %v8555, %v4949
  %v8588 = vadd.f32 %v8556, %v4949
  %v8589 = vadd.f32 %v8557, %v4949
  %v8590 = vadd.f32 %v8558, %v4949
  %v8591 = vadd.f32 %v8559, %v4949
  %v8592 = vadd.f32 %v8560, %v4949
  %v8593 = vadd.f32 %v8561, %v4949
  %v8594 = vadd.f32 %v8562, %v4949
  %v8595 = vadd.f32 %v8563, %v4949
  %v8596 = vadd.f32 %v8564, %v4949
  %v8597 = vadd.f32 %v8565, %v4949
  %v8598 = vadd.f32 %v8566, %v4949
  %v8599 = vadd.f32 %v8567, %v4949
  %v8600 = vadd.f32 %v8568, %v4949
  %v8601 = vadd.f32 %v8569, %v4949
  %v8602 = vadd.f32 %v8570, %v4949
  %v8603 = vadd.f32 %v8571, %v4949
  %v8604 = vadd.f32 %v8572, %v4949
  %v8605 = vadd.f32 %v8573, %v4949
  %v8606 = vadd.f32 %v8574, %v4949
  %v8607 = vmul.f32 %v8575, 0.5
  %v8608 = vmul.f32 %v8576, 0.5
  %v8609 = vmul.f32 %v8577, 0.5
  %v8610 = vmul.f32 %v8578, 0.5
  %v8611 = vmul.f32 %v8579, 0.5
  %v8612 = vmul.f32 %v8580, 0.5
  %v8613 = vmul.f32 %v8581, 0.5
  %v8614 = vmul.f32 %v8582, 0.5
  %v8615 = vmul.f32 %v8583, 0.5
  %v8616 = vmul.f32 %v8584, 0.5
  %v8617 = vmul.f32 %v8585, 0.5
  %v8618 = vmul.f32 %v8586, 0.5
  %v8619 = vmul.f32 %v8587, 0.5
  %v8620 = vmul.f32 %v8588, 0.5
  %v8621 = vmul.f32 %v8589, 0.5
  %v8622 = vmul.f32 %v8590, 0.5
  %v8623 = vmul.f32 %v8591, 0.5
  %v8624 = vmul.f32 %v8592, 0.5
  %v8625 = vmul.f32 %v8593, 0.5
  %v8626 = vmul.f32 %v8594, 0.5
  %v8627 = vmul.f32 %v8595, 0.5
  %v8628 = vmul.f32 %v8596, 0.5
  %v8629 = vmul.f32 %v8597, 0.5
  %v8630 = vmul.f32 %v8598, 0.5
  %v8631 = vmul.f32 %v8599, 0.5
  %v8632 = vmul.f32 %v8600, 0.5
  %v8633 = vmul.f32 %v8601, 0.5
  %v8634 = vmul.f32 %v8602, 0.5
  %v8635 = vmul.f32 %v8603, 0.5
  %v8636 = vmul.f32 %v8604, 0.5
  %v8637 = vmul.f32 %v8605, 0.5
  %v8638 = vmul.f32 %v8606, 0.5
  %v8639 = vmul.f32 %v8575, 0.70710677
  %v8640 = vmul.f32 %v8576, 0.70710677
  %v8641 = vmul.f32 %v8577, 0.70710677
  %v8642 = vmul.f32 %v8578, 0.70710677
  %v8643 = vmul.f32 %v8579, 0.70710677
  %v8644 = vmul.f32 %v8580, 0.70710677
  %v8645 = vmul.f32 %v8581, 0.70710677
  %v8646 = vmul.f32 %v8582, 0.70710677
  %v8647 = vmul.f32 %v8583, 0.70710677
  %v8648 = vmul.f32 %v8584, 0.70710677
  %v8649 = vmul.f32 %v8585, 0.70710677
  %v8650 = vmul.f32 %v8586, 0.70710677
  %v8651 = vmul.f32 %v8587, 0.70710677
  %v8652 = vmul.f32 %v8588, 0.70710677
  %v8653 = vmul.f32 %v8589, 0.70710677
  %v8654 = vmul.f32 %v8590, 0.70710677
  %v8655 = vmul.f32 %v8591, 0.70710677
  %v8656 = vmul.f32 %v8592, 0.70710677
  %v8657 = vmul.f32 %v8593, 0.70710677
  %v8658 = vmul.f32 %v8594, 0.70710677
  %v8659 = vmul.f32 %v8595, 0.70710677
  %v8660 = vmul.f32 %v8596, 0.70710677
  %v8661 = vmul.f32 %v8597, 0.70710677
  %v8662 = vmul.f32 %v8598, 0.70710677
  %v8663 = vmul.f32 %v8599, 0.70710677
  %v8664 = vmul.f32 %v8600, 0.70710677
  %v8665 = vmul.f32 %v8601, 0.70710677
  %v8666 = vmul.f32 %v8602, 0.70710677
  %v8667 = vmul.f32 %v8603, 0.70710677
  %v8668 = vmul.f32 %v8604, 0.70710677
  %v8669 = vmul.f32 %v8605, 0.70710677
  %v8670 = vmul.f32 %v8606, 0.70710677
  %v8671 = vand.u32 2147483647, %v8639
  %v8672 = vand.u32 2147483647, %v8640
  %v8673 = vand.u32 2147483647, %v8641
  %v8674 = vand.u32 2147483647, %v8642
  %v8675 = vand.u32 2147483647, %v8643
  %v8676 = vand.u32 2147483647, %v8644
  %v8677 = vand.u32 2147483647, %v8645
  %v8678 = vand.u32 2147483647, %v8646
  %v8679 = vand.u32 2147483647, %v8647
  %v8680 = vand.u32 2147483647, %v8648
  %v8681 = vand.u32 2147483647, %v8649
  %v8682 = vand.u32 2147483647, %v8650
  %v8683 = vand.u32 2147483647, %v8651
  %v8684 = vand.u32 2147483647, %v8652
  %v8685 = vand.u32 2147483647, %v8653
  %v8686 = vand.u32 2147483647, %v8654
  %v8687 = vand.u32 2147483647, %v8655
  %v8688 = vand.u32 2147483647, %v8656
  %v8689 = vand.u32 2147483647, %v8657
  %v8690 = vand.u32 2147483647, %v8658
  %v8691 = vand.u32 2147483647, %v8659
  %v8692 = vand.u32 2147483647, %v8660
  %v8693 = vand.u32 2147483647, %v8661
  %v8694 = vand.u32 2147483647, %v8662
  %v8695 = vand.u32 2147483647, %v8663
  %v8696 = vand.u32 2147483647, %v8664
  %v8697 = vand.u32 2147483647, %v8665
  %v8698 = vand.u32 2147483647, %v8666
  %v8699 = vand.u32 2147483647, %v8667
  %v8700 = vand.u32 2147483647, %v8668
  %v8701 = vand.u32 2147483647, %v8669
  %v8702 = vand.u32 2147483647, %v8670
  %v8703 = vmul.f32 %v8671, 0.3275911
  %v8704 = vmul.f32 %v8672, 0.3275911
  %v8705 = vmul.f32 %v8673, 0.3275911
  %v8706 = vmul.f32 %v8674, 0.3275911
  %v8707 = vmul.f32 %v8675, 0.3275911
  %v8708 = vmul.f32 %v8676, 0.3275911
  %v8709 = vmul.f32 %v8677, 0.3275911
  %v8710 = vmul.f32 %v8678, 0.3275911
  %v8711 = vmul.f32 %v8679, 0.3275911
  %v8712 = vmul.f32 %v8680, 0.3275911
  %v8713 = vmul.f32 %v8681, 0.3275911
  %v8714 = vmul.f32 %v8682, 0.3275911
  %v8715 = vmul.f32 %v8683, 0.3275911
  %v8716 = vmul.f32 %v8684, 0.3275911
  %v8717 = vmul.f32 %v8685, 0.3275911
  %v8718 = vmul.f32 %v8686, 0.3275911
  %v8719 = vmul.f32 %v8687, 0.3275911
  %v8720 = vmul.f32 %v8688, 0.3275911
  %v8721 = vmul.f32 %v8689, 0.3275911
  %v8722 = vmul.f32 %v8690, 0.3275911
  %v8723 = vmul.f32 %v8691, 0.3275911
  %v8724 = vmul.f32 %v8692, 0.3275911
  %v8725 = vmul.f32 %v8693, 0.3275911
  %v8726 = vmul.f32 %v8694, 0.3275911
  %v8727 = vmul.f32 %v8695, 0.3275911
  %v8728 = vmul.f32 %v8696, 0.3275911
  %v8729 = vmul.f32 %v8697, 0.3275911
  %v8730 = vmul.f32 %v8698, 0.3275911
  %v8731 = vmul.f32 %v8699, 0.3275911
  %v8732 = vmul.f32 %v8700, 0.3275911
  %v8733 = vmul.f32 %v8701, 0.3275911
  %v8734 = vmul.f32 %v8702, 0.3275911
  %v8735 = vadd.f32 %v8703, 1.0
  %v8736 = vadd.f32 %v8704, 1.0
  %v8737 = vadd.f32 %v8705, 1.0
  %v8738 = vadd.f32 %v8706, 1.0
  %v8739 = vadd.f32 %v8707, 1.0
  %v8740 = vadd.f32 %v8708, 1.0
  %v8741 = vadd.f32 %v8709, 1.0
  %v8742 = vadd.f32 %v8710, 1.0
  %v8743 = vadd.f32 %v8711, 1.0
  %v8744 = vadd.f32 %v8712, 1.0
  %v8745 = vadd.f32 %v8713, 1.0
  %v8746 = vadd.f32 %v8714, 1.0
  %v8747 = vadd.f32 %v8715, 1.0
  %v8748 = vadd.f32 %v8716, 1.0
  %v8749 = vadd.f32 %v8717, 1.0
  %v8750 = vadd.f32 %v8718, 1.0
  %v8751 = vadd.f32 %v8719, 1.0
  %v8752 = vadd.f32 %v8720, 1.0
  %v8753 = vadd.f32 %v8721, 1.0
  %v8754 = vadd.f32 %v8722, 1.0
  %v8755 = vadd.f32 %v8723, 1.0
  %v8756 = vadd.f32 %v8724, 1.0
  %v8757 = vadd.f32 %v8725, 1.0
  %v8758 = vadd.f32 %v8726, 1.0
  %v8759 = vadd.f32 %v8727, 1.0
  %v8760 = vadd.f32 %v8728, 1.0
  %v8761 = vadd.f32 %v8729, 1.0
  %v8762 = vadd.f32 %v8730, 1.0
  %v8763 = vadd.f32 %v8731, 1.0
  %v8764 = vadd.f32 %v8732, 1.0
  %v8765 = vadd.f32 %v8733, 1.0
  %v8766 = vadd.f32 %v8734, 1.0
  %v8767 = vrcp.pop %v8735
  %v8768 = vmul.f32 1.0, %v8767
  %v8769 = vrcp.pop %v8736
  %v8770 = vmul.f32 1.0, %v8769
  %v8771 = vrcp.pop %v8737
  %v8772 = vmul.f32 1.0, %v8771
  %v8773 = vrcp.pop %v8738
  %v8774 = vmul.f32 1.0, %v8773
  %v8775 = vrcp.pop %v8739
  %v8776 = vmul.f32 1.0, %v8775
  %v8777 = vrcp.pop %v8740
  %v8778 = vmul.f32 1.0, %v8777
  %v8779 = vrcp.pop %v8741
  %v8780 = vmul.f32 1.0, %v8779
  %v8781 = vrcp.pop %v8742
  %v8782 = vmul.f32 1.0, %v8781
  %v8783 = vrcp.pop %v8743
  %v8784 = vmul.f32 1.0, %v8783
  %v8785 = vrcp.pop %v8744
  %v8786 = vmul.f32 1.0, %v8785
  %v8787 = vrcp.pop %v8745
  %v8788 = vmul.f32 1.0, %v8787
  %v8789 = vrcp.pop %v8746
  %v8790 = vmul.f32 1.0, %v8789
  %v8791 = vrcp.pop %v8747
  %v8792 = vmul.f32 1.0, %v8791
  %v8793 = vrcp.pop %v8748
  %v8794 = vmul.f32 1.0, %v8793
  %v8795 = vrcp.pop %v8749
  %v8796 = vmul.f32 1.0, %v8795
  %v8797 = vrcp.pop %v8750
  %v8798 = vmul.f32 1.0, %v8797
  %v8799 = vrcp.pop %v8751
  %v8800 = vmul.f32 1.0, %v8799
  %v8801 = vrcp.pop %v8752
  %v8802 = vmul.f32 1.0, %v8801
  %v8803 = vrcp.pop %v8753
  %v8804 = vmul.f32 1.0, %v8803
  %v8805 = vrcp.pop %v8754
  %v8806 = vmul.f32 1.0, %v8805
  %v8807 = vrcp.pop %v8755
  %v8808 = vmul.f32 1.0, %v8807
  %v8809 = vrcp.pop %v8756
  %v8810 = vmul.f32 1.0, %v8809
  %v8811 = vrcp.pop %v8757
  %v8812 = vmul.f32 1.0, %v8811
  %v8813 = vrcp.pop %v8758
  %v8814 = vmul.f32 1.0, %v8813
  %v8815 = vrcp.pop %v8759
  %v8816 = vmul.f32 1.0, %v8815
  %v8817 = vrcp.pop %v8760
  %v8818 = vmul.f32 1.0, %v8817
  %v8819 = vrcp.pop %v8761
  %v8820 = vmul.f32 1.0, %v8819
  %v8821 = vrcp.pop %v8762
  %v8822 = vmul.f32 1.0, %v8821
  %v8823 = vrcp.pop %v8763
  %v8824 = vmul.f32 1.0, %v8823
  %v8825 = vrcp.pop %v8764
  %v8826 = vmul.f32 1.0, %v8825
  %v8827 = vrcp.pop %v8765
  %v8828 = vmul.f32 1.0, %v8827
  %v8829 = vrcp.pop %v8766
  %v8830 = vmul.f32 1.0, %v8829
  %v8831 = vmul.f32 %v8768, 1.0614054
  %v8832 = vmul.f32 %v8770, 1.0614054
  %v8833 = vmul.f32 %v8772, 1.0614054
  %v8834 = vmul.f32 %v8774, 1.0614054
  %v8835 = vmul.f32 %v8776, 1.0614054
  %v8836 = vmul.f32 %v8778, 1.0614054
  %v8837 = vmul.f32 %v8780, 1.0614054
  %v8838 = vmul.f32 %v8782, 1.0614054
  %v8839 = vmul.f32 %v8784, 1.0614054
  %v8840 = vmul.f32 %v8786, 1.0614054
  %v8841 = vmul.f32 %v8788, 1.0614054
  %v8842 = vmul.f32 %v8790, 1.0614054
  %v8843 = vmul.f32 %v8792, 1.0614054
  %v8844 = vmul.f32 %v8794, 1.0614054
  %v8845 = vmul.f32 %v8796, 1.0614054
  %v8846 = vmul.f32 %v8798, 1.0614054
  %v8847 = vmul.f32 %v8800, 1.0614054
  %v8848 = vmul.f32 %v8802, 1.0614054
  %v8849 = vmul.f32 %v8804, 1.0614054
  %v8850 = vmul.f32 %v8806, 1.0614054
  %v8851 = vmul.f32 %v8808, 1.0614054
  %v8852 = vmul.f32 %v8810, 1.0614054
  %v8853 = vmul.f32 %v8812, 1.0614054
  %v8854 = vmul.f32 %v8814, 1.0614054
  %v8855 = vmul.f32 %v8816, 1.0614054
  %v8856 = vmul.f32 %v8818, 1.0614054
  %v8857 = vmul.f32 %v8820, 1.0614054
  %v8858 = vmul.f32 %v8822, 1.0614054
  %v8859 = vmul.f32 %v8824, 1.0614054
  %v8860 = vmul.f32 %v8826, 1.0614054
  %v8861 = vmul.f32 %v8828, 1.0614054
  %v8862 = vmul.f32 %v8830, 1.0614054
  %v8863 = vadd.f32 %v8831, -1.4531521
  %v8864 = vadd.f32 %v8832, -1.4531521
  %v8865 = vadd.f32 %v8833, -1.4531521
  %v8866 = vadd.f32 %v8834, -1.4531521
  %v8867 = vadd.f32 %v8835, -1.4531521
  %v8868 = vadd.f32 %v8836, -1.4531521
  %v8869 = vadd.f32 %v8837, -1.4531521
  %v8870 = vadd.f32 %v8838, -1.4531521
  %v8871 = vadd.f32 %v8839, -1.4531521
  %v8872 = vadd.f32 %v8840, -1.4531521
  %v8873 = vadd.f32 %v8841, -1.4531521
  %v8874 = vadd.f32 %v8842, -1.4531521
  %v8875 = vadd.f32 %v8843, -1.4531521
  %v8876 = vadd.f32 %v8844, -1.4531521
  %v8877 = vadd.f32 %v8845, -1.4531521
  %v8878 = vadd.f32 %v8846, -1.4531521
  %v8879 = vadd.f32 %v8847, -1.4531521
  %v8880 = vadd.f32 %v8848, -1.4531521
  %v8881 = vadd.f32 %v8849, -1.4531521
  %v8882 = vadd.f32 %v8850, -1.4531521
  %v8883 = vadd.f32 %v8851, -1.4531521
  %v8884 = vadd.f32 %v8852, -1.4531521
  %v8885 = vadd.f32 %v8853, -1.4531521
  %v8886 = vadd.f32 %v8854, -1.4531521
  %v8887 = vadd.f32 %v8855, -1.4531521
  %v8888 = vadd.f32 %v8856, -1.4531521
  %v8889 = vadd.f32 %v8857, -1.4531521
  %v8890 = vadd.f32 %v8858, -1.4531521
  %v8891 = vadd.f32 %v8859, -1.4531521
  %v8892 = vadd.f32 %v8860, -1.4531521
  %v8893 = vadd.f32 %v8861, -1.4531521
  %v8894 = vadd.f32 %v8862, -1.4531521
  %v8895 = vmul.f32 %v8863, %v8768
  %v8896 = vmul.f32 %v8864, %v8770
  %v8897 = vmul.f32 %v8865, %v8772
  %v8898 = vmul.f32 %v8866, %v8774
  %v8899 = vmul.f32 %v8867, %v8776
  %v8900 = vmul.f32 %v8868, %v8778
  %v8901 = vmul.f32 %v8869, %v8780
  %v8902 = vmul.f32 %v8870, %v8782
  %v8903 = vmul.f32 %v8871, %v8784
  %v8904 = vmul.f32 %v8872, %v8786
  %v8905 = vmul.f32 %v8873, %v8788
  %v8906 = vmul.f32 %v8874, %v8790
  %v8907 = vmul.f32 %v8875, %v8792
  %v8908 = vmul.f32 %v8876, %v8794
  %v8909 = vmul.f32 %v8877, %v8796
  %v8910 = vmul.f32 %v8878, %v8798
  %v8911 = vmul.f32 %v8879, %v8800
  %v8912 = vmul.f32 %v8880, %v8802
  %v8913 = vmul.f32 %v8881, %v8804
  %v8914 = vmul.f32 %v8882, %v8806
  %v8915 = vmul.f32 %v8883, %v8808
  %v8916 = vmul.f32 %v8884, %v8810
  %v8917 = vmul.f32 %v8885, %v8812
  %v8918 = vmul.f32 %v8886, %v8814
  %v8919 = vmul.f32 %v8887, %v8816
  %v8920 = vmul.f32 %v8888, %v8818
  %v8921 = vmul.f32 %v8889, %v8820
  %v8922 = vmul.f32 %v8890, %v8822
  %v8923 = vmul.f32 %v8891, %v8824
  %v8924 = vmul.f32 %v8892, %v8826
  %v8925 = vmul.f32 %v8893, %v8828
  %v8926 = vmul.f32 %v8894, %v8830
  %v8927 = vadd.f32 %v8895, 1.4214138
  %v8928 = vadd.f32 %v8896, 1.4214138
  %v8929 = vadd.f32 %v8897, 1.4214138
  %v8930 = vadd.f32 %v8898, 1.4214138
  %v8931 = vadd.f32 %v8899, 1.4214138
  %v8932 = vadd.f32 %v8900, 1.4214138
  %v8933 = vadd.f32 %v8901, 1.4214138
  %v8934 = vadd.f32 %v8902, 1.4214138
  %v8935 = vadd.f32 %v8903, 1.4214138
  %v8936 = vadd.f32 %v8904, 1.4214138
  %v8937 = vadd.f32 %v8905, 1.4214138
  %v8938 = vadd.f32 %v8906, 1.4214138
  %v8939 = vadd.f32 %v8907, 1.4214138
  %v8940 = vadd.f32 %v8908, 1.4214138
  %v8941 = vadd.f32 %v8909, 1.4214138
  %v8942 = vadd.f32 %v8910, 1.4214138
  %v8943 = vadd.f32 %v8911, 1.4214138
  %v8944 = vadd.f32 %v8912, 1.4214138
  %v8945 = vadd.f32 %v8913, 1.4214138
  %v8946 = vadd.f32 %v8914, 1.4214138
  %v8947 = vadd.f32 %v8915, 1.4214138
  %v8948 = vadd.f32 %v8916, 1.4214138
  %v8949 = vadd.f32 %v8917, 1.4214138
  %v8950 = vadd.f32 %v8918, 1.4214138
  %v8951 = vadd.f32 %v8919, 1.4214138
  %v8952 = vadd.f32 %v8920, 1.4214138
  %v8953 = vadd.f32 %v8921, 1.4214138
  %v8954 = vadd.f32 %v8922, 1.4214138
  %v8955 = vadd.f32 %v8923, 1.4214138
  %v8956 = vadd.f32 %v8924, 1.4214138
  %v8957 = vadd.f32 %v8925, 1.4214138
  %v8958 = vadd.f32 %v8926, 1.4214138
  %v8959 = vmul.f32 %v8927, %v8768
  %v8960 = vmul.f32 %v8928, %v8770
  %v8961 = vmul.f32 %v8929, %v8772
  %v8962 = vmul.f32 %v8930, %v8774
  %v8963 = vmul.f32 %v8931, %v8776
  %v8964 = vmul.f32 %v8932, %v8778
  %v8965 = vmul.f32 %v8933, %v8780
  %v8966 = vmul.f32 %v8934, %v8782
  %v8967 = vmul.f32 %v8935, %v8784
  %v8968 = vmul.f32 %v8936, %v8786
  %v8969 = vmul.f32 %v8937, %v8788
  %v8970 = vmul.f32 %v8938, %v8790
  %v8971 = vmul.f32 %v8939, %v8792
  %v8972 = vmul.f32 %v8940, %v8794
  %v8973 = vmul.f32 %v8941, %v8796
  %v8974 = vmul.f32 %v8942, %v8798
  %v8975 = vmul.f32 %v8943, %v8800
  %v8976 = vmul.f32 %v8944, %v8802
  %v8977 = vmul.f32 %v8945, %v8804
  %v8978 = vmul.f32 %v8946, %v8806
  %v8979 = vmul.f32 %v8947, %v8808
  %v8980 = vmul.f32 %v8948, %v8810
  %v8981 = vmul.f32 %v8949, %v8812
  %v8982 = vmul.f32 %v8950, %v8814
  %v8983 = vmul.f32 %v8951, %v8816
  %v8984 = vmul.f32 %v8952, %v8818
  %v8985 = vmul.f32 %v8953, %v8820
  %v8986 = vmul.f32 %v8954, %v8822
  %v8987 = vmul.f32 %v8955, %v8824
  %v8988 = vmul.f32 %v8956, %v8826
  %v8989 = vmul.f32 %v8957, %v8828
  %v8990 = vmul.f32 %v8958, %v8830
  %v8991 = vadd.f32 %v8959, -0.28449672
  %v8992 = vadd.f32 %v8960, -0.28449672
  %v8993 = vadd.f32 %v8961, -0.28449672
  %v8994 = vadd.f32 %v8962, -0.28449672
  %v8995 = vadd.f32 %v8963, -0.28449672
  %v8996 = vadd.f32 %v8964, -0.28449672
  %v8997 = vadd.f32 %v8965, -0.28449672
  %v8998 = vadd.f32 %v8966, -0.28449672
  %v8999 = vadd.f32 %v8967, -0.28449672
  %v9000 = vadd.f32 %v8968, -0.28449672
  %v9001 = vadd.f32 %v8969, -0.28449672
  %v9002 = vadd.f32 %v8970, -0.28449672
  %v9003 = vadd.f32 %v8971, -0.28449672
  %v9004 = vadd.f32 %v8972, -0.28449672
  %v9005 = vadd.f32 %v8973, -0.28449672
  %v9006 = vadd.f32 %v8974, -0.28449672
  %v9007 = vadd.f32 %v8975, -0.28449672
  %v9008 = vadd.f32 %v8976, -0.28449672
  %v9009 = vadd.f32 %v8977, -0.28449672
  %v9010 = vadd.f32 %v8978, -0.28449672
  %v9011 = vadd.f32 %v8979, -0.28449672
  %v9012 = vadd.f32 %v8980, -0.28449672
  %v9013 = vadd.f32 %v8981, -0.28449672
  %v9014 = vadd.f32 %v8982, -0.28449672
  %v9015 = vadd.f32 %v8983, -0.28449672
  %v9016 = vadd.f32 %v8984, -0.28449672
  %v9017 = vadd.f32 %v8985, -0.28449672
  %v9018 = vadd.f32 %v8986, -0.28449672
  %v9019 = vadd.f32 %v8987, -0.28449672
  %v9020 = vadd.f32 %v8988, -0.28449672
  %v9021 = vadd.f32 %v8989, -0.28449672
  %v9022 = vadd.f32 %v8990, -0.28449672
  %v9023 = vmul.f32 %v8991, %v8768
  %v9024 = vmul.f32 %v8992, %v8770
  %v9025 = vmul.f32 %v8993, %v8772
  %v9026 = vmul.f32 %v8994, %v8774
  %v9027 = vmul.f32 %v8995, %v8776
  %v9028 = vmul.f32 %v8996, %v8778
  %v9029 = vmul.f32 %v8997, %v8780
  %v9030 = vmul.f32 %v8998, %v8782
  %v9031 = vmul.f32 %v8999, %v8784
  %v9032 = vmul.f32 %v9000, %v8786
  %v9033 = vmul.f32 %v9001, %v8788
  %v9034 = vmul.f32 %v9002, %v8790
  %v9035 = vmul.f32 %v9003, %v8792
  %v9036 = vmul.f32 %v9004, %v8794
  %v9037 = vmul.f32 %v9005, %v8796
  %v9038 = vmul.f32 %v9006, %v8798
  %v9039 = vmul.f32 %v9007, %v8800
  %v9040 = vmul.f32 %v9008, %v8802
  %v9041 = vmul.f32 %v9009, %v8804
  %v9042 = vmul.f32 %v9010, %v8806
  %v9043 = vmul.f32 %v9011, %v8808
  %v9044 = vmul.f32 %v9012, %v8810
  %v9045 = vmul.f32 %v9013, %v8812
  %v9046 = vmul.f32 %v9014, %v8814
  %v9047 = vmul.f32 %v9015, %v8816
  %v9048 = vmul.f32 %v9016, %v8818
  %v9049 = vmul.f32 %v9017, %v8820
  %v9050 = vmul.f32 %v9018, %v8822
  %v9051 = vmul.f32 %v9019, %v8824
  %v9052 = vmul.f32 %v9020, %v8826
  %v9053 = vmul.f32 %v9021, %v8828
  %v9054 = vmul.f32 %v9022, %v8830
  %v9055 = vadd.f32 %v9023, 0.2548296
  %v9056 = vadd.f32 %v9024, 0.2548296
  %v9057 = vadd.f32 %v9025, 0.2548296
  %v9058 = vadd.f32 %v9026, 0.2548296
  %v9059 = vadd.f32 %v9027, 0.2548296
  %v9060 = vadd.f32 %v9028, 0.2548296
  %v9061 = vadd.f32 %v9029, 0.2548296
  %v9062 = vadd.f32 %v9030, 0.2548296
  %v9063 = vadd.f32 %v9031, 0.2548296
  %v9064 = vadd.f32 %v9032, 0.2548296
  %v9065 = vadd.f32 %v9033, 0.2548296
  %v9066 = vadd.f32 %v9034, 0.2548296
  %v9067 = vadd.f32 %v9035, 0.2548296
  %v9068 = vadd.f32 %v9036, 0.2548296
  %v9069 = vadd.f32 %v9037, 0.2548296
  %v9070 = vadd.f32 %v9038, 0.2548296
  %v9071 = vadd.f32 %v9039, 0.2548296
  %v9072 = vadd.f32 %v9040, 0.2548296
  %v9073 = vadd.f32 %v9041, 0.2548296
  %v9074 = vadd.f32 %v9042, 0.2548296
  %v9075 = vadd.f32 %v9043, 0.2548296
  %v9076 = vadd.f32 %v9044, 0.2548296
  %v9077 = vadd.f32 %v9045, 0.2548296
  %v9078 = vadd.f32 %v9046, 0.2548296
  %v9079 = vadd.f32 %v9047, 0.2548296
  %v9080 = vadd.f32 %v9048, 0.2548296
  %v9081 = vadd.f32 %v9049, 0.2548296
  %v9082 = vadd.f32 %v9050, 0.2548296
  %v9083 = vadd.f32 %v9051, 0.2548296
  %v9084 = vadd.f32 %v9052, 0.2548296
  %v9085 = vadd.f32 %v9053, 0.2548296
  %v9086 = vadd.f32 %v9054, 0.2548296
  %v9087 = vmul.f32 %v9055, %v8768
  %v9088 = vmul.f32 %v9056, %v8770
  %v9089 = vmul.f32 %v9057, %v8772
  %v9090 = vmul.f32 %v9058, %v8774
  %v9091 = vmul.f32 %v9059, %v8776
  %v9092 = vmul.f32 %v9060, %v8778
  %v9093 = vmul.f32 %v9061, %v8780
  %v9094 = vmul.f32 %v9062, %v8782
  %v9095 = vmul.f32 %v9063, %v8784
  %v9096 = vmul.f32 %v9064, %v8786
  %v9097 = vmul.f32 %v9065, %v8788
  %v9098 = vmul.f32 %v9066, %v8790
  %v9099 = vmul.f32 %v9067, %v8792
  %v9100 = vmul.f32 %v9068, %v8794
  %v9101 = vmul.f32 %v9069, %v8796
  %v9102 = vmul.f32 %v9070, %v8798
  %v9103 = vmul.f32 %v9071, %v8800
  %v9104 = vmul.f32 %v9072, %v8802
  %v9105 = vmul.f32 %v9073, %v8804
  %v9106 = vmul.f32 %v9074, %v8806
  %v9107 = vmul.f32 %v9075, %v8808
  %v9108 = vmul.f32 %v9076, %v8810
  %v9109 = vmul.f32 %v9077, %v8812
  %v9110 = vmul.f32 %v9078, %v8814
  %v9111 = vmul.f32 %v9079, %v8816
  %v9112 = vmul.f32 %v9080, %v8818
  %v9113 = vmul.f32 %v9081, %v8820
  %v9114 = vmul.f32 %v9082, %v8822
  %v9115 = vmul.f32 %v9083, %v8824
  %v9116 = vmul.f32 %v9084, %v8826
  %v9117 = vmul.f32 %v9085, %v8828
  %v9118 = vmul.f32 %v9086, %v8830
  %v9119 = vsub.f32 0.0, %v8671
  %v9120 = vsub.f32 0.0, %v8672
  %v9121 = vsub.f32 0.0, %v8673
  %v9122 = vsub.f32 0.0, %v8674
  %v9123 = vsub.f32 0.0, %v8675
  %v9124 = vsub.f32 0.0, %v8676
  %v9125 = vsub.f32 0.0, %v8677
  %v9126 = vsub.f32 0.0, %v8678
  %v9127 = vsub.f32 0.0, %v8679
  %v9128 = vsub.f32 0.0, %v8680
  %v9129 = vsub.f32 0.0, %v8681
  %v9130 = vsub.f32 0.0, %v8682
  %v9131 = vsub.f32 0.0, %v8683
  %v9132 = vsub.f32 0.0, %v8684
  %v9133 = vsub.f32 0.0, %v8685
  %v9134 = vsub.f32 0.0, %v8686
  %v9135 = vsub.f32 0.0, %v8687
  %v9136 = vsub.f32 0.0, %v8688
  %v9137 = vsub.f32 0.0, %v8689
  %v9138 = vsub.f32 0.0, %v8690
  %v9139 = vsub.f32 0.0, %v8691
  %v9140 = vsub.f32 0.0, %v8692
  %v9141 = vsub.f32 0.0, %v8693
  %v9142 = vsub.f32 0.0, %v8694
  %v9143 = vsub.f32 0.0, %v8695
  %v9144 = vsub.f32 0.0, %v8696
  %v9145 = vsub.f32 0.0, %v8697
  %v9146 = vsub.f32 0.0, %v8698
  %v9147 = vsub.f32 0.0, %v8699
  %v9148 = vsub.f32 0.0, %v8700
  %v9149 = vsub.f32 0.0, %v8701
  %v9150 = vsub.f32 0.0, %v8702
  %v9151 = vmul.f32 %v9119, %v8671
  %v9152 = vmul.f32 %v9120, %v8672
  %v9153 = vmul.f32 %v9121, %v8673
  %v9154 = vmul.f32 %v9122, %v8674
  %v9155 = vmul.f32 %v9123, %v8675
  %v9156 = vmul.f32 %v9124, %v8676
  %v9157 = vmul.f32 %v9125, %v8677
  %v9158 = vmul.f32 %v9126, %v8678
  %v9159 = vmul.f32 %v9127, %v8679
  %v9160 = vmul.f32 %v9128, %v8680
  %v9161 = vmul.f32 %v9129, %v8681
  %v9162 = vmul.f32 %v9130, %v8682
  %v9163 = vmul.f32 %v9131, %v8683
  %v9164 = vmul.f32 %v9132, %v8684
  %v9165 = vmul.f32 %v9133, %v8685
  %v9166 = vmul.f32 %v9134, %v8686
  %v9167 = vmul.f32 %v9135, %v8687
  %v9168 = vmul.f32 %v9136, %v8688
  %v9169 = vmul.f32 %v9137, %v8689
  %v9170 = vmul.f32 %v9138, %v8690
  %v9171 = vmul.f32 %v9139, %v8691
  %v9172 = vmul.f32 %v9140, %v8692
  %v9173 = vmul.f32 %v9141, %v8693
  %v9174 = vmul.f32 %v9142, %v8694
  %v9175 = vmul.f32 %v9143, %v8695
  %v9176 = vmul.f32 %v9144, %v8696
  %v9177 = vmul.f32 %v9145, %v8697
  %v9178 = vmul.f32 %v9146, %v8698
  %v9179 = vmul.f32 %v9147, %v8699
  %v9180 = vmul.f32 %v9148, %v8700
  %v9181 = vmul.f32 %v9149, %v8701
  %v9182 = vmul.f32 %v9150, %v8702
  %v9183 = vmul.f32 %v9151, 1.442695
  %v9184 = vpow.pop %v9183
  %v9185 = vmul.f32 %v9152, 1.442695
  %v9186 = vpow.pop %v9185
  %v9187 = vmul.f32 %v9153, 1.442695
  %v9188 = vpow.pop %v9187
  %v9189 = vmul.f32 %v9154, 1.442695
  %v9190 = vpow.pop %v9189
  %v9191 = vmul.f32 %v9155, 1.442695
  %v9192 = vpow.pop %v9191
  %v9193 = vmul.f32 %v9156, 1.442695
  %v9194 = vpow.pop %v9193
  %v9195 = vmul.f32 %v9157, 1.442695
  %v9196 = vpow.pop %v9195
  %v9197 = vmul.f32 %v9158, 1.442695
  %v9198 = vpow.pop %v9197
  %v9199 = vmul.f32 %v9159, 1.442695
  %v9200 = vpow.pop %v9199
  %v9201 = vmul.f32 %v9160, 1.442695
  %v9202 = vpow.pop %v9201
  %v9203 = vmul.f32 %v9161, 1.442695
  %v9204 = vpow.pop %v9203
  %v9205 = vmul.f32 %v9162, 1.442695
  %v9206 = vpow.pop %v9205
  %v9207 = vmul.f32 %v9163, 1.442695
  %v9208 = vpow.pop %v9207
  %v9209 = vmul.f32 %v9164, 1.442695
  %v9210 = vpow.pop %v9209
  %v9211 = vmul.f32 %v9165, 1.442695
  %v9212 = vpow.pop %v9211
  %v9213 = vmul.f32 %v9166, 1.442695
  %v9214 = vpow.pop %v9213
  %v9215 = vmul.f32 %v9167, 1.442695
  %v9216 = vpow.pop %v9215
  %v9217 = vmul.f32 %v9168, 1.442695
  %v9218 = vpow.pop %v9217
  %v9219 = vmul.f32 %v9169, 1.442695
  %v9220 = vpow.pop %v9219
  %v9221 = vmul.f32 %v9170, 1.442695
  %v9222 = vpow.pop %v9221
  %v9223 = vmul.f32 %v9171, 1.442695
  %v9224 = vpow.pop %v9223
  %v9225 = vmul.f32 %v9172, 1.442695
  %v9226 = vpow.pop %v9225
  %v9227 = vmul.f32 %v9173, 1.442695
  %v9228 = vpow.pop %v9227
  %v9229 = vmul.f32 %v9174, 1.442695
  %v9230 = vpow.pop %v9229
  %v9231 = vmul.f32 %v9175, 1.442695
  %v9232 = vpow.pop %v9231
  %v9233 = vmul.f32 %v9176, 1.442695
  %v9234 = vpow.pop %v9233
  %v9235 = vmul.f32 %v9177, 1.442695
  %v9236 = vpow.pop %v9235
  %v9237 = vmul.f32 %v9178, 1.442695
  %v9238 = vpow.pop %v9237
  %v9239 = vmul.f32 %v9179, 1.442695
  %v9240 = vpow.pop %v9239
  %v9241 = vmul.f32 %v9180, 1.442695
  %v9242 = vpow.pop %v9241
  %v9243 = vmul.f32 %v9181, 1.442695
  %v9244 = vpow.pop %v9243
  %v9245 = vmul.f32 %v9182, 1.442695
  %v9246 = vpow.pop %v9245
  %v9247 = vmul.f32 %v9087, %v9184
  %v9248 = vmul.f32 %v9088, %v9186
  %v9249 = vmul.f32 %v9089, %v9188
  %v9250 = vmul.f32 %v9090, %v9190
  %v9251 = vmul.f32 %v9091, %v9192
  %v9252 = vmul.f32 %v9092, %v9194
  %v9253 = vmul.f32 %v9093, %v9196
  %v9254 = vmul.f32 %v9094, %v9198
  %v9255 = vmul.f32 %v9095, %v9200
  %v9256 = vmul.f32 %v9096, %v9202
  %v9257 = vmul.f32 %v9097, %v9204
  %v9258 = vmul.f32 %v9098, %v9206
  %v9259 = vmul.f32 %v9099, %v9208
  %v9260 = vmul.f32 %v9100, %v9210
  %v9261 = vmul.f32 %v9101, %v9212
  %v9262 = vmul.f32 %v9102, %v9214
  %v9263 = vmul.f32 %v9103, %v9216
  %v9264 = vmul.f32 %v9104, %v9218
  %v9265 = vmul.f32 %v9105, %v9220
  %v9266 = vmul.f32 %v9106, %v9222
  %v9267 = vmul.f32 %v9107, %v9224
  %v9268 = vmul.f32 %v9108, %v9226
  %v9269 = vmul.f32 %v9109, %v9228
  %v9270 = vmul.f32 %v9110, %v9230
  %v9271 = vmul.f32 %v9111, %v9232
  %v9272 = vmul.f32 %v9112, %v9234
  %v9273 = vmul.f32 %v9113, %v9236
  %v9274 = vmul.f32 %v9114, %v9238
  %v9275 = vmul.f32 %v9115, %v9240
  %v9276 = vmul.f32 %v9116, %v9242
  %v9277 = vmul.f32 %v9117, %v9244
  %v9278 = vmul.f32 %v9118, %v9246
  %v9279 = vsub.f32 1.0, %v9247
  %v9280 = vsub.f32 1.0, %v9248
  %v9281 = vsub.f32 1.0, %v9249
  %v9282 = vsub.f32 1.0, %v9250
  %v9283 = vsub.f32 1.0, %v9251
  %v9284 = vsub.f32 1.0, %v9252
  %v9285 = vsub.f32 1.0, %v9253
  %v9286 = vsub.f32 1.0, %v9254
  %v9287 = vsub.f32 1.0, %v9255
  %v9288 = vsub.f32 1.0, %v9256
  %v9289 = vsub.f32 1.0, %v9257
  %v9290 = vsub.f32 1.0, %v9258
  %v9291 = vsub.f32 1.0, %v9259
  %v9292 = vsub.f32 1.0, %v9260
  %v9293 = vsub.f32 1.0, %v9261
  %v9294 = vsub.f32 1.0, %v9262
  %v9295 = vsub.f32 1.0, %v9263
  %v9296 = vsub.f32 1.0, %v9264
  %v9297 = vsub.f32 1.0, %v9265
  %v9298 = vsub.f32 1.0, %v9266
  %v9299 = vsub.f32 1.0, %v9267
  %v9300 = vsub.f32 1.0, %v9268
  %v9301 = vsub.f32 1.0, %v9269
  %v9302 = vsub.f32 1.0, %v9270
  %v9303 = vsub.f32 1.0, %v9271
  %v9304 = vsub.f32 1.0, %v9272
  %v9305 = vsub.f32 1.0, %v9273
  %v9306 = vsub.f32 1.0, %v9274
  %v9307 = vsub.f32 1.0, %v9275
  %v9308 = vsub.f32 1.0, %v9276
  %v9309 = vsub.f32 1.0, %v9277
  %v9310 = vsub.f32 1.0, %v9278
  %vm9311 = vcmp.ge.f32.partialorder %v8639, 0.0
  %vm9312 = vcmp.ge.f32.partialorder %v8640, 0.0
  %vm9313 = vcmp.ge.f32.partialorder %v8641, 0.0
  %vm9314 = vcmp.ge.f32.partialorder %v8642, 0.0
  %vm9315 = vcmp.ge.f32.partialorder %v8643, 0.0
  %vm9316 = vcmp.ge.f32.partialorder %v8644, 0.0
  %vm9317 = vcmp.ge.f32.partialorder %v8645, 0.0
  %vm9318 = vcmp.ge.f32.partialorder %v8646, 0.0
  %vm9319 = vcmp.ge.f32.partialorder %v8647, 0.0
  %vm9320 = vcmp.ge.f32.partialorder %v8648, 0.0
  %vm9321 = vcmp.ge.f32.partialorder %v8649, 0.0
  %vm9322 = vcmp.ge.f32.partialorder %v8650, 0.0
  %vm9323 = vcmp.ge.f32.partialorder %v8651, 0.0
  %vm9324 = vcmp.ge.f32.partialorder %v8652, 0.0
  %vm9325 = vcmp.ge.f32.partialorder %v8653, 0.0
  %vm9326 = vcmp.ge.f32.partialorder %v8654, 0.0
  %vm9327 = vcmp.ge.f32.partialorder %v8655, 0.0
  %vm9328 = vcmp.ge.f32.partialorder %v8656, 0.0
  %vm9329 = vcmp.ge.f32.partialorder %v8657, 0.0
  %vm9330 = vcmp.ge.f32.partialorder %v8658, 0.0
  %vm9331 = vcmp.ge.f32.partialorder %v8659, 0.0
  %vm9332 = vcmp.ge.f32.partialorder %v8660, 0.0
  %vm9333 = vcmp.ge.f32.partialorder %v8661, 0.0
  %vm9334 = vcmp.ge.f32.partialorder %v8662, 0.0
  %vm9335 = vcmp.ge.f32.partialorder %v8663, 0.0
  %vm9336 = vcmp.ge.f32.partialorder %v8664, 0.0
  %vm9337 = vcmp.ge.f32.partialorder %v8665, 0.0
  %vm9338 = vcmp.ge.f32.partialorder %v8666, 0.0
  %vm9339 = vcmp.ge.f32.partialorder %v8667, 0.0
  %vm9340 = vcmp.ge.f32.partialorder %v8668, 0.0
  %vm9341 = vcmp.ge.f32.partialorder %v8669, 0.0
  %vm9342 = vcmp.ge.f32.partialorder %v8670, 0.0
  %v9343 = vsub.f32 0.0, %v9279
  %v9344 = vsub.f32 0.0, %v9280
  %v9345 = vsub.f32 0.0, %v9281
  %v9346 = vsub.f32 0.0, %v9282
  %v9347 = vsub.f32 0.0, %v9283
  %v9348 = vsub.f32 0.0, %v9284
  %v9349 = vsub.f32 0.0, %v9285
  %v9350 = vsub.f32 0.0, %v9286
  %v9351 = vsub.f32 0.0, %v9287
  %v9352 = vsub.f32 0.0, %v9288
  %v9353 = vsub.f32 0.0, %v9289
  %v9354 = vsub.f32 0.0, %v9290
  %v9355 = vsub.f32 0.0, %v9291
  %v9356 = vsub.f32 0.0, %v9292
  %v9357 = vsub.f32 0.0, %v9293
  %v9358 = vsub.f32 0.0, %v9294
  %v9359 = vsub.f32 0.0, %v9295
  %v9360 = vsub.f32 0.0, %v9296
  %v9361 = vsub.f32 0.0, %v9297
  %v9362 = vsub.f32 0.0, %v9298
  %v9363 = vsub.f32 0.0, %v9299
  %v9364 = vsub.f32 0.0, %v9300
  %v9365 = vsub.f32 0.0, %v9301
  %v9366 = vsub.f32 0.0, %v9302
  %v9367 = vsub.f32 0.0, %v9303
  %v9368 = vsub.f32 0.0, %v9304
  %v9369 = vsub.f32 0.0, %v9305
  %v9370 = vsub.f32 0.0, %v9306
  %v9371 = vsub.f32 0.0, %v9307
  %v9372 = vsub.f32 0.0, %v9308
  %v9373 = vsub.f32 0.0, %v9309
  %v9374 = vsub.f32 0.0, %v9310
  %v9375 = vsel %vm9311, %v9279, %v9343
  %v9376 = vsel %vm9312, %v9280, %v9344
  %v9377 = vsel %vm9313, %v9281, %v9345
  %v9378 = vsel %vm9314, %v9282, %v9346
  %v9379 = vsel %vm9315, %v9283, %v9347
  %v9380 = vsel %vm9316, %v9284, %v9348
  %v9381 = vsel %vm9317, %v9285, %v9349
  %v9382 = vsel %vm9318, %v9286, %v9350
  %v9383 = vsel %vm9319, %v9287, %v9351
  %v9384 = vsel %vm9320, %v9288, %v9352
  %v9385 = vsel %vm9321, %v9289, %v9353
  %v9386 = vsel %vm9322, %v9290, %v9354
  %v9387 = vsel %vm9323, %v9291, %v9355
  %v9388 = vsel %vm9324, %v9292, %v9356
  %v9389 = vsel %vm9325, %v9293, %v9357
  %v9390 = vsel %vm9326, %v9294, %v9358
  %v9391 = vsel %vm9327, %v9295, %v9359
  %v9392 = vsel %vm9328, %v9296, %v9360
  %v9393 = vsel %vm9329, %v9297, %v9361
  %v9394 = vsel %vm9330, %v9298, %v9362
  %v9395 = vsel %vm9331, %v9299, %v9363
  %v9396 = vsel %vm9332, %v9300, %v9364
  %v9397 = vsel %vm9333, %v9301, %v9365
  %v9398 = vsel %vm9334, %v9302, %v9366
  %v9399 = vsel %vm9335, %v9303, %v9367
  %v9400 = vsel %vm9336, %v9304, %v9368
  %v9401 = vsel %vm9337, %v9305, %v9369
  %v9402 = vsel %vm9338, %v9306, %v9370
  %v9403 = vsel %vm9339, %v9307, %v9371
  %v9404 = vsel %vm9340, %v9308, %v9372
  %v9405 = vsel %vm9341, %v9309, %v9373
  %v9406 = vsel %vm9342, %v9310, %v9374
  %v9407 = vadd.f32 %v9375, 1.0
  %v9408 = vadd.f32 %v9376, 1.0
  %v9409 = vadd.f32 %v9377, 1.0
  %v9410 = vadd.f32 %v9378, 1.0
  %v9411 = vadd.f32 %v9379, 1.0
  %v9412 = vadd.f32 %v9380, 1.0
  %v9413 = vadd.f32 %v9381, 1.0
  %v9414 = vadd.f32 %v9382, 1.0
  %v9415 = vadd.f32 %v9383, 1.0
  %v9416 = vadd.f32 %v9384, 1.0
  %v9417 = vadd.f32 %v9385, 1.0
  %v9418 = vadd.f32 %v9386, 1.0
  %v9419 = vadd.f32 %v9387, 1.0
  %v9420 = vadd.f32 %v9388, 1.0
  %v9421 = vadd.f32 %v9389, 1.0
  %v9422 = vadd.f32 %v9390, 1.0
  %v9423 = vadd.f32 %v9391, 1.0
  %v9424 = vadd.f32 %v9392, 1.0
  %v9425 = vadd.f32 %v9393, 1.0
  %v9426 = vadd.f32 %v9394, 1.0
  %v9427 = vadd.f32 %v9395, 1.0
  %v9428 = vadd.f32 %v9396, 1.0
  %v9429 = vadd.f32 %v9397, 1.0
  %v9430 = vadd.f32 %v9398, 1.0
  %v9431 = vadd.f32 %v9399, 1.0
  %v9432 = vadd.f32 %v9400, 1.0
  %v9433 = vadd.f32 %v9401, 1.0
  %v9434 = vadd.f32 %v9402, 1.0
  %v9435 = vadd.f32 %v9403, 1.0
  %v9436 = vadd.f32 %v9404, 1.0
  %v9437 = vadd.f32 %v9405, 1.0
  %v9438 = vadd.f32 %v9406, 1.0
  %v9439 = vmul.f32 %v8607, %v9407
  %v9440 = vmul.f32 %v8608, %v9408
  %v9441 = vmul.f32 %v8609, %v9409
  %v9442 = vmul.f32 %v8610, %v9410
  %v9443 = vmul.f32 %v8611, %v9411
  %v9444 = vmul.f32 %v8612, %v9412
  %v9445 = vmul.f32 %v8613, %v9413
  %v9446 = vmul.f32 %v8614, %v9414
  %v9447 = vmul.f32 %v8615, %v9415
  %v9448 = vmul.f32 %v8616, %v9416
  %v9449 = vmul.f32 %v8617, %v9417
  %v9450 = vmul.f32 %v8618, %v9418
  %v9451 = vmul.f32 %v8619, %v9419
  %v9452 = vmul.f32 %v8620, %v9420
  %v9453 = vmul.f32 %v8621, %v9421
  %v9454 = vmul.f32 %v8622, %v9422
  %v9455 = vmul.f32 %v8623, %v9423
  %v9456 = vmul.f32 %v8624, %v9424
  %v9457 = vmul.f32 %v8625, %v9425
  %v9458 = vmul.f32 %v8626, %v9426
  %v9459 = vmul.f32 %v8627, %v9427
  %v9460 = vmul.f32 %v8628, %v9428
  %v9461 = vmul.f32 %v8629, %v9429
  %v9462 = vmul.f32 %v8630, %v9430
  %v9463 = vmul.f32 %v8631, %v9431
  %v9464 = vmul.f32 %v8632, %v9432
  %v9465 = vmul.f32 %v8633, %v9433
  %v9466 = vmul.f32 %v8634, %v9434
  %v9467 = vmul.f32 %v8635, %v9435
  %v9468 = vmul.f32 %v8636, %v9436
  %v9469 = vmul.f32 %v8637, %v9437
  %v9470 = vmul.f32 %v8638, %v9438
  %9471 = vmatprep.subr.mxu0 0.0
  %v9472 = vand.u32 %v3582, 4294901760
  %9473 = vmatpush1.msra.mxu0 %v9472
  %9474 = vmatprep.subr.mxu0 0.0
  %v9475 = vand.u32 %v3581, 4294901760
  %9476 = vmatpush1.msra.mxu0 %v9475
  %9477 = vmatprep.subr.mxu0 0.0
  %v9478 = vand.u32 %v3580, 4294901760
  %9479 = vmatpush1.msra.mxu0 %v9478
  %9480 = vmatprep.subr.mxu0 0.0
  %v9481 = vand.u32 %v3579, 4294901760
  %9482 = vmatpush1.msra.mxu0 %v9481
  %9483 = vmatprep.subr.mxu0 0.0
  %v9484 = vand.u32 %v3578, 4294901760
  %9485 = vmatpush1.msra.mxu0 %v9484
  %9486 = vmatprep.subr.mxu0 0.0
  %v9487 = vand.u32 %v3577, 4294901760
  %9488 = vmatpush1.msra.mxu0 %v9487
  %9489 = vmatprep.subr.mxu0 0.0
  %v9490 = vand.u32 %v3576, 4294901760
  %9491 = vmatpush1.msra.mxu0 %v9490
  %9492 = vmatprep.subr.mxu0 0.0
  %v9493 = vand.u32 %v3575, 4294901760
  %9494 = vmatpush1.msra.mxu0 %v9493
  %9495 = vmatprep.subr.mxu0 0.0
  %v9496 = vand.u32 %v3574, 4294901760
  %9497 = vmatpush1.msra.mxu0 %v9496
  %9498 = vmatprep.subr.mxu0 0.0
  %v9499 = vand.u32 %v3573, 4294901760
  %9500 = vmatpush1.msra.mxu0 %v9499
  %9501 = vmatprep.subr.mxu0 0.0
  %v9502 = vand.u32 %v3572, 4294901760
  %9503 = vmatpush1.msra.mxu0 %v9502
  %9504 = vmatprep.subr.mxu0 0.0
  %v9505 = vand.u32 %v3571, 4294901760
  %9506 = vmatpush1.msra.mxu0 %v9505
  %9507 = vmatprep.subr.mxu0 0.0
  %v9508 = vand.u32 %v3570, 4294901760
  %9509 = vmatpush1.msra.mxu0 %v9508
  %9510 = vmatprep.subr.mxu0 0.0
  %v9511 = vand.u32 %v3569, 4294901760
  %9512 = vmatpush1.msra.mxu0 %v9511
  %9513 = vmatprep.subr.mxu0 0.0
  %v9514 = vand.u32 %v3568, 4294901760
  %9515 = vmatpush1.msra.mxu0 %v9514
  %9516 = vmatprep.subr.mxu0 0.0
  %v9517 = vand.u32 %v3567, 4294901760
  %9518 = vmatpush1.msra.mxu0 %v9517
  %9519 = vmatprep.subr.mxu0 0.0
  %9520 = vmatpush2.msra.mxu0 0.0
  %9521 = vmatprep.subr.mxu0 0.0
  %9522 = vmatpush2.msra.mxu0 0.0
  %9523 = vmatprep.subr.mxu0 0.0
  %9524 = vmatpush2.msra.mxu0 0.0
  %9525 = vmatprep.subr.mxu0 0.0
  %9526 = vmatpush2.msra.mxu0 0.0
  %9527 = vmatprep.subr.mxu0 0.0
  %9528 = vmatpush2.msra.mxu0 0.0
  %9529 = vmatprep.subr.mxu0 0.0
  %9530 = vmatpush2.msra.mxu0 0.0
  %9531 = vmatprep.subr.mxu0 0.0
  %9532 = vmatpush2.msra.mxu0 0.0
  %9533 = vmatprep.subr.mxu0 0.0
  %9534 = vmatpush2.msra.mxu0 0.0
  %9535 = vmatprep.subr.mxu0 0.0
  %9536 = vmatpush2.msra.mxu0 0.0
  %9537 = vmatprep.subr.mxu0 0.0
  %9538 = vmatpush2.msra.mxu0 0.0
  %9539 = vmatprep.subr.mxu0 0.0
  %9540 = vmatpush2.msra.mxu0 0.0
  %9541 = vmatprep.subr.mxu0 0.0
  %9542 = vmatpush2.msra.mxu0 0.0
  %9543 = vmatprep.subr.mxu0 0.0
  %9544 = vmatpush2.msra.mxu0 0.0
  %9545 = vmatprep.subr.mxu0 0.0
  %9546 = vmatpush2.msra.mxu0 0.0
  %9547 = vmatprep.subr.mxu0 0.0
  %9548 = vmatpush2.msra.mxu0 0.0
  %9549 = vmatprep.subr.mxu0 0.0
  %9550 = vmatpush2.msra.mxu0 0.0
  %9551 = vmatprep.mubr.f32.mxu0 0.0
  %v9552 = vand.u32 %v9439, 4294901760
  %v9553 = vsub.f32 %v9439, %v9552
  %v9554 = vand.u32 %v9553, 4294901760
  %v9555 = vsub.f32 %v9553, %v9554
  %v9556 = vand.u32 %v9555, 4294901760
  %9557 = vmatmul.mubr.f32.gmra.mxu0 %v9556
  %v9558 = vpop.f32.mrf.mxu0
  %v9559 = vadd.f32 %v5851, %v9558
  %v9560 = vpop.f32.mrf.mxu0
  %9561 = vmatprep.mubr.f32.mxu0 0.0
  %v9562 = vand.u32 %v9440, 4294901760
  %v9563 = vsub.f32 %v9440, %v9562
  %v9564 = vand.u32 %v9563, 4294901760
  %v9565 = vsub.f32 %v9563, %v9564
  %v9566 = vand.u32 %v9565, 4294901760
  %9567 = vmatmul.mubr.f32.gmra.mxu0 %v9566
  %v9568 = vpop.f32.mrf.mxu0
  %v9569 = vadd.f32 %v5851, %v9568
  %v9570 = vpop.f32.mrf.mxu0
  %9571 = vmatprep.mubr.f32.mxu0 0.0
  %v9572 = vand.u32 %v9441, 4294901760
  %v9573 = vsub.f32 %v9441, %v9572
  %v9574 = vand.u32 %v9573, 4294901760
  %v9575 = vsub.f32 %v9573, %v9574
  %v9576 = vand.u32 %v9575, 4294901760
  %9577 = vmatmul.mubr.f32.gmra.mxu0 %v9576
  %v9578 = vpop.f32.mrf.mxu0
  %v9579 = vadd.f32 %v5851, %v9578
  %v9580 = vpop.f32.mrf.mxu0
  %9581 = vmatprep.mubr.f32.mxu0 0.0
  %v9582 = vand.u32 %v9442, 4294901760
  %v9583 = vsub.f32 %v9442, %v9582
  %v9584 = vand.u32 %v9583, 4294901760
  %v9585 = vsub.f32 %v9583, %v9584
  %v9586 = vand.u32 %v9585, 4294901760
  %9587 = vmatmul.mubr.f32.gmra.mxu0 %v9586
  %v9588 = vpop.f32.mrf.mxu0
  %v9589 = vadd.f32 %v5851, %v9588
  %v9590 = vpop.f32.mrf.mxu0
  %9591 = vmatprep.mubr.f32.mxu0 0.0
  %v9592 = vand.u32 %v9443, 4294901760
  %v9593 = vsub.f32 %v9443, %v9592
  %v9594 = vand.u32 %v9593, 4294901760
  %v9595 = vsub.f32 %v9593, %v9594
  %v9596 = vand.u32 %v9595, 4294901760
  %9597 = vmatmul.mubr.f32.gmra.mxu0 %v9596
  %v9598 = vpop.f32.mrf.mxu0
  %v9599 = vadd.f32 %v5851, %v9598
  %v9600 = vpop.f32.mrf.mxu0
  %9601 = vmatprep.mubr.f32.mxu0 0.0
  %v9602 = vand.u32 %v9444, 4294901760
  %v9603 = vsub.f32 %v9444, %v9602
  %v9604 = vand.u32 %v9603, 4294901760
  %v9605 = vsub.f32 %v9603, %v9604
  %v9606 = vand.u32 %v9605, 4294901760
  %9607 = vmatmul.mubr.f32.gmra.mxu0 %v9606
  %v9608 = vpop.f32.mrf.mxu0
  %v9609 = vadd.f32 %v5851, %v9608
  %v9610 = vpop.f32.mrf.mxu0
  %9611 = vmatprep.mubr.f32.mxu0 0.0
  %v9612 = vand.u32 %v9445, 4294901760
  %v9613 = vsub.f32 %v9445, %v9612
  %v9614 = vand.u32 %v9613, 4294901760
  %v9615 = vsub.f32 %v9613, %v9614
  %v9616 = vand.u32 %v9615, 4294901760
  %9617 = vmatmul.mubr.f32.gmra.mxu0 %v9616
  %v9618 = vpop.f32.mrf.mxu0
  %v9619 = vadd.f32 %v5851, %v9618
  %v9620 = vpop.f32.mrf.mxu0
  %9621 = vmatprep.mubr.f32.mxu0 0.0
  %v9622 = vand.u32 %v9446, 4294901760
  %v9623 = vsub.f32 %v9446, %v9622
  %v9624 = vand.u32 %v9623, 4294901760
  %v9625 = vsub.f32 %v9623, %v9624
  %v9626 = vand.u32 %v9625, 4294901760
  %9627 = vmatmul.mubr.f32.gmra.mxu0 %v9626
  %v9628 = vpop.f32.mrf.mxu0
  %v9629 = vadd.f32 %v5851, %v9628
  %v9630 = vpop.f32.mrf.mxu0
  %9631 = vmatprep.mubr.f32.mxu0 0.0
  %v9632 = vand.u32 %v9447, 4294901760
  %v9633 = vsub.f32 %v9447, %v9632
  %v9634 = vand.u32 %v9633, 4294901760
  %v9635 = vsub.f32 %v9633, %v9634
  %v9636 = vand.u32 %v9635, 4294901760
  %9637 = vmatmul.mubr.f32.gmra.mxu0 %v9636
  %v9638 = vpop.f32.mrf.mxu0
  %v9639 = vadd.f32 %v5851, %v9638
  %v9640 = vpop.f32.mrf.mxu0
  %9641 = vmatprep.mubr.f32.mxu0 0.0
  %v9642 = vand.u32 %v9448, 4294901760
  %v9643 = vsub.f32 %v9448, %v9642
  %v9644 = vand.u32 %v9643, 4294901760
  %v9645 = vsub.f32 %v9643, %v9644
  %v9646 = vand.u32 %v9645, 4294901760
  %9647 = vmatmul.mubr.f32.gmra.mxu0 %v9646
  %v9648 = vpop.f32.mrf.mxu0
  %v9649 = vadd.f32 %v5851, %v9648
  %v9650 = vpop.f32.mrf.mxu0
  %9651 = vmatprep.mubr.f32.mxu0 0.0
  %v9652 = vand.u32 %v9449, 4294901760
  %v9653 = vsub.f32 %v9449, %v9652
  %v9654 = vand.u32 %v9653, 4294901760
  %v9655 = vsub.f32 %v9653, %v9654
  %v9656 = vand.u32 %v9655, 4294901760
  %9657 = vmatmul.mubr.f32.gmra.mxu0 %v9656
  %v9658 = vpop.f32.mrf.mxu0
  %v9659 = vadd.f32 %v5851, %v9658
  %v9660 = vpop.f32.mrf.mxu0
  %9661 = vmatprep.mubr.f32.mxu0 0.0
  %v9662 = vand.u32 %v9450, 4294901760
  %v9663 = vsub.f32 %v9450, %v9662
  %v9664 = vand.u32 %v9663, 4294901760
  %v9665 = vsub.f32 %v9663, %v9664
  %v9666 = vand.u32 %v9665, 4294901760
  %9667 = vmatmul.mubr.f32.gmra.mxu0 %v9666
  %v9668 = vpop.f32.mrf.mxu0
  %v9669 = vadd.f32 %v5851, %v9668
  %v9670 = vpop.f32.mrf.mxu0
  %9671 = vmatprep.mubr.f32.mxu0 0.0
  %v9672 = vand.u32 %v9451, 4294901760
  %v9673 = vsub.f32 %v9451, %v9672
  %v9674 = vand.u32 %v9673, 4294901760
  %v9675 = vsub.f32 %v9673, %v9674
  %v9676 = vand.u32 %v9675, 4294901760
  %9677 = vmatmul.mubr.f32.gmra.mxu0 %v9676
  %v9678 = vpop.f32.mrf.mxu0
  %v9679 = vadd.f32 %v5851, %v9678
  %v9680 = vpop.f32.mrf.mxu0
  %9681 = vmatprep.mubr.f32.mxu0 0.0
  %v9682 = vand.u32 %v9452, 4294901760
  %v9683 = vsub.f32 %v9452, %v9682
  %v9684 = vand.u32 %v9683, 4294901760
  %v9685 = vsub.f32 %v9683, %v9684
  %v9686 = vand.u32 %v9685, 4294901760
  %9687 = vmatmul.mubr.f32.gmra.mxu0 %v9686
  %v9688 = vpop.f32.mrf.mxu0
  %v9689 = vadd.f32 %v5851, %v9688
  %v9690 = vpop.f32.mrf.mxu0
  %9691 = vmatprep.mubr.f32.mxu0 0.0
  %v9692 = vand.u32 %v9453, 4294901760
  %v9693 = vsub.f32 %v9453, %v9692
  %v9694 = vand.u32 %v9693, 4294901760
  %v9695 = vsub.f32 %v9693, %v9694
  %v9696 = vand.u32 %v9695, 4294901760
  %9697 = vmatmul.mubr.f32.gmra.mxu0 %v9696
  %v9698 = vpop.f32.mrf.mxu0
  %v9699 = vadd.f32 %v5851, %v9698
  %v9700 = vpop.f32.mrf.mxu0
  %9701 = vmatprep.mubr.f32.mxu0 0.0
  %v9702 = vand.u32 %v9454, 4294901760
  %v9703 = vsub.f32 %v9454, %v9702
  %v9704 = vand.u32 %v9703, 4294901760
  %v9705 = vsub.f32 %v9703, %v9704
  %v9706 = vand.u32 %v9705, 4294901760
  %9707 = vmatmul.mubr.f32.gmra.mxu0 %v9706
  %v9708 = vpop.f32.mrf.mxu0
  %v9709 = vadd.f32 %v5851, %v9708
  %v9710 = vpop.f32.mrf.mxu0
  %9711 = vmatprep.mubr.f32.mxu0 0.0
  %v9712 = vand.u32 %v9455, 4294901760
  %v9713 = vsub.f32 %v9455, %v9712
  %v9714 = vand.u32 %v9713, 4294901760
  %v9715 = vsub.f32 %v9713, %v9714
  %v9716 = vand.u32 %v9715, 4294901760
  %9717 = vmatmul.mubr.f32.gmra.mxu0 %v9716
  %v9718 = vpop.f32.mrf.mxu0
  %v9719 = vadd.f32 %v5851, %v9718
  %v9720 = vpop.f32.mrf.mxu0
  %9721 = vmatprep.mubr.f32.mxu0 0.0
  %v9722 = vand.u32 %v9456, 4294901760
  %v9723 = vsub.f32 %v9456, %v9722
  %v9724 = vand.u32 %v9723, 4294901760
  %v9725 = vsub.f32 %v9723, %v9724
  %v9726 = vand.u32 %v9725, 4294901760
  %9727 = vmatmul.mubr.f32.gmra.mxu0 %v9726
  %v9728 = vpop.f32.mrf.mxu0
  %v9729 = vadd.f32 %v5851, %v9728
  %v9730 = vpop.f32.mrf.mxu0
  %9731 = vmatprep.mubr.f32.mxu0 0.0
  %v9732 = vand.u32 %v9457, 4294901760
  %v9733 = vsub.f32 %v9457, %v9732
  %v9734 = vand.u32 %v9733, 4294901760
  %v9735 = vsub.f32 %v9733, %v9734
  %v9736 = vand.u32 %v9735, 4294901760
  %9737 = vmatmul.mubr.f32.gmra.mxu0 %v9736
  %v9738 = vpop.f32.mrf.mxu0
  %v9739 = vadd.f32 %v5851, %v9738
  %v9740 = vpop.f32.mrf.mxu0
  %9741 = vmatprep.mubr.f32.mxu0 0.0
  %v9742 = vand.u32 %v9458, 4294901760
  %v9743 = vsub.f32 %v9458, %v9742
  %v9744 = vand.u32 %v9743, 4294901760
  %v9745 = vsub.f32 %v9743, %v9744
  %v9746 = vand.u32 %v9745, 4294901760
  %9747 = vmatmul.mubr.f32.gmra.mxu0 %v9746
  %v9748 = vpop.f32.mrf.mxu0
  %v9749 = vadd.f32 %v5851, %v9748
  %v9750 = vpop.f32.mrf.mxu0
  %9751 = vmatprep.mubr.f32.mxu0 0.0
  %v9752 = vand.u32 %v9459, 4294901760
  %v9753 = vsub.f32 %v9459, %v9752
  %v9754 = vand.u32 %v9753, 4294901760
  %v9755 = vsub.f32 %v9753, %v9754
  %v9756 = vand.u32 %v9755, 4294901760
  %9757 = vmatmul.mubr.f32.gmra.mxu0 %v9756
  %v9758 = vpop.f32.mrf.mxu0
  %v9759 = vadd.f32 %v5851, %v9758
  %v9760 = vpop.f32.mrf.mxu0
  %9761 = vmatprep.mubr.f32.mxu0 0.0
  %v9762 = vand.u32 %v9460, 4294901760
  %v9763 = vsub.f32 %v9460, %v9762
  %v9764 = vand.u32 %v9763, 4294901760
  %v9765 = vsub.f32 %v9763, %v9764
  %v9766 = vand.u32 %v9765, 4294901760
  %9767 = vmatmul.mubr.f32.gmra.mxu0 %v9766
  %v9768 = vpop.f32.mrf.mxu0
  %v9769 = vadd.f32 %v5851, %v9768
  %v9770 = vpop.f32.mrf.mxu0
  %9771 = vmatprep.mubr.f32.mxu0 0.0
  %v9772 = vand.u32 %v9461, 4294901760
  %v9773 = vsub.f32 %v9461, %v9772
  %v9774 = vand.u32 %v9773, 4294901760
  %v9775 = vsub.f32 %v9773, %v9774
  %v9776 = vand.u32 %v9775, 4294901760
  %9777 = vmatmul.mubr.f32.gmra.mxu0 %v9776
  %v9778 = vpop.f32.mrf.mxu0
  %v9779 = vadd.f32 %v5851, %v9778
  %v9780 = vpop.f32.mrf.mxu0
  %9781 = vmatprep.mubr.f32.mxu0 0.0
  %v9782 = vand.u32 %v9462, 4294901760
  %v9783 = vsub.f32 %v9462, %v9782
  %v9784 = vand.u32 %v9783, 4294901760
  %v9785 = vsub.f32 %v9783, %v9784
  %v9786 = vand.u32 %v9785, 4294901760
  %9787 = vmatmul.mubr.f32.gmra.mxu0 %v9786
  %v9788 = vpop.f32.mrf.mxu0
  %v9789 = vadd.f32 %v5851, %v9788
  %v9790 = vpop.f32.mrf.mxu0
  %9791 = vmatprep.mubr.f32.mxu0 0.0
  %v9792 = vand.u32 %v9463, 4294901760
  %v9793 = vsub.f32 %v9463, %v9792
  %v9794 = vand.u32 %v9793, 4294901760
  %v9795 = vsub.f32 %v9793, %v9794
  %v9796 = vand.u32 %v9795, 4294901760
  %9797 = vmatmul.mubr.f32.gmra.mxu0 %v9796
  %v9798 = vpop.f32.mrf.mxu0
  %v9799 = vadd.f32 %v5851, %v9798
  %v9800 = vpop.f32.mrf.mxu0
  %9801 = vmatprep.mubr.f32.mxu0 0.0
  %v9802 = vand.u32 %v9464, 4294901760
  %v9803 = vsub.f32 %v9464, %v9802
  %v9804 = vand.u32 %v9803, 4294901760
  %v9805 = vsub.f32 %v9803, %v9804
  %v9806 = vand.u32 %v9805, 4294901760
  %9807 = vmatmul.mubr.f32.gmra.mxu0 %v9806
  %v9808 = vpop.f32.mrf.mxu0
  %v9809 = vadd.f32 %v5851, %v9808
  %v9810 = vpop.f32.mrf.mxu0
  %9811 = vmatprep.mubr.f32.mxu0 0.0
  %v9812 = vand.u32 %v9465, 4294901760
  %v9813 = vsub.f32 %v9465, %v9812
  %v9814 = vand.u32 %v9813, 4294901760
  %v9815 = vsub.f32 %v9813, %v9814
  %v9816 = vand.u32 %v9815, 4294901760
  %9817 = vmatmul.mubr.f32.gmra.mxu0 %v9816
  %v9818 = vpop.f32.mrf.mxu0
  %v9819 = vadd.f32 %v5851, %v9818
  %v9820 = vpop.f32.mrf.mxu0
  %9821 = vmatprep.mubr.f32.mxu0 0.0
  %v9822 = vand.u32 %v9466, 4294901760
  %v9823 = vsub.f32 %v9466, %v9822
  %v9824 = vand.u32 %v9823, 4294901760
  %v9825 = vsub.f32 %v9823, %v9824
  %v9826 = vand.u32 %v9825, 4294901760
  %9827 = vmatmul.mubr.f32.gmra.mxu0 %v9826
  %v9828 = vpop.f32.mrf.mxu0
  %v9829 = vadd.f32 %v5851, %v9828
  %v9830 = vpop.f32.mrf.mxu0
  %9831 = vmatprep.mubr.f32.mxu0 0.0
  %v9832 = vand.u32 %v9467, 4294901760
  %v9833 = vsub.f32 %v9467, %v9832
  %v9834 = vand.u32 %v9833, 4294901760
  %v9835 = vsub.f32 %v9833, %v9834
  %v9836 = vand.u32 %v9835, 4294901760
  %9837 = vmatmul.mubr.f32.gmra.mxu0 %v9836
  %v9838 = vpop.f32.mrf.mxu0
  %v9839 = vadd.f32 %v5851, %v9838
  %v9840 = vpop.f32.mrf.mxu0
  %9841 = vmatprep.mubr.f32.mxu0 0.0
  %v9842 = vand.u32 %v9468, 4294901760
  %v9843 = vsub.f32 %v9468, %v9842
  %v9844 = vand.u32 %v9843, 4294901760
  %v9845 = vsub.f32 %v9843, %v9844
  %v9846 = vand.u32 %v9845, 4294901760
  %9847 = vmatmul.mubr.f32.gmra.mxu0 %v9846
  %v9848 = vpop.f32.mrf.mxu0
  %v9849 = vadd.f32 %v5851, %v9848
  %v9850 = vpop.f32.mrf.mxu0
  %9851 = vmatprep.mubr.f32.mxu0 0.0
  %v9852 = vand.u32 %v9469, 4294901760
  %v9853 = vsub.f32 %v9469, %v9852
  %v9854 = vand.u32 %v9853, 4294901760
  %v9855 = vsub.f32 %v9853, %v9854
  %v9856 = vand.u32 %v9855, 4294901760
  %9857 = vmatmul.mubr.f32.gmra.mxu0 %v9856
  %v9858 = vpop.f32.mrf.mxu0
  %v9859 = vadd.f32 %v5851, %v9858
  %v9860 = vpop.f32.mrf.mxu0
  %9861 = vmatprep.mubr.f32.mxu0 0.0
  %v9862 = vand.u32 %v9470, 4294901760
  %v9863 = vsub.f32 %v9470, %v9862
  %v9864 = vand.u32 %v9863, 4294901760
  %v9865 = vsub.f32 %v9863, %v9864
  %v9866 = vand.u32 %v9865, 4294901760
  %9867 = vmatmul.mubr.f32.gmra.mxu0 %v9866
  %v9868 = vpop.f32.mrf.mxu0
  %v9869 = vadd.f32 %v5851, %v9868
  %v9870 = vpop.f32.mrf.mxu0
  %9871 = vdwg.mxu0
  %9872 = vmatprep.subr.mxu0 0.0
  %v9873 = vand.u32 %v3582, 4294901760
  %v9874 = vsub.f32 %v3582, %v9873
  %v9875 = vand.u32 %v9874, 4294901760
  %v9876 = vsub.f32 %v9874, %v9875
  %v9877 = vand.u32 %v9876, 4294901760
  %9878 = vmatpush1.msra.mxu0 %v9877
  %9879 = vmatprep.subr.mxu0 0.0
  %v9880 = vand.u32 %v3581, 4294901760
  %v9881 = vsub.f32 %v3581, %v9880
  %v9882 = vand.u32 %v9881, 4294901760
  %v9883 = vsub.f32 %v9881, %v9882
  %v9884 = vand.u32 %v9883, 4294901760
  %9885 = vmatpush1.msra.mxu0 %v9884
  %9886 = vmatprep.subr.mxu0 0.0
  %v9887 = vand.u32 %v3580, 4294901760
  %v9888 = vsub.f32 %v3580, %v9887
  %v9889 = vand.u32 %v9888, 4294901760
  %v9890 = vsub.f32 %v9888, %v9889
  %v9891 = vand.u32 %v9890, 4294901760
  %9892 = vmatpush1.msra.mxu0 %v9891
  %9893 = vmatprep.subr.mxu0 0.0
  %v9894 = vand.u32 %v3579, 4294901760
  %v9895 = vsub.f32 %v3579, %v9894
  %v9896 = vand.u32 %v9895, 4294901760
  %v9897 = vsub.f32 %v9895, %v9896
  %v9898 = vand.u32 %v9897, 4294901760
  %9899 = vmatpush1.msra.mxu0 %v9898
  %9900 = vmatprep.subr.mxu0 0.0
  %v9901 = vand.u32 %v3578, 4294901760
  %v9902 = vsub.f32 %v3578, %v9901
  %v9903 = vand.u32 %v9902, 4294901760
  %v9904 = vsub.f32 %v9902, %v9903
  %v9905 = vand.u32 %v9904, 4294901760
  %9906 = vmatpush1.msra.mxu0 %v9905
  %9907 = vmatprep.subr.mxu0 0.0
  %v9908 = vand.u32 %v3577, 4294901760
  %v9909 = vsub.f32 %v3577, %v9908
  %v9910 = vand.u32 %v9909, 4294901760
  %v9911 = vsub.f32 %v9909, %v9910
  %v9912 = vand.u32 %v9911, 4294901760
  %9913 = vmatpush1.msra.mxu0 %v9912
  %9914 = vmatprep.subr.mxu0 0.0
  %v9915 = vand.u32 %v3576, 4294901760
  %v9916 = vsub.f32 %v3576, %v9915
  %v9917 = vand.u32 %v9916, 4294901760
  %v9918 = vsub.f32 %v9916, %v9917
  %v9919 = vand.u32 %v9918, 4294901760
  %9920 = vmatpush1.msra.mxu0 %v9919
  %9921 = vmatprep.subr.mxu0 0.0
  %v9922 = vand.u32 %v3575, 4294901760
  %v9923 = vsub.f32 %v3575, %v9922
  %v9924 = vand.u32 %v9923, 4294901760
  %v9925 = vsub.f32 %v9923, %v9924
  %v9926 = vand.u32 %v9925, 4294901760
  %9927 = vmatpush1.msra.mxu0 %v9926
  %9928 = vmatprep.subr.mxu0 0.0
  %v9929 = vand.u32 %v3574, 4294901760
  %v9930 = vsub.f32 %v3574, %v9929
  %v9931 = vand.u32 %v9930, 4294901760
  %v9932 = vsub.f32 %v9930, %v9931
  %v9933 = vand.u32 %v9932, 4294901760
  %9934 = vmatpush1.msra.mxu0 %v9933
  %9935 = vmatprep.subr.mxu0 0.0
  %v9936 = vand.u32 %v3573, 4294901760
  %v9937 = vsub.f32 %v3573, %v9936
  %v9938 = vand.u32 %v9937, 4294901760
  %v9939 = vsub.f32 %v9937, %v9938
  %v9940 = vand.u32 %v9939, 4294901760
  %9941 = vmatpush1.msra.mxu0 %v9940
  %9942 = vmatprep.subr.mxu0 0.0
  %v9943 = vand.u32 %v3572, 4294901760
  %v9944 = vsub.f32 %v3572, %v9943
  %v9945 = vand.u32 %v9944, 4294901760
  %v9946 = vsub.f32 %v9944, %v9945
  %v9947 = vand.u32 %v9946, 4294901760
  %9948 = vmatpush1.msra.mxu0 %v9947
  %9949 = vmatprep.subr.mxu0 0.0
  %v9950 = vand.u32 %v3571, 4294901760
  %v9951 = vsub.f32 %v3571, %v9950
  %v9952 = vand.u32 %v9951, 4294901760
  %v9953 = vsub.f32 %v9951, %v9952
  %v9954 = vand.u32 %v9953, 4294901760
  %9955 = vmatpush1.msra.mxu0 %v9954
  %9956 = vmatprep.subr.mxu0 0.0
  %v9957 = vand.u32 %v3570, 4294901760
  %v9958 = vsub.f32 %v3570, %v9957
  %v9959 = vand.u32 %v9958, 4294901760
  %v9960 = vsub.f32 %v9958, %v9959
  %v9961 = vand.u32 %v9960, 4294901760
  %9962 = vmatpush1.msra.mxu0 %v9961
  %9963 = vmatprep.subr.mxu0 0.0
  %v9964 = vand.u32 %v3569, 4294901760
  %v9965 = vsub.f32 %v3569, %v9964
  %v9966 = vand.u32 %v9965, 4294901760
  %v9967 = vsub.f32 %v9965, %v9966
  %v9968 = vand.u32 %v9967, 4294901760
  %9969 = vmatpush1.msra.mxu0 %v9968
  %9970 = vmatprep.subr.mxu0 0.0
  %v9971 = vand.u32 %v3568, 4294901760
  %v9972 = vsub.f32 %v3568, %v9971
  %v9973 = vand.u32 %v9972, 4294901760
  %v9974 = vsub.f32 %v9972, %v9973
  %v9975 = vand.u32 %v9974, 4294901760
  %9976 = vmatpush1.msra.mxu0 %v9975
  %9977 = vmatprep.subr.mxu0 0.0
  %v9978 = vand.u32 %v3567, 4294901760
  %v9979 = vsub.f32 %v3567, %v9978
  %v9980 = vand.u32 %v9979, 4294901760
  %v9981 = vsub.f32 %v9979, %v9980
  %v9982 = vand.u32 %v9981, 4294901760
  %9983 = vmatpush1.msra.mxu0 %v9982
  %9984 = vmatprep.subr.mxu0 0.0
  %9985 = vmatpush2.msra.mxu0 0.0
  %9986 = vmatprep.subr.mxu0 0.0
  %9987 = vmatpush2.msra.mxu0 0.0
  %9988 = vmatprep.subr.mxu0 0.0
  %9989 = vmatpush2.msra.mxu0 0.0
  %9990 = vmatprep.subr.mxu0 0.0
  %9991 = vmatpush2.msra.mxu0 0.0
  %9992 = vmatprep.subr.mxu0 0.0
  %9993 = vmatpush2.msra.mxu0 0.0
  %9994 = vmatprep.subr.mxu0 0.0
  %9995 = vmatpush2.msra.mxu0 0.0
  %9996 = vmatprep.subr.mxu0 0.0
  %9997 = vmatpush2.msra.mxu0 0.0
  %9998 = vmatprep.subr.mxu0 0.0
  %9999 = vmatpush2.msra.mxu0 0.0
  %10000 = vmatprep.subr.mxu0 0.0
  %10001 = vmatpush2.msra.mxu0 0.0
  %10002 = vmatprep.subr.mxu0 0.0
  %10003 = vmatpush2.msra.mxu0 0.0
  %10004 = vmatprep.subr.mxu0 0.0
  %10005 = vmatpush2.msra.mxu0 0.0
  %10006 = vmatprep.subr.mxu0 0.0
  %10007 = vmatpush2.msra.mxu0 0.0
  %10008 = vmatprep.subr.mxu0 0.0
  %10009 = vmatpush2.msra.mxu0 0.0
  %10010 = vmatprep.subr.mxu0 0.0
  %10011 = vmatpush2.msra.mxu0 0.0
  %10012 = vmatprep.subr.mxu0 0.0
  %10013 = vmatpush2.msra.mxu0 0.0
  %10014 = vmatprep.subr.mxu0 0.0
  %10015 = vmatpush2.msra.mxu0 0.0
  %10016 = vmatprep.mubr.f32.mxu0 0.0
  %v10017 = vand.u32 %v9439, 4294901760
  %10018 = vmatmul.mubr.f32.gmra.mxu0 %v10017
  %v10019 = vpop.f32.mrf.mxu0
  %v10020 = vadd.f32 %v9559, %v10019
  %v10021 = vpop.f32.mrf.mxu0
  %10022 = vmatprep.mubr.f32.mxu0 0.0
  %v10023 = vand.u32 %v9440, 4294901760
  %10024 = vmatmul.mubr.f32.gmra.mxu0 %v10023
  %v10025 = vpop.f32.mrf.mxu0
  %v10026 = vadd.f32 %v9569, %v10025
  %v10027 = vpop.f32.mrf.mxu0
  %10028 = vmatprep.mubr.f32.mxu0 0.0
  %v10029 = vand.u32 %v9441, 4294901760
  %10030 = vmatmul.mubr.f32.gmra.mxu0 %v10029
  %v10031 = vpop.f32.mrf.mxu0
  %v10032 = vadd.f32 %v9579, %v10031
  %v10033 = vpop.f32.mrf.mxu0
  %10034 = vmatprep.mubr.f32.mxu0 0.0
  %v10035 = vand.u32 %v9442, 4294901760
  %10036 = vmatmul.mubr.f32.gmra.mxu0 %v10035
  %v10037 = vpop.f32.mrf.mxu0
  %v10038 = vadd.f32 %v9589, %v10037
  %v10039 = vpop.f32.mrf.mxu0
  %10040 = vmatprep.mubr.f32.mxu0 0.0
  %v10041 = vand.u32 %v9443, 4294901760
  %10042 = vmatmul.mubr.f32.gmra.mxu0 %v10041
  %v10043 = vpop.f32.mrf.mxu0
  %v10044 = vadd.f32 %v9599, %v10043
  %v10045 = vpop.f32.mrf.mxu0
  %10046 = vmatprep.mubr.f32.mxu0 0.0
  %v10047 = vand.u32 %v9444, 4294901760
  %10048 = vmatmul.mubr.f32.gmra.mxu0 %v10047
  %v10049 = vpop.f32.mrf.mxu0
  %v10050 = vadd.f32 %v9609, %v10049
  %v10051 = vpop.f32.mrf.mxu0
  %10052 = vmatprep.mubr.f32.mxu0 0.0
  %v10053 = vand.u32 %v9445, 4294901760
  %10054 = vmatmul.mubr.f32.gmra.mxu0 %v10053
  %v10055 = vpop.f32.mrf.mxu0
  %v10056 = vadd.f32 %v9619, %v10055
  %v10057 = vpop.f32.mrf.mxu0
  %10058 = vmatprep.mubr.f32.mxu0 0.0
  %v10059 = vand.u32 %v9446, 4294901760
  %10060 = vmatmul.mubr.f32.gmra.mxu0 %v10059
  %v10061 = vpop.f32.mrf.mxu0
  %v10062 = vadd.f32 %v9629, %v10061
  %v10063 = vpop.f32.mrf.mxu0
  %10064 = vmatprep.mubr.f32.mxu0 0.0
  %v10065 = vand.u32 %v9447, 4294901760
  %10066 = vmatmul.mubr.f32.gmra.mxu0 %v10065
  %v10067 = vpop.f32.mrf.mxu0
  %v10068 = vadd.f32 %v9639, %v10067
  %v10069 = vpop.f32.mrf.mxu0
  %10070 = vmatprep.mubr.f32.mxu0 0.0
  %v10071 = vand.u32 %v9448, 4294901760
  %10072 = vmatmul.mubr.f32.gmra.mxu0 %v10071
  %v10073 = vpop.f32.mrf.mxu0
  %v10074 = vadd.f32 %v9649, %v10073
  %v10075 = vpop.f32.mrf.mxu0
  %10076 = vmatprep.mubr.f32.mxu0 0.0
  %v10077 = vand.u32 %v9449, 4294901760
  %10078 = vmatmul.mubr.f32.gmra.mxu0 %v10077
  %v10079 = vpop.f32.mrf.mxu0
  %v10080 = vadd.f32 %v9659, %v10079
  %v10081 = vpop.f32.mrf.mxu0
  %10082 = vmatprep.mubr.f32.mxu0 0.0
  %v10083 = vand.u32 %v9450, 4294901760
  %10084 = vmatmul.mubr.f32.gmra.mxu0 %v10083
  %v10085 = vpop.f32.mrf.mxu0
  %v10086 = vadd.f32 %v9669, %v10085
  %v10087 = vpop.f32.mrf.mxu0
  %10088 = vmatprep.mubr.f32.mxu0 0.0
  %v10089 = vand.u32 %v9451, 4294901760
  %10090 = vmatmul.mubr.f32.gmra.mxu0 %v10089
  %v10091 = vpop.f32.mrf.mxu0
  %v10092 = vadd.f32 %v9679, %v10091
  %v10093 = vpop.f32.mrf.mxu0
  %10094 = vmatprep.mubr.f32.mxu0 0.0
  %v10095 = vand.u32 %v9452, 4294901760
  %10096 = vmatmul.mubr.f32.gmra.mxu0 %v10095
  %v10097 = vpop.f32.mrf.mxu0
  %v10098 = vadd.f32 %v9689, %v10097
  %v10099 = vpop.f32.mrf.mxu0
  %10100 = vmatprep.mubr.f32.mxu0 0.0
  %v10101 = vand.u32 %v9453, 4294901760
  %10102 = vmatmul.mubr.f32.gmra.mxu0 %v10101
  %v10103 = vpop.f32.mrf.mxu0
  %v10104 = vadd.f32 %v9699, %v10103
  %v10105 = vpop.f32.mrf.mxu0
  %10106 = vmatprep.mubr.f32.mxu0 0.0
  %v10107 = vand.u32 %v9454, 4294901760
  %10108 = vmatmul.mubr.f32.gmra.mxu0 %v10107
  %v10109 = vpop.f32.mrf.mxu0
  %v10110 = vadd.f32 %v9709, %v10109
  %v10111 = vpop.f32.mrf.mxu0
  %10112 = vmatprep.mubr.f32.mxu0 0.0
  %v10113 = vand.u32 %v9455, 4294901760
  %10114 = vmatmul.mubr.f32.gmra.mxu0 %v10113
  %v10115 = vpop.f32.mrf.mxu0
  %v10116 = vadd.f32 %v9719, %v10115
  %v10117 = vpop.f32.mrf.mxu0
  %10118 = vmatprep.mubr.f32.mxu0 0.0
  %v10119 = vand.u32 %v9456, 4294901760
  %10120 = vmatmul.mubr.f32.gmra.mxu0 %v10119
  %v10121 = vpop.f32.mrf.mxu0
  %v10122 = vadd.f32 %v9729, %v10121
  %v10123 = vpop.f32.mrf.mxu0
  %10124 = vmatprep.mubr.f32.mxu0 0.0
  %v10125 = vand.u32 %v9457, 4294901760
  %10126 = vmatmul.mubr.f32.gmra.mxu0 %v10125
  %v10127 = vpop.f32.mrf.mxu0
  %v10128 = vadd.f32 %v9739, %v10127
  %v10129 = vpop.f32.mrf.mxu0
  %10130 = vmatprep.mubr.f32.mxu0 0.0
  %v10131 = vand.u32 %v9458, 4294901760
  %10132 = vmatmul.mubr.f32.gmra.mxu0 %v10131
  %v10133 = vpop.f32.mrf.mxu0
  %v10134 = vadd.f32 %v9749, %v10133
  %v10135 = vpop.f32.mrf.mxu0
  %10136 = vmatprep.mubr.f32.mxu0 0.0
  %v10137 = vand.u32 %v9459, 4294901760
  %10138 = vmatmul.mubr.f32.gmra.mxu0 %v10137
  %v10139 = vpop.f32.mrf.mxu0
  %v10140 = vadd.f32 %v9759, %v10139
  %v10141 = vpop.f32.mrf.mxu0
  %10142 = vmatprep.mubr.f32.mxu0 0.0
  %v10143 = vand.u32 %v9460, 4294901760
  %10144 = vmatmul.mubr.f32.gmra.mxu0 %v10143
  %v10145 = vpop.f32.mrf.mxu0
  %v10146 = vadd.f32 %v9769, %v10145
  %v10147 = vpop.f32.mrf.mxu0
  %10148 = vmatprep.mubr.f32.mxu0 0.0
  %v10149 = vand.u32 %v9461, 4294901760
  %10150 = vmatmul.mubr.f32.gmra.mxu0 %v10149
  %v10151 = vpop.f32.mrf.mxu0
  %v10152 = vadd.f32 %v9779, %v10151
  %v10153 = vpop.f32.mrf.mxu0
  %10154 = vmatprep.mubr.f32.mxu0 0.0
  %v10155 = vand.u32 %v9462, 4294901760
  %10156 = vmatmul.mubr.f32.gmra.mxu0 %v10155
  %v10157 = vpop.f32.mrf.mxu0
  %v10158 = vadd.f32 %v9789, %v10157
  %v10159 = vpop.f32.mrf.mxu0
  %10160 = vmatprep.mubr.f32.mxu0 0.0
  %v10161 = vand.u32 %v9463, 4294901760
  %10162 = vmatmul.mubr.f32.gmra.mxu0 %v10161
  %v10163 = vpop.f32.mrf.mxu0
  %v10164 = vadd.f32 %v9799, %v10163
  %v10165 = vpop.f32.mrf.mxu0
  %10166 = vmatprep.mubr.f32.mxu0 0.0
  %v10167 = vand.u32 %v9464, 4294901760
  %10168 = vmatmul.mubr.f32.gmra.mxu0 %v10167
  %v10169 = vpop.f32.mrf.mxu0
  %v10170 = vadd.f32 %v9809, %v10169
  %v10171 = vpop.f32.mrf.mxu0
  %10172 = vmatprep.mubr.f32.mxu0 0.0
  %v10173 = vand.u32 %v9465, 4294901760
  %10174 = vmatmul.mubr.f32.gmra.mxu0 %v10173
  %v10175 = vpop.f32.mrf.mxu0
  %v10176 = vadd.f32 %v9819, %v10175
  %v10177 = vpop.f32.mrf.mxu0
  %10178 = vmatprep.mubr.f32.mxu0 0.0
  %v10179 = vand.u32 %v9466, 4294901760
  %10180 = vmatmul.mubr.f32.gmra.mxu0 %v10179
  %v10181 = vpop.f32.mrf.mxu0
  %v10182 = vadd.f32 %v9829, %v10181
  %v10183 = vpop.f32.mrf.mxu0
  %10184 = vmatprep.mubr.f32.mxu0 0.0
  %v10185 = vand.u32 %v9467, 4294901760
  %10186 = vmatmul.mubr.f32.gmra.mxu0 %v10185
  %v10187 = vpop.f32.mrf.mxu0
  %v10188 = vadd.f32 %v9839, %v10187
  %v10189 = vpop.f32.mrf.mxu0
  %10190 = vmatprep.mubr.f32.mxu0 0.0
  %v10191 = vand.u32 %v9468, 4294901760
  %10192 = vmatmul.mubr.f32.gmra.mxu0 %v10191
  %v10193 = vpop.f32.mrf.mxu0
  %v10194 = vadd.f32 %v9849, %v10193
  %v10195 = vpop.f32.mrf.mxu0
  %10196 = vmatprep.mubr.f32.mxu0 0.0
  %v10197 = vand.u32 %v9469, 4294901760
  %10198 = vmatmul.mubr.f32.gmra.mxu0 %v10197
  %v10199 = vpop.f32.mrf.mxu0
  %v10200 = vadd.f32 %v9859, %v10199
  %v10201 = vpop.f32.mrf.mxu0
  %10202 = vmatprep.mubr.f32.mxu0 0.0
  %v10203 = vand.u32 %v9470, 4294901760
  %10204 = vmatmul.mubr.f32.gmra.mxu0 %v10203
  %v10205 = vpop.f32.mrf.mxu0
  %v10206 = vadd.f32 %v9869, %v10205
  %v10207 = vpop.f32.mrf.mxu0
  %10208 = vdwg.mxu0
  %10209 = vmatprep.subr.mxu0 0.0
  %v10210 = vand.u32 %v3582, 4294901760
  %v10211 = vsub.f32 %v3582, %v10210
  %10212 = vmatpush1.msra.mxu0 %v10211
  %10213 = vmatprep.subr.mxu0 0.0
  %v10214 = vand.u32 %v3581, 4294901760
  %v10215 = vsub.f32 %v3581, %v10214
  %10216 = vmatpush1.msra.mxu0 %v10215
  %10217 = vmatprep.subr.mxu0 0.0
  %v10218 = vand.u32 %v3580, 4294901760
  %v10219 = vsub.f32 %v3580, %v10218
  %10220 = vmatpush1.msra.mxu0 %v10219
  %10221 = vmatprep.subr.mxu0 0.0
  %v10222 = vand.u32 %v3579, 4294901760
  %v10223 = vsub.f32 %v3579, %v10222
  %10224 = vmatpush1.msra.mxu0 %v10223
  %10225 = vmatprep.subr.mxu0 0.0
  %v10226 = vand.u32 %v3578, 4294901760
  %v10227 = vsub.f32 %v3578, %v10226
  %10228 = vmatpush1.msra.mxu0 %v10227
  %10229 = vmatprep.subr.mxu0 0.0
  %v10230 = vand.u32 %v3577, 4294901760
  %v10231 = vsub.f32 %v3577, %v10230
  %10232 = vmatpush1.msra.mxu0 %v10231
  %10233 = vmatprep.subr.mxu0 0.0
  %v10234 = vand.u32 %v3576, 4294901760
  %v10235 = vsub.f32 %v3576, %v10234
  %10236 = vmatpush1.msra.mxu0 %v10235
  %10237 = vmatprep.subr.mxu0 0.0
  %v10238 = vand.u32 %v3575, 4294901760
  %v10239 = vsub.f32 %v3575, %v10238
  %10240 = vmatpush1.msra.mxu0 %v10239
  %10241 = vmatprep.subr.mxu0 0.0
  %v10242 = vand.u32 %v3574, 4294901760
  %v10243 = vsub.f32 %v3574, %v10242
  %10244 = vmatpush1.msra.mxu0 %v10243
  %10245 = vmatprep.subr.mxu0 0.0
  %v10246 = vand.u32 %v3573, 4294901760
  %v10247 = vsub.f32 %v3573, %v10246
  %10248 = vmatpush1.msra.mxu0 %v10247
  %10249 = vmatprep.subr.mxu0 0.0
  %v10250 = vand.u32 %v3572, 4294901760
  %v10251 = vsub.f32 %v3572, %v10250
  %10252 = vmatpush1.msra.mxu0 %v10251
  %10253 = vmatprep.subr.mxu0 0.0
  %v10254 = vand.u32 %v3571, 4294901760
  %v10255 = vsub.f32 %v3571, %v10254
  %10256 = vmatpush1.msra.mxu0 %v10255
  %10257 = vmatprep.subr.mxu0 0.0
  %v10258 = vand.u32 %v3570, 4294901760
  %v10259 = vsub.f32 %v3570, %v10258
  %10260 = vmatpush1.msra.mxu0 %v10259
  %10261 = vmatprep.subr.mxu0 0.0
  %v10262 = vand.u32 %v3569, 4294901760
  %v10263 = vsub.f32 %v3569, %v10262
  %10264 = vmatpush1.msra.mxu0 %v10263
  %10265 = vmatprep.subr.mxu0 0.0
  %v10266 = vand.u32 %v3568, 4294901760
  %v10267 = vsub.f32 %v3568, %v10266
  %10268 = vmatpush1.msra.mxu0 %v10267
  %10269 = vmatprep.subr.mxu0 0.0
  %v10270 = vand.u32 %v3567, 4294901760
  %v10271 = vsub.f32 %v3567, %v10270
  %10272 = vmatpush1.msra.mxu0 %v10271
  %10273 = vmatprep.subr.mxu0 0.0
  %10274 = vmatpush2.msra.mxu0 0.0
  %10275 = vmatprep.subr.mxu0 0.0
  %10276 = vmatpush2.msra.mxu0 0.0
  %10277 = vmatprep.subr.mxu0 0.0
  %10278 = vmatpush2.msra.mxu0 0.0
  %10279 = vmatprep.subr.mxu0 0.0
  %10280 = vmatpush2.msra.mxu0 0.0
  %10281 = vmatprep.subr.mxu0 0.0
  %10282 = vmatpush2.msra.mxu0 0.0
  %10283 = vmatprep.subr.mxu0 0.0
  %10284 = vmatpush2.msra.mxu0 0.0
  %10285 = vmatprep.subr.mxu0 0.0
  %10286 = vmatpush2.msra.mxu0 0.0
  %10287 = vmatprep.subr.mxu0 0.0
  %10288 = vmatpush2.msra.mxu0 0.0
  %10289 = vmatprep.subr.mxu0 0.0
  %10290 = vmatpush2.msra.mxu0 0.0
  %10291 = vmatprep.subr.mxu0 0.0
  %10292 = vmatpush2.msra.mxu0 0.0
  %10293 = vmatprep.subr.mxu0 0.0
  %10294 = vmatpush2.msra.mxu0 0.0
  %10295 = vmatprep.subr.mxu0 0.0
  %10296 = vmatpush2.msra.mxu0 0.0
  %10297 = vmatprep.subr.mxu0 0.0
  %10298 = vmatpush2.msra.mxu0 0.0
  %10299 = vmatprep.subr.mxu0 0.0
  %10300 = vmatpush2.msra.mxu0 0.0
  %10301 = vmatprep.subr.mxu0 0.0
  %10302 = vmatpush2.msra.mxu0 0.0
  %10303 = vmatprep.subr.mxu0 0.0
  %10304 = vmatpush2.msra.mxu0 0.0
  %10305 = vmatprep.mubr.f32.mxu0 0.0
  %v10306 = vand.u32 %v9439, 4294901760
  %v10307 = vsub.f32 %v9439, %v10306
  %10308 = vmatmul.mubr.f32.gmra.mxu0 %v10307
  %v10309 = vpop.f32.mrf.mxu0
  %v10310 = vadd.f32 %v10020, %v10309
  %v10311 = vpop.f32.mrf.mxu0
  %10312 = vmatprep.mubr.f32.mxu0 0.0
  %v10313 = vand.u32 %v9440, 4294901760
  %v10314 = vsub.f32 %v9440, %v10313
  %10315 = vmatmul.mubr.f32.gmra.mxu0 %v10314
  %v10316 = vpop.f32.mrf.mxu0
  %v10317 = vadd.f32 %v10026, %v10316
  %v10318 = vpop.f32.mrf.mxu0
  %10319 = vmatprep.mubr.f32.mxu0 0.0
  %v10320 = vand.u32 %v9441, 4294901760
  %v10321 = vsub.f32 %v9441, %v10320
  %10322 = vmatmul.mubr.f32.gmra.mxu0 %v10321
  %v10323 = vpop.f32.mrf.mxu0
  %v10324 = vadd.f32 %v10032, %v10323
  %v10325 = vpop.f32.mrf.mxu0
  %10326 = vmatprep.mubr.f32.mxu0 0.0
  %v10327 = vand.u32 %v9442, 4294901760
  %v10328 = vsub.f32 %v9442, %v10327
  %10329 = vmatmul.mubr.f32.gmra.mxu0 %v10328
  %v10330 = vpop.f32.mrf.mxu0
  %v10331 = vadd.f32 %v10038, %v10330
  %v10332 = vpop.f32.mrf.mxu0
  %10333 = vmatprep.mubr.f32.mxu0 0.0
  %v10334 = vand.u32 %v9443, 4294901760
  %v10335 = vsub.f32 %v9443, %v10334
  %10336 = vmatmul.mubr.f32.gmra.mxu0 %v10335
  %v10337 = vpop.f32.mrf.mxu0
  %v10338 = vadd.f32 %v10044, %v10337
  %v10339 = vpop.f32.mrf.mxu0
  %10340 = vmatprep.mubr.f32.mxu0 0.0
  %v10341 = vand.u32 %v9444, 4294901760
  %v10342 = vsub.f32 %v9444, %v10341
  %10343 = vmatmul.mubr.f32.gmra.mxu0 %v10342
  %v10344 = vpop.f32.mrf.mxu0
  %v10345 = vadd.f32 %v10050, %v10344
  %v10346 = vpop.f32.mrf.mxu0
  %10347 = vmatprep.mubr.f32.mxu0 0.0
  %v10348 = vand.u32 %v9445, 4294901760
  %v10349 = vsub.f32 %v9445, %v10348
  %10350 = vmatmul.mubr.f32.gmra.mxu0 %v10349
  %v10351 = vpop.f32.mrf.mxu0
  %v10352 = vadd.f32 %v10056, %v10351
  %v10353 = vpop.f32.mrf.mxu0
  %10354 = vmatprep.mubr.f32.mxu0 0.0
  %v10355 = vand.u32 %v9446, 4294901760
  %v10356 = vsub.f32 %v9446, %v10355
  %10357 = vmatmul.mubr.f32.gmra.mxu0 %v10356
  %v10358 = vpop.f32.mrf.mxu0
  %v10359 = vadd.f32 %v10062, %v10358
  %v10360 = vpop.f32.mrf.mxu0
  %10361 = vmatprep.mubr.f32.mxu0 0.0
  %v10362 = vand.u32 %v9447, 4294901760
  %v10363 = vsub.f32 %v9447, %v10362
  %10364 = vmatmul.mubr.f32.gmra.mxu0 %v10363
  %v10365 = vpop.f32.mrf.mxu0
  %v10366 = vadd.f32 %v10068, %v10365
  %v10367 = vpop.f32.mrf.mxu0
  %10368 = vmatprep.mubr.f32.mxu0 0.0
  %v10369 = vand.u32 %v9448, 4294901760
  %v10370 = vsub.f32 %v9448, %v10369
  %10371 = vmatmul.mubr.f32.gmra.mxu0 %v10370
  %v10372 = vpop.f32.mrf.mxu0
  %v10373 = vadd.f32 %v10074, %v10372
  %v10374 = vpop.f32.mrf.mxu0
  %10375 = vmatprep.mubr.f32.mxu0 0.0
  %v10376 = vand.u32 %v9449, 4294901760
  %v10377 = vsub.f32 %v9449, %v10376
  %10378 = vmatmul.mubr.f32.gmra.mxu0 %v10377
  %v10379 = vpop.f32.mrf.mxu0
  %v10380 = vadd.f32 %v10080, %v10379
  %v10381 = vpop.f32.mrf.mxu0
  %10382 = vmatprep.mubr.f32.mxu0 0.0
  %v10383 = vand.u32 %v9450, 4294901760
  %v10384 = vsub.f32 %v9450, %v10383
  %10385 = vmatmul.mubr.f32.gmra.mxu0 %v10384
  %v10386 = vpop.f32.mrf.mxu0
  %v10387 = vadd.f32 %v10086, %v10386
  %v10388 = vpop.f32.mrf.mxu0
  %10389 = vmatprep.mubr.f32.mxu0 0.0
  %v10390 = vand.u32 %v9451, 4294901760
  %v10391 = vsub.f32 %v9451, %v10390
  %10392 = vmatmul.mubr.f32.gmra.mxu0 %v10391
  %v10393 = vpop.f32.mrf.mxu0
  %v10394 = vadd.f32 %v10092, %v10393
  %v10395 = vpop.f32.mrf.mxu0
  %10396 = vmatprep.mubr.f32.mxu0 0.0
  %v10397 = vand.u32 %v9452, 4294901760
  %v10398 = vsub.f32 %v9452, %v10397
  %10399 = vmatmul.mubr.f32.gmra.mxu0 %v10398
  %v10400 = vpop.f32.mrf.mxu0
  %v10401 = vadd.f32 %v10098, %v10400
  %v10402 = vpop.f32.mrf.mxu0
  %10403 = vmatprep.mubr.f32.mxu0 0.0
  %v10404 = vand.u32 %v9453, 4294901760
  %v10405 = vsub.f32 %v9453, %v10404
  %10406 = vmatmul.mubr.f32.gmra.mxu0 %v10405
  %v10407 = vpop.f32.mrf.mxu0
  %v10408 = vadd.f32 %v10104, %v10407
  %v10409 = vpop.f32.mrf.mxu0
  %10410 = vmatprep.mubr.f32.mxu0 0.0
  %v10411 = vand.u32 %v9454, 4294901760
  %v10412 = vsub.f32 %v9454, %v10411
  %10413 = vmatmul.mubr.f32.gmra.mxu0 %v10412
  %v10414 = vpop.f32.mrf.mxu0
  %v10415 = vadd.f32 %v10110, %v10414
  %v10416 = vpop.f32.mrf.mxu0
  %10417 = vmatprep.mubr.f32.mxu0 0.0
  %v10418 = vand.u32 %v9455, 4294901760
  %v10419 = vsub.f32 %v9455, %v10418
  %10420 = vmatmul.mubr.f32.gmra.mxu0 %v10419
  %v10421 = vpop.f32.mrf.mxu0
  %v10422 = vadd.f32 %v10116, %v10421
  %v10423 = vpop.f32.mrf.mxu0
  %10424 = vmatprep.mubr.f32.mxu0 0.0
  %v10425 = vand.u32 %v9456, 4294901760
  %v10426 = vsub.f32 %v9456, %v10425
  %10427 = vmatmul.mubr.f32.gmra.mxu0 %v10426
  %v10428 = vpop.f32.mrf.mxu0
  %v10429 = vadd.f32 %v10122, %v10428
  %v10430 = vpop.f32.mrf.mxu0
  %10431 = vmatprep.mubr.f32.mxu0 0.0
  %v10432 = vand.u32 %v9457, 4294901760
  %v10433 = vsub.f32 %v9457, %v10432
  %10434 = vmatmul.mubr.f32.gmra.mxu0 %v10433
  %v10435 = vpop.f32.mrf.mxu0
  %v10436 = vadd.f32 %v10128, %v10435
  %v10437 = vpop.f32.mrf.mxu0
  %10438 = vmatprep.mubr.f32.mxu0 0.0
  %v10439 = vand.u32 %v9458, 4294901760
  %v10440 = vsub.f32 %v9458, %v10439
  %10441 = vmatmul.mubr.f32.gmra.mxu0 %v10440
  %v10442 = vpop.f32.mrf.mxu0
  %v10443 = vadd.f32 %v10134, %v10442
  %v10444 = vpop.f32.mrf.mxu0
  %10445 = vmatprep.mubr.f32.mxu0 0.0
  %v10446 = vand.u32 %v9459, 4294901760
  %v10447 = vsub.f32 %v9459, %v10446
  %10448 = vmatmul.mubr.f32.gmra.mxu0 %v10447
  %v10449 = vpop.f32.mrf.mxu0
  %v10450 = vadd.f32 %v10140, %v10449
  %v10451 = vpop.f32.mrf.mxu0
  %10452 = vmatprep.mubr.f32.mxu0 0.0
  %v10453 = vand.u32 %v9460, 4294901760
  %v10454 = vsub.f32 %v9460, %v10453
  %10455 = vmatmul.mubr.f32.gmra.mxu0 %v10454
  %v10456 = vpop.f32.mrf.mxu0
  %v10457 = vadd.f32 %v10146, %v10456
  %v10458 = vpop.f32.mrf.mxu0
  %10459 = vmatprep.mubr.f32.mxu0 0.0
  %v10460 = vand.u32 %v9461, 4294901760
  %v10461 = vsub.f32 %v9461, %v10460
  %10462 = vmatmul.mubr.f32.gmra.mxu0 %v10461
  %v10463 = vpop.f32.mrf.mxu0
  %v10464 = vadd.f32 %v10152, %v10463
  %v10465 = vpop.f32.mrf.mxu0
  %10466 = vmatprep.mubr.f32.mxu0 0.0
  %v10467 = vand.u32 %v9462, 4294901760
  %v10468 = vsub.f32 %v9462, %v10467
  %10469 = vmatmul.mubr.f32.gmra.mxu0 %v10468
  %v10470 = vpop.f32.mrf.mxu0
  %v10471 = vadd.f32 %v10158, %v10470
  %v10472 = vpop.f32.mrf.mxu0
  %10473 = vmatprep.mubr.f32.mxu0 0.0
  %v10474 = vand.u32 %v9463, 4294901760
  %v10475 = vsub.f32 %v9463, %v10474
  %10476 = vmatmul.mubr.f32.gmra.mxu0 %v10475
  %v10477 = vpop.f32.mrf.mxu0
  %v10478 = vadd.f32 %v10164, %v10477
  %v10479 = vpop.f32.mrf.mxu0
  %10480 = vmatprep.mubr.f32.mxu0 0.0
  %v10481 = vand.u32 %v9464, 4294901760
  %v10482 = vsub.f32 %v9464, %v10481
  %10483 = vmatmul.mubr.f32.gmra.mxu0 %v10482
  %v10484 = vpop.f32.mrf.mxu0
  %v10485 = vadd.f32 %v10170, %v10484
  %v10486 = vpop.f32.mrf.mxu0
  %10487 = vmatprep.mubr.f32.mxu0 0.0
  %v10488 = vand.u32 %v9465, 4294901760
  %v10489 = vsub.f32 %v9465, %v10488
  %10490 = vmatmul.mubr.f32.gmra.mxu0 %v10489
  %v10491 = vpop.f32.mrf.mxu0
  %v10492 = vadd.f32 %v10176, %v10491
  %v10493 = vpop.f32.mrf.mxu0
  %10494 = vmatprep.mubr.f32.mxu0 0.0
  %v10495 = vand.u32 %v9466, 4294901760
  %v10496 = vsub.f32 %v9466, %v10495
  %10497 = vmatmul.mubr.f32.gmra.mxu0 %v10496
  %v10498 = vpop.f32.mrf.mxu0
  %v10499 = vadd.f32 %v10182, %v10498
  %v10500 = vpop.f32.mrf.mxu0
  %10501 = vmatprep.mubr.f32.mxu0 0.0
  %v10502 = vand.u32 %v9467, 4294901760
  %v10503 = vsub.f32 %v9467, %v10502
  %10504 = vmatmul.mubr.f32.gmra.mxu0 %v10503
  %v10505 = vpop.f32.mrf.mxu0
  %v10506 = vadd.f32 %v10188, %v10505
  %v10507 = vpop.f32.mrf.mxu0
  %10508 = vmatprep.mubr.f32.mxu0 0.0
  %v10509 = vand.u32 %v9468, 4294901760
  %v10510 = vsub.f32 %v9468, %v10509
  %10511 = vmatmul.mubr.f32.gmra.mxu0 %v10510
  %v10512 = vpop.f32.mrf.mxu0
  %v10513 = vadd.f32 %v10194, %v10512
  %v10514 = vpop.f32.mrf.mxu0
  %10515 = vmatprep.mubr.f32.mxu0 0.0
  %v10516 = vand.u32 %v9469, 4294901760
  %v10517 = vsub.f32 %v9469, %v10516
  %10518 = vmatmul.mubr.f32.gmra.mxu0 %v10517
  %v10519 = vpop.f32.mrf.mxu0
  %v10520 = vadd.f32 %v10200, %v10519
  %v10521 = vpop.f32.mrf.mxu0
  %10522 = vmatprep.mubr.f32.mxu0 0.0
  %v10523 = vand.u32 %v9470, 4294901760
  %v10524 = vsub.f32 %v9470, %v10523
  %10525 = vmatmul.mubr.f32.gmra.mxu0 %v10524
  %v10526 = vpop.f32.mrf.mxu0
  %v10527 = vadd.f32 %v10206, %v10526
  %v10528 = vpop.f32.mrf.mxu0
  %10529 = vdwg.mxu0
  %10530 = vmatprep.subr.mxu0 0.0
  %v10531 = vand.u32 %v3582, 4294901760
  %10532 = vmatpush1.msra.mxu0 %v10531
  %10533 = vmatprep.subr.mxu0 0.0
  %v10534 = vand.u32 %v3581, 4294901760
  %10535 = vmatpush1.msra.mxu0 %v10534
  %10536 = vmatprep.subr.mxu0 0.0
  %v10537 = vand.u32 %v3580, 4294901760
  %10538 = vmatpush1.msra.mxu0 %v10537
  %10539 = vmatprep.subr.mxu0 0.0
  %v10540 = vand.u32 %v3579, 4294901760
  %10541 = vmatpush1.msra.mxu0 %v10540
  %10542 = vmatprep.subr.mxu0 0.0
  %v10543 = vand.u32 %v3578, 4294901760
  %10544 = vmatpush1.msra.mxu0 %v10543
  %10545 = vmatprep.subr.mxu0 0.0
  %v10546 = vand.u32 %v3577, 4294901760
  %10547 = vmatpush1.msra.mxu0 %v10546
  %10548 = vmatprep.subr.mxu0 0.0
  %v10549 = vand.u32 %v3576, 4294901760
  %10550 = vmatpush1.msra.mxu0 %v10549
  %10551 = vmatprep.subr.mxu0 0.0
  %v10552 = vand.u32 %v3575, 4294901760
  %10553 = vmatpush1.msra.mxu0 %v10552
  %10554 = vmatprep.subr.mxu0 0.0
  %v10555 = vand.u32 %v3574, 4294901760
  %10556 = vmatpush1.msra.mxu0 %v10555
  %10557 = vmatprep.subr.mxu0 0.0
  %v10558 = vand.u32 %v3573, 4294901760
  %10559 = vmatpush1.msra.mxu0 %v10558
  %10560 = vmatprep.subr.mxu0 0.0
  %v10561 = vand.u32 %v3572, 4294901760
  %10562 = vmatpush1.msra.mxu0 %v10561
  %10563 = vmatprep.subr.mxu0 0.0
  %v10564 = vand.u32 %v3571, 4294901760
  %10565 = vmatpush1.msra.mxu0 %v10564
  %10566 = vmatprep.subr.mxu0 0.0
  %v10567 = vand.u32 %v3570, 4294901760
  %10568 = vmatpush1.msra.mxu0 %v10567
  %10569 = vmatprep.subr.mxu0 0.0
  %v10570 = vand.u32 %v3569, 4294901760
  %10571 = vmatpush1.msra.mxu0 %v10570
  %10572 = vmatprep.subr.mxu0 0.0
  %v10573 = vand.u32 %v3568, 4294901760
  %10574 = vmatpush1.msra.mxu0 %v10573
  %10575 = vmatprep.subr.mxu0 0.0
  %v10576 = vand.u32 %v3567, 4294901760
  %10577 = vmatpush1.msra.mxu0 %v10576
  %10578 = vmatprep.subr.mxu0 0.0
  %10579 = vmatpush2.msra.mxu0 0.0
  %10580 = vmatprep.subr.mxu0 0.0
  %10581 = vmatpush2.msra.mxu0 0.0
  %10582 = vmatprep.subr.mxu0 0.0
  %10583 = vmatpush2.msra.mxu0 0.0
  %10584 = vmatprep.subr.mxu0 0.0
  %10585 = vmatpush2.msra.mxu0 0.0
  %10586 = vmatprep.subr.mxu0 0.0
  %10587 = vmatpush2.msra.mxu0 0.0
  %10588 = vmatprep.subr.mxu0 0.0
  %10589 = vmatpush2.msra.mxu0 0.0
  %10590 = vmatprep.subr.mxu0 0.0
  %10591 = vmatpush2.msra.mxu0 0.0
  %10592 = vmatprep.subr.mxu0 0.0
  %10593 = vmatpush2.msra.mxu0 0.0
  %10594 = vmatprep.subr.mxu0 0.0
  %10595 = vmatpush2.msra.mxu0 0.0
  %10596 = vmatprep.subr.mxu0 0.0
  %10597 = vmatpush2.msra.mxu0 0.0
  %10598 = vmatprep.subr.mxu0 0.0
  %10599 = vmatpush2.msra.mxu0 0.0
  %10600 = vmatprep.subr.mxu0 0.0
  %10601 = vmatpush2.msra.mxu0 0.0
  %10602 = vmatprep.subr.mxu0 0.0
  %10603 = vmatpush2.msra.mxu0 0.0
  %10604 = vmatprep.subr.mxu0 0.0
  %10605 = vmatpush2.msra.mxu0 0.0
  %10606 = vmatprep.subr.mxu0 0.0
  %10607 = vmatpush2.msra.mxu0 0.0
  %10608 = vmatprep.subr.mxu0 0.0
  %10609 = vmatpush2.msra.mxu0 0.0
  %10610 = vmatprep.mubr.f32.mxu0 0.0
  %v10611 = vand.u32 %v9439, 4294901760
  %v10612 = vsub.f32 %v9439, %v10611
  %v10613 = vand.u32 %v10612, 4294901760
  %10614 = vmatmul.mubr.f32.gmra.mxu0 %v10613
  %v10615 = vpop.f32.mrf.mxu0
  %v10616 = vadd.f32 %v10310, %v10615
  %v10617 = vpop.f32.mrf.mxu0
  %10618 = vmatprep.mubr.f32.mxu0 0.0
  %v10619 = vand.u32 %v9440, 4294901760
  %v10620 = vsub.f32 %v9440, %v10619
  %v10621 = vand.u32 %v10620, 4294901760
  %10622 = vmatmul.mubr.f32.gmra.mxu0 %v10621
  %v10623 = vpop.f32.mrf.mxu0
  %v10624 = vadd.f32 %v10317, %v10623
  %v10625 = vpop.f32.mrf.mxu0
  %10626 = vmatprep.mubr.f32.mxu0 0.0
  %v10627 = vand.u32 %v9441, 4294901760
  %v10628 = vsub.f32 %v9441, %v10627
  %v10629 = vand.u32 %v10628, 4294901760
  %10630 = vmatmul.mubr.f32.gmra.mxu0 %v10629
  %v10631 = vpop.f32.mrf.mxu0
  %v10632 = vadd.f32 %v10324, %v10631
  %v10633 = vpop.f32.mrf.mxu0
  %10634 = vmatprep.mubr.f32.mxu0 0.0
  %v10635 = vand.u32 %v9442, 4294901760
  %v10636 = vsub.f32 %v9442, %v10635
  %v10637 = vand.u32 %v10636, 4294901760
  %10638 = vmatmul.mubr.f32.gmra.mxu0 %v10637
  %v10639 = vpop.f32.mrf.mxu0
  %v10640 = vadd.f32 %v10331, %v10639
  %v10641 = vpop.f32.mrf.mxu0
  %10642 = vmatprep.mubr.f32.mxu0 0.0
  %v10643 = vand.u32 %v9443, 4294901760
  %v10644 = vsub.f32 %v9443, %v10643
  %v10645 = vand.u32 %v10644, 4294901760
  %10646 = vmatmul.mubr.f32.gmra.mxu0 %v10645
  %v10647 = vpop.f32.mrf.mxu0
  %v10648 = vadd.f32 %v10338, %v10647
  %v10649 = vpop.f32.mrf.mxu0
  %10650 = vmatprep.mubr.f32.mxu0 0.0
  %v10651 = vand.u32 %v9444, 4294901760
  %v10652 = vsub.f32 %v9444, %v10651
  %v10653 = vand.u32 %v10652, 4294901760
  %10654 = vmatmul.mubr.f32.gmra.mxu0 %v10653
  %v10655 = vpop.f32.mrf.mxu0
  %v10656 = vadd.f32 %v10345, %v10655
  %v10657 = vpop.f32.mrf.mxu0
  %10658 = vmatprep.mubr.f32.mxu0 0.0
  %v10659 = vand.u32 %v9445, 4294901760
  %v10660 = vsub.f32 %v9445, %v10659
  %v10661 = vand.u32 %v10660, 4294901760
  %10662 = vmatmul.mubr.f32.gmra.mxu0 %v10661
  %v10663 = vpop.f32.mrf.mxu0
  %v10664 = vadd.f32 %v10352, %v10663
  %v10665 = vpop.f32.mrf.mxu0
  %10666 = vmatprep.mubr.f32.mxu0 0.0
  %v10667 = vand.u32 %v9446, 4294901760
  %v10668 = vsub.f32 %v9446, %v10667
  %v10669 = vand.u32 %v10668, 4294901760
  %10670 = vmatmul.mubr.f32.gmra.mxu0 %v10669
  %v10671 = vpop.f32.mrf.mxu0
  %v10672 = vadd.f32 %v10359, %v10671
  %v10673 = vpop.f32.mrf.mxu0
  %10674 = vmatprep.mubr.f32.mxu0 0.0
  %v10675 = vand.u32 %v9447, 4294901760
  %v10676 = vsub.f32 %v9447, %v10675
  %v10677 = vand.u32 %v10676, 4294901760
  %10678 = vmatmul.mubr.f32.gmra.mxu0 %v10677
  %v10679 = vpop.f32.mrf.mxu0
  %v10680 = vadd.f32 %v10366, %v10679
  %v10681 = vpop.f32.mrf.mxu0
  %10682 = vmatprep.mubr.f32.mxu0 0.0
  %v10683 = vand.u32 %v9448, 4294901760
  %v10684 = vsub.f32 %v9448, %v10683
  %v10685 = vand.u32 %v10684, 4294901760
  %10686 = vmatmul.mubr.f32.gmra.mxu0 %v10685
  %v10687 = vpop.f32.mrf.mxu0
  %v10688 = vadd.f32 %v10373, %v10687
  %v10689 = vpop.f32.mrf.mxu0
  %10690 = vmatprep.mubr.f32.mxu0 0.0
  %v10691 = vand.u32 %v9449, 4294901760
  %v10692 = vsub.f32 %v9449, %v10691
  %v10693 = vand.u32 %v10692, 4294901760
  %10694 = vmatmul.mubr.f32.gmra.mxu0 %v10693
  %v10695 = vpop.f32.mrf.mxu0
  %v10696 = vadd.f32 %v10380, %v10695
  %v10697 = vpop.f32.mrf.mxu0
  %10698 = vmatprep.mubr.f32.mxu0 0.0
  %v10699 = vand.u32 %v9450, 4294901760
  %v10700 = vsub.f32 %v9450, %v10699
  %v10701 = vand.u32 %v10700, 4294901760
  %10702 = vmatmul.mubr.f32.gmra.mxu0 %v10701
  %v10703 = vpop.f32.mrf.mxu0
  %v10704 = vadd.f32 %v10387, %v10703
  %v10705 = vpop.f32.mrf.mxu0
  %10706 = vmatprep.mubr.f32.mxu0 0.0
  %v10707 = vand.u32 %v9451, 4294901760
  %v10708 = vsub.f32 %v9451, %v10707
  %v10709 = vand.u32 %v10708, 4294901760
  %10710 = vmatmul.mubr.f32.gmra.mxu0 %v10709
  %v10711 = vpop.f32.mrf.mxu0
  %v10712 = vadd.f32 %v10394, %v10711
  %v10713 = vpop.f32.mrf.mxu0
  %10714 = vmatprep.mubr.f32.mxu0 0.0
  %v10715 = vand.u32 %v9452, 4294901760
  %v10716 = vsub.f32 %v9452, %v10715
  %v10717 = vand.u32 %v10716, 4294901760
  %10718 = vmatmul.mubr.f32.gmra.mxu0 %v10717
  %v10719 = vpop.f32.mrf.mxu0
  %v10720 = vadd.f32 %v10401, %v10719
  %v10721 = vpop.f32.mrf.mxu0
  %10722 = vmatprep.mubr.f32.mxu0 0.0
  %v10723 = vand.u32 %v9453, 4294901760
  %v10724 = vsub.f32 %v9453, %v10723
  %v10725 = vand.u32 %v10724, 4294901760
  %10726 = vmatmul.mubr.f32.gmra.mxu0 %v10725
  %v10727 = vpop.f32.mrf.mxu0
  %v10728 = vadd.f32 %v10408, %v10727
  %v10729 = vpop.f32.mrf.mxu0
  %10730 = vmatprep.mubr.f32.mxu0 0.0
  %v10731 = vand.u32 %v9454, 4294901760
  %v10732 = vsub.f32 %v9454, %v10731
  %v10733 = vand.u32 %v10732, 4294901760
  %10734 = vmatmul.mubr.f32.gmra.mxu0 %v10733
  %v10735 = vpop.f32.mrf.mxu0
  %v10736 = vadd.f32 %v10415, %v10735
  %v10737 = vpop.f32.mrf.mxu0
  %10738 = vmatprep.mubr.f32.mxu0 0.0
  %v10739 = vand.u32 %v9455, 4294901760
  %v10740 = vsub.f32 %v9455, %v10739
  %v10741 = vand.u32 %v10740, 4294901760
  %10742 = vmatmul.mubr.f32.gmra.mxu0 %v10741
  %v10743 = vpop.f32.mrf.mxu0
  %v10744 = vadd.f32 %v10422, %v10743
  %v10745 = vpop.f32.mrf.mxu0
  %10746 = vmatprep.mubr.f32.mxu0 0.0
  %v10747 = vand.u32 %v9456, 4294901760
  %v10748 = vsub.f32 %v9456, %v10747
  %v10749 = vand.u32 %v10748, 4294901760
  %10750 = vmatmul.mubr.f32.gmra.mxu0 %v10749
  %v10751 = vpop.f32.mrf.mxu0
  %v10752 = vadd.f32 %v10429, %v10751
  %v10753 = vpop.f32.mrf.mxu0
  %10754 = vmatprep.mubr.f32.mxu0 0.0
  %v10755 = vand.u32 %v9457, 4294901760
  %v10756 = vsub.f32 %v9457, %v10755
  %v10757 = vand.u32 %v10756, 4294901760
  %10758 = vmatmul.mubr.f32.gmra.mxu0 %v10757
  %v10759 = vpop.f32.mrf.mxu0
  %v10760 = vadd.f32 %v10436, %v10759
  %v10761 = vpop.f32.mrf.mxu0
  %10762 = vmatprep.mubr.f32.mxu0 0.0
  %v10763 = vand.u32 %v9458, 4294901760
  %v10764 = vsub.f32 %v9458, %v10763
  %v10765 = vand.u32 %v10764, 4294901760
  %10766 = vmatmul.mubr.f32.gmra.mxu0 %v10765
  %v10767 = vpop.f32.mrf.mxu0
  %v10768 = vadd.f32 %v10443, %v10767
  %v10769 = vpop.f32.mrf.mxu0
  %10770 = vmatprep.mubr.f32.mxu0 0.0
  %v10771 = vand.u32 %v9459, 4294901760
  %v10772 = vsub.f32 %v9459, %v10771
  %v10773 = vand.u32 %v10772, 4294901760
  %10774 = vmatmul.mubr.f32.gmra.mxu0 %v10773
  %v10775 = vpop.f32.mrf.mxu0
  %v10776 = vadd.f32 %v10450, %v10775
  %v10777 = vpop.f32.mrf.mxu0
  %10778 = vmatprep.mubr.f32.mxu0 0.0
  %v10779 = vand.u32 %v9460, 4294901760
  %v10780 = vsub.f32 %v9460, %v10779
  %v10781 = vand.u32 %v10780, 4294901760
  %10782 = vmatmul.mubr.f32.gmra.mxu0 %v10781
  %v10783 = vpop.f32.mrf.mxu0
  %v10784 = vadd.f32 %v10457, %v10783
  %v10785 = vpop.f32.mrf.mxu0
  %10786 = vmatprep.mubr.f32.mxu0 0.0
  %v10787 = vand.u32 %v9461, 4294901760
  %v10788 = vsub.f32 %v9461, %v10787
  %v10789 = vand.u32 %v10788, 4294901760
  %10790 = vmatmul.mubr.f32.gmra.mxu0 %v10789
  %v10791 = vpop.f32.mrf.mxu0
  %v10792 = vadd.f32 %v10464, %v10791
  %v10793 = vpop.f32.mrf.mxu0
  %10794 = vmatprep.mubr.f32.mxu0 0.0
  %v10795 = vand.u32 %v9462, 4294901760
  %v10796 = vsub.f32 %v9462, %v10795
  %v10797 = vand.u32 %v10796, 4294901760
  %10798 = vmatmul.mubr.f32.gmra.mxu0 %v10797
  %v10799 = vpop.f32.mrf.mxu0
  %v10800 = vadd.f32 %v10471, %v10799
  %v10801 = vpop.f32.mrf.mxu0
  %10802 = vmatprep.mubr.f32.mxu0 0.0
  %v10803 = vand.u32 %v9463, 4294901760
  %v10804 = vsub.f32 %v9463, %v10803
  %v10805 = vand.u32 %v10804, 4294901760
  %10806 = vmatmul.mubr.f32.gmra.mxu0 %v10805
  %v10807 = vpop.f32.mrf.mxu0
  %v10808 = vadd.f32 %v10478, %v10807
  %v10809 = vpop.f32.mrf.mxu0
  %10810 = vmatprep.mubr.f32.mxu0 0.0
  %v10811 = vand.u32 %v9464, 4294901760
  %v10812 = vsub.f32 %v9464, %v10811
  %v10813 = vand.u32 %v10812, 4294901760
  %10814 = vmatmul.mubr.f32.gmra.mxu0 %v10813
  %v10815 = vpop.f32.mrf.mxu0
  %v10816 = vadd.f32 %v10485, %v10815
  %v10817 = vpop.f32.mrf.mxu0
  %10818 = vmatprep.mubr.f32.mxu0 0.0
  %v10819 = vand.u32 %v9465, 4294901760
  %v10820 = vsub.f32 %v9465, %v10819
  %v10821 = vand.u32 %v10820, 4294901760
  %10822 = vmatmul.mubr.f32.gmra.mxu0 %v10821
  %v10823 = vpop.f32.mrf.mxu0
  %v10824 = vadd.f32 %v10492, %v10823
  %v10825 = vpop.f32.mrf.mxu0
  %10826 = vmatprep.mubr.f32.mxu0 0.0
  %v10827 = vand.u32 %v9466, 4294901760
  %v10828 = vsub.f32 %v9466, %v10827
  %v10829 = vand.u32 %v10828, 4294901760
  %10830 = vmatmul.mubr.f32.gmra.mxu0 %v10829
  %v10831 = vpop.f32.mrf.mxu0
  %v10832 = vadd.f32 %v10499, %v10831
  %v10833 = vpop.f32.mrf.mxu0
  %10834 = vmatprep.mubr.f32.mxu0 0.0
  %v10835 = vand.u32 %v9467, 4294901760
  %v10836 = vsub.f32 %v9467, %v10835
  %v10837 = vand.u32 %v10836, 4294901760
  %10838 = vmatmul.mubr.f32.gmra.mxu0 %v10837
  %v10839 = vpop.f32.mrf.mxu0
  %v10840 = vadd.f32 %v10506, %v10839
  %v10841 = vpop.f32.mrf.mxu0
  %10842 = vmatprep.mubr.f32.mxu0 0.0
  %v10843 = vand.u32 %v9468, 4294901760
  %v10844 = vsub.f32 %v9468, %v10843
  %v10845 = vand.u32 %v10844, 4294901760
  %10846 = vmatmul.mubr.f32.gmra.mxu0 %v10845
  %v10847 = vpop.f32.mrf.mxu0
  %v10848 = vadd.f32 %v10513, %v10847
  %v10849 = vpop.f32.mrf.mxu0
  %10850 = vmatprep.mubr.f32.mxu0 0.0
  %v10851 = vand.u32 %v9469, 4294901760
  %v10852 = vsub.f32 %v9469, %v10851
  %v10853 = vand.u32 %v10852, 4294901760
  %10854 = vmatmul.mubr.f32.gmra.mxu0 %v10853
  %v10855 = vpop.f32.mrf.mxu0
  %v10856 = vadd.f32 %v10520, %v10855
  %v10857 = vpop.f32.mrf.mxu0
  %10858 = vmatprep.mubr.f32.mxu0 0.0
  %v10859 = vand.u32 %v9470, 4294901760
  %v10860 = vsub.f32 %v9470, %v10859
  %v10861 = vand.u32 %v10860, 4294901760
  %10862 = vmatmul.mubr.f32.gmra.mxu0 %v10861
  %v10863 = vpop.f32.mrf.mxu0
  %v10864 = vadd.f32 %v10527, %v10863
  %v10865 = vpop.f32.mrf.mxu0
  %10866 = vdwg.mxu0
  %10867 = vmatprep.subr.mxu0 0.0
  %v10868 = vand.u32 %v3582, 4294901760
  %v10869 = vsub.f32 %v3582, %v10868
  %v10870 = vand.u32 %v10869, 4294901760
  %10871 = vmatpush1.msra.mxu0 %v10870
  %10872 = vmatprep.subr.mxu0 0.0
  %v10873 = vand.u32 %v3581, 4294901760
  %v10874 = vsub.f32 %v3581, %v10873
  %v10875 = vand.u32 %v10874, 4294901760
  %10876 = vmatpush1.msra.mxu0 %v10875
  %10877 = vmatprep.subr.mxu0 0.0
  %v10878 = vand.u32 %v3580, 4294901760
  %v10879 = vsub.f32 %v3580, %v10878
  %v10880 = vand.u32 %v10879, 4294901760
  %10881 = vmatpush1.msra.mxu0 %v10880
  %10882 = vmatprep.subr.mxu0 0.0
  %v10883 = vand.u32 %v3579, 4294901760
  %v10884 = vsub.f32 %v3579, %v10883
  %v10885 = vand.u32 %v10884, 4294901760
  %10886 = vmatpush1.msra.mxu0 %v10885
  %10887 = vmatprep.subr.mxu0 0.0
  %v10888 = vand.u32 %v3578, 4294901760
  %v10889 = vsub.f32 %v3578, %v10888
  %v10890 = vand.u32 %v10889, 4294901760
  %10891 = vmatpush1.msra.mxu0 %v10890
  %10892 = vmatprep.subr.mxu0 0.0
  %v10893 = vand.u32 %v3577, 4294901760
  %v10894 = vsub.f32 %v3577, %v10893
  %v10895 = vand.u32 %v10894, 4294901760
  %10896 = vmatpush1.msra.mxu0 %v10895
  %10897 = vmatprep.subr.mxu0 0.0
  %v10898 = vand.u32 %v3576, 4294901760
  %v10899 = vsub.f32 %v3576, %v10898
  %v10900 = vand.u32 %v10899, 4294901760
  %10901 = vmatpush1.msra.mxu0 %v10900
  %10902 = vmatprep.subr.mxu0 0.0
  %v10903 = vand.u32 %v3575, 4294901760
  %v10904 = vsub.f32 %v3575, %v10903
  %v10905 = vand.u32 %v10904, 4294901760
  %10906 = vmatpush1.msra.mxu0 %v10905
  %10907 = vmatprep.subr.mxu0 0.0
  %v10908 = vand.u32 %v3574, 4294901760
  %v10909 = vsub.f32 %v3574, %v10908
  %v10910 = vand.u32 %v10909, 4294901760
  %10911 = vmatpush1.msra.mxu0 %v10910
  %10912 = vmatprep.subr.mxu0 0.0
  %v10913 = vand.u32 %v3573, 4294901760
  %v10914 = vsub.f32 %v3573, %v10913
  %v10915 = vand.u32 %v10914, 4294901760
  %10916 = vmatpush1.msra.mxu0 %v10915
  %10917 = vmatprep.subr.mxu0 0.0
  %v10918 = vand.u32 %v3572, 4294901760
  %v10919 = vsub.f32 %v3572, %v10918
  %v10920 = vand.u32 %v10919, 4294901760
  %10921 = vmatpush1.msra.mxu0 %v10920
  %10922 = vmatprep.subr.mxu0 0.0
  %v10923 = vand.u32 %v3571, 4294901760
  %v10924 = vsub.f32 %v3571, %v10923
  %v10925 = vand.u32 %v10924, 4294901760
  %10926 = vmatpush1.msra.mxu0 %v10925
  %10927 = vmatprep.subr.mxu0 0.0
  %v10928 = vand.u32 %v3570, 4294901760
  %v10929 = vsub.f32 %v3570, %v10928
  %v10930 = vand.u32 %v10929, 4294901760
  %10931 = vmatpush1.msra.mxu0 %v10930
  %10932 = vmatprep.subr.mxu0 0.0
  %v10933 = vand.u32 %v3569, 4294901760
  %v10934 = vsub.f32 %v3569, %v10933
  %v10935 = vand.u32 %v10934, 4294901760
  %10936 = vmatpush1.msra.mxu0 %v10935
  %10937 = vmatprep.subr.mxu0 0.0
  %v10938 = vand.u32 %v3568, 4294901760
  %v10939 = vsub.f32 %v3568, %v10938
  %v10940 = vand.u32 %v10939, 4294901760
  %10941 = vmatpush1.msra.mxu0 %v10940
  %10942 = vmatprep.subr.mxu0 0.0
  %v10943 = vand.u32 %v3567, 4294901760
  %v10944 = vsub.f32 %v3567, %v10943
  %v10945 = vand.u32 %v10944, 4294901760
  %10946 = vmatpush1.msra.mxu0 %v10945
  %10947 = vmatprep.subr.mxu0 0.0
  %10948 = vmatpush2.msra.mxu0 0.0
  %10949 = vmatprep.subr.mxu0 0.0
  %10950 = vmatpush2.msra.mxu0 0.0
  %10951 = vmatprep.subr.mxu0 0.0
  %10952 = vmatpush2.msra.mxu0 0.0
  %10953 = vmatprep.subr.mxu0 0.0
  %10954 = vmatpush2.msra.mxu0 0.0
  %10955 = vmatprep.subr.mxu0 0.0
  %10956 = vmatpush2.msra.mxu0 0.0
  %10957 = vmatprep.subr.mxu0 0.0
  %10958 = vmatpush2.msra.mxu0 0.0
  %10959 = vmatprep.subr.mxu0 0.0
  %10960 = vmatpush2.msra.mxu0 0.0
  %10961 = vmatprep.subr.mxu0 0.0
  %10962 = vmatpush2.msra.mxu0 0.0
  %10963 = vmatprep.subr.mxu0 0.0
  %10964 = vmatpush2.msra.mxu0 0.0
  %10965 = vmatprep.subr.mxu0 0.0
  %10966 = vmatpush2.msra.mxu0 0.0
  %10967 = vmatprep.subr.mxu0 0.0
  %10968 = vmatpush2.msra.mxu0 0.0
  %10969 = vmatprep.subr.mxu0 0.0
  %10970 = vmatpush2.msra.mxu0 0.0
  %10971 = vmatprep.subr.mxu0 0.0
  %10972 = vmatpush2.msra.mxu0 0.0
  %10973 = vmatprep.subr.mxu0 0.0
  %10974 = vmatpush2.msra.mxu0 0.0
  %10975 = vmatprep.subr.mxu0 0.0
  %10976 = vmatpush2.msra.mxu0 0.0
  %10977 = vmatprep.subr.mxu0 0.0
  %10978 = vmatpush2.msra.mxu0 0.0
  %10979 = vmatprep.mubr.f32.mxu0 0.0
  %v10980 = vand.u32 %v9439, 4294901760
  %10981 = vmatmul.mubr.f32.gmra.mxu0 %v10980
  %v10982 = vpop.f32.mrf.mxu0
  %v10983 = vadd.f32 %v10616, %v10982
  %v10984 = vpop.f32.mrf.mxu0
  %10985 = vmatprep.mubr.f32.mxu0 0.0
  %v10986 = vand.u32 %v9440, 4294901760
  %10987 = vmatmul.mubr.f32.gmra.mxu0 %v10986
  %v10988 = vpop.f32.mrf.mxu0
  %v10989 = vadd.f32 %v10624, %v10988
  %v10990 = vpop.f32.mrf.mxu0
  %10991 = vmatprep.mubr.f32.mxu0 0.0
  %v10992 = vand.u32 %v9441, 4294901760
  %10993 = vmatmul.mubr.f32.gmra.mxu0 %v10992
  %v10994 = vpop.f32.mrf.mxu0
  %v10995 = vadd.f32 %v10632, %v10994
  %v10996 = vpop.f32.mrf.mxu0
  %10997 = vmatprep.mubr.f32.mxu0 0.0
  %v10998 = vand.u32 %v9442, 4294901760
  %10999 = vmatmul.mubr.f32.gmra.mxu0 %v10998
  %v11000 = vpop.f32.mrf.mxu0
  %v11001 = vadd.f32 %v10640, %v11000
  %v11002 = vpop.f32.mrf.mxu0
  %11003 = vmatprep.mubr.f32.mxu0 0.0
  %v11004 = vand.u32 %v9443, 4294901760
  %11005 = vmatmul.mubr.f32.gmra.mxu0 %v11004
  %v11006 = vpop.f32.mrf.mxu0
  %v11007 = vadd.f32 %v10648, %v11006
  %v11008 = vpop.f32.mrf.mxu0
  %11009 = vmatprep.mubr.f32.mxu0 0.0
  %v11010 = vand.u32 %v9444, 4294901760
  %11011 = vmatmul.mubr.f32.gmra.mxu0 %v11010
  %v11012 = vpop.f32.mrf.mxu0
  %v11013 = vadd.f32 %v10656, %v11012
  %v11014 = vpop.f32.mrf.mxu0
  %11015 = vmatprep.mubr.f32.mxu0 0.0
  %v11016 = vand.u32 %v9445, 4294901760
  %11017 = vmatmul.mubr.f32.gmra.mxu0 %v11016
  %v11018 = vpop.f32.mrf.mxu0
  %v11019 = vadd.f32 %v10664, %v11018
  %v11020 = vpop.f32.mrf.mxu0
  %11021 = vmatprep.mubr.f32.mxu0 0.0
  %v11022 = vand.u32 %v9446, 4294901760
  %11023 = vmatmul.mubr.f32.gmra.mxu0 %v11022
  %v11024 = vpop.f32.mrf.mxu0
  %v11025 = vadd.f32 %v10672, %v11024
  %v11026 = vpop.f32.mrf.mxu0
  %11027 = vmatprep.mubr.f32.mxu0 0.0
  %v11028 = vand.u32 %v9447, 4294901760
  %11029 = vmatmul.mubr.f32.gmra.mxu0 %v11028
  %v11030 = vpop.f32.mrf.mxu0
  %v11031 = vadd.f32 %v10680, %v11030
  %v11032 = vpop.f32.mrf.mxu0
  %11033 = vmatprep.mubr.f32.mxu0 0.0
  %v11034 = vand.u32 %v9448, 4294901760
  %11035 = vmatmul.mubr.f32.gmra.mxu0 %v11034
  %v11036 = vpop.f32.mrf.mxu0
  %v11037 = vadd.f32 %v10688, %v11036
  %v11038 = vpop.f32.mrf.mxu0
  %11039 = vmatprep.mubr.f32.mxu0 0.0
  %v11040 = vand.u32 %v9449, 4294901760
  %11041 = vmatmul.mubr.f32.gmra.mxu0 %v11040
  %v11042 = vpop.f32.mrf.mxu0
  %v11043 = vadd.f32 %v10696, %v11042
  %v11044 = vpop.f32.mrf.mxu0
  %11045 = vmatprep.mubr.f32.mxu0 0.0
  %v11046 = vand.u32 %v9450, 4294901760
  %11047 = vmatmul.mubr.f32.gmra.mxu0 %v11046
  %v11048 = vpop.f32.mrf.mxu0
  %v11049 = vadd.f32 %v10704, %v11048
  %v11050 = vpop.f32.mrf.mxu0
  %11051 = vmatprep.mubr.f32.mxu0 0.0
  %v11052 = vand.u32 %v9451, 4294901760
  %11053 = vmatmul.mubr.f32.gmra.mxu0 %v11052
  %v11054 = vpop.f32.mrf.mxu0
  %v11055 = vadd.f32 %v10712, %v11054
  %v11056 = vpop.f32.mrf.mxu0
  %11057 = vmatprep.mubr.f32.mxu0 0.0
  %v11058 = vand.u32 %v9452, 4294901760
  %11059 = vmatmul.mubr.f32.gmra.mxu0 %v11058
  %v11060 = vpop.f32.mrf.mxu0
  %v11061 = vadd.f32 %v10720, %v11060
  %v11062 = vpop.f32.mrf.mxu0
  %11063 = vmatprep.mubr.f32.mxu0 0.0
  %v11064 = vand.u32 %v9453, 4294901760
  %11065 = vmatmul.mubr.f32.gmra.mxu0 %v11064
  %v11066 = vpop.f32.mrf.mxu0
  %v11067 = vadd.f32 %v10728, %v11066
  %v11068 = vpop.f32.mrf.mxu0
  %11069 = vmatprep.mubr.f32.mxu0 0.0
  %v11070 = vand.u32 %v9454, 4294901760
  %11071 = vmatmul.mubr.f32.gmra.mxu0 %v11070
  %v11072 = vpop.f32.mrf.mxu0
  %v11073 = vadd.f32 %v10736, %v11072
  %v11074 = vpop.f32.mrf.mxu0
  %11075 = vmatprep.mubr.f32.mxu0 0.0
  %v11076 = vand.u32 %v9455, 4294901760
  %11077 = vmatmul.mubr.f32.gmra.mxu0 %v11076
  %v11078 = vpop.f32.mrf.mxu0
  %v11079 = vadd.f32 %v10744, %v11078
  %v11080 = vpop.f32.mrf.mxu0
  %11081 = vmatprep.mubr.f32.mxu0 0.0
  %v11082 = vand.u32 %v9456, 4294901760
  %11083 = vmatmul.mubr.f32.gmra.mxu0 %v11082
  %v11084 = vpop.f32.mrf.mxu0
  %v11085 = vadd.f32 %v10752, %v11084
  %v11086 = vpop.f32.mrf.mxu0
  %11087 = vmatprep.mubr.f32.mxu0 0.0
  %v11088 = vand.u32 %v9457, 4294901760
  %11089 = vmatmul.mubr.f32.gmra.mxu0 %v11088
  %v11090 = vpop.f32.mrf.mxu0
  %v11091 = vadd.f32 %v10760, %v11090
  %v11092 = vpop.f32.mrf.mxu0
  %11093 = vmatprep.mubr.f32.mxu0 0.0
  %v11094 = vand.u32 %v9458, 4294901760
  %11095 = vmatmul.mubr.f32.gmra.mxu0 %v11094
  %v11096 = vpop.f32.mrf.mxu0
  %v11097 = vadd.f32 %v10768, %v11096
  %v11098 = vpop.f32.mrf.mxu0
  %11099 = vmatprep.mubr.f32.mxu0 0.0
  %v11100 = vand.u32 %v9459, 4294901760
  %11101 = vmatmul.mubr.f32.gmra.mxu0 %v11100
  %v11102 = vpop.f32.mrf.mxu0
  %v11103 = vadd.f32 %v10776, %v11102
  %v11104 = vpop.f32.mrf.mxu0
  %11105 = vmatprep.mubr.f32.mxu0 0.0
  %v11106 = vand.u32 %v9460, 4294901760
  %11107 = vmatmul.mubr.f32.gmra.mxu0 %v11106
  %v11108 = vpop.f32.mrf.mxu0
  %v11109 = vadd.f32 %v10784, %v11108
  %v11110 = vpop.f32.mrf.mxu0
  %11111 = vmatprep.mubr.f32.mxu0 0.0
  %v11112 = vand.u32 %v9461, 4294901760
  %11113 = vmatmul.mubr.f32.gmra.mxu0 %v11112
  %v11114 = vpop.f32.mrf.mxu0
  %v11115 = vadd.f32 %v10792, %v11114
  %v11116 = vpop.f32.mrf.mxu0
  %11117 = vmatprep.mubr.f32.mxu0 0.0
  %v11118 = vand.u32 %v9462, 4294901760
  %11119 = vmatmul.mubr.f32.gmra.mxu0 %v11118
  %v11120 = vpop.f32.mrf.mxu0
  %v11121 = vadd.f32 %v10800, %v11120
  %v11122 = vpop.f32.mrf.mxu0
  %11123 = vmatprep.mubr.f32.mxu0 0.0
  %v11124 = vand.u32 %v9463, 4294901760
  %11125 = vmatmul.mubr.f32.gmra.mxu0 %v11124
  %v11126 = vpop.f32.mrf.mxu0
  %v11127 = vadd.f32 %v10808, %v11126
  %v11128 = vpop.f32.mrf.mxu0
  %11129 = vmatprep.mubr.f32.mxu0 0.0
  %v11130 = vand.u32 %v9464, 4294901760
  %11131 = vmatmul.mubr.f32.gmra.mxu0 %v11130
  %v11132 = vpop.f32.mrf.mxu0
  %v11133 = vadd.f32 %v10816, %v11132
  %v11134 = vpop.f32.mrf.mxu0
  %11135 = vmatprep.mubr.f32.mxu0 0.0
  %v11136 = vand.u32 %v9465, 4294901760
  %11137 = vmatmul.mubr.f32.gmra.mxu0 %v11136
  %v11138 = vpop.f32.mrf.mxu0
  %v11139 = vadd.f32 %v10824, %v11138
  %v11140 = vpop.f32.mrf.mxu0
  %11141 = vmatprep.mubr.f32.mxu0 0.0
  %v11142 = vand.u32 %v9466, 4294901760
  %11143 = vmatmul.mubr.f32.gmra.mxu0 %v11142
  %v11144 = vpop.f32.mrf.mxu0
  %v11145 = vadd.f32 %v10832, %v11144
  %v11146 = vpop.f32.mrf.mxu0
  %11147 = vmatprep.mubr.f32.mxu0 0.0
  %v11148 = vand.u32 %v9467, 4294901760
  %11149 = vmatmul.mubr.f32.gmra.mxu0 %v11148
  %v11150 = vpop.f32.mrf.mxu0
  %v11151 = vadd.f32 %v10840, %v11150
  %v11152 = vpop.f32.mrf.mxu0
  %11153 = vmatprep.mubr.f32.mxu0 0.0
  %v11154 = vand.u32 %v9468, 4294901760
  %11155 = vmatmul.mubr.f32.gmra.mxu0 %v11154
  %v11156 = vpop.f32.mrf.mxu0
  %v11157 = vadd.f32 %v10848, %v11156
  %v11158 = vpop.f32.mrf.mxu0
  %11159 = vmatprep.mubr.f32.mxu0 0.0
  %v11160 = vand.u32 %v9469, 4294901760
  %11161 = vmatmul.mubr.f32.gmra.mxu0 %v11160
  %v11162 = vpop.f32.mrf.mxu0
  %v11163 = vadd.f32 %v10856, %v11162
  %v11164 = vpop.f32.mrf.mxu0
  %11165 = vmatprep.mubr.f32.mxu0 0.0
  %v11166 = vand.u32 %v9470, 4294901760
  %11167 = vmatmul.mubr.f32.gmra.mxu0 %v11166
  %v11168 = vpop.f32.mrf.mxu0
  %v11169 = vadd.f32 %v10864, %v11168
  %v11170 = vpop.f32.mrf.mxu0
  %11171 = vdwg.mxu0
  %11172 = vmatprep.subr.mxu0 0.0
  %v11173 = vand.u32 %v3582, 4294901760
  %11174 = vmatpush1.msra.mxu0 %v11173
  %11175 = vmatprep.subr.mxu0 0.0
  %v11176 = vand.u32 %v3581, 4294901760
  %11177 = vmatpush1.msra.mxu0 %v11176
  %11178 = vmatprep.subr.mxu0 0.0
  %v11179 = vand.u32 %v3580, 4294901760
  %11180 = vmatpush1.msra.mxu0 %v11179
  %11181 = vmatprep.subr.mxu0 0.0
  %v11182 = vand.u32 %v3579, 4294901760
  %11183 = vmatpush1.msra.mxu0 %v11182
  %11184 = vmatprep.subr.mxu0 0.0
  %v11185 = vand.u32 %v3578, 4294901760
  %11186 = vmatpush1.msra.mxu0 %v11185
  %11187 = vmatprep.subr.mxu0 0.0
  %v11188 = vand.u32 %v3577, 4294901760
  %11189 = vmatpush1.msra.mxu0 %v11188
  %11190 = vmatprep.subr.mxu0 0.0
  %v11191 = vand.u32 %v3576, 4294901760
  %11192 = vmatpush1.msra.mxu0 %v11191
  %11193 = vmatprep.subr.mxu0 0.0
  %v11194 = vand.u32 %v3575, 4294901760
  %11195 = vmatpush1.msra.mxu0 %v11194
  %11196 = vmatprep.subr.mxu0 0.0
  %v11197 = vand.u32 %v3574, 4294901760
  %11198 = vmatpush1.msra.mxu0 %v11197
  %11199 = vmatprep.subr.mxu0 0.0
  %v11200 = vand.u32 %v3573, 4294901760
  %11201 = vmatpush1.msra.mxu0 %v11200
  %11202 = vmatprep.subr.mxu0 0.0
  %v11203 = vand.u32 %v3572, 4294901760
  %11204 = vmatpush1.msra.mxu0 %v11203
  %11205 = vmatprep.subr.mxu0 0.0
  %v11206 = vand.u32 %v3571, 4294901760
  %11207 = vmatpush1.msra.mxu0 %v11206
  %11208 = vmatprep.subr.mxu0 0.0
  %v11209 = vand.u32 %v3570, 4294901760
  %11210 = vmatpush1.msra.mxu0 %v11209
  %11211 = vmatprep.subr.mxu0 0.0
  %v11212 = vand.u32 %v3569, 4294901760
  %11213 = vmatpush1.msra.mxu0 %v11212
  %11214 = vmatprep.subr.mxu0 0.0
  %v11215 = vand.u32 %v3568, 4294901760
  %11216 = vmatpush1.msra.mxu0 %v11215
  %11217 = vmatprep.subr.mxu0 0.0
  %v11218 = vand.u32 %v3567, 4294901760
  %11219 = vmatpush1.msra.mxu0 %v11218
  %11220 = vmatprep.subr.mxu0 0.0
  %11221 = vmatpush2.msra.mxu0 0.0
  %11222 = vmatprep.subr.mxu0 0.0
  %11223 = vmatpush2.msra.mxu0 0.0
  %11224 = vmatprep.subr.mxu0 0.0
  %11225 = vmatpush2.msra.mxu0 0.0
  %11226 = vmatprep.subr.mxu0 0.0
  %11227 = vmatpush2.msra.mxu0 0.0
  %11228 = vmatprep.subr.mxu0 0.0
  %11229 = vmatpush2.msra.mxu0 0.0
  %11230 = vmatprep.subr.mxu0 0.0
  %11231 = vmatpush2.msra.mxu0 0.0
  %11232 = vmatprep.subr.mxu0 0.0
  %11233 = vmatpush2.msra.mxu0 0.0
  %11234 = vmatprep.subr.mxu0 0.0
  %11235 = vmatpush2.msra.mxu0 0.0
  %11236 = vmatprep.subr.mxu0 0.0
  %11237 = vmatpush2.msra.mxu0 0.0
  %11238 = vmatprep.subr.mxu0 0.0
  %11239 = vmatpush2.msra.mxu0 0.0
  %11240 = vmatprep.subr.mxu0 0.0
  %11241 = vmatpush2.msra.mxu0 0.0
  %11242 = vmatprep.subr.mxu0 0.0
  %11243 = vmatpush2.msra.mxu0 0.0
  %11244 = vmatprep.subr.mxu0 0.0
  %11245 = vmatpush2.msra.mxu0 0.0
  %11246 = vmatprep.subr.mxu0 0.0
  %11247 = vmatpush2.msra.mxu0 0.0
  %11248 = vmatprep.subr.mxu0 0.0
  %11249 = vmatpush2.msra.mxu0 0.0
  %11250 = vmatprep.subr.mxu0 0.0
  %11251 = vmatpush2.msra.mxu0 0.0
  %11252 = vmatprep.mubr.f32.mxu0 0.0
  %v11253 = vand.u32 %v9439, 4294901760
  %11254 = vmatmul.mubr.f32.gmra.mxu0 %v11253
  %v11255 = vpop.f32.mrf.mxu0
  %v11256 = vadd.f32 %v10983, %v11255
  %v11257 = vpop.f32.mrf.mxu0
  %11258 = vmatprep.mubr.f32.mxu0 0.0
  %v11259 = vand.u32 %v9440, 4294901760
  %11260 = vmatmul.mubr.f32.gmra.mxu0 %v11259
  %v11261 = vpop.f32.mrf.mxu0
  %v11262 = vadd.f32 %v10989, %v11261
  %v11263 = vpop.f32.mrf.mxu0
  %11264 = vmatprep.mubr.f32.mxu0 0.0
  %v11265 = vand.u32 %v9441, 4294901760
  %11266 = vmatmul.mubr.f32.gmra.mxu0 %v11265
  %v11267 = vpop.f32.mrf.mxu0
  %v11268 = vadd.f32 %v10995, %v11267
  %v11269 = vpop.f32.mrf.mxu0
  %11270 = vmatprep.mubr.f32.mxu0 0.0
  %v11271 = vand.u32 %v9442, 4294901760
  %11272 = vmatmul.mubr.f32.gmra.mxu0 %v11271
  %v11273 = vpop.f32.mrf.mxu0
  %v11274 = vadd.f32 %v11001, %v11273
  %v11275 = vpop.f32.mrf.mxu0
  %11276 = vmatprep.mubr.f32.mxu0 0.0
  %v11277 = vand.u32 %v9443, 4294901760
  %11278 = vmatmul.mubr.f32.gmra.mxu0 %v11277
  %v11279 = vpop.f32.mrf.mxu0
  %v11280 = vadd.f32 %v11007, %v11279
  %v11281 = vpop.f32.mrf.mxu0
  %11282 = vmatprep.mubr.f32.mxu0 0.0
  %v11283 = vand.u32 %v9444, 4294901760
  %11284 = vmatmul.mubr.f32.gmra.mxu0 %v11283
  %v11285 = vpop.f32.mrf.mxu0
  %v11286 = vadd.f32 %v11013, %v11285
  %v11287 = vpop.f32.mrf.mxu0
  %11288 = vmatprep.mubr.f32.mxu0 0.0
  %v11289 = vand.u32 %v9445, 4294901760
  %11290 = vmatmul.mubr.f32.gmra.mxu0 %v11289
  %v11291 = vpop.f32.mrf.mxu0
  %v11292 = vadd.f32 %v11019, %v11291
  %v11293 = vpop.f32.mrf.mxu0
  %11294 = vmatprep.mubr.f32.mxu0 0.0
  %v11295 = vand.u32 %v9446, 4294901760
  %11296 = vmatmul.mubr.f32.gmra.mxu0 %v11295
  %v11297 = vpop.f32.mrf.mxu0
  %v11298 = vadd.f32 %v11025, %v11297
  %v11299 = vpop.f32.mrf.mxu0
  %11300 = vmatprep.mubr.f32.mxu0 0.0
  %v11301 = vand.u32 %v9447, 4294901760
  %11302 = vmatmul.mubr.f32.gmra.mxu0 %v11301
  %v11303 = vpop.f32.mrf.mxu0
  %v11304 = vadd.f32 %v11031, %v11303
  %v11305 = vpop.f32.mrf.mxu0
  %11306 = vmatprep.mubr.f32.mxu0 0.0
  %v11307 = vand.u32 %v9448, 4294901760
  %11308 = vmatmul.mubr.f32.gmra.mxu0 %v11307
  %v11309 = vpop.f32.mrf.mxu0
  %v11310 = vadd.f32 %v11037, %v11309
  %v11311 = vpop.f32.mrf.mxu0
  %11312 = vmatprep.mubr.f32.mxu0 0.0
  %v11313 = vand.u32 %v9449, 4294901760
  %11314 = vmatmul.mubr.f32.gmra.mxu0 %v11313
  %v11315 = vpop.f32.mrf.mxu0
  %v11316 = vadd.f32 %v11043, %v11315
  %v11317 = vpop.f32.mrf.mxu0
  %11318 = vmatprep.mubr.f32.mxu0 0.0
  %v11319 = vand.u32 %v9450, 4294901760
  %11320 = vmatmul.mubr.f32.gmra.mxu0 %v11319
  %v11321 = vpop.f32.mrf.mxu0
  %v11322 = vadd.f32 %v11049, %v11321
  %v11323 = vpop.f32.mrf.mxu0
  %11324 = vmatprep.mubr.f32.mxu0 0.0
  %v11325 = vand.u32 %v9451, 4294901760
  %11326 = vmatmul.mubr.f32.gmra.mxu0 %v11325
  %v11327 = vpop.f32.mrf.mxu0
  %v11328 = vadd.f32 %v11055, %v11327
  %v11329 = vpop.f32.mrf.mxu0
  %11330 = vmatprep.mubr.f32.mxu0 0.0
  %v11331 = vand.u32 %v9452, 4294901760
  %11332 = vmatmul.mubr.f32.gmra.mxu0 %v11331
  %v11333 = vpop.f32.mrf.mxu0
  %v11334 = vadd.f32 %v11061, %v11333
  %v11335 = vpop.f32.mrf.mxu0
  %11336 = vmatprep.mubr.f32.mxu0 0.0
  %v11337 = vand.u32 %v9453, 4294901760
  %11338 = vmatmul.mubr.f32.gmra.mxu0 %v11337
  %v11339 = vpop.f32.mrf.mxu0
  %v11340 = vadd.f32 %v11067, %v11339
  %v11341 = vpop.f32.mrf.mxu0
  %11342 = vmatprep.mubr.f32.mxu0 0.0
  %v11343 = vand.u32 %v9454, 4294901760
  %11344 = vmatmul.mubr.f32.gmra.mxu0 %v11343
  %v11345 = vpop.f32.mrf.mxu0
  %v11346 = vadd.f32 %v11073, %v11345
  %v11347 = vpop.f32.mrf.mxu0
  %11348 = vmatprep.mubr.f32.mxu0 0.0
  %v11349 = vand.u32 %v9455, 4294901760
  %11350 = vmatmul.mubr.f32.gmra.mxu0 %v11349
  %v11351 = vpop.f32.mrf.mxu0
  %v11352 = vadd.f32 %v11079, %v11351
  %v11353 = vpop.f32.mrf.mxu0
  %11354 = vmatprep.mubr.f32.mxu0 0.0
  %v11355 = vand.u32 %v9456, 4294901760
  %11356 = vmatmul.mubr.f32.gmra.mxu0 %v11355
  %v11357 = vpop.f32.mrf.mxu0
  %v11358 = vadd.f32 %v11085, %v11357
  %v11359 = vpop.f32.mrf.mxu0
  %11360 = vmatprep.mubr.f32.mxu0 0.0
  %v11361 = vand.u32 %v9457, 4294901760
  %11362 = vmatmul.mubr.f32.gmra.mxu0 %v11361
  %v11363 = vpop.f32.mrf.mxu0
  %v11364 = vadd.f32 %v11091, %v11363
  %v11365 = vpop.f32.mrf.mxu0
  %11366 = vmatprep.mubr.f32.mxu0 0.0
  %v11367 = vand.u32 %v9458, 4294901760
  %11368 = vmatmul.mubr.f32.gmra.mxu0 %v11367
  %v11369 = vpop.f32.mrf.mxu0
  %v11370 = vadd.f32 %v11097, %v11369
  %v11371 = vpop.f32.mrf.mxu0
  %11372 = vmatprep.mubr.f32.mxu0 0.0
  %v11373 = vand.u32 %v9459, 4294901760
  %11374 = vmatmul.mubr.f32.gmra.mxu0 %v11373
  %v11375 = vpop.f32.mrf.mxu0
  %v11376 = vadd.f32 %v11103, %v11375
  %v11377 = vpop.f32.mrf.mxu0
  %11378 = vmatprep.mubr.f32.mxu0 0.0
  %v11379 = vand.u32 %v9460, 4294901760
  %11380 = vmatmul.mubr.f32.gmra.mxu0 %v11379
  %v11381 = vpop.f32.mrf.mxu0
  %v11382 = vadd.f32 %v11109, %v11381
  %v11383 = vpop.f32.mrf.mxu0
  %11384 = vmatprep.mubr.f32.mxu0 0.0
  %v11385 = vand.u32 %v9461, 4294901760
  %11386 = vmatmul.mubr.f32.gmra.mxu0 %v11385
  %v11387 = vpop.f32.mrf.mxu0
  %v11388 = vadd.f32 %v11115, %v11387
  %v11389 = vpop.f32.mrf.mxu0
  %11390 = vmatprep.mubr.f32.mxu0 0.0
  %v11391 = vand.u32 %v9462, 4294901760
  %11392 = vmatmul.mubr.f32.gmra.mxu0 %v11391
  %v11393 = vpop.f32.mrf.mxu0
  %v11394 = vadd.f32 %v11121, %v11393
  %v11395 = vpop.f32.mrf.mxu0
  %11396 = vmatprep.mubr.f32.mxu0 0.0
  %v11397 = vand.u32 %v9463, 4294901760
  %11398 = vmatmul.mubr.f32.gmra.mxu0 %v11397
  %v11399 = vpop.f32.mrf.mxu0
  %v11400 = vadd.f32 %v11127, %v11399
  %v11401 = vpop.f32.mrf.mxu0
  %11402 = vmatprep.mubr.f32.mxu0 0.0
  %v11403 = vand.u32 %v9464, 4294901760
  %11404 = vmatmul.mubr.f32.gmra.mxu0 %v11403
  %v11405 = vpop.f32.mrf.mxu0
  %v11406 = vadd.f32 %v11133, %v11405
  %v11407 = vpop.f32.mrf.mxu0
  %11408 = vmatprep.mubr.f32.mxu0 0.0
  %v11409 = vand.u32 %v9465, 4294901760
  %11410 = vmatmul.mubr.f32.gmra.mxu0 %v11409
  %v11411 = vpop.f32.mrf.mxu0
  %v11412 = vadd.f32 %v11139, %v11411
  %v11413 = vpop.f32.mrf.mxu0
  %11414 = vmatprep.mubr.f32.mxu0 0.0
  %v11415 = vand.u32 %v9466, 4294901760
  %11416 = vmatmul.mubr.f32.gmra.mxu0 %v11415
  %v11417 = vpop.f32.mrf.mxu0
  %v11418 = vadd.f32 %v11145, %v11417
  %v11419 = vpop.f32.mrf.mxu0
  %11420 = vmatprep.mubr.f32.mxu0 0.0
  %v11421 = vand.u32 %v9467, 4294901760
  %11422 = vmatmul.mubr.f32.gmra.mxu0 %v11421
  %v11423 = vpop.f32.mrf.mxu0
  %v11424 = vadd.f32 %v11151, %v11423
  %v11425 = vpop.f32.mrf.mxu0
  %11426 = vmatprep.mubr.f32.mxu0 0.0
  %v11427 = vand.u32 %v9468, 4294901760
  %11428 = vmatmul.mubr.f32.gmra.mxu0 %v11427
  %v11429 = vpop.f32.mrf.mxu0
  %v11430 = vadd.f32 %v11157, %v11429
  %v11431 = vpop.f32.mrf.mxu0
  %11432 = vmatprep.mubr.f32.mxu0 0.0
  %v11433 = vand.u32 %v9469, 4294901760
  %11434 = vmatmul.mubr.f32.gmra.mxu0 %v11433
  %v11435 = vpop.f32.mrf.mxu0
  %v11436 = vadd.f32 %v11163, %v11435
  %v11437 = vpop.f32.mrf.mxu0
  %11438 = vmatprep.mubr.f32.mxu0 0.0
  %v11439 = vand.u32 %v9470, 4294901760
  %11440 = vmatmul.mubr.f32.gmra.mxu0 %v11439
  %v11441 = vpop.f32.mrf.mxu0
  %v11442 = vadd.f32 %v11169, %v11441
  %v11443 = vpop.f32.mrf.mxu0
  %11444 = vdwg.mxu0
  %11445 = vst.msk [vmem:[%s7 + $0x100] sm:$0xff] %vm101, %v11256
  %11446 = vst.msk [vmem:[%s7 + $0x108] sm:$0xff] %vm101, %v11262
  %11447 = vst.msk [vmem:[%s7 + $0x110] sm:$0xff] %vm101, %v11268
  %11448 = vst.msk [vmem:[%s7 + $0x118] sm:$0xff] %vm101, %v11274
  %11449 = vst.msk [vmem:[%s7 + $0x120] sm:$0xff] %vm101, %v11280
  %11450 = vst.msk [vmem:[%s7 + $0x128] sm:$0xff] %vm101, %v11286
  %11451 = vst.msk [vmem:[%s7 + $0x130] sm:$0xff] %vm101, %v11292
  %11452 = vst.msk [vmem:[%s7 + $0x138] sm:$0xff] %vm101, %v11298
  %11453 = vst.msk [vmem:[%s7 + $0x140] sm:$0xff] %vm101, %v11304
  %11454 = vst.msk [vmem:[%s7 + $0x148] sm:$0xff] %vm101, %v11310
  %11455 = vst.msk [vmem:[%s7 + $0x150] sm:$0xff] %vm101, %v11316
  %11456 = vst.msk [vmem:[%s7 + $0x158] sm:$0xff] %vm101, %v11322
  %11457 = vst.msk [vmem:[%s7 + $0x160] sm:$0xff] %vm101, %v11328
  %11458 = vst.msk [vmem:[%s7 + $0x168] sm:$0xff] %vm101, %v11334
  %11459 = vst.msk [vmem:[%s7 + $0x170] sm:$0xff] %vm101, %v11340
  %11460 = vst.msk [vmem:[%s7 + $0x178] sm:$0xff] %vm101, %v11346
  %11461 = vst.msk [vmem:[%s7 + $0x180] sm:$0xff] %vm101, %v11352
  %11462 = vst.msk [vmem:[%s7 + $0x188] sm:$0xff] %vm101, %v11358
  %11463 = vst.msk [vmem:[%s7 + $0x190] sm:$0xff] %vm101, %v11364
  %11464 = vst.msk [vmem:[%s7 + $0x198] sm:$0xff] %vm101, %v11370
  %11465 = vst.msk [vmem:[%s7 + $0x1a0] sm:$0xff] %vm101, %v11376
  %11466 = vst.msk [vmem:[%s7 + $0x1a8] sm:$0xff] %vm101, %v11382
  %11467 = vst.msk [vmem:[%s7 + $0x1b0] sm:$0xff] %vm101, %v11388
  %11468 = vst.msk [vmem:[%s7 + $0x1b8] sm:$0xff] %vm101, %v11394
  %11469 = vst.msk [vmem:[%s7 + $0x1c0] sm:$0xff] %vm101, %v11400
  %11470 = vst.msk [vmem:[%s7 + $0x1c8] sm:$0xff] %vm101, %v11406
  %11471 = vst.msk [vmem:[%s7 + $0x1d0] sm:$0xff] %vm101, %v11412
  %11472 = vst.msk [vmem:[%s7 + $0x1d8] sm:$0xff] %vm101, %v11418
  %11473 = vst.msk [vmem:[%s7 + $0x1e0] sm:$0xff] %vm101, %v11424
  %11474 = vst.msk [vmem:[%s7 + $0x1e8] sm:$0xff] %vm101, %v11430
  %11475 = vst.msk [vmem:[%s7 + $0x1f0] sm:$0xff] %vm101, %v11436
  %11476 = vst.msk [vmem:[%s7 + $0x1f8] sm:$0xff] %vm101, %v11442
  // Predicated region
  $region30: #{tpu_custom_call.1} parent=0 // pred_check
    _
  $region31: #{tpu_custom_call.1} parent=0 // pred_check_branch
    %11478 = sbr.rel (0) target = $region33
  $region32: #{tpu_custom_call.1} parent=0 // pred_region
    _
  $region33: #{tpu_custom_call.1} parent=0 // pred_fallthru
    _
  // Predicated region
  $region34: #{tpu_custom_call.1} parent=0 // pred_check
    _
  $region35: #{tpu_custom_call.1} parent=0 // pred_check_branch
    %11480 = sbr.rel (0) target = $region37
  $region36: #{tpu_custom_call.1} parent=0 // pred_region
    _
  $region37: #{tpu_custom_call.1} parent=0 // pred_fallthru
    _

</llo_original>
